<compile_context>
chip_gen: v7x
topology: tpu7x:2x2x1
jax: 0.10.0
libtpu: 0.0.40
codegen_flags: <defaults>
</compile_context>

<pallas_src>
import functools
import math

import jax
import jax.numpy as jnp
from jax import lax
from jax.experimental import pallas as pl
from jax.experimental.pallas import tpu as pltpu


def _round_up(x, m):
    return ((x + m - 1) // m) * m


_COMPILER_PARAMS = pltpu.CompilerParams(
    dimension_semantics=("parallel",),     # batch axis; megacore-split on v7x
    vmem_limit_bytes=32 * 1024 * 1024,     # safe on all generations at these tiles
)


# ----------------------------------------------------------------------------
# In-kernel helpers (channel-first flat layout: activations are (C, H*W))
# ----------------------------------------------------------------------------
def _zero_halo(buf_ref, pad_l, M, W):
    """Zero only the two (C, W+1) halo strips the shifted tap reads can touch.
    Done unconditionally every grid step (tiny) so it stays correct when the
    'parallel' batch axis is sharded across TensorCores."""
    c = buf_ref.shape[0]
    buf_ref[:, pad_l - (W + 1):pad_l] = jnp.zeros((c, W + 1), buf_ref.dtype)
    buf_ref[:, pad_l + M:pad_l + M + W + 1] = jnp.zeros((c, W + 1), buf_ref.dtype)


def _col_masks(W, M):
    """Left/right image-edge masks (1, M) f32 for the dx=-1 / dx=+1 taps."""
    col = lax.broadcasted_iota(jnp.int32, (1, M), 1) % W
    return ((col != 0).astype(jnp.float32), (col != W - 1).astype(jnp.float32))


def _conv3x3_flat(buf_ref, x_val, w, b, mask_l, mask_r, *, H, W, pad_l, relu):
    """3x3 'same' conv, channel-first flat layout.

    buf_ref : (C_buf, pad_l + M + W + 1) bf16 VMEM scratch, halos pre-zeroed.
    x_val   : (Cin, M) activation (any float dtype), M = H*W on lanes.
    w       : (9*Cout, Cin) bf16, rows ordered (tap = dy*3+dx, cout).
    b       : (Cout, 1) f32.
    Returns (Cout, M) f32.

    out(h,w) = sum_{dy,dx} w[dy,dx] @ x(h+dy-1, w+dx-1); the (dy,dx) source is
    a flat shift by (dy-1)*W + (dx-1) of the haloed buffer; wrong-row pixels
    pulled in by the dx shifts are killed by the column masks (masking the
    output column equals masking the input column of the GEMM).
    """
    c_in, M = x_val.shape
    c_out = w.shape[0] // 9

    # Lane-aligned, lane-dense interior write (the only store of x).
    buf_ref[0:c_in, pad_l:pad_l + M] = x_val.astype(buf_ref.dtype)

    acc = None
    for dx in range(3):
        part = None
        for dy in range(3):
            shift = (dy - 1) * W + (dx - 1)
            slab = buf_ref[0:c_in, pad_l + shift:pad_l + shift + M]   # (Cin, M)
            tap = dy * 3 + dx
            t = jnp.dot(w[tap * c_out:(tap + 1) * c_out, :], slab,
                        preferred_element_type=jnp.float32)
            part = t if part is None else part + t
        if dx == 0:
            part = part * mask_l
        elif dx == 2:
            part = part * mask_r
        acc = part if acc is None else acc + part

    acc = acc + b
    if relu:
        acc = jnp.maximum(acc, 0.0)
    return acc


# ----------------------------------------------------------------------------
# Kernel A: fused head + all ResBlocks + body-tail conv + long skip
# ----------------------------------------------------------------------------
def _edsr_body_kernel(x_ref, sub_ref, wh_ref, bh_ref, wb_ref, bb_ref,
                      wt_ref, bt_ref, o_ref, buf_ref,
                      *, H, W, pad_l, n_blocks, n_feats, res_scale):
    M = H * W
    C = n_feats
    _zero_halo(buf_ref, pad_l, M, W)
    mask_l, mask_r = _col_masks(W, M)

    # Head conv; ShiftMean 'sub': mean subtracted here, 1/std folded in weights.
    x = x_ref[0].astype(jnp.float32) - sub_ref[...]
    h = _conv3x3_flat(buf_ref, x, wh_ref[...], bh_ref[...], mask_l, mask_r,
                      H=H, W=W, pad_l=pad_l, relu=False)

    # ResBlocks: conv + ReLU + conv, *res_scale, + identity.  Stacked weights,
    # activation carried as a value; it never leaves VMEM.
    def blk_body(i, act):
        wblk = wb_ref[i]                           # (18*C, C) bf16
        bblk = bb_ref[i]                           # (2*C, 1)  f32
        t = _conv3x3_flat(buf_ref, act, wblk[0:9 * C], bblk[0:C], mask_l,
                          mask_r, H=H, W=W, pad_l=pad_l, relu=True)
        t = _conv3x3_flat(buf_ref, t, wblk[9 * C:18 * C], bblk[C:2 * C],
                          mask_l, mask_r, H=H, W=W, pad_l=pad_l, relu=False)
        return act + t * res_scale

    act = lax.fori_loop(0, n_blocks, blk_body, h)

    # Body-tail conv + long skip.
    out = _conv3x3_flat(buf_ref, act, wt_ref[...], bt_ref[...], mask_l, mask_r,
                        H=H, W=W, pad_l=pad_l, relu=False) + h
    o_ref[0] = out.astype(o_ref.dtype)


def edsr_body(x_cf, sub, wh, bh, wb, bb, wt, bt, *, H, W, res_scale):
    """x_cf: (N, Cin, H*W) f32.  Returns (N, n_feats, H*W) bf16."""
    N, c_in, M = x_cf.shape
    assert M == H * W
    n_blocks = wb.shape[0]
    n_feats = wt.shape[-1]
    pad_l = _round_up(W + 1, 128)
    buf_w = pad_l + M + W + 1
    c_buf = max(c_in, n_feats)

    kernel = functools.partial(_edsr_body_kernel, H=H, W=W, pad_l=pad_l,
                               n_blocks=n_blocks, n_feats=n_feats,
                               res_scale=float(res_scale))
    return pl.pallas_call(
        kernel,
        out_shape=jax.ShapeDtypeStruct((N, n_feats, M), jnp.bfloat16),
        grid_spec=pltpu.PrefetchScalarGridSpec(
            num_scalar_prefetch=0,
            grid=(N,),
            in_specs=[
                pl.BlockSpec((1, c_in, M), lambda n: (n, 0, 0)),
                pl.BlockSpec(sub.shape, lambda n: (0, 0)),
                pl.BlockSpec(wh.shape, lambda n: (0, 0)),
                pl.BlockSpec(bh.shape, lambda n: (0, 0)),
                pl.BlockSpec(wb.shape, lambda n: (0, 0, 0)),
                pl.BlockSpec(bb.shape, lambda n: (0, 0, 0)),
                pl.BlockSpec(wt.shape, lambda n: (0, 0)),
                pl.BlockSpec(bt.shape, lambda n: (0, 0)),
            ],
            out_specs=pl.BlockSpec((1, n_feats, M), lambda n: (n, 0, 0)),
            scratch_shapes=[pltpu.VMEM((c_buf, buf_w), jnp.bfloat16)],
        ),
        compiler_params=_COMPILER_PARAMS,
    )(x_cf, sub, wh, bh, wb, bb, wt, bt)


# ----------------------------------------------------------------------------
# Kernel B: standalone 3x3 conv (upsampler convs and the tail conv)
# ----------------------------------------------------------------------------
def _conv3x3_kernel(x_ref, w_ref, b_ref, o_ref, buf_ref, *, H, W, pad_l, relu):
    M = H * W
    _zero_halo(buf_ref, pad_l, M, W)
    mask_l, mask_r = _col_masks(W, M)
    out = _conv3x3_flat(buf_ref, x_ref[0], w_ref[...], b_ref[...], mask_l,
                        mask_r, H=H, W=W, pad_l=pad_l, relu=relu)
    o_ref[0] = out.astype(o_ref.dtype)


def conv3x3(x_cf, w, b, *, H, W, relu=False, out_dtype=jnp.bfloat16):
    """x_cf: (N, Cin, H*W); w: (9*Cout, Cin) bf16; b: (Cout, 1) f32."""
    N, c_in, M = x_cf.shape
    assert M == H * W
    c_out = w.shape[0] // 9
    pad_l = _round_up(W + 1, 128)
    buf_w = pad_l + M + W + 1

    kernel = functools.partial(_conv3x3_kernel, H=H, W=W, pad_l=pad_l, relu=relu)
    return pl.pallas_call(
        kernel,
        out_shape=jax.ShapeDtypeStruct((N, c_out, M), out_dtype),
        grid_spec=pltpu.PrefetchScalarGridSpec(
            num_scalar_prefetch=0,
            grid=(N,),
            in_specs=[
                pl.BlockSpec((1, c_in, M), lambda n: (n, 0, 0)),
                pl.BlockSpec(w.shape, lambda n: (0, 0)),
                pl.BlockSpec(b.shape, lambda n: (0, 0)),
            ],
            out_specs=pl.BlockSpec((1, c_out, M), lambda n: (n, 0, 0)),
            scratch_shapes=[pltpu.VMEM((c_in, buf_w), jnp.bfloat16)],
        ),
        compiler_params=_COMPILER_PARAMS,
    )(x_cf, w, b)


# ----------------------------------------------------------------------------
# PixelShuffle in channel-first-flat layout (pure XLA layout op between calls)
# ----------------------------------------------------------------------------
def pixel_shuffle_cf(x, r, H, W):
    """out[n, c, (h*r+i)*(W*r) + (w*r+j)] = x[n, c*r*r + i*r + j, h*W + w]."""
    N, crr, M = x.shape
    C = crr // (r * r)
    x = x.reshape(N, C, r, r, H, W)
    x = jnp.transpose(x, (0, 1, 4, 2, 5, 3))          # (N, C, H, r, W, r)
    return x.reshape(N, C, (H * r) * (W * r))


# ----------------------------------------------------------------------------
# Parameter init (deterministic), ShiftMean folding and weight packing
# ----------------------------------------------------------------------------
def init_edsr_params(key, in_feats, n_feats, n_res_blocks, upscale, mean, std):
    def conv_params(k, cin, cout):
        kw, kb = jax.random.split(k)
        scale = 1.0 / math.sqrt(cin * 9)
        w = jax.random.normal(kw, (3, 3, cin, cout), jnp.float32) * scale
        b = jax.random.normal(kb, (cout,), jnp.float32) * 0.01
        return w, b

    pow2 = (upscale & (upscale - 1)) == 0
    n_up = int(math.log2(upscale)) if pow2 else 1
    keys = iter(jax.random.split(key, 3 + 2 * n_res_blocks + n_up))

    raw = {
        "mean": jnp.asarray(mean, jnp.float32),
        "std": jnp.asarray(std, jnp.float32),
        "head": conv_params(next(keys), in_feats, n_feats),
        "blocks": [(conv_params(next(keys), n_feats, n_feats),
                    conv_params(next(keys), n_feats, n_feats))
                   for _ in range(n_res_blocks)],
        "body_tail": conv_params(next(keys), n_feats, n_feats),
    }
    if pow2:
        raw["up"] = [conv_params(next(keys), n_feats, 4 * n_feats)
                     for _ in range(n_up)]
        raw["up_factors"] = tuple([2] * n_up)
    else:
        raw["up"] = [conv_params(next(keys), n_feats, upscale * upscale * n_feats)]
        raw["up_factors"] = (upscale,)
    raw["tail"] = conv_params(next(keys), n_feats, in_feats)
    return raw


def pack_for_inference(raw):
    """Fold ShiftMean into head/tail and pack weights for the kernels:
    (3,3,Cin,Cout) f32 -> (9*Cout, Cin) bf16 (rows = tap-major, then Cout);
    bias -> (Cout, 1) f32.  ResBlock weights are stacked for the in-kernel
    fori_loop: (n_blocks, 18*C, C) / (n_blocks, 2*C, 1)."""
    mean, std = raw["mean"], raw["std"]

    def pack(wb, in_scale=None, out_scale=None, out_shift=None):
        w, b = wb
        if in_scale is not None:
            w = w * in_scale.reshape(1, 1, -1, 1)
        if out_scale is not None:
            w = w * out_scale.reshape(1, 1, 1, -1)
            b = b * out_scale
        if out_shift is not None:
            b = b + out_shift
        kh, kw, cin, cout = w.shape
        wp = jnp.transpose(w, (0, 1, 3, 2)).reshape(kh * kw * cout, cin)
        return wp.astype(jnp.bfloat16), b.reshape(cout, 1).astype(jnp.float32)

    blk_w, blk_b = [], []
    for (c1, c2) in raw["blocks"]:
        w1, b1 = pack(c1)
        w2, b2 = pack(c2)
        blk_w.append(jnp.concatenate([w1, w2], axis=0))
        blk_b.append(jnp.concatenate([b1, b2], axis=0))

    return {
        "sub_mean": mean.reshape(-1, 1).astype(jnp.float32),      # fused (x - mean)
        "head": pack(raw["head"], in_scale=1.0 / std),            # 1/std folded in
        "blk_w": jnp.stack(blk_w),
        "blk_b": jnp.stack(blk_b),
        "body_tail": pack(raw["body_tail"]),
        "up": [pack(wb) for wb in raw["up"]],
        "tail": pack(raw["tail"], out_scale=std, out_shift=mean),  # *std + mean
    }


# ----------------------------------------------------------------------------
# Forward pass (matches EDSR.forward) and a pure-JAX reference
# ----------------------------------------------------------------------------
def edsr_forward(params, x_nchw, *, up_factors):
    N, c_in, H, W = x_nchw.shape
    x = x_nchw.astype(jnp.float32).reshape(N, c_in, H * W)       # free reshape

    hw_, hb_ = params["head"]
    tw_, tb_ = params["body_tail"]
    res = edsr_body(x, params["sub_mean"], hw_, hb_,
                    params["blk_w"], params["blk_b"], tw_, tb_,
                    H=H, W=W, res_scale=0.1)                     # (N, C, M) bf16

    y, cur_h, cur_w = res, H, W
    for r, (uw, ub) in zip(up_factors, params["up"]):
        y = conv3x3(y, uw, ub, H=cur_h, W=cur_w)                 # bf16 activations
        y = pixel_shuffle_cf(y, r, cur_h, cur_w)                 # XLA layout op
        cur_h, cur_w = cur_h * r, cur_w * r

    tw, tb = params["tail"]
    y = conv3x3(y, tw, tb, H=cur_h, W=cur_w, out_dtype=jnp.float32)
    return y.reshape(N, c_in, cur_h, cur_w)                      # free -> NCHW


def edsr_reference(raw, x_nchw, up_factors):
    """Pure-JAX f32 reference matching the PyTorch module semantics."""
    mean = raw["mean"].reshape(1, -1, 1, 1)
    std = raw["std"].reshape(1, -1, 1, 1)

    def conv(x, wb):
        w, b = wb
        y = lax.conv_general_dilated(
            x, w, window_strides=(1, 1), padding="SAME",
            dimension_numbers=("NCHW", "HWIO", "NCHW"))
        return y + b.reshape(1, -1, 1, 1)

    x = (x_nchw.astype(jnp.float32) - mean) / std
    h = conv(x, raw["head"])
    res = h
    for c1, c2 in raw["blocks"]:
        t = jax.nn.relu(conv(res, c1))
        t = conv(t, c2)
        res = res + 0.1 * t
    res = conv(res, raw["body_tail"]) + h
    y = res
    for r, wb in zip(up_factors, raw["up"]):
        y = conv(y, wb)
        N, crr, hh, ww = y.shape
        c = crr // (r * r)
        y = y.reshape(N, c, r, r, hh, ww).transpose(0, 1, 4, 2, 5, 3)
        y = y.reshape(N, c, hh * r, ww * r)
    y = conv(y, raw["tail"])
    return y * std + mean


# ----------------------------------------------------------------------------
if __name__ == "__main__":
    in_feats, n_feats, n_res_blocks, upscale = 4, 32, 2, 2
    N, H, W = 2, 16, 16
    mean = [0.1, 0.2, 0.3, 0.4]
    std = [1.0, 0.9, 1.1, 1.2]

    key = jax.random.PRNGKey(0)
    kx, kp = jax.random.split(key)
    x = jax.random.normal(kx, (N, in_feats, H, W), jnp.float32)   # NCHW like PyTorch

    raw = init_edsr_params(kp, in_feats, n_feats, n_res_blocks, upscale, mean, std)
    params = pack_for_inference(raw)

    fwd = jax.jit(functools.partial(edsr_forward, up_factors=raw["up_factors"]))
    out = jax.block_until_ready(fwd(params, x))

    expected = (N, in_feats, H * upscale, W * upscale)
    assert out.shape == expected, (out.shape, expected)

    # Loose-tolerance numerics check vs. a pure-JAX f32 reference (kernels use
    # bf16 weights/activations with f32 accumulation).
    ref = jax.block_until_ready(edsr_reference(raw, x, raw["up_factors"]))
    err = float(jnp.max(jnp.abs(out - ref)))
    ref_scale = float(jnp.max(jnp.abs(ref)))
    assert err <= 5e-2 * ref_scale + 1e-2, (err, ref_scale)

    print("KERNEL_OK")
</pallas_src>

<mosaic_0001>
module attributes {stable_mosaic.version = 11 : i64} {
  func.func @_edsr_body_kernel(%arg0: i32, %arg1: memref<1x4x256xf32, #tpu.memory_space<vmem>>, %arg2: memref<4x1xf32, #tpu.memory_space<vmem>>, %arg3: memref<288x4xbf16, #tpu.memory_space<vmem>>, %arg4: memref<32x1xf32, #tpu.memory_space<vmem>>, %arg5: memref<2x576x32xbf16, #tpu.memory_space<vmem>>, %arg6: memref<2x64x1xf32, #tpu.memory_space<vmem>>, %arg7: memref<288x32xbf16, #tpu.memory_space<vmem>>, %arg8: memref<32x1xf32, #tpu.memory_space<vmem>>, %arg9: memref<1x32x256xbf16, #tpu.memory_space<vmem>>, %arg10: memref<32x401xbf16, #tpu.memory_space<vmem>>) attributes {dimension_semantics = [#tpu.dimension_semantics<parallel>], iteration_bounds = array<i64: 2>, scalar_prefetch = 0 : i64, scratch_operands = 1 : i64, tpu.core_type = #tpu.core_type<tc>, window_params = [{transform_indices = @transform_0, window_bounds = array<i64: 1, 4, 256>}, {pipeline_mode = #tpu.pipeline_mode<synchronous>, transform_indices = @transform_1, window_bounds = array<i64: 4, 1>}, {pipeline_mode = #tpu.pipeline_mode<synchronous>, transform_indices = @transform_2, window_bounds = array<i64: 288, 4>}, {pipeline_mode = #tpu.pipeline_mode<synchronous>, transform_indices = @transform_3, window_bounds = array<i64: 32, 1>}, {pipeline_mode = #tpu.pipeline_mode<synchronous>, transform_indices = @transform_4, window_bounds = array<i64: 2, 576, 32>}, {pipeline_mode = #tpu.pipeline_mode<synchronous>, transform_indices = @transform_5, window_bounds = array<i64: 2, 64, 1>}, {pipeline_mode = #tpu.pipeline_mode<synchronous>, transform_indices = @transform_6, window_bounds = array<i64: 288, 32>}, {pipeline_mode = #tpu.pipeline_mode<synchronous>, transform_indices = @transform_7, window_bounds = array<i64: 32, 1>}, {transform_indices = @transform_8, window_bounds = array<i64: 1, 32, 256>}]} {
    %cst = arith.constant 0.000000e+00 : bf16
    %0 = vector.broadcast %cst : bf16 to vector<32x17xbf16>
    %c0 = arith.constant 0 : index
    %c111 = arith.constant 111 : index
    %1 = vector.load %arg10[%c0, %c111] : memref<32x401xbf16, #tpu.memory_space<vmem>>, vector<32x17xbf16>
    tpu.vector_store %arg10[%c0, %c111], %0 {strides = array<i32>} : memref<32x401xbf16, #tpu.memory_space<vmem>>, vector<32x17xbf16>,
    %cst_0 = arith.constant 0.000000e+00 : bf16
    %2 = vector.broadcast %cst_0 : bf16 to vector<32x17xbf16>
    %c0_1 = arith.constant 0 : index
    %c384 = arith.constant 384 : index
    %3 = vector.load %arg10[%c0_1, %c384] : memref<32x401xbf16, #tpu.memory_space<vmem>>, vector<32x17xbf16>
    tpu.vector_store %arg10[%c0_1, %c384], %2 {strides = array<i32>} : memref<32x401xbf16, #tpu.memory_space<vmem>>, vector<32x17xbf16>,
    %4 = tpu.iota {dimensions = array<i32: 1>} : vector<1x256xi32>
    %c16_i32 = arith.constant 16 : i32
    %c0_i32 = arith.constant 0 : i32
    %5 = arith.cmpi eq, %c16_i32, %c0_i32 : i32
    %c1_i32 = arith.constant 1 : i32
    %6 = arith.select %5, %c1_i32, %c16_i32 : i32
    %7 = vector.broadcast %6 : i32 to vector<1x256xi32>
    %8 = arith.remsi %4, %7 : vector<1x256xi32>
    %c0_i32_2 = arith.constant 0 : i32
    %9 = vector.broadcast %c0_i32_2 : i32 to vector<1x256xi32>
    %10 = arith.cmpi ne, %8, %9 : vector<1x256xi32>
    %c0_i32_3 = arith.constant 0 : i32
    %11 = vector.broadcast %c0_i32_3 : i32 to vector<1x256xi32>
    %12 = arith.cmpi slt, %8, %11 : vector<1x256xi32>
    %c0_i32_4 = arith.constant 0 : i32
    %13 = arith.cmpi slt, %6, %c0_i32_4 : i32
    %14 = vector.broadcast %13 : i1 to vector<1x256xi1>
    %15 = vector.broadcast %14 : vector<1x256xi1> to vector<1x256xi1>
    %16 = arith.xori %12, %15 : vector<1x256xi1>
    %17 = arith.andi %16, %10 : vector<1x256xi1>
    %18 = vector.broadcast %6 : i32 to vector<1x256xi32>
    %19 = arith.addi %8, %18 : vector<1x256xi32>
    %20 = arith.select %17, %19, %8 : vector<1x256xi1>, vector<1x256xi32>
    %c0_i32_5 = arith.constant 0 : i32
    %21 = vector.broadcast %c0_i32_5 : i32 to vector<1x256xi32>
    %22 = arith.cmpi ne, %20, %21 : vector<1x256xi32>
    %23 = arith.extui %22 : vector<1x256xi1> to vector<1x256xi32>
    %24 = arith.sitofp %23 : vector<1x256xi32> to vector<1x256xf32>
    %c15_i32 = arith.constant 15 : i32
    %25 = vector.broadcast %c15_i32 : i32 to vector<1x256xi32>
    %26 = arith.cmpi ne, %20, %25 : vector<1x256xi32>
    %27 = arith.extui %26 : vector<1x256xi1> to vector<1x256xi32>
    %28 = arith.sitofp %27 : vector<1x256xi32> to vector<1x256xf32>
    %c0_6 = arith.constant 0 : index
    %c0_7 = arith.constant 0 : index
    %c0_8 = arith.constant 0 : index
    %29 = vector.load %arg1[%c0_6, %c0_7, %c0_8] : memref<1x4x256xf32, #tpu.memory_space<vmem>>, vector<1x4x256xf32>
    %30 = vector.shape_cast %29 : vector<1x4x256xf32> to vector<4x256xf32>
    %c0_9 = arith.constant 0 : index
    %c0_10 = arith.constant 0 : index
    %31 = vector.load %arg2[%c0_9, %c0_10] : memref<4x1xf32, #tpu.memory_space<vmem>>, vector<4x1xf32>
    %32 = vector.broadcast %31 : vector<4x1xf32> to vector<4x256xf32>
    %33 = arith.subf %30, %32 : vector<4x256xf32>
    %c0_11 = arith.constant 0 : index
    %c0_12 = arith.constant 0 : index
    %34 = vector.load %arg3[%c0_11, %c0_12] : memref<288x4xbf16, #tpu.memory_space<vmem>>, vector<288x4xbf16>
    %c0_13 = arith.constant 0 : index
    %c0_14 = arith.constant 0 : index
    %35 = vector.load %arg4[%c0_13, %c0_14] : memref<32x1xf32, #tpu.memory_space<vmem>>, vector<32x1xf32>
    %36 = arith.truncf %33 : vector<4x256xf32> to vector<4x256xbf16>
    %c0_15 = arith.constant 0 : index
    %c128 = arith.constant 128 : index
    %37 = vector.load %arg10[%c0_15, %c128] : memref<32x401xbf16, #tpu.memory_space<vmem>>, vector<4x256xbf16>
    tpu.vector_store %arg10[%c0_15, %c128], %36 {strides = array<i32>} : memref<32x401xbf16, #tpu.memory_space<vmem>>, vector<4x256xbf16>,
    %c0_16 = arith.constant 0 : index
    %c111_17 = arith.constant 111 : index
    %38 = vector.load %arg10[%c0_16, %c111_17] : memref<32x401xbf16, #tpu.memory_space<vmem>>, vector<4x256xbf16>
    %39 = vector.extract_strided_slice %34 {offsets = [0, 0], sizes = [32, 4], strides = [1, 1]} : vector<288x4xbf16> to vector<32x4xbf16>
    %cst_18 = arith.constant dense<0.000000e+00> : vector<32x256xf32>
    %40 = tpu.matmul %39, %38, %cst_18 {dimension_numbers = #tpu.dot_dimension_numbers<[1], [0], [0], [1], [0, 0, 1, 1], [], []>} : vector<32x4xbf16>, vector<4x256xbf16>, vector<32x256xf32> -> vector<32x256xf32>
    %c0_19 = arith.constant 0 : index
    %c127 = arith.constant 127 : index
    %41 = vector.load %arg10[%c0_19, %c127] : memref<32x401xbf16, #tpu.memory_space<vmem>>, vector<4x256xbf16>
    %42 = vector.extract_strided_slice %34 {offsets = [96, 0], sizes = [32, 4], strides = [1, 1]} : vector<288x4xbf16> to vector<32x4xbf16>
    %cst_20 = arith.constant dense<0.000000e+00> : vector<32x256xf32>
    %43 = tpu.matmul %42, %41, %cst_20 {dimension_numbers = #tpu.dot_dimension_numbers<[1], [0], [0], [1], [0, 0, 1, 1], [], []>} : vector<32x4xbf16>, vector<4x256xbf16>, vector<32x256xf32> -> vector<32x256xf32>
    %44 = arith.addf %40, %43 : vector<32x256xf32>
    %c0_21 = arith.constant 0 : index
    %c143 = arith.constant 143 : index
    %45 = vector.load %arg10[%c0_21, %c143] : memref<32x401xbf16, #tpu.memory_space<vmem>>, vector<4x256xbf16>
    %46 = vector.extract_strided_slice %34 {offsets = [192, 0], sizes = [32, 4], strides = [1, 1]} : vector<288x4xbf16> to vector<32x4xbf16>
    %cst_22 = arith.constant dense<0.000000e+00> : vector<32x256xf32>
    %47 = tpu.matmul %46, %45, %cst_22 {dimension_numbers = #tpu.dot_dimension_numbers<[1], [0], [0], [1], [0, 0, 1, 1], [], []>} : vector<32x4xbf16>, vector<4x256xbf16>, vector<32x256xf32> -> vector<32x256xf32>
    %48 = arith.addf %44, %47 : vector<32x256xf32>
    %49 = vector.broadcast %24 : vector<1x256xf32> to vector<32x256xf32>
    %50 = arith.mulf %48, %49 : vector<32x256xf32>
    %c0_23 = arith.constant 0 : index
    %c112 = arith.constant 112 : index
    %51 = vector.load %arg10[%c0_23, %c112] : memref<32x401xbf16, #tpu.memory_space<vmem>>, vector<4x256xbf16>
    %52 = vector.extract_strided_slice %34 {offsets = [32, 0], sizes = [32, 4], strides = [1, 1]} : vector<288x4xbf16> to vector<32x4xbf16>
    %cst_24 = arith.constant dense<0.000000e+00> : vector<32x256xf32>
    %53 = tpu.matmul %52, %51, %cst_24 {dimension_numbers = #tpu.dot_dimension_numbers<[1], [0], [0], [1], [0, 0, 1, 1], [], []>} : vector<32x4xbf16>, vector<4x256xbf16>, vector<32x256xf32> -> vector<32x256xf32>
    %c0_25 = arith.constant 0 : index
    %c128_26 = arith.constant 128 : index
    %54 = vector.load %arg10[%c0_25, %c128_26] : memref<32x401xbf16, #tpu.memory_space<vmem>>, vector<4x256xbf16>
    %55 = vector.extract_strided_slice %34 {offsets = [128, 0], sizes = [32, 4], strides = [1, 1]} : vector<288x4xbf16> to vector<32x4xbf16>
    %cst_27 = arith.constant dense<0.000000e+00> : vector<32x256xf32>
    %56 = tpu.matmul %55, %54, %cst_27 {dimension_numbers = #tpu.dot_dimension_numbers<[1], [0], [0], [1], [0, 0, 1, 1], [], []>} : vector<32x4xbf16>, vector<4x256xbf16>, vector<32x256xf32> -> vector<32x256xf32>
    %57 = arith.addf %53, %56 : vector<32x256xf32>
    %c0_28 = arith.constant 0 : index
    %c144 = arith.constant 144 : index
    %58 = vector.load %arg10[%c0_28, %c144] : memref<32x401xbf16, #tpu.memory_space<vmem>>, vector<4x256xbf16>
    %59 = vector.extract_strided_slice %34 {offsets = [224, 0], sizes = [32, 4], strides = [1, 1]} : vector<288x4xbf16> to vector<32x4xbf16>
    %cst_29 = arith.constant dense<0.000000e+00> : vector<32x256xf32>
    %60 = tpu.matmul %59, %58, %cst_29 {dimension_numbers = #tpu.dot_dimension_numbers<[1], [0], [0], [1], [0, 0, 1, 1], [], []>} : vector<32x4xbf16>, vector<4x256xbf16>, vector<32x256xf32> -> vector<32x256xf32>
    %61 = arith.addf %57, %60 : vector<32x256xf32>
    %62 = arith.addf %50, %61 : vector<32x256xf32>
    %c0_30 = arith.constant 0 : index
    %c113 = arith.constant 113 : index
    %63 = vector.load %arg10[%c0_30, %c113] : memref<32x401xbf16, #tpu.memory_space<vmem>>, vector<4x256xbf16>
    %64 = vector.extract_strided_slice %34 {offsets = [64, 0], sizes = [32, 4], strides = [1, 1]} : vector<288x4xbf16> to vector<32x4xbf16>
    %cst_31 = arith.constant dense<0.000000e+00> : vector<32x256xf32>
    %65 = tpu.matmul %64, %63, %cst_31 {dimension_numbers = #tpu.dot_dimension_numbers<[1], [0], [0], [1], [0, 0, 1, 1], [], []>} : vector<32x4xbf16>, vector<4x256xbf16>, vector<32x256xf32> -> vector<32x256xf32>
    %c0_32 = arith.constant 0 : index
    %c129 = arith.constant 129 : index
    %66 = vector.load %arg10[%c0_32, %c129] : memref<32x401xbf16, #tpu.memory_space<vmem>>, vector<4x256xbf16>
    %67 = vector.extract_strided_slice %34 {offsets = [160, 0], sizes = [32, 4], strides = [1, 1]} : vector<288x4xbf16> to vector<32x4xbf16>
    %cst_33 = arith.constant dense<0.000000e+00> : vector<32x256xf32>
    %68 = tpu.matmul %67, %66, %cst_33 {dimension_numbers = #tpu.dot_dimension_numbers<[1], [0], [0], [1], [0, 0, 1, 1], [], []>} : vector<32x4xbf16>, vector<4x256xbf16>, vector<32x256xf32> -> vector<32x256xf32>
    %69 = arith.addf %65, %68 : vector<32x256xf32>
    %c0_34 = arith.constant 0 : index
    %c145 = arith.constant 145 : index
    %70 = vector.load %arg10[%c0_34, %c145] : memref<32x401xbf16, #tpu.memory_space<vmem>>, vector<4x256xbf16>
    %71 = vector.extract_strided_slice %34 {offsets = [256, 0], sizes = [32, 4], strides = [1, 1]} : vector<288x4xbf16> to vector<32x4xbf16>
    %cst_35 = arith.constant dense<0.000000e+00> : vector<32x256xf32>
    %72 = tpu.matmul %71, %70, %cst_35 {dimension_numbers = #tpu.dot_dimension_numbers<[1], [0], [0], [1], [0, 0, 1, 1], [], []>} : vector<32x4xbf16>, vector<4x256xbf16>, vector<32x256xf32> -> vector<32x256xf32>
    %73 = arith.addf %69, %72 : vector<32x256xf32>
    %74 = vector.broadcast %28 : vector<1x256xf32> to vector<32x256xf32>
    %75 = arith.mulf %73, %74 : vector<32x256xf32>
    %76 = arith.addf %62, %75 : vector<32x256xf32>
    %77 = vector.broadcast %35 : vector<32x1xf32> to vector<32x256xf32>
    %78 = arith.addf %76, %77 : vector<32x256xf32>
    %c0_i32_36 = arith.constant 0 : i32
    %c2_i32 = arith.constant 2 : i32
    %79 = arith.addi %c0_i32_36, %c2_i32 : i32
    %c1_i32_37 = arith.constant 1 : i32
    %80 = scf.for %arg11 = %c0_i32_36 to %79 step %c1_i32_37 iter_args(%arg12 = %78) -> (vector<32x256xf32>)  : i32 {
      %131 = arith.index_cast %arg11 : i32 to index
      %c0_75 = arith.constant 0 : index
      %c0_76 = arith.constant 0 : index
      %132 = vector.load %arg5[%131, %c0_75, %c0_76] : memref<2x576x32xbf16, #tpu.memory_space<vmem>>, vector<1x576x32xbf16>
      %133 = vector.shape_cast %132 : vector<1x576x32xbf16> to vector<576x32xbf16>
      %134 = arith.index_cast %arg11 : i32 to index
      %c0_77 = arith.constant 0 : index
      %c0_78 = arith.constant 0 : index
      %135 = vector.load %arg6[%134, %c0_77, %c0_78] : memref<2x64x1xf32, #tpu.memory_space<vmem>>, vector<1x64x1xf32>
      %136 = vector.shape_cast %135 : vector<1x64x1xf32> to vector<64x1xf32>
      %137 = vector.extract_strided_slice %133 {offsets = [0, 0], sizes = [288, 32], strides = [1, 1]} : vector<576x32xbf16> to vector<288x32xbf16>
      %138 = vector.extract_strided_slice %136 {offsets = [0, 0], sizes = [32, 1], strides = [1, 1]} : vector<64x1xf32> to vector<32x1xf32>
      %139 = arith.truncf %arg12 : vector<32x256xf32> to vector<32x256xbf16>
      %c0_79 = arith.constant 0 : index
      %c128_80 = arith.constant 128 : index
      %140 = vector.load %arg10[%c0_79, %c128_80] : memref<32x401xbf16, #tpu.memory_space<vmem>>, vector<32x256xbf16>
      tpu.vector_store %arg10[%c0_79, %c128_80], %139 {strides = array<i32>} : memref<32x401xbf16, #tpu.memory_space<vmem>>, vector<32x256xbf16>,
      %c0_81 = arith.constant 0 : index
      %c111_82 = arith.constant 111 : index
      %141 = vector.load %arg10[%c0_81, %c111_82] : memref<32x401xbf16, #tpu.memory_space<vmem>>, vector<32x256xbf16>
      %142 = vector.extract_strided_slice %137 {offsets = [0, 0], sizes = [32, 32], strides = [1, 1]} : vector<288x32xbf16> to vector<32x32xbf16>
      %cst_83 = arith.constant dense<0.000000e+00> : vector<32x256xf32>
      %143 = tpu.matmul %142, %141, %cst_83 {dimension_numbers = #tpu.dot_dimension_numbers<[1], [0], [0], [1], [0, 0, 1, 1], [], []>} : vector<32x32xbf16>, vector<32x256xbf16>, vector<32x256xf32> -> vector<32x256xf32>
      %c0_84 = arith.constant 0 : index
      %c127_85 = arith.constant 127 : index
      %144 = vector.load %arg10[%c0_84, %c127_85] : memref<32x401xbf16, #tpu.memory_space<vmem>>, vector<32x256xbf16>
      %145 = vector.extract_strided_slice %137 {offsets = [96, 0], sizes = [32, 32], strides = [1, 1]} : vector<288x32xbf16> to vector<32x32xbf16>
      %cst_86 = arith.constant dense<0.000000e+00> : vector<32x256xf32>
      %146 = tpu.matmul %145, %144, %cst_86 {dimension_numbers = #tpu.dot_dimension_numbers<[1], [0], [0], [1], [0, 0, 1, 1], [], []>} : vector<32x32xbf16>, vector<32x256xbf16>, vector<32x256xf32> -> vector<32x256xf32>
      %147 = arith.addf %143, %146 : vector<32x256xf32>
      %c0_87 = arith.constant 0 : index
      %c143_88 = arith.constant 143 : index
      %148 = vector.load %arg10[%c0_87, %c143_88] : memref<32x401xbf16, #tpu.memory_space<vmem>>, vector<32x256xbf16>
      %149 = vector.extract_strided_slice %137 {offsets = [192, 0], sizes = [32, 32], strides = [1, 1]} : vector<288x32xbf16> to vector<32x32xbf16>
      %cst_89 = arith.constant dense<0.000000e+00> : vector<32x256xf32>
      %150 = tpu.matmul %149, %148, %cst_89 {dimension_numbers = #tpu.dot_dimension_numbers<[1], [0], [0], [1], [0, 0, 1, 1], [], []>} : vector<32x32xbf16>, vector<32x256xbf16>, vector<32x256xf32> -> vector<32x256xf32>
      %151 = arith.addf %147, %150 : vector<32x256xf32>
      %152 = vector.broadcast %24 : vector<1x256xf32> to vector<32x256xf32>
      %153 = arith.mulf %151, %152 : vector<32x256xf32>
      %c0_90 = arith.constant 0 : index
      %c112_91 = arith.constant 112 : index
      %154 = vector.load %arg10[%c0_90, %c112_91] : memref<32x401xbf16, #tpu.memory_space<vmem>>, vector<32x256xbf16>
      %155 = vector.extract_strided_slice %137 {offsets = [32, 0], sizes = [32, 32], strides = [1, 1]} : vector<288x32xbf16> to vector<32x32xbf16>
      %cst_92 = arith.constant dense<0.000000e+00> : vector<32x256xf32>
      %156 = tpu.matmul %155, %154, %cst_92 {dimension_numbers = #tpu.dot_dimension_numbers<[1], [0], [0], [1], [0, 0, 1, 1], [], []>} : vector<32x32xbf16>, vector<32x256xbf16>, vector<32x256xf32> -> vector<32x256xf32>
      %c0_93 = arith.constant 0 : index
      %c128_94 = arith.constant 128 : index
      %157 = vector.load %arg10[%c0_93, %c128_94] : memref<32x401xbf16, #tpu.memory_space<vmem>>, vector<32x256xbf16>
      %158 = vector.extract_strided_slice %137 {offsets = [128, 0], sizes = [32, 32], strides = [1, 1]} : vector<288x32xbf16> to vector<32x32xbf16>
      %cst_95 = arith.constant dense<0.000000e+00> : vector<32x256xf32>
      %159 = tpu.matmul %158, %157, %cst_95 {dimension_numbers = #tpu.dot_dimension_numbers<[1], [0], [0], [1], [0, 0, 1, 1], [], []>} : vector<32x32xbf16>, vector<32x256xbf16>, vector<32x256xf32> -> vector<32x256xf32>
      %160 = arith.addf %156, %159 : vector<32x256xf32>
      %c0_96 = arith.constant 0 : index
      %c144_97 = arith.constant 144 : index
      %161 = vector.load %arg10[%c0_96, %c144_97] : memref<32x401xbf16, #tpu.memory_space<vmem>>, vector<32x256xbf16>
      %162 = vector.extract_strided_slice %137 {offsets = [224, 0], sizes = [32, 32], strides = [1, 1]} : vector<288x32xbf16> to vector<32x32xbf16>
      %cst_98 = arith.constant dense<0.000000e+00> : vector<32x256xf32>
      %163 = tpu.matmul %162, %161, %cst_98 {dimension_numbers = #tpu.dot_dimension_numbers<[1], [0], [0], [1], [0, 0, 1, 1], [], []>} : vector<32x32xbf16>, vector<32x256xbf16>, vector<32x256xf32> -> vector<32x256xf32>
      %164 = arith.addf %160, %163 : vector<32x256xf32>
      %165 = arith.addf %153, %164 : vector<32x256xf32>
      %c0_99 = arith.constant 0 : index
      %c113_100 = arith.constant 113 : index
      %166 = vector.load %arg10[%c0_99, %c113_100] : memref<32x401xbf16, #tpu.memory_space<vmem>>, vector<32x256xbf16>
      %167 = vector.extract_strided_slice %137 {offsets = [64, 0], sizes = [32, 32], strides = [1, 1]} : vector<288x32xbf16> to vector<32x32xbf16>
      %cst_101 = arith.constant dense<0.000000e+00> : vector<32x256xf32>
      %168 = tpu.matmul %167, %166, %cst_101 {dimension_numbers = #tpu.dot_dimension_numbers<[1], [0], [0], [1], [0, 0, 1, 1], [], []>} : vector<32x32xbf16>, vector<32x256xbf16>, vector<32x256xf32> -> vector<32x256xf32>
      %c0_102 = arith.constant 0 : index
      %c129_103 = arith.constant 129 : index
      %169 = vector.load %arg10[%c0_102, %c129_103] : memref<32x401xbf16, #tpu.memory_space<vmem>>, vector<32x256xbf16>
      %170 = vector.extract_strided_slice %137 {offsets = [160, 0], sizes = [32, 32], strides = [1, 1]} : vector<288x32xbf16> to vector<32x32xbf16>
      %cst_104 = arith.constant dense<0.000000e+00> : vector<32x256xf32>
      %171 = tpu.matmul %170, %169, %cst_104 {dimension_numbers = #tpu.dot_dimension_numbers<[1], [0], [0], [1], [0, 0, 1, 1], [], []>} : vector<32x32xbf16>, vector<32x256xbf16>, vector<32x256xf32> -> vector<32x256xf32>
      %172 = arith.addf %168, %171 : vector<32x256xf32>
      %c0_105 = arith.constant 0 : index
      %c145_106 = arith.constant 145 : index
      %173 = vector.load %arg10[%c0_105, %c145_106] : memref<32x401xbf16, #tpu.memory_space<vmem>>, vector<32x256xbf16>
      %174 = vector.extract_strided_slice %137 {offsets = [256, 0], sizes = [32, 32], strides = [1, 1]} : vector<288x32xbf16> to vector<32x32xbf16>
      %cst_107 = arith.constant dense<0.000000e+00> : vector<32x256xf32>
      %175 = tpu.matmul %174, %173, %cst_107 {dimension_numbers = #tpu.dot_dimension_numbers<[1], [0], [0], [1], [0, 0, 1, 1], [], []>} : vector<32x32xbf16>, vector<32x256xbf16>, vector<32x256xf32> -> vector<32x256xf32>
      %176 = arith.addf %172, %175 : vector<32x256xf32>
      %177 = vector.broadcast %28 : vector<1x256xf32> to vector<32x256xf32>
      %178 = arith.mulf %176, %177 : vector<32x256xf32>
      %179 = arith.addf %165, %178 : vector<32x256xf32>
      %180 = vector.broadcast %138 : vector<32x1xf32> to vector<32x256xf32>
      %181 = arith.addf %179, %180 : vector<32x256xf32>
      %cst_108 = arith.constant 0.000000e+00 : f32
      %182 = vector.broadcast %cst_108 : f32 to vector<32x256xf32>
      %183 = arith.maximumf %181, %182 : vector<32x256xf32>
      %184 = vector.extract_strided_slice %133 {offsets = [288, 0], sizes = [288, 32], strides = [1, 1]} : vector<576x32xbf16> to vector<288x32xbf16>
      %185 = vector.extract_strided_slice %136 {offsets = [32, 0], sizes = [32, 1], strides = [1, 1]} : vector<64x1xf32> to vector<32x1xf32>
      %186 = arith.truncf %183 : vector<32x256xf32> to vector<32x256xbf16>
      %c0_109 = arith.constant 0 : index
      %c128_110 = arith.constant 128 : index
      %187 = vector.load %arg10[%c0_109, %c128_110] : memref<32x401xbf16, #tpu.memory_space<vmem>>, vector<32x256xbf16>
      tpu.vector_store %arg10[%c0_109, %c128_110], %186 {strides = array<i32>} : memref<32x401xbf16, #tpu.memory_space<vmem>>, vector<32x256xbf16>,
      %c0_111 = arith.constant 0 : index
      %c111_112 = arith.constant 111 : index
      %188 = vector.load %arg10[%c0_111, %c111_112] : memref<32x401xbf16, #tpu.memory_space<vmem>>, vector<32x256xbf16>
      %189 = vector.extract_strided_slice %184 {offsets = [0, 0], sizes = [32, 32], strides = [1, 1]} : vector<288x32xbf16> to vector<32x32xbf16>
      %cst_113 = arith.constant dense<0.000000e+00> : vector<32x256xf32>
      %190 = tpu.matmul %189, %188, %cst_113 {dimension_numbers = #tpu.dot_dimension_numbers<[1], [0], [0], [1], [0, 0, 1, 1], [], []>} : vector<32x32xbf16>, vector<32x256xbf16>, vector<32x256xf32> -> vector<32x256xf32>
      %c0_114 = arith.constant 0 : index
      %c127_115 = arith.constant 127 : index
      %191 = vector.load %arg10[%c0_114, %c127_115] : memref<32x401xbf16, #tpu.memory_space<vmem>>, vector<32x256xbf16>
      %192 = vector.extract_strided_slice %184 {offsets = [96, 0], sizes = [32, 32], strides = [1, 1]} : vector<288x32xbf16> to vector<32x32xbf16>
      %cst_116 = arith.constant dense<0.000000e+00> : vector<32x256xf32>
      %193 = tpu.matmul %192, %191, %cst_116 {dimension_numbers = #tpu.dot_dimension_numbers<[1], [0], [0], [1], [0, 0, 1, 1], [], []>} : vector<32x32xbf16>, vector<32x256xbf16>, vector<32x256xf32> -> vector<32x256xf32>
      %194 = arith.addf %190, %193 : vector<32x256xf32>
      %c0_117 = arith.constant 0 : index
      %c143_118 = arith.constant 143 : index
      %195 = vector.load %arg10[%c0_117, %c143_118] : memref<32x401xbf16, #tpu.memory_space<vmem>>, vector<32x256xbf16>
      %196 = vector.extract_strided_slice %184 {offsets = [192, 0], sizes = [32, 32], strides = [1, 1]} : vector<288x32xbf16> to vector<32x32xbf16>
      %cst_119 = arith.constant dense<0.000000e+00> : vector<32x256xf32>
      %197 = tpu.matmul %196, %195, %cst_119 {dimension_numbers = #tpu.dot_dimension_numbers<[1], [0], [0], [1], [0, 0, 1, 1], [], []>} : vector<32x32xbf16>, vector<32x256xbf16>, vector<32x256xf32> -> vector<32x256xf32>
      %198 = arith.addf %194, %197 : vector<32x256xf32>
      %199 = vector.broadcast %24 : vector<1x256xf32> to vector<32x256xf32>
      %200 = arith.mulf %198, %199 : vector<32x256xf32>
      %c0_120 = arith.constant 0 : index
      %c112_121 = arith.constant 112 : index
      %201 = vector.load %arg10[%c0_120, %c112_121] : memref<32x401xbf16, #tpu.memory_space<vmem>>, vector<32x256xbf16>
      %202 = vector.extract_strided_slice %184 {offsets = [32, 0], sizes = [32, 32], strides = [1, 1]} : vector<288x32xbf16> to vector<32x32xbf16>
      %cst_122 = arith.constant dense<0.000000e+00> : vector<32x256xf32>
      %203 = tpu.matmul %202, %201, %cst_122 {dimension_numbers = #tpu.dot_dimension_numbers<[1], [0], [0], [1], [0, 0, 1, 1], [], []>} : vector<32x32xbf16>, vector<32x256xbf16>, vector<32x256xf32> -> vector<32x256xf32>
      %c0_123 = arith.constant 0 : index
      %c128_124 = arith.constant 128 : index
      %204 = vector.load %arg10[%c0_123, %c128_124] : memref<32x401xbf16, #tpu.memory_space<vmem>>, vector<32x256xbf16>
      %205 = vector.extract_strided_slice %184 {offsets = [128, 0], sizes = [32, 32], strides = [1, 1]} : vector<288x32xbf16> to vector<32x32xbf16>
      %cst_125 = arith.constant dense<0.000000e+00> : vector<32x256xf32>
      %206 = tpu.matmul %205, %204, %cst_125 {dimension_numbers = #tpu.dot_dimension_numbers<[1], [0], [0], [1], [0, 0, 1, 1], [], []>} : vector<32x32xbf16>, vector<32x256xbf16>, vector<32x256xf32> -> vector<32x256xf32>
      %207 = arith.addf %203, %206 : vector<32x256xf32>
      %c0_126 = arith.constant 0 : index
      %c144_127 = arith.constant 144 : index
      %208 = vector.load %arg10[%c0_126, %c144_127] : memref<32x401xbf16, #tpu.memory_space<vmem>>, vector<32x256xbf16>
      %209 = vector.extract_strided_slice %184 {offsets = [224, 0], sizes = [32, 32], strides = [1, 1]} : vector<288x32xbf16> to vector<32x32xbf16>
      %cst_128 = arith.constant dense<0.000000e+00> : vector<32x256xf32>
      %210 = tpu.matmul %209, %208, %cst_128 {dimension_numbers = #tpu.dot_dimension_numbers<[1], [0], [0], [1], [0, 0, 1, 1], [], []>} : vector<32x32xbf16>, vector<32x256xbf16>, vector<32x256xf32> -> vector<32x256xf32>
      %211 = arith.addf %207, %210 : vector<32x256xf32>
      %212 = arith.addf %200, %211 : vector<32x256xf32>
      %c0_129 = arith.constant 0 : index
      %c113_130 = arith.constant 113 : index
      %213 = vector.load %arg10[%c0_129, %c113_130] : memref<32x401xbf16, #tpu.memory_space<vmem>>, vector<32x256xbf16>
      %214 = vector.extract_strided_slice %184 {offsets = [64, 0], sizes = [32, 32], strides = [1, 1]} : vector<288x32xbf16> to vector<32x32xbf16>
      %cst_131 = arith.constant dense<0.000000e+00> : vector<32x256xf32>
      %215 = tpu.matmul %214, %213, %cst_131 {dimension_numbers = #tpu.dot_dimension_numbers<[1], [0], [0], [1], [0, 0, 1, 1], [], []>} : vector<32x32xbf16>, vector<32x256xbf16>, vector<32x256xf32> -> vector<32x256xf32>
      %c0_132 = arith.constant 0 : index
      %c129_133 = arith.constant 129 : index
      %216 = vector.load %arg10[%c0_132, %c129_133] : memref<32x401xbf16, #tpu.memory_space<vmem>>, vector<32x256xbf16>
      %217 = vector.extract_strided_slice %184 {offsets = [160, 0], sizes = [32, 32], strides = [1, 1]} : vector<288x32xbf16> to vector<32x32xbf16>
      %cst_134 = arith.constant dense<0.000000e+00> : vector<32x256xf32>
      %218 = tpu.matmul %217, %216, %cst_134 {dimension_numbers = #tpu.dot_dimension_numbers<[1], [0], [0], [1], [0, 0, 1, 1], [], []>} : vector<32x32xbf16>, vector<32x256xbf16>, vector<32x256xf32> -> vector<32x256xf32>
      %219 = arith.addf %215, %218 : vector<32x256xf32>
      %c0_135 = arith.constant 0 : index
      %c145_136 = arith.constant 145 : index
      %220 = vector.load %arg10[%c0_135, %c145_136] : memref<32x401xbf16, #tpu.memory_space<vmem>>, vector<32x256xbf16>
      %221 = vector.extract_strided_slice %184 {offsets = [256, 0], sizes = [32, 32], strides = [1, 1]} : vector<288x32xbf16> to vector<32x32xbf16>
      %cst_137 = arith.constant dense<0.000000e+00> : vector<32x256xf32>
      %222 = tpu.matmul %221, %220, %cst_137 {dimension_numbers = #tpu.dot_dimension_numbers<[1], [0], [0], [1], [0, 0, 1, 1], [], []>} : vector<32x32xbf16>, vector<32x256xbf16>, vector<32x256xf32> -> vector<32x256xf32>
      %223 = arith.addf %219, %222 : vector<32x256xf32>
      %224 = vector.broadcast %28 : vector<1x256xf32> to vector<32x256xf32>
      %225 = arith.mulf %223, %224 : vector<32x256xf32>
      %226 = arith.addf %212, %225 : vector<32x256xf32>
      %227 = vector.broadcast %185 : vector<32x1xf32> to vector<32x256xf32>
      %228 = arith.addf %226, %227 : vector<32x256xf32>
      %cst_138 = arith.constant 1.000000e-01 : f32
      %229 = vector.broadcast %cst_138 : f32 to vector<32x256xf32>
      %230 = arith.mulf %228, %229 : vector<32x256xf32>
      %231 = arith.addf %arg12, %230 : vector<32x256xf32>
      scf.yield %231 : vector<32x256xf32>
    }
    %c2_i32_38 = arith.constant 2 : i32
    %c0_39 = arith.constant 0 : index
    %c0_40 = arith.constant 0 : index
    %81 = vector.load %arg7[%c0_39, %c0_40] : memref<288x32xbf16, #tpu.memory_space<vmem>>, vector<288x32xbf16>
    %c0_41 = arith.constant 0 : index
    %c0_42 = arith.constant 0 : index
    %82 = vector.load %arg8[%c0_41, %c0_42] : memref<32x1xf32, #tpu.memory_space<vmem>>, vector<32x1xf32>
    %83 = arith.truncf %80 : vector<32x256xf32> to vector<32x256xbf16>
    %c0_43 = arith.constant 0 : index
    %c128_44 = arith.constant 128 : index
    %84 = vector.load %arg10[%c0_43, %c128_44] : memref<32x401xbf16, #tpu.memory_space<vmem>>, vector<32x256xbf16>
    tpu.vector_store %arg10[%c0_43, %c128_44], %83 {strides = array<i32>} : memref<32x401xbf16, #tpu.memory_space<vmem>>, vector<32x256xbf16>,
    %c0_45 = arith.constant 0 : index
    %c111_46 = arith.constant 111 : index
    %85 = vector.load %arg10[%c0_45, %c111_46] : memref<32x401xbf16, #tpu.memory_space<vmem>>, vector<32x256xbf16>
    %86 = vector.extract_strided_slice %81 {offsets = [0, 0], sizes = [32, 32], strides = [1, 1]} : vector<288x32xbf16> to vector<32x32xbf16>
    %cst_47 = arith.constant dense<0.000000e+00> : vector<32x256xf32>
    %87 = tpu.matmul %86, %85, %cst_47 {dimension_numbers = #tpu.dot_dimension_numbers<[1], [0], [0], [1], [0, 0, 1, 1], [], []>} : vector<32x32xbf16>, vector<32x256xbf16>, vector<32x256xf32> -> vector<32x256xf32>
    %c0_48 = arith.constant 0 : index
    %c127_49 = arith.constant 127 : index
    %88 = vector.load %arg10[%c0_48, %c127_49] : memref<32x401xbf16, #tpu.memory_space<vmem>>, vector<32x256xbf16>
    %89 = vector.extract_strided_slice %81 {offsets = [96, 0], sizes = [32, 32], strides = [1, 1]} : vector<288x32xbf16> to vector<32x32xbf16>
    %cst_50 = arith.constant dense<0.000000e+00> : vector<32x256xf32>
    %90 = tpu.matmul %89, %88, %cst_50 {dimension_numbers = #tpu.dot_dimension_numbers<[1], [0], [0], [1], [0, 0, 1, 1], [], []>} : vector<32x32xbf16>, vector<32x256xbf16>, vector<32x256xf32> -> vector<32x256xf32>
    %91 = arith.addf %87, %90 : vector<32x256xf32>
    %c0_51 = arith.constant 0 : index
    %c143_52 = arith.constant 143 : index
    %92 = vector.load %arg10[%c0_51, %c143_52] : memref<32x401xbf16, #tpu.memory_space<vmem>>, vector<32x256xbf16>
    %93 = vector.extract_strided_slice %81 {offsets = [192, 0], sizes = [32, 32], strides = [1, 1]} : vector<288x32xbf16> to vector<32x32xbf16>
    %cst_53 = arith.constant dense<0.000000e+00> : vector<32x256xf32>
    %94 = tpu.matmul %93, %92, %cst_53 {dimension_numbers = #tpu.dot_dimension_numbers<[1], [0], [0], [1], [0, 0, 1, 1], [], []>} : vector<32x32xbf16>, vector<32x256xbf16>, vector<32x256xf32> -> vector<32x256xf32>
    %95 = arith.addf %91, %94 : vector<32x256xf32>
    %96 = vector.broadcast %24 : vector<1x256xf32> to vector<32x256xf32>
    %97 = arith.mulf %95, %96 : vector<32x256xf32>
    %c0_54 = arith.constant 0 : index
    %c112_55 = arith.constant 112 : index
    %98 = vector.load %arg10[%c0_54, %c112_55] : memref<32x401xbf16, #tpu.memory_space<vmem>>, vector<32x256xbf16>
    %99 = vector.extract_strided_slice %81 {offsets = [32, 0], sizes = [32, 32], strides = [1, 1]} : vector<288x32xbf16> to vector<32x32xbf16>
    %cst_56 = arith.constant dense<0.000000e+00> : vector<32x256xf32>
    %100 = tpu.matmul %99, %98, %cst_56 {dimension_numbers = #tpu.dot_dimension_numbers<[1], [0], [0], [1], [0, 0, 1, 1], [], []>} : vector<32x32xbf16>, vector<32x256xbf16>, vector<32x256xf32> -> vector<32x256xf32>
    %c0_57 = arith.constant 0 : index
    %c128_58 = arith.constant 128 : index
    %101 = vector.load %arg10[%c0_57, %c128_58] : memref<32x401xbf16, #tpu.memory_space<vmem>>, vector<32x256xbf16>
    %102 = vector.extract_strided_slice %81 {offsets = [128, 0], sizes = [32, 32], strides = [1, 1]} : vector<288x32xbf16> to vector<32x32xbf16>
    %cst_59 = arith.constant dense<0.000000e+00> : vector<32x256xf32>
    %103 = tpu.matmul %102, %101, %cst_59 {dimension_numbers = #tpu.dot_dimension_numbers<[1], [0], [0], [1], [0, 0, 1, 1], [], []>} : vector<32x32xbf16>, vector<32x256xbf16>, vector<32x256xf32> -> vector<32x256xf32>
    %104 = arith.addf %100, %103 : vector<32x256xf32>
    %c0_60 = arith.constant 0 : index
    %c144_61 = arith.constant 144 : index
    %105 = vector.load %arg10[%c0_60, %c144_61] : memref<32x401xbf16, #tpu.memory_space<vmem>>, vector<32x256xbf16>
    %106 = vector.extract_strided_slice %81 {offsets = [224, 0], sizes = [32, 32], strides = [1, 1]} : vector<288x32xbf16> to vector<32x32xbf16>
    %cst_62 = arith.constant dense<0.000000e+00> : vector<32x256xf32>
    %107 = tpu.matmul %106, %105, %cst_62 {dimension_numbers = #tpu.dot_dimension_numbers<[1], [0], [0], [1], [0, 0, 1, 1], [], []>} : vector<32x32xbf16>, vector<32x256xbf16>, vector<32x256xf32> -> vector<32x256xf32>
    %108 = arith.addf %104, %107 : vector<32x256xf32>
    %109 = arith.addf %97, %108 : vector<32x256xf32>
    %c0_63 = arith.constant 0 : index
    %c113_64 = arith.constant 113 : index
    %110 = vector.load %arg10[%c0_63, %c113_64] : memref<32x401xbf16, #tpu.memory_space<vmem>>, vector<32x256xbf16>
    %111 = vector.extract_strided_slice %81 {offsets = [64, 0], sizes = [32, 32], strides = [1, 1]} : vector<288x32xbf16> to vector<32x32xbf16>
    %cst_65 = arith.constant dense<0.000000e+00> : vector<32x256xf32>
    %112 = tpu.matmul %111, %110, %cst_65 {dimension_numbers = #tpu.dot_dimension_numbers<[1], [0], [0], [1], [0, 0, 1, 1], [], []>} : vector<32x32xbf16>, vector<32x256xbf16>, vector<32x256xf32> -> vector<32x256xf32>
    %c0_66 = arith.constant 0 : index
    %c129_67 = arith.constant 129 : index
    %113 = vector.load %arg10[%c0_66, %c129_67] : memref<32x401xbf16, #tpu.memory_space<vmem>>, vector<32x256xbf16>
    %114 = vector.extract_strided_slice %81 {offsets = [160, 0], sizes = [32, 32], strides = [1, 1]} : vector<288x32xbf16> to vector<32x32xbf16>
    %cst_68 = arith.constant dense<0.000000e+00> : vector<32x256xf32>
    %115 = tpu.matmul %114, %113, %cst_68 {dimension_numbers = #tpu.dot_dimension_numbers<[1], [0], [0], [1], [0, 0, 1, 1], [], []>} : vector<32x32xbf16>, vector<32x256xbf16>, vector<32x256xf32> -> vector<32x256xf32>
    %116 = arith.addf %112, %115 : vector<32x256xf32>
    %c0_69 = arith.constant 0 : index
    %c145_70 = arith.constant 145 : index
    %117 = vector.load %arg10[%c0_69, %c145_70] : memref<32x401xbf16, #tpu.memory_space<vmem>>, vector<32x256xbf16>
    %118 = vector.extract_strided_slice %81 {offsets = [256, 0], sizes = [32, 32], strides = [1, 1]} : vector<288x32xbf16> to vector<32x32xbf16>
    %cst_71 = arith.constant dense<0.000000e+00> : vector<32x256xf32>
    %119 = tpu.matmul %118, %117, %cst_71 {dimension_numbers = #tpu.dot_dimension_numbers<[1], [0], [0], [1], [0, 0, 1, 1], [], []>} : vector<32x32xbf16>, vector<32x256xbf16>, vector<32x256xf32> -> vector<32x256xf32>
    %120 = arith.addf %116, %119 : vector<32x256xf32>
    %121 = vector.broadcast %28 : vector<1x256xf32> to vector<32x256xf32>
    %122 = arith.mulf %120, %121 : vector<32x256xf32>
    %123 = arith.addf %109, %122 : vector<32x256xf32>
    %124 = vector.broadcast %82 : vector<32x1xf32> to vector<32x256xf32>
    %125 = arith.addf %123, %124 : vector<32x256xf32>
    %126 = arith.addf %125, %78 : vector<32x256xf32>
    %127 = arith.truncf %126 : vector<32x256xf32> to vector<32x256xbf16>
    %c0_72 = arith.constant 0 : index
    %c0_73 = arith.constant 0 : index
    %c0_74 = arith.constant 0 : index
    %128 = vector.load %arg9[%c0_72, %c0_73, %c0_74] : memref<1x32x256xbf16, #tpu.memory_space<vmem>>, vector<1x32x256xbf16>
    %129 = vector.shape_cast %128 : vector<1x32x256xbf16> to vector<32x256xbf16>
    %130 = vector.shape_cast %127 : vector<32x256xbf16> to vector<1x32x256xbf16>
    tpu.vector_store %arg9[%c0_72, %c0_73, %c0_74], %130 {strides = array<i32>} : memref<1x32x256xbf16, #tpu.memory_space<vmem>>, vector<1x32x256xbf16>,
    return
  }
  func.func @transform_0(%arg0: i32) -> (i32, i32, i32) {
    %c0_i32 = arith.constant 0 : i32
    %c0_i32_0 = arith.constant 0 : i32
    %c0_i32_1 = arith.constant 0 : i32
    return %arg0, %c0_i32, %c0_i32_0 : i32, i32, i32
  }
  func.func @transform_1(%arg0: i32) -> (i32, i32) {
    %c0_i32 = arith.constant 0 : i32
    %c0_i32_0 = arith.constant 0 : i32
    %c0_i32_1 = arith.constant 0 : i32
    return %c0_i32, %c0_i32_0 : i32, i32
  }
  func.func @transform_2(%arg0: i32) -> (i32, i32) {
    %c0_i32 = arith.constant 0 : i32
    %c0_i32_0 = arith.constant 0 : i32
    %c0_i32_1 = arith.constant 0 : i32
    return %c0_i32, %c0_i32_0 : i32, i32
  }
  func.func @transform_3(%arg0: i32) -> (i32, i32) {
    %c0_i32 = arith.constant 0 : i32
    %c0_i32_0 = arith.constant 0 : i32
    %c0_i32_1 = arith.constant 0 : i32
    return %c0_i32, %c0_i32_0 : i32, i32
  }
  func.func @transform_4(%arg0: i32) -> (i32, i32, i32) {
    %c0_i32 = arith.constant 0 : i32
    %c0_i32_0 = arith.constant 0 : i32
    %c0_i32_1 = arith.constant 0 : i32
    %c0_i32_2 = arith.constant 0 : i32
    return %c0_i32, %c0_i32_0, %c0_i32_1 : i32, i32, i32
  }
  func.func @transform_5(%arg0: i32) -> (i32, i32, i32) {
    %c0_i32 = arith.constant 0 : i32
    %c0_i32_0 = arith.constant 0 : i32
    %c0_i32_1 = arith.constant 0 : i32
    %c0_i32_2 = arith.constant 0 : i32
    return %c0_i32, %c0_i32_0, %c0_i32_1 : i32, i32, i32
  }
  func.func @transform_6(%arg0: i32) -> (i32, i32) {
    %c0_i32 = arith.constant 0 : i32
    %c0_i32_0 = arith.constant 0 : i32
    %c0_i32_1 = arith.constant 0 : i32
    return %c0_i32, %c0_i32_0 : i32, i32
  }
  func.func @transform_7(%arg0: i32) -> (i32, i32) {
    %c0_i32 = arith.constant 0 : i32
    %c0_i32_0 = arith.constant 0 : i32
    %c0_i32_1 = arith.constant 0 : i32
    return %c0_i32, %c0_i32_0 : i32, i32
  }
  func.func @transform_8(%arg0: i32) -> (i32, i32, i32) {
    %c0_i32 = arith.constant 0 : i32
    %c0_i32_0 = arith.constant 0 : i32
    %c0_i32_1 = arith.constant 0 : i32
    return %arg0, %c0_i32, %c0_i32_0 : i32, i32, i32
  }
}

module attributes {stable_mosaic.version = 11 : i64} {
  func.func @_conv3x3_kernel(%arg0: i32, %arg1: memref<1x32x256xbf16, #tpu.memory_space<vmem>>, %arg2: memref<1152x32xbf16, #tpu.memory_space<vmem>>, %arg3: memref<128x1xf32, #tpu.memory_space<vmem>>, %arg4: memref<1x128x256xbf16, #tpu.memory_space<vmem>>, %arg5: memref<32x401xbf16, #tpu.memory_space<vmem>>) attributes {dimension_semantics = [#tpu.dimension_semantics<parallel>], iteration_bounds = array<i64: 2>, scalar_prefetch = 0 : i64, scratch_operands = 1 : i64, tpu.core_type = #tpu.core_type<tc>, window_params = [{transform_indices = @transform_0, window_bounds = array<i64: 1, 32, 256>}, {pipeline_mode = #tpu.pipeline_mode<synchronous>, transform_indices = @transform_1, window_bounds = array<i64: 1152, 32>}, {pipeline_mode = #tpu.pipeline_mode<synchronous>, transform_indices = @transform_2, window_bounds = array<i64: 128, 1>}, {transform_indices = @transform_3, window_bounds = array<i64: 1, 128, 256>}]} {
    %cst = arith.constant 0.000000e+00 : bf16
    %0 = vector.broadcast %cst : bf16 to vector<32x17xbf16>
    %c0 = arith.constant 0 : index
    %c111 = arith.constant 111 : index
    %1 = vector.load %arg5[%c0, %c111] : memref<32x401xbf16, #tpu.memory_space<vmem>>, vector<32x17xbf16>
    tpu.vector_store %arg5[%c0, %c111], %0 {strides = array<i32>} : memref<32x401xbf16, #tpu.memory_space<vmem>>, vector<32x17xbf16>,
    %cst_0 = arith.constant 0.000000e+00 : bf16
    %2 = vector.broadcast %cst_0 : bf16 to vector<32x17xbf16>
    %c0_1 = arith.constant 0 : index
    %c384 = arith.constant 384 : index
    %3 = vector.load %arg5[%c0_1, %c384] : memref<32x401xbf16, #tpu.memory_space<vmem>>, vector<32x17xbf16>
    tpu.vector_store %arg5[%c0_1, %c384], %2 {strides = array<i32>} : memref<32x401xbf16, #tpu.memory_space<vmem>>, vector<32x17xbf16>,
    %4 = tpu.iota {dimensions = array<i32: 1>} : vector<1x256xi32>
    %c16_i32 = arith.constant 16 : i32
    %c0_i32 = arith.constant 0 : i32
    %5 = arith.cmpi eq, %c16_i32, %c0_i32 : i32
    %c1_i32 = arith.constant 1 : i32
    %6 = arith.select %5, %c1_i32, %c16_i32 : i32
    %7 = vector.broadcast %6 : i32 to vector<1x256xi32>
    %8 = arith.remsi %4, %7 : vector<1x256xi32>
    %c0_i32_2 = arith.constant 0 : i32
    %9 = vector.broadcast %c0_i32_2 : i32 to vector<1x256xi32>
    %10 = arith.cmpi ne, %8, %9 : vector<1x256xi32>
    %c0_i32_3 = arith.constant 0 : i32
    %11 = vector.broadcast %c0_i32_3 : i32 to vector<1x256xi32>
    %12 = arith.cmpi slt, %8, %11 : vector<1x256xi32>
    %c0_i32_4 = arith.constant 0 : i32
    %13 = arith.cmpi slt, %6, %c0_i32_4 : i32
    %14 = vector.broadcast %13 : i1 to vector<1x256xi1>
    %15 = vector.broadcast %14 : vector<1x256xi1> to vector<1x256xi1>
    %16 = arith.xori %12, %15 : vector<1x256xi1>
    %17 = arith.andi %16, %10 : vector<1x256xi1>
    %18 = vector.broadcast %6 : i32 to vector<1x256xi32>
    %19 = arith.addi %8, %18 : vector<1x256xi32>
    %20 = arith.select %17, %19, %8 : vector<1x256xi1>, vector<1x256xi32>
    %c0_i32_5 = arith.constant 0 : i32
    %21 = vector.broadcast %c0_i32_5 : i32 to vector<1x256xi32>
    %22 = arith.cmpi ne, %20, %21 : vector<1x256xi32>
    %23 = arith.extui %22 : vector<1x256xi1> to vector<1x256xi32>
    %24 = arith.sitofp %23 : vector<1x256xi32> to vector<1x256xf32>
    %c15_i32 = arith.constant 15 : i32
    %25 = vector.broadcast %c15_i32 : i32 to vector<1x256xi32>
    %26 = arith.cmpi ne, %20, %25 : vector<1x256xi32>
    %27 = arith.extui %26 : vector<1x256xi1> to vector<1x256xi32>
    %28 = arith.sitofp %27 : vector<1x256xi32> to vector<1x256xf32>
    %c0_6 = arith.constant 0 : index
    %c0_7 = arith.constant 0 : index
    %c0_8 = arith.constant 0 : index
    %29 = vector.load %arg1[%c0_6, %c0_7, %c0_8] : memref<1x32x256xbf16, #tpu.memory_space<vmem>>, vector<1x32x256xbf16>
    %30 = vector.shape_cast %29 : vector<1x32x256xbf16> to vector<32x256xbf16>
    %c0_9 = arith.constant 0 : index
    %c0_10 = arith.constant 0 : index
    %31 = vector.load %arg2[%c0_9, %c0_10] : memref<1152x32xbf16, #tpu.memory_space<vmem>>, vector<1152x32xbf16>
    %c0_11 = arith.constant 0 : index
    %c0_12 = arith.constant 0 : index
    %32 = vector.load %arg3[%c0_11, %c0_12] : memref<128x1xf32, #tpu.memory_space<vmem>>, vector<128x1xf32>
    %c0_13 = arith.constant 0 : index
    %c128 = arith.constant 128 : index
    %33 = vector.load %arg5[%c0_13, %c128] : memref<32x401xbf16, #tpu.memory_space<vmem>>, vector<32x256xbf16>
    tpu.vector_store %arg5[%c0_13, %c128], %30 {strides = array<i32>} : memref<32x401xbf16, #tpu.memory_space<vmem>>, vector<32x256xbf16>,
    %c0_14 = arith.constant 0 : index
    %c111_15 = arith.constant 111 : index
    %34 = vector.load %arg5[%c0_14, %c111_15] : memref<32x401xbf16, #tpu.memory_space<vmem>>, vector<32x256xbf16>
    %35 = vector.extract_strided_slice %31 {offsets = [0, 0], sizes = [128, 32], strides = [1, 1]} : vector<1152x32xbf16> to vector<128x32xbf16>
    %cst_16 = arith.constant dense<0.000000e+00> : vector<128x256xf32>
    %36 = tpu.matmul %35, %34, %cst_16 {dimension_numbers = #tpu.dot_dimension_numbers<[1], [0], [0], [1], [0, 0, 1, 1], [], []>} : vector<128x32xbf16>, vector<32x256xbf16>, vector<128x256xf32> -> vector<128x256xf32>
    %c0_17 = arith.constant 0 : index
    %c127 = arith.constant 127 : index
    %37 = vector.load %arg5[%c0_17, %c127] : memref<32x401xbf16, #tpu.memory_space<vmem>>, vector<32x256xbf16>
    %38 = vector.extract_strided_slice %31 {offsets = [384, 0], sizes = [128, 32], strides = [1, 1]} : vector<1152x32xbf16> to vector<128x32xbf16>
    %cst_18 = arith.constant dense<0.000000e+00> : vector<128x256xf32>
    %39 = tpu.matmul %38, %37, %cst_18 {dimension_numbers = #tpu.dot_dimension_numbers<[1], [0], [0], [1], [0, 0, 1, 1], [], []>} : vector<128x32xbf16>, vector<32x256xbf16>, vector<128x256xf32> -> vector<128x256xf32>
    %40 = arith.addf %36, %39 : vector<128x256xf32>
    %c0_19 = arith.constant 0 : index
    %c143 = arith.constant 143 : index
    %41 = vector.load %arg5[%c0_19, %c143] : memref<32x401xbf16, #tpu.memory_space<vmem>>, vector<32x256xbf16>
    %42 = vector.extract_strided_slice %31 {offsets = [768, 0], sizes = [128, 32], strides = [1, 1]} : vector<1152x32xbf16> to vector<128x32xbf16>
    %cst_20 = arith.constant dense<0.000000e+00> : vector<128x256xf32>
    %43 = tpu.matmul %42, %41, %cst_20 {dimension_numbers = #tpu.dot_dimension_numbers<[1], [0], [0], [1], [0, 0, 1, 1], [], []>} : vector<128x32xbf16>, vector<32x256xbf16>, vector<128x256xf32> -> vector<128x256xf32>
    %44 = arith.addf %40, %43 : vector<128x256xf32>
    %45 = vector.broadcast %24 : vector<1x256xf32> to vector<128x256xf32>
    %46 = arith.mulf %44, %45 : vector<128x256xf32>
    %c0_21 = arith.constant 0 : index
    %c112 = arith.constant 112 : index
    %47 = vector.load %arg5[%c0_21, %c112] : memref<32x401xbf16, #tpu.memory_space<vmem>>, vector<32x256xbf16>
    %48 = vector.extract_strided_slice %31 {offsets = [128, 0], sizes = [128, 32], strides = [1, 1]} : vector<1152x32xbf16> to vector<128x32xbf16>
    %cst_22 = arith.constant dense<0.000000e+00> : vector<128x256xf32>
    %49 = tpu.matmul %48, %47, %cst_22 {dimension_numbers = #tpu.dot_dimension_numbers<[1], [0], [0], [1], [0, 0, 1, 1], [], []>} : vector<128x32xbf16>, vector<32x256xbf16>, vector<128x256xf32> -> vector<128x256xf32>
    %c0_23 = arith.constant 0 : index
    %c128_24 = arith.constant 128 : index
    %50 = vector.load %arg5[%c0_23, %c128_24] : memref<32x401xbf16, #tpu.memory_space<vmem>>, vector<32x256xbf16>
    %51 = vector.extract_strided_slice %31 {offsets = [512, 0], sizes = [128, 32], strides = [1, 1]} : vector<1152x32xbf16> to vector<128x32xbf16>
    %cst_25 = arith.constant dense<0.000000e+00> : vector<128x256xf32>
    %52 = tpu.matmul %51, %50, %cst_25 {dimension_numbers = #tpu.dot_dimension_numbers<[1], [0], [0], [1], [0, 0, 1, 1], [], []>} : vector<128x32xbf16>, vector<32x256xbf16>, vector<128x256xf32> -> vector<128x256xf32>
    %53 = arith.addf %49, %52 : vector<128x256xf32>
    %c0_26 = arith.constant 0 : index
    %c144 = arith.constant 144 : index
    %54 = vector.load %arg5[%c0_26, %c144] : memref<32x401xbf16, #tpu.memory_space<vmem>>, vector<32x256xbf16>
    %55 = vector.extract_strided_slice %31 {offsets = [896, 0], sizes = [128, 32], strides = [1, 1]} : vector<1152x32xbf16> to vector<128x32xbf16>
    %cst_27 = arith.constant dense<0.000000e+00> : vector<128x256xf32>
    %56 = tpu.matmul %55, %54, %cst_27 {dimension_numbers = #tpu.dot_dimension_numbers<[1], [0], [0], [1], [0, 0, 1, 1], [], []>} : vector<128x32xbf16>, vector<32x256xbf16>, vector<128x256xf32> -> vector<128x256xf32>
    %57 = arith.addf %53, %56 : vector<128x256xf32>
    %58 = arith.addf %46, %57 : vector<128x256xf32>
    %c0_28 = arith.constant 0 : index
    %c113 = arith.constant 113 : index
    %59 = vector.load %arg5[%c0_28, %c113] : memref<32x401xbf16, #tpu.memory_space<vmem>>, vector<32x256xbf16>
    %60 = vector.extract_strided_slice %31 {offsets = [256, 0], sizes = [128, 32], strides = [1, 1]} : vector<1152x32xbf16> to vector<128x32xbf16>
    %cst_29 = arith.constant dense<0.000000e+00> : vector<128x256xf32>
    %61 = tpu.matmul %60, %59, %cst_29 {dimension_numbers = #tpu.dot_dimension_numbers<[1], [0], [0], [1], [0, 0, 1, 1], [], []>} : vector<128x32xbf16>, vector<32x256xbf16>, vector<128x256xf32> -> vector<128x256xf32>
    %c0_30 = arith.constant 0 : index
    %c129 = arith.constant 129 : index
    %62 = vector.load %arg5[%c0_30, %c129] : memref<32x401xbf16, #tpu.memory_space<vmem>>, vector<32x256xbf16>
    %63 = vector.extract_strided_slice %31 {offsets = [640, 0], sizes = [128, 32], strides = [1, 1]} : vector<1152x32xbf16> to vector<128x32xbf16>
    %cst_31 = arith.constant dense<0.000000e+00> : vector<128x256xf32>
    %64 = tpu.matmul %63, %62, %cst_31 {dimension_numbers = #tpu.dot_dimension_numbers<[1], [0], [0], [1], [0, 0, 1, 1], [], []>} : vector<128x32xbf16>, vector<32x256xbf16>, vector<128x256xf32> -> vector<128x256xf32>
    %65 = arith.addf %61, %64 : vector<128x256xf32>
    %c0_32 = arith.constant 0 : index
    %c145 = arith.constant 145 : index
    %66 = vector.load %arg5[%c0_32, %c145] : memref<32x401xbf16, #tpu.memory_space<vmem>>, vector<32x256xbf16>
    %67 = vector.extract_strided_slice %31 {offsets = [1024, 0], sizes = [128, 32], strides = [1, 1]} : vector<1152x32xbf16> to vector<128x32xbf16>
    %cst_33 = arith.constant dense<0.000000e+00> : vector<128x256xf32>
    %68 = tpu.matmul %67, %66, %cst_33 {dimension_numbers = #tpu.dot_dimension_numbers<[1], [0], [0], [1], [0, 0, 1, 1], [], []>} : vector<128x32xbf16>, vector<32x256xbf16>, vector<128x256xf32> -> vector<128x256xf32>
    %69 = arith.addf %65, %68 : vector<128x256xf32>
    %70 = vector.broadcast %28 : vector<1x256xf32> to vector<128x256xf32>
    %71 = arith.mulf %69, %70 : vector<128x256xf32>
    %72 = arith.addf %58, %71 : vector<128x256xf32>
    %73 = vector.broadcast %32 : vector<128x1xf32> to vector<128x256xf32>
    %74 = arith.addf %72, %73 : vector<128x256xf32>
    %75 = arith.truncf %74 : vector<128x256xf32> to vector<128x256xbf16>
    %c0_34 = arith.constant 0 : index
    %c0_35 = arith.constant 0 : index
    %c0_36 = arith.constant 0 : index
    %76 = vector.load %arg4[%c0_34, %c0_35, %c0_36] : memref<1x128x256xbf16, #tpu.memory_space<vmem>>, vector<1x128x256xbf16>
    %77 = vector.shape_cast %76 : vector<1x128x256xbf16> to vector<128x256xbf16>
    %78 = vector.shape_cast %75 : vector<128x256xbf16> to vector<1x128x256xbf16>
    tpu.vector_store %arg4[%c0_34, %c0_35, %c0_36], %78 {strides = array<i32>} : memref<1x128x256xbf16, #tpu.memory_space<vmem>>, vector<1x128x256xbf16>,
    return
  }
  func.func @transform_0(%arg0: i32) -> (i32, i32, i32) {
    %c0_i32 = arith.constant 0 : i32
    %c0_i32_0 = arith.constant 0 : i32
    %c0_i32_1 = arith.constant 0 : i32
    return %arg0, %c0_i32, %c0_i32_0 : i32, i32, i32
  }
  func.func @transform_1(%arg0: i32) -> (i32, i32) {
    %c0_i32 = arith.constant 0 : i32
    %c0_i32_0 = arith.constant 0 : i32
    %c0_i32_1 = arith.constant 0 : i32
    return %c0_i32, %c0_i32_0 : i32, i32
  }
  func.func @transform_2(%arg0: i32) -> (i32, i32) {
    %c0_i32 = arith.constant 0 : i32
    %c0_i32_0 = arith.constant 0 : i32
    %c0_i32_1 = arith.constant 0 : i32
    return %c0_i32, %c0_i32_0 : i32, i32
  }
  func.func @transform_3(%arg0: i32) -> (i32, i32, i32) {
    %c0_i32 = arith.constant 0 : i32
    %c0_i32_0 = arith.constant 0 : i32
    %c0_i32_1 = arith.constant 0 : i32
    return %arg0, %c0_i32, %c0_i32_0 : i32, i32, i32
  }
}

module attributes {stable_mosaic.version = 11 : i64} {
  func.func @_conv3x3_kernel(%arg0: i32, %arg1: memref<1x32x1024xbf16, #tpu.memory_space<vmem>>, %arg2: memref<36x32xbf16, #tpu.memory_space<vmem>>, %arg3: memref<4x1xf32, #tpu.memory_space<vmem>>, %arg4: memref<1x4x1024xf32, #tpu.memory_space<vmem>>, %arg5: memref<32x1185xbf16, #tpu.memory_space<vmem>>) attributes {dimension_semantics = [#tpu.dimension_semantics<parallel>], iteration_bounds = array<i64: 2>, scalar_prefetch = 0 : i64, scratch_operands = 1 : i64, tpu.core_type = #tpu.core_type<tc>, window_params = [{transform_indices = @transform_0, window_bounds = array<i64: 1, 32, 1024>}, {pipeline_mode = #tpu.pipeline_mode<synchronous>, transform_indices = @transform_1, window_bounds = array<i64: 36, 32>}, {pipeline_mode = #tpu.pipeline_mode<synchronous>, transform_indices = @transform_2, window_bounds = array<i64: 4, 1>}, {transform_indices = @transform_3, window_bounds = array<i64: 1, 4, 1024>}]} {
    %cst = arith.constant 0.000000e+00 : bf16
    %0 = vector.broadcast %cst : bf16 to vector<32x33xbf16>
    %c0 = arith.constant 0 : index
    %c95 = arith.constant 95 : index
    %1 = vector.load %arg5[%c0, %c95] : memref<32x1185xbf16, #tpu.memory_space<vmem>>, vector<32x33xbf16>
    tpu.vector_store %arg5[%c0, %c95], %0 {strides = array<i32>} : memref<32x1185xbf16, #tpu.memory_space<vmem>>, vector<32x33xbf16>,
    %cst_0 = arith.constant 0.000000e+00 : bf16
    %2 = vector.broadcast %cst_0 : bf16 to vector<32x33xbf16>
    %c0_1 = arith.constant 0 : index
    %c1152 = arith.constant 1152 : index
    %3 = vector.load %arg5[%c0_1, %c1152] : memref<32x1185xbf16, #tpu.memory_space<vmem>>, vector<32x33xbf16>
    tpu.vector_store %arg5[%c0_1, %c1152], %2 {strides = array<i32>} : memref<32x1185xbf16, #tpu.memory_space<vmem>>, vector<32x33xbf16>,
    %4 = tpu.iota {dimensions = array<i32: 1>} : vector<1x1024xi32>
    %c32_i32 = arith.constant 32 : i32
    %c0_i32 = arith.constant 0 : i32
    %5 = arith.cmpi eq, %c32_i32, %c0_i32 : i32
    %c1_i32 = arith.constant 1 : i32
    %6 = arith.select %5, %c1_i32, %c32_i32 : i32
    %7 = vector.broadcast %6 : i32 to vector<1x1024xi32>
    %8 = arith.remsi %4, %7 : vector<1x1024xi32>
    %c0_i32_2 = arith.constant 0 : i32
    %9 = vector.broadcast %c0_i32_2 : i32 to vector<1x1024xi32>
    %10 = arith.cmpi ne, %8, %9 : vector<1x1024xi32>
    %c0_i32_3 = arith.constant 0 : i32
    %11 = vector.broadcast %c0_i32_3 : i32 to vector<1x1024xi32>
    %12 = arith.cmpi slt, %8, %11 : vector<1x1024xi32>
    %c0_i32_4 = arith.constant 0 : i32
    %13 = arith.cmpi slt, %6, %c0_i32_4 : i32
    %14 = vector.broadcast %13 : i1 to vector<1x1024xi1>
    %15 = vector.broadcast %14 : vector<1x1024xi1> to vector<1x1024xi1>
    %16 = arith.xori %12, %15 : vector<1x1024xi1>
    %17 = arith.andi %16, %10 : vector<1x1024xi1>
    %18 = vector.broadcast %6 : i32 to vector<1x1024xi32>
    %19 = arith.addi %8, %18 : vector<1x1024xi32>
    %20 = arith.select %17, %19, %8 : vector<1x1024xi1>, vector<1x1024xi32>
    %c0_i32_5 = arith.constant 0 : i32
    %21 = vector.broadcast %c0_i32_5 : i32 to vector<1x1024xi32>
    %22 = arith.cmpi ne, %20, %21 : vector<1x1024xi32>
    %23 = arith.extui %22 : vector<1x1024xi1> to vector<1x1024xi32>
    %24 = arith.sitofp %23 : vector<1x1024xi32> to vector<1x1024xf32>
    %c31_i32 = arith.constant 31 : i32
    %25 = vector.broadcast %c31_i32 : i32 to vector<1x1024xi32>
    %26 = arith.cmpi ne, %20, %25 : vector<1x1024xi32>
    %27 = arith.extui %26 : vector<1x1024xi1> to vector<1x1024xi32>
    %28 = arith.sitofp %27 : vector<1x1024xi32> to vector<1x1024xf32>
    %c0_6 = arith.constant 0 : index
    %c0_7 = arith.constant 0 : index
    %c0_8 = arith.constant 0 : index
    %29 = vector.load %arg1[%c0_6, %c0_7, %c0_8] : memref<1x32x1024xbf16, #tpu.memory_space<vmem>>, vector<1x32x1024xbf16>
    %30 = vector.shape_cast %29 : vector<1x32x1024xbf16> to vector<32x1024xbf16>
    %c0_9 = arith.constant 0 : index
    %c0_10 = arith.constant 0 : index
    %31 = vector.load %arg2[%c0_9, %c0_10] : memref<36x32xbf16, #tpu.memory_space<vmem>>, vector<36x32xbf16>
    %c0_11 = arith.constant 0 : index
    %c0_12 = arith.constant 0 : index
    %32 = vector.load %arg3[%c0_11, %c0_12] : memref<4x1xf32, #tpu.memory_space<vmem>>, vector<4x1xf32>
    %c0_13 = arith.constant 0 : index
    %c128 = arith.constant 128 : index
    %33 = vector.load %arg5[%c0_13, %c128] : memref<32x1185xbf16, #tpu.memory_space<vmem>>, vector<32x1024xbf16>
    tpu.vector_store %arg5[%c0_13, %c128], %30 {strides = array<i32>} : memref<32x1185xbf16, #tpu.memory_space<vmem>>, vector<32x1024xbf16>,
    %c0_14 = arith.constant 0 : index
    %c95_15 = arith.constant 95 : index
    %34 = vector.load %arg5[%c0_14, %c95_15] : memref<32x1185xbf16, #tpu.memory_space<vmem>>, vector<32x1024xbf16>
    %35 = vector.extract_strided_slice %31 {offsets = [0, 0], sizes = [4, 32], strides = [1, 1]} : vector<36x32xbf16> to vector<4x32xbf16>
    %cst_16 = arith.constant dense<0.000000e+00> : vector<4x1024xf32>
    %36 = tpu.matmul %35, %34, %cst_16 {dimension_numbers = #tpu.dot_dimension_numbers<[1], [0], [0], [1], [0, 0, 1, 1], [], []>} : vector<4x32xbf16>, vector<32x1024xbf16>, vector<4x1024xf32> -> vector<4x1024xf32>
    %c0_17 = arith.constant 0 : index
    %c127 = arith.constant 127 : index
    %37 = vector.load %arg5[%c0_17, %c127] : memref<32x1185xbf16, #tpu.memory_space<vmem>>, vector<32x1024xbf16>
    %38 = vector.extract_strided_slice %31 {offsets = [12, 0], sizes = [4, 32], strides = [1, 1]} : vector<36x32xbf16> to vector<4x32xbf16>
    %cst_18 = arith.constant dense<0.000000e+00> : vector<4x1024xf32>
    %39 = tpu.matmul %38, %37, %cst_18 {dimension_numbers = #tpu.dot_dimension_numbers<[1], [0], [0], [1], [0, 0, 1, 1], [], []>} : vector<4x32xbf16>, vector<32x1024xbf16>, vector<4x1024xf32> -> vector<4x1024xf32>
    %40 = arith.addf %36, %39 : vector<4x1024xf32>
    %c0_19 = arith.constant 0 : index
    %c159 = arith.constant 159 : index
    %41 = vector.load %arg5[%c0_19, %c159] : memref<32x1185xbf16, #tpu.memory_space<vmem>>, vector<32x1024xbf16>
    %42 = vector.extract_strided_slice %31 {offsets = [24, 0], sizes = [4, 32], strides = [1, 1]} : vector<36x32xbf16> to vector<4x32xbf16>
    %cst_20 = arith.constant dense<0.000000e+00> : vector<4x1024xf32>
    %43 = tpu.matmul %42, %41, %cst_20 {dimension_numbers = #tpu.dot_dimension_numbers<[1], [0], [0], [1], [0, 0, 1, 1], [], []>} : vector<4x32xbf16>, vector<32x1024xbf16>, vector<4x1024xf32> -> vector<4x1024xf32>
    %44 = arith.addf %40, %43 : vector<4x1024xf32>
    %45 = vector.broadcast %24 : vector<1x1024xf32> to vector<4x1024xf32>
    %46 = arith.mulf %44, %45 : vector<4x1024xf32>
    %c0_21 = arith.constant 0 : index
    %c96 = arith.constant 96 : index
    %47 = vector.load %arg5[%c0_21, %c96] : memref<32x1185xbf16, #tpu.memory_space<vmem>>, vector<32x1024xbf16>
    %48 = vector.extract_strided_slice %31 {offsets = [4, 0], sizes = [4, 32], strides = [1, 1]} : vector<36x32xbf16> to vector<4x32xbf16>
    %cst_22 = arith.constant dense<0.000000e+00> : vector<4x1024xf32>
    %49 = tpu.matmul %48, %47, %cst_22 {dimension_numbers = #tpu.dot_dimension_numbers<[1], [0], [0], [1], [0, 0, 1, 1], [], []>} : vector<4x32xbf16>, vector<32x1024xbf16>, vector<4x1024xf32> -> vector<4x1024xf32>
    %c0_23 = arith.constant 0 : index
    %c128_24 = arith.constant 128 : index
    %50 = vector.load %arg5[%c0_23, %c128_24] : memref<32x1185xbf16, #tpu.memory_space<vmem>>, vector<32x1024xbf16>
    %51 = vector.extract_strided_slice %31 {offsets = [16, 0], sizes = [4, 32], strides = [1, 1]} : vector<36x32xbf16> to vector<4x32xbf16>
    %cst_25 = arith.constant dense<0.000000e+00> : vector<4x1024xf32>
    %52 = tpu.matmul %51, %50, %cst_25 {dimension_numbers = #tpu.dot_dimension_numbers<[1], [0], [0], [1], [0, 0, 1, 1], [], []>} : vector<4x32xbf16>, vector<32x1024xbf16>, vector<4x1024xf32> -> vector<4x1024xf32>
    %53 = arith.addf %49, %52 : vector<4x1024xf32>
    %c0_26 = arith.constant 0 : index
    %c160 = arith.constant 160 : index
    %54 = vector.load %arg5[%c0_26, %c160] : memref<32x1185xbf16, #tpu.memory_space<vmem>>, vector<32x1024xbf16>
    %55 = vector.extract_strided_slice %31 {offsets = [28, 0], sizes = [4, 32], strides = [1, 1]} : vector<36x32xbf16> to vector<4x32xbf16>
    %cst_27 = arith.constant dense<0.000000e+00> : vector<4x1024xf32>
    %56 = tpu.matmul %55, %54, %cst_27 {dimension_numbers = #tpu.dot_dimension_numbers<[1], [0], [0], [1], [0, 0, 1, 1], [], []>} : vector<4x32xbf16>, vector<32x1024xbf16>, vector<4x1024xf32> -> vector<4x1024xf32>
    %57 = arith.addf %53, %56 : vector<4x1024xf32>
    %58 = arith.addf %46, %57 : vector<4x1024xf32>
    %c0_28 = arith.constant 0 : index
    %c97 = arith.constant 97 : index
    %59 = vector.load %arg5[%c0_28, %c97] : memref<32x1185xbf16, #tpu.memory_space<vmem>>, vector<32x1024xbf16>
    %60 = vector.extract_strided_slice %31 {offsets = [8, 0], sizes = [4, 32], strides = [1, 1]} : vector<36x32xbf16> to vector<4x32xbf16>
    %cst_29 = arith.constant dense<0.000000e+00> : vector<4x1024xf32>
    %61 = tpu.matmul %60, %59, %cst_29 {dimension_numbers = #tpu.dot_dimension_numbers<[1], [0], [0], [1], [0, 0, 1, 1], [], []>} : vector<4x32xbf16>, vector<32x1024xbf16>, vector<4x1024xf32> -> vector<4x1024xf32>
    %c0_30 = arith.constant 0 : index
    %c129 = arith.constant 129 : index
    %62 = vector.load %arg5[%c0_30, %c129] : memref<32x1185xbf16, #tpu.memory_space<vmem>>, vector<32x1024xbf16>
    %63 = vector.extract_strided_slice %31 {offsets = [20, 0], sizes = [4, 32], strides = [1, 1]} : vector<36x32xbf16> to vector<4x32xbf16>
    %cst_31 = arith.constant dense<0.000000e+00> : vector<4x1024xf32>
    %64 = tpu.matmul %63, %62, %cst_31 {dimension_numbers = #tpu.dot_dimension_numbers<[1], [0], [0], [1], [0, 0, 1, 1], [], []>} : vector<4x32xbf16>, vector<32x1024xbf16>, vector<4x1024xf32> -> vector<4x1024xf32>
    %65 = arith.addf %61, %64 : vector<4x1024xf32>
    %c0_32 = arith.constant 0 : index
    %c161 = arith.constant 161 : index
    %66 = vector.load %arg5[%c0_32, %c161] : memref<32x1185xbf16, #tpu.memory_space<vmem>>, vector<32x1024xbf16>
    %67 = vector.extract_strided_slice %31 {offsets = [32, 0], sizes = [4, 32], strides = [1, 1]} : vector<36x32xbf16> to vector<4x32xbf16>
    %cst_33 = arith.constant dense<0.000000e+00> : vector<4x1024xf32>
    %68 = tpu.matmul %67, %66, %cst_33 {dimension_numbers = #tpu.dot_dimension_numbers<[1], [0], [0], [1], [0, 0, 1, 1], [], []>} : vector<4x32xbf16>, vector<32x1024xbf16>, vector<4x1024xf32> -> vector<4x1024xf32>
    %69 = arith.addf %65, %68 : vector<4x1024xf32>
    %70 = vector.broadcast %28 : vector<1x1024xf32> to vector<4x1024xf32>
    %71 = arith.mulf %69, %70 : vector<4x1024xf32>
    %72 = arith.addf %58, %71 : vector<4x1024xf32>
    %73 = vector.broadcast %32 : vector<4x1xf32> to vector<4x1024xf32>
    %74 = arith.addf %72, %73 : vector<4x1024xf32>
    %c0_34 = arith.constant 0 : index
    %c0_35 = arith.constant 0 : index
    %c0_36 = arith.constant 0 : index
    %75 = vector.load %arg4[%c0_34, %c0_35, %c0_36] : memref<1x4x1024xf32, #tpu.memory_space<vmem>>, vector<1x4x1024xf32>
    %76 = vector.shape_cast %75 : vector<1x4x1024xf32> to vector<4x1024xf32>
    %77 = vector.shape_cast %74 : vector<4x1024xf32> to vector<1x4x1024xf32>
    tpu.vector_store %arg4[%c0_34, %c0_35, %c0_36], %77 {strides = array<i32>} : memref<1x4x1024xf32, #tpu.memory_space<vmem>>, vector<1x4x1024xf32>,
    return
  }
  func.func @transform_0(%arg0: i32) -> (i32, i32, i32) {
    %c0_i32 = arith.constant 0 : i32
    %c0_i32_0 = arith.constant 0 : i32
    %c0_i32_1 = arith.constant 0 : i32
    return %arg0, %c0_i32, %c0_i32_0 : i32, i32, i32
  }
  func.func @transform_1(%arg0: i32) -> (i32, i32) {
    %c0_i32 = arith.constant 0 : i32
    %c0_i32_0 = arith.constant 0 : i32
    %c0_i32_1 = arith.constant 0 : i32
    return %c0_i32, %c0_i32_0 : i32, i32
  }
  func.func @transform_2(%arg0: i32) -> (i32, i32) {
    %c0_i32 = arith.constant 0 : i32
    %c0_i32_0 = arith.constant 0 : i32
    %c0_i32_1 = arith.constant 0 : i32
    return %c0_i32, %c0_i32_0 : i32, i32
  }
  func.func @transform_3(%arg0: i32) -> (i32, i32, i32) {
    %c0_i32 = arith.constant 0 : i32
    %c0_i32_0 = arith.constant 0 : i32
    %c0_i32_1 = arith.constant 0 : i32
    return %arg0, %c0_i32, %c0_i32_0 : i32, i32, i32
  }
}

</mosaic_0001>

<llo_original>
// kernel: edsr_forward.4
$region0: #{edsr_forward.4}
  #allocation0 [shape = 'u32[]', space=smem, size = 0x4, offset = 0x4, fixed_abs, tag = 'smem constant byte address 0x4 - core index']
  #allocation1 [shape = 'u32[144,128]{1,0:T(1,128)}', space=vmem, size = 0x12000, scoped, tag = 'internal scratch']
  #allocation2 [shape = 'bf16[32,401]{1,0:T(16,128)(2,1)}', space=vmem, size = 0x8000, scoped, tag = 'scratch operand']
  %s0 = inlined_call_operand.vmem [shape: bf16[2,32,256], index: 0, kind: input, shape index: {}]
  %s1 = inlined_call_operand.vmem [shape: bf16[1152,32], index: 1, kind: input, shape index: {}]
  %s2 = inlined_call_operand.vmem [shape: f32[128,1], index: 2, kind: input, shape index: {}]
  %s3 = inlined_call_operand.vmem [shape: bf16[2,128,256], index: 3, kind: output, shape index: {}]
  %s4 = sld [smem:[#allocation0]]
  $region45: #{edsr_forward.4} parent=0
    _
  %s6 = ssub.s32 1, %s4
  %s7 = scalar_select 0, %s6, %s4
  loop: start=0, step=1, limit=4
  $region2: #{edsr_forward.4} parent=0 // loop_pre_header
    _
  $region3: #{edsr_forward.4} parent=0 // loop_header
    %s9 = sphi 0, %s13
    %p10 = scmp.ge.s32.totalorder %s9, 4
    %s19 = sphi 0, %s21
    %s22 = sphi 0, %s19
    %s23 = sphi 0, %s22
    %s39 = sphi 0, %s23
    %s43 = sphi 0, %s43
    %s45 = sphi 0, %s43
    %s46 = sphi 0, %s45
    %s60 = sphi 0, %s46
    %s64 = sphi 0, %s64
    %s66 = sphi 0, %s64
    %s67 = sphi 0, %s66
    %s81 = sphi 0, %s67
    %s87 = sphi 0, %s89
    %s90 = sphi 0, %s87
    %s91 = sphi 0, %s90
    %s107 = sphi 0, %s91
  $region4: #{edsr_forward.4} parent=0 // loop_header_branch
    %12 = sbr.rel (%p10) target = $region8
  $region5: #{edsr_forward.4} parent=0 // loop_body
    %s14 = ssub.s32 %s9, 1
    %s15 = ssub.s32 %s9, 2
    %s16 = sadd.s32 %s9, 1
    %s17 = ssub.s32 %s9, %s16
    %p18 = scmp.eq.s32.totalorder %s17, 0
    %s20 = sadd.s32 %s19, 1
    %s21 = scalar_select %p18, %s19, %s20
    %p24 = pneg %p18
    %p25 = scmp.eq.s32.totalorder %s9, 1
    %p26 = por %p24, %p25
    %p27 = scmp.ne.s32.totalorder %s19, %s22
    %p28 = scmp.eq.s32.totalorder %s9, 0
    %p29 = por %p27, %p28
    %p30 = scmp.ne.s32.totalorder %s19, %s22
    %p31 = scmp.eq.s32.totalorder %s14, 1
    %p32 = por %p30, %p31
    %p33 = scmp.ne.s32.totalorder %s22, %s23
    %p34 = scmp.eq.s32.totalorder %s14, 0
    %p35 = por %p33, %p34
    %p36 = scmp.ne.s32.totalorder %s22, %s23
    %p37 = scmp.eq.s32.totalorder %s15, 1
    %p38 = por %p36, %p37
    %p40 = scmp.ne.s32.totalorder %s23, %s39
    %p41 = scmp.eq.s32.totalorder %s15, 0
    %p42 = por %p40, %p41
    %s44 = sadd.s32 %s43, 1
    %p47 = scmp.eq.s32.totalorder %s9, 1
    %p48 = scmp.ne.s32.totalorder %s43, %s45
    %p49 = scmp.eq.s32.totalorder %s9, 0
    %p50 = por %p48, %p49
    %p51 = scmp.ne.s32.totalorder %s43, %s45
    %p52 = scmp.eq.s32.totalorder %s14, 1
    %p53 = por %p51, %p52
    %p54 = scmp.ne.s32.totalorder %s45, %s46
    %p55 = scmp.eq.s32.totalorder %s14, 0
    %p56 = por %p54, %p55
    %p57 = scmp.ne.s32.totalorder %s45, %s46
    %p58 = scmp.eq.s32.totalorder %s15, 1
    %p59 = por %p57, %p58
    %p61 = scmp.ne.s32.totalorder %s46, %s60
    %p62 = scmp.eq.s32.totalorder %s15, 0
    %p63 = por %p61, %p62
    %s65 = sadd.s32 %s64, 1
    %p68 = scmp.eq.s32.totalorder %s9, 1
    %p69 = scmp.ne.s32.totalorder %s64, %s66
    %p70 = scmp.eq.s32.totalorder %s9, 0
    %p71 = por %p69, %p70
    %p72 = scmp.ne.s32.totalorder %s64, %s66
    %p73 = scmp.eq.s32.totalorder %s14, 1
    %p74 = por %p72, %p73
    %p75 = scmp.ne.s32.totalorder %s66, %s67
    %p76 = scmp.eq.s32.totalorder %s14, 0
    %p77 = por %p75, %p76
    %p78 = scmp.ne.s32.totalorder %s66, %s67
    %p79 = scmp.eq.s32.totalorder %s15, 1
    %p80 = por %p78, %p79
    %p82 = scmp.ne.s32.totalorder %s67, %s81
    %p83 = scmp.eq.s32.totalorder %s15, 0
    %p84 = por %p82, %p83
    %s85 = ssub.s32 %s9, %s16
    %p86 = scmp.eq.s32.totalorder %s85, 0
    %s88 = sadd.s32 %s87, 1
    %s89 = scalar_select %p86, %s87, %s88
    %p92 = pneg %p86
    %p93 = scmp.eq.s32.totalorder %s9, 1
    %p94 = por %p92, %p93
    %p95 = scmp.ne.s32.totalorder %s87, %s90
    %p96 = scmp.eq.s32.totalorder %s9, 0
    %p97 = por %p95, %p96
    %p98 = scmp.ne.s32.totalorder %s87, %s90
    %p99 = scmp.eq.s32.totalorder %s14, 1
    %p100 = por %p98, %p99
    %p101 = scmp.ne.s32.totalorder %s90, %s91
    %p102 = scmp.eq.s32.totalorder %s14, 0
    %p103 = por %p101, %p102
    %p104 = scmp.ne.s32.totalorder %s90, %s91
    %p105 = scmp.eq.s32.totalorder %s15, 1
    %p106 = por %p104, %p105
    %p108 = scmp.ne.s32.totalorder %s91, %s107
    %p109 = scmp.eq.s32.totalorder %s15, 0
    %p110 = por %p108, %p109
    %p111 = scmp.le.s32.totalorder 1, %s9
    %p112 = scmp.lt.s32.totalorder %s9, 3
    %p113 = pnand %p111, %p112
    %p114 = pneg %p113
    // Predicated region
    $region9: #{edsr_forward.4} parent=5 // pred_check
      _
    $region10: #{edsr_forward.4} parent=5 // pred_check_branch
      %116 = sbr.rel (%p113) target = $region12
    $region11: #{edsr_forward.4} parent=5 // pred_region
      %s117 = ssub.s32 %s9, 1
      // Predicated region
      $region13: #{edsr_forward.4} parent=11 // pred_check
        %p118 = pneg %p56
      $region14: #{edsr_forward.4} parent=11 // pred_check_branch
        %120 = sbr.rel (%p118) target = $region16
      $region15: #{edsr_forward.4} parent=11 // pred_region
        _
      $region16: #{edsr_forward.4} parent=11 // pred_fallthru
        _
      // Predicated region
      $region17: #{edsr_forward.4} parent=11 // pred_check
        %p121 = pneg %p77
      $region18: #{edsr_forward.4} parent=11 // pred_check_branch
        %123 = sbr.rel (%p121) target = $region20
      $region19: #{edsr_forward.4} parent=11 // pred_region
        _
      $region20: #{edsr_forward.4} parent=11 // pred_fallthru
        _
    $region12: #{edsr_forward.4} parent=5 // pred_fallthru
      _
    %p124 = scmp.lt.s32.totalorder %s9, 2
    // Predicated region
    $region21: #{edsr_forward.4} parent=5 // pred_check
      %p125 = pneg %p124
    $region22: #{edsr_forward.4} parent=5 // pred_check_branch
      %127 = sbr.rel (%p125) target = $region24
    $region23: #{edsr_forward.4} parent=5 // pred_region
      // Predicated region
      $region25: #{edsr_forward.4} parent=23 // pred_check
        %p128 = pneg %p29
      $region26: #{edsr_forward.4} parent=23 // pred_check_branch
        %130 = sbr.rel (%p128) target = $region28
      $region27: #{edsr_forward.4} parent=23 // pred_region
        %p131 = scmp.lt.s32.totalorder %s9, 1
        %s132 = scalar_select %p131, %s9, 1
        %s133 = smul.addr %s132, 8
        %s134 = smul.addr %s133, 4
        %s135 = scalar_lea.vmem %s0, %s134
      $region28: #{edsr_forward.4} parent=23 // pred_fallthru
        _
    $region24: #{edsr_forward.4} parent=5 // pred_fallthru
      _
    %p136 = scmp.le.s32.totalorder 1, %s9
    %p137 = scmp.lt.s32.totalorder %s9, 3
    %p138 = pnand %p136, %p137
    %p139 = pneg %p138
    // Predicated region
    $region29: #{edsr_forward.4} parent=5 // pred_check
      _
    $region30: #{edsr_forward.4} parent=5 // pred_check_branch
      %141 = sbr.rel (%p138) target = $region32
    $region31: #{edsr_forward.4} parent=5 // pred_region
      %s142 = ssub.s32 %s9, 1
      %p143 = scmp.lt.s32.totalorder %s14, 1
      %s144 = scalar_select %p143, %s14, 1
      %s145 = smul.addr %s144, 8
      %s146 = smul.addr %s145, 4
      %s147 = scalar_lea.vmem %s0, %s146
      %p148 = pneg %p35
      %p149 = pneg %p32
      %p150 = pneg %p56
      %p151 = pneg %p53
      %p152 = pneg %p77
      %p153 = pneg %p74
      %p154 = pneg %p103
      %p155 = pneg %p100
      %p156 = scmp.lt.s32.totalorder %s14, 1
      %s157 = scalar_select %p156, %s14, 1
      %s158 = smul.addr %s157, 32
      %s159 = smul.addr %s158, 4
      %s160 = scalar_lea.vmem %s3, %s159
      %p161 = scmp.lt.s32.totalorder %s14, 1
      %s162 = scalar_select %p161, %s14, 1
      %s163 = smul.addr %s162, 8
      %s164 = smul.addr %s163, 4
      %s165 = scalar_lea.vmem %s0, %s164
      %p166 = scmp.lt.s32.totalorder %s14, 1
      %s167 = scalar_select %p166, %s14, 1
      %s168 = smul.addr %s167, 32
      %s169 = smul.addr %s168, 4
      %s170 = scalar_lea.vmem %s3, %s169
      %vm172 = vcmask 1048440
      %173 = vst.msk [vmem:[#allocation2] sm:$0xff] %vm172, 0
      %174 = vst.msk [vmem:[#allocation2 + $0x20] sm:$0xff] %vm172, 0
      %vm175 = vcmask 138240
      %176 = vst.msk [vmem:[#allocation2 + $0x18] sm:$0xff] %vm175, 0
      %177 = vst.msk [vmem:[#allocation2 + $0x38] sm:$0xff] %vm175, 0
      %v178 = vlaneseq
      %v179 = vand.u32 %v178, 127
      %v180 = vadd.s32 %v179, 128
      %vm181 = vcmp.lt.s32.totalorder %v179, 0
      %v182 = vsub.s32 0, %v179
      %v183 = vsel %vm181, %v182, %v179
      %v184 = vshrl.u32 %v183, 4
      %v185 = vand.u32 %v183, 15
      %v186 = vsub.s32 0, %v185
      %v187 = vsel %vm181, %v186, %v185
      %vm188 = vcmp.lt.s32.totalorder %v180, 0
      %v189 = vsub.s32 0, %v180
      %v190 = vsel %vm188, %v189, %v180
      %v191 = vshrl.u32 %v190, 4
      %v192 = vand.u32 %v190, 15
      %v193 = vsub.s32 0, %v192
      %v194 = vsel %vm188, %v193, %v192
      %vm195 = vcmp.ne.s32.totalorder %v187, 0
      %vm196 = vcmp.ne.s32.totalorder %v194, 0
      %vm197 = vcmp.lt.s32.totalorder %v187, 0
      %vm198 = vcmp.lt.s32.totalorder %v194, 0
      %vm199 = vmand %vm197, %vm195
      %vm200 = vmand %vm198, %vm196
      %v201 = vadd.s32 %v187, 16
      %v202 = vadd.s32 %v194, 16
      %v203 = vsel %vm199, %v201, %v187
      %v204 = vsel %vm200, %v202, %v194
      %vm205 = vcmp.ne.s32.totalorder %v203, 0
      %vm206 = vcmp.ne.s32.totalorder %v204, 0
      %v207 = vsel %vm205, 1, 0
      %v208 = vsel %vm206, 1, 0
      %v209 = vcvt.s32.f32 %v207
      %v210 = vcvt.s32.f32 %v208
      %vm211 = vcmp.ne.s32.totalorder %v203, 15
      %vm212 = vcmp.ne.s32.totalorder %v204, 15
      %v213 = vsel %vm211, 1, 0
      %v214 = vsel %vm212, 1, 0
      %v215 = vcvt.s32.f32 %v213
      %v216 = vcvt.s32.f32 %v214
      %v217 = vld [vmem:[%s165] sm:$0xff]
      %v218 = vld [vmem:[%s165 + $0x8] sm:$0xff]
      %v219 = vld [vmem:[%s165 + $0x10] sm:$0xff]
      %v220 = vld [vmem:[%s165 + $0x18] sm:$0xff]
      %v221 = vld [vmem:[%s1] sm:$0xf]
      %v222 = vld [vmem:[%s1 + $0x4] sm:$0xf]
      %v223 = vld [vmem:[%s1 + $0x8] sm:$0xf]
      %v224 = vld [vmem:[%s1 + $0xc] sm:$0xf]
      %v225 = vld [vmem:[%s1 + $0x10] sm:$0xf]
      %v226 = vld [vmem:[%s1 + $0x14] sm:$0xf]
      %v227 = vld [vmem:[%s1 + $0x18] sm:$0xf]
      %v228 = vld [vmem:[%s1 + $0x1c] sm:$0xf]
      %v229 = vld [vmem:[%s1 + $0x20] sm:$0xf]
      %v230 = vld [vmem:[%s1 + $0x24] sm:$0xf]
      %v231 = vld [vmem:[%s1 + $0x28] sm:$0xf]
      %v232 = vld [vmem:[%s1 + $0x2c] sm:$0xf]
      %v233 = vld [vmem:[%s1 + $0x30] sm:$0xf]
      %v234 = vld [vmem:[%s1 + $0x34] sm:$0xf]
      %v235 = vld [vmem:[%s1 + $0x38] sm:$0xf]
      %v236 = vld [vmem:[%s1 + $0x3c] sm:$0xf]
      %v237 = vld [vmem:[%s1 + $0x40] sm:$0xf]
      %v238 = vld [vmem:[%s1 + $0x44] sm:$0xf]
      %v239 = vld [vmem:[%s1 + $0x48] sm:$0xf]
      %v240 = vld [vmem:[%s1 + $0x4c] sm:$0xf]
      %v241 = vld [vmem:[%s1 + $0x50] sm:$0xf]
      %v242 = vld [vmem:[%s1 + $0x54] sm:$0xf]
      %v243 = vld [vmem:[%s1 + $0x58] sm:$0xf]
      %v244 = vld [vmem:[%s1 + $0x5c] sm:$0xf]
      %v245 = vld [vmem:[%s1 + $0x60] sm:$0xf]
      %v246 = vld [vmem:[%s1 + $0x64] sm:$0xf]
      %v247 = vld [vmem:[%s1 + $0x68] sm:$0xf]
      %v248 = vld [vmem:[%s1 + $0x6c] sm:$0xf]
      %v249 = vld [vmem:[%s1 + $0x70] sm:$0xf]
      %v250 = vld [vmem:[%s1 + $0x74] sm:$0xf]
      %v251 = vld [vmem:[%s1 + $0x78] sm:$0xf]
      %v252 = vld [vmem:[%s1 + $0x7c] sm:$0xf]
      %v253 = vld [vmem:[%s1 + $0x80] sm:$0xf]
      %v254 = vld [vmem:[%s1 + $0x84] sm:$0xf]
      %v255 = vld [vmem:[%s1 + $0x88] sm:$0xf]
      %v256 = vld [vmem:[%s1 + $0x8c] sm:$0xf]
      %v257 = vld [vmem:[%s1 + $0x90] sm:$0xf]
      %v258 = vld [vmem:[%s1 + $0x94] sm:$0xf]
      %v259 = vld [vmem:[%s1 + $0x98] sm:$0xf]
      %v260 = vld [vmem:[%s1 + $0x9c] sm:$0xf]
      %v261 = vld [vmem:[%s1 + $0xa0] sm:$0xf]
      %v262 = vld [vmem:[%s1 + $0xa4] sm:$0xf]
      %v263 = vld [vmem:[%s1 + $0xa8] sm:$0xf]
      %v264 = vld [vmem:[%s1 + $0xac] sm:$0xf]
      %v265 = vld [vmem:[%s1 + $0xb0] sm:$0xf]
      %v266 = vld [vmem:[%s1 + $0xb4] sm:$0xf]
      %v267 = vld [vmem:[%s1 + $0xb8] sm:$0xf]
      %v268 = vld [vmem:[%s1 + $0xbc] sm:$0xf]
      %v269 = vld [vmem:[%s1 + $0xc0] sm:$0xf]
      %v270 = vld [vmem:[%s1 + $0xc4] sm:$0xf]
      %v271 = vld [vmem:[%s1 + $0xc8] sm:$0xf]
      %v272 = vld [vmem:[%s1 + $0xcc] sm:$0xf]
      %v273 = vld [vmem:[%s1 + $0xd0] sm:$0xf]
      %v274 = vld [vmem:[%s1 + $0xd4] sm:$0xf]
      %v275 = vld [vmem:[%s1 + $0xd8] sm:$0xf]
      %v276 = vld [vmem:[%s1 + $0xdc] sm:$0xf]
      %v277 = vld [vmem:[%s1 + $0xe0] sm:$0xf]
      %v278 = vld [vmem:[%s1 + $0xe4] sm:$0xf]
      %v279 = vld [vmem:[%s1 + $0xe8] sm:$0xf]
      %v280 = vld [vmem:[%s1 + $0xec] sm:$0xf]
      %v281 = vld [vmem:[%s1 + $0xf0] sm:$0xf]
      %v282 = vld [vmem:[%s1 + $0xf4] sm:$0xf]
      %v283 = vld [vmem:[%s1 + $0xf8] sm:$0xf]
      %v284 = vld [vmem:[%s1 + $0xfc] sm:$0xf]
      %v285 = vld [vmem:[%s1 + $0x100] sm:$0xf]
      %v286 = vld [vmem:[%s1 + $0x104] sm:$0xf]
      %v287 = vld [vmem:[%s1 + $0x108] sm:$0xf]
      %v288 = vld [vmem:[%s1 + $0x10c] sm:$0xf]
      %v289 = vld [vmem:[%s1 + $0x110] sm:$0xf]
      %v290 = vld [vmem:[%s1 + $0x114] sm:$0xf]
      %v291 = vld [vmem:[%s1 + $0x118] sm:$0xf]
      %v292 = vld [vmem:[%s1 + $0x11c] sm:$0xf]
      %v293 = vld [vmem:[%s1 + $0x120] sm:$0xf]
      %v294 = vld [vmem:[%s1 + $0x124] sm:$0xf]
      %v295 = vld [vmem:[%s1 + $0x128] sm:$0xf]
      %v296 = vld [vmem:[%s1 + $0x12c] sm:$0xf]
      %v297 = vld [vmem:[%s1 + $0x130] sm:$0xf]
      %v298 = vld [vmem:[%s1 + $0x134] sm:$0xf]
      %v299 = vld [vmem:[%s1 + $0x138] sm:$0xf]
      %v300 = vld [vmem:[%s1 + $0x13c] sm:$0xf]
      %v301 = vld [vmem:[%s1 + $0x140] sm:$0xf]
      %v302 = vld [vmem:[%s1 + $0x144] sm:$0xf]
      %v303 = vld [vmem:[%s1 + $0x148] sm:$0xf]
      %v304 = vld [vmem:[%s1 + $0x14c] sm:$0xf]
      %v305 = vld [vmem:[%s1 + $0x150] sm:$0xf]
      %v306 = vld [vmem:[%s1 + $0x154] sm:$0xf]
      %v307 = vld [vmem:[%s1 + $0x158] sm:$0xf]
      %v308 = vld [vmem:[%s1 + $0x15c] sm:$0xf]
      %v309 = vld [vmem:[%s1 + $0x160] sm:$0xf]
      %v310 = vld [vmem:[%s1 + $0x164] sm:$0xf]
      %v311 = vld [vmem:[%s1 + $0x168] sm:$0xf]
      %v312 = vld [vmem:[%s1 + $0x16c] sm:$0xf]
      %v313 = vld [vmem:[%s1 + $0x170] sm:$0xf]
      %v314 = vld [vmem:[%s1 + $0x174] sm:$0xf]
      %v315 = vld [vmem:[%s1 + $0x178] sm:$0xf]
      %v316 = vld [vmem:[%s1 + $0x17c] sm:$0xf]
      %v317 = vld [vmem:[%s1 + $0x180] sm:$0xf]
      %v318 = vld [vmem:[%s1 + $0x184] sm:$0xf]
      %v319 = vld [vmem:[%s1 + $0x188] sm:$0xf]
      %v320 = vld [vmem:[%s1 + $0x18c] sm:$0xf]
      %v321 = vld [vmem:[%s1 + $0x190] sm:$0xf]
      %v322 = vld [vmem:[%s1 + $0x194] sm:$0xf]
      %v323 = vld [vmem:[%s1 + $0x198] sm:$0xf]
      %v324 = vld [vmem:[%s1 + $0x19c] sm:$0xf]
      %v325 = vld [vmem:[%s1 + $0x1a0] sm:$0xf]
      %v326 = vld [vmem:[%s1 + $0x1a4] sm:$0xf]
      %v327 = vld [vmem:[%s1 + $0x1a8] sm:$0xf]
      %v328 = vld [vmem:[%s1 + $0x1ac] sm:$0xf]
      %v329 = vld [vmem:[%s1 + $0x1b0] sm:$0xf]
      %v330 = vld [vmem:[%s1 + $0x1b4] sm:$0xf]
      %v331 = vld [vmem:[%s1 + $0x1b8] sm:$0xf]
      %v332 = vld [vmem:[%s1 + $0x1bc] sm:$0xf]
      %v333 = vld [vmem:[%s1 + $0x1c0] sm:$0xf]
      %v334 = vld [vmem:[%s1 + $0x1c4] sm:$0xf]
      %v335 = vld [vmem:[%s1 + $0x1c8] sm:$0xf]
      %v336 = vld [vmem:[%s1 + $0x1cc] sm:$0xf]
      %v337 = vld [vmem:[%s1 + $0x1d0] sm:$0xf]
      %v338 = vld [vmem:[%s1 + $0x1d4] sm:$0xf]
      %v339 = vld [vmem:[%s1 + $0x1d8] sm:$0xf]
      %v340 = vld [vmem:[%s1 + $0x1dc] sm:$0xf]
      %v341 = vld [vmem:[%s1 + $0x1e0] sm:$0xf]
      %v342 = vld [vmem:[%s1 + $0x1e4] sm:$0xf]
      %v343 = vld [vmem:[%s1 + $0x1e8] sm:$0xf]
      %v344 = vld [vmem:[%s1 + $0x1ec] sm:$0xf]
      %v345 = vld [vmem:[%s1 + $0x1f0] sm:$0xf]
      %v346 = vld [vmem:[%s1 + $0x1f4] sm:$0xf]
      %v347 = vld [vmem:[%s1 + $0x1f8] sm:$0xf]
      %v348 = vld [vmem:[%s1 + $0x1fc] sm:$0xf]
      %v349 = vld [vmem:[%s1 + $0x200] sm:$0xf]
      %v350 = vld [vmem:[%s1 + $0x204] sm:$0xf]
      %v351 = vld [vmem:[%s1 + $0x208] sm:$0xf]
      %v352 = vld [vmem:[%s1 + $0x20c] sm:$0xf]
      %v353 = vld [vmem:[%s1 + $0x210] sm:$0xf]
      %v354 = vld [vmem:[%s1 + $0x214] sm:$0xf]
      %v355 = vld [vmem:[%s1 + $0x218] sm:$0xf]
      %v356 = vld [vmem:[%s1 + $0x21c] sm:$0xf]
      %v357 = vld [vmem:[%s1 + $0x220] sm:$0xf]
      %v358 = vld [vmem:[%s1 + $0x224] sm:$0xf]
      %v359 = vld [vmem:[%s1 + $0x228] sm:$0xf]
      %v360 = vld [vmem:[%s1 + $0x22c] sm:$0xf]
      %v361 = vld [vmem:[%s1 + $0x230] sm:$0xf]
      %v362 = vld [vmem:[%s1 + $0x234] sm:$0xf]
      %v363 = vld [vmem:[%s1 + $0x238] sm:$0xf]
      %v364 = vld [vmem:[%s1 + $0x23c] sm:$0xf]
      %v365 = vld [vmem:[%s2] sm:$0xff]
      %v366 = vld [vmem:[%s2 + $0x8] sm:$0xff]
      %v367 = vld [vmem:[%s2 + $0x10] sm:$0xff]
      %v368 = vld [vmem:[%s2 + $0x18] sm:$0xff]
      %v369 = vld [vmem:[%s2 + $0x20] sm:$0xff]
      %v370 = vld [vmem:[%s2 + $0x28] sm:$0xff]
      %v371 = vld [vmem:[%s2 + $0x30] sm:$0xff]
      %v372 = vld [vmem:[%s2 + $0x38] sm:$0xff]
      %v373 = vld [vmem:[%s2 + $0x40] sm:$0xff]
      %v374 = vld [vmem:[%s2 + $0x48] sm:$0xff]
      %v375 = vld [vmem:[%s2 + $0x50] sm:$0xff]
      %v376 = vld [vmem:[%s2 + $0x58] sm:$0xff]
      %v377 = vld [vmem:[%s2 + $0x60] sm:$0xff]
      %v378 = vld [vmem:[%s2 + $0x68] sm:$0xff]
      %v379 = vld [vmem:[%s2 + $0x70] sm:$0xff]
      %v380 = vld [vmem:[%s2 + $0x78] sm:$0xff]
      %v385 = vunpack.c.l.b16 %v217
      %v386 = vunpack.c.h.b16 %v217
      %v387 = vunpack.c.l.b16 %v218
      %v388 = vunpack.c.h.b16 %v218
      %v389 = vunpack.c.l.b16 %v219
      %v390 = vunpack.c.h.b16 %v219
      %v391 = vunpack.c.l.b16 %v220
      %v392 = vunpack.c.h.b16 %v220
      %v393 = vpack.c.b16 %v387, %v385
      %v394 = vpack.c.b16 %v388, %v386
      %v395 = vpack.c.b16 %v391, %v389
      %v396 = vpack.c.b16 %v392, %v390
      %401 = vst [vmem:[#allocation2 + $0x8] sm:$0xff] %v393
      %402 = vst [vmem:[#allocation2 + $0x10] sm:$0xff] %v394
      %403 = vst [vmem:[#allocation2 + $0x28] sm:$0xff] %v395
      %404 = vst [vmem:[#allocation2 + $0x30] sm:$0xff] %v396
      %v405 = vld [vmem:[#allocation2] sm:$0xff]
      %v406 = vld [vmem:[#allocation2 + $0x8] sm:$0xff]
      %v407 = vld [vmem:[#allocation2 + $0x10] sm:$0xff]
      %v408 = vld [vmem:[#allocation2 + $0x20] sm:$0xff]
      %v409 = vld [vmem:[#allocation2 + $0x28] sm:$0xff]
      %v410 = vld [vmem:[#allocation2 + $0x30] sm:$0xff]
      %v427 = vunpack.c.l.b16 %v269
      %v428 = vunpack.c.l.b16 %v270
      %v429 = vunpack.c.l.b16 %v271
      %v430 = vunpack.c.l.b16 %v272
      %v431 = vunpack.c.l.b16 %v273
      %v432 = vunpack.c.l.b16 %v274
      %v433 = vunpack.c.l.b16 %v275
      %v434 = vunpack.c.l.b16 %v276
      %v435 = vunpack.c.l.b16 %v277
      %v436 = vunpack.c.l.b16 %v278
      %v437 = vunpack.c.l.b16 %v279
      %v438 = vunpack.c.l.b16 %v280
      %v439 = vunpack.c.l.b16 %v281
      %v440 = vunpack.c.l.b16 %v282
      %v441 = vunpack.c.l.b16 %v283
      %v442 = vunpack.c.l.b16 %v284
      %v443 = vpack.c.b16 %v428, %v427
      %v444 = vpack.c.b16 %v430, %v429
      %v445 = vpack.c.b16 %v432, %v431
      %v446 = vpack.c.b16 %v434, %v433
      %v447 = vpack.c.b16 %v436, %v435
      %v448 = vpack.c.b16 %v438, %v437
      %v449 = vpack.c.b16 %v440, %v439
      %v450 = vpack.c.b16 %v442, %v441
      %457 = vrot.lane.b32.xlu0 %v405, 1
      %v458 = vpop.permute.xlu0 %457
      %459 = vrot.lane.b32.xlu0 %v406, 1
      %v460 = vpop.permute.xlu0 %459
      %461 = vrot.lane.b32.xlu0 %v407, 1
      %v462 = vpop.permute.xlu0 %461
      %463 = vrot.lane.b32.xlu0 %v408, 1
      %v464 = vpop.permute.xlu0 %463
      %465 = vrot.lane.b32.xlu0 %v409, 1
      %v466 = vpop.permute.xlu0 %465
      %467 = vrot.lane.b32.xlu0 %v410, 1
      %v468 = vpop.permute.xlu0 %467
      %vm469 = vcmask 7168
      %v470 = vsel %vm469, %v458, %v460
      %v471 = vsel %vm469, %v460, %v462
      %v472 = vsel %vm469, %v464, %v466
      %v473 = vsel %vm469, %v466, %v468
      %vm478 = vcmask 261120
      %v480 = vsel %vm478, %v443, 0
      %v483 = vsel %vm478, %v444, 0
      %v486 = vsel %vm478, %v445, 0
      %v489 = vsel %vm478, %v446, 0
      %v492 = vsel %vm478, %v447, 0
      %v495 = vsel %vm478, %v448, 0
      %v498 = vsel %vm478, %v449, 0
      %v501 = vsel %vm478, %v450, 0
      %503 = vmatprep.subr.bf16.mxu0 %v471
      %504 = vmatpush1.bf16.msra.mxu0 %v470
      %505 = vmatprep.subr.bf16.mxu0 %v473
      %506 = vmatpush1.bf16.msra.mxu0 %v472
      %507 = vmatprep.subr.bf16.mxu0 0
      %508 = vmatpush1.bf16.msra.mxu0 0
      %509 = vmatprep.subr.bf16.mxu0 0
      %510 = vmatpush1.bf16.msra.mxu0 0
      %511 = vmatprep.subr.bf16.mxu0 0
      %512 = vmatpush1.bf16.msra.mxu0 0
      %513 = vmatprep.subr.bf16.mxu0 0
      %514 = vmatpush1.bf16.msra.mxu0 0
      %515 = vmatprep.subr.bf16.mxu0 0
      %516 = vmatpush1.bf16.msra.mxu0 0
      %517 = vmatprep.subr.bf16.mxu0 0
      %518 = vmatpush1.bf16.msra.mxu0 0
      %519 = vmatprep.subr.bf16.mxu0 0
      %520 = vmatpush1.bf16.msra.mxu0 0
      %521 = vmatprep.subr.bf16.mxu0 0
      %522 = vmatpush1.bf16.msra.mxu0 0
      %523 = vmatprep.subr.bf16.mxu0 0
      %524 = vmatpush1.bf16.msra.mxu0 0
      %525 = vmatprep.subr.bf16.mxu0 0
      %526 = vmatpush1.bf16.msra.mxu0 0
      %527 = vmatprep.subr.bf16.mxu0 0
      %528 = vmatpush1.bf16.msra.mxu0 0
      %529 = vmatprep.subr.bf16.mxu0 0
      %530 = vmatpush1.bf16.msra.mxu0 0
      %531 = vmatprep.subr.bf16.mxu0 0
      %532 = vmatpush1.bf16.msra.mxu0 0
      %533 = vmatprep.subr.bf16.mxu0 0
      %534 = vmatpush1.bf16.msra.mxu0 0
      %535 = vmatprep.mubr.bf16.mxu0 0
      %536 = vmatmul.mubr.bf16.gmra.mrb[0].mxu0 %v480
      %v537 = vpop.f32.mrb[0].mxu0
      %v538 = vadd.f32 0.0, %v537
      %v539 = vpop.f32.mrb[0].mxu0
      %v540 = vadd.f32 0.0, %v539
      %v541 = vpop.f32.mrb[0].mxu0
      %v542 = vadd.f32 0.0, %v541
      %v543 = vpop.f32.mrb[0].mxu0
      %v544 = vadd.f32 0.0, %v543
      %545 = vmatprep.mubr.bf16.mxu0 0
      %546 = vmatmul.mubr.bf16.gmra.mrb[0].mxu0 %v483
      %v547 = vpop.f32.mrb[0].mxu0
      %v548 = vadd.f32 0.0, %v547
      %v549 = vpop.f32.mrb[0].mxu0
      %v550 = vadd.f32 0.0, %v549
      %v551 = vpop.f32.mrb[0].mxu0
      %v552 = vadd.f32 0.0, %v551
      %v553 = vpop.f32.mrb[0].mxu0
      %v554 = vadd.f32 0.0, %v553
      %555 = vmatprep.mubr.bf16.mxu0 0
      %556 = vmatmul.mubr.bf16.gmra.mrb[0].mxu0 %v486
      %v557 = vpop.f32.mrb[0].mxu0
      %v558 = vadd.f32 0.0, %v557
      %v559 = vpop.f32.mrb[0].mxu0
      %v560 = vadd.f32 0.0, %v559
      %v561 = vpop.f32.mrb[0].mxu0
      %v562 = vadd.f32 0.0, %v561
      %v563 = vpop.f32.mrb[0].mxu0
      %v564 = vadd.f32 0.0, %v563
      %565 = vmatprep.mubr.bf16.mxu0 0
      %566 = vmatmul.mubr.bf16.gmra.mrb[0].mxu0 %v489
      %v567 = vpop.f32.mrb[0].mxu0
      %v568 = vadd.f32 0.0, %v567
      %v569 = vpop.f32.mrb[0].mxu0
      %v570 = vadd.f32 0.0, %v569
      %v571 = vpop.f32.mrb[0].mxu0
      %v572 = vadd.f32 0.0, %v571
      %v573 = vpop.f32.mrb[0].mxu0
      %v574 = vadd.f32 0.0, %v573
      %575 = vmatprep.mubr.bf16.mxu0 0
      %576 = vmatmul.mubr.bf16.gmra.mrb[0].mxu0 %v492
      %v577 = vpop.f32.mrb[0].mxu0
      %v578 = vadd.f32 0.0, %v577
      %v579 = vpop.f32.mrb[0].mxu0
      %v580 = vadd.f32 0.0, %v579
      %v581 = vpop.f32.mrb[0].mxu0
      %v582 = vadd.f32 0.0, %v581
      %v583 = vpop.f32.mrb[0].mxu0
      %v584 = vadd.f32 0.0, %v583
      %585 = vmatprep.mubr.bf16.mxu0 0
      %586 = vmatmul.mubr.bf16.gmra.mrb[0].mxu0 %v495
      %v587 = vpop.f32.mrb[0].mxu0
      %v588 = vadd.f32 0.0, %v587
      %v589 = vpop.f32.mrb[0].mxu0
      %v590 = vadd.f32 0.0, %v589
      %v591 = vpop.f32.mrb[0].mxu0
      %v592 = vadd.f32 0.0, %v591
      %v593 = vpop.f32.mrb[0].mxu0
      %v594 = vadd.f32 0.0, %v593
      %595 = vmatprep.mubr.bf16.mxu0 0
      %596 = vmatmul.mubr.bf16.gmra.mrb[0].mxu0 %v498
      %v597 = vpop.f32.mrb[0].mxu0
      %v598 = vadd.f32 0.0, %v597
      %v599 = vpop.f32.mrb[0].mxu0
      %v600 = vadd.f32 0.0, %v599
      %v601 = vpop.f32.mrb[0].mxu0
      %v602 = vadd.f32 0.0, %v601
      %v603 = vpop.f32.mrb[0].mxu0
      %v604 = vadd.f32 0.0, %v603
      %605 = vmatprep.mubr.bf16.mxu0 0
      %606 = vmatmul.mubr.bf16.gmra.mrb[0].mxu0 %v501
      %v607 = vpop.f32.mrb[0].mxu0
      %v608 = vadd.f32 0.0, %v607
      %v609 = vpop.f32.mrb[0].mxu0
      %v610 = vadd.f32 0.0, %v609
      %v611 = vpop.f32.mrb[0].mxu0
      %v612 = vadd.f32 0.0, %v611
      %v613 = vpop.f32.mrb[0].mxu0
      %v614 = vadd.f32 0.0, %v613
      %615 = vdwg.mxu0
      %v632 = vunpack.c.l.b16 %v221
      %v633 = vunpack.c.l.b16 %v222
      %v634 = vunpack.c.l.b16 %v223
      %v635 = vunpack.c.l.b16 %v224
      %v636 = vunpack.c.l.b16 %v225
      %v637 = vunpack.c.l.b16 %v226
      %v638 = vunpack.c.l.b16 %v227
      %v639 = vunpack.c.l.b16 %v228
      %v640 = vunpack.c.l.b16 %v229
      %v641 = vunpack.c.l.b16 %v230
      %v642 = vunpack.c.l.b16 %v231
      %v643 = vunpack.c.l.b16 %v232
      %v644 = vunpack.c.l.b16 %v233
      %v645 = vunpack.c.l.b16 %v234
      %v646 = vunpack.c.l.b16 %v235
      %v647 = vunpack.c.l.b16 %v236
      %v648 = vpack.c.b16 %v633, %v632
      %v649 = vpack.c.b16 %v635, %v634
      %v650 = vpack.c.b16 %v637, %v636
      %v651 = vpack.c.b16 %v639, %v638
      %v652 = vpack.c.b16 %v641, %v640
      %v653 = vpack.c.b16 %v643, %v642
      %v654 = vpack.c.b16 %v645, %v644
      %v655 = vpack.c.b16 %v647, %v646
      %656 = vrot.lane.b32.xlu0 %v405, 17
      %v657 = vpop.permute.xlu0 %656
      %658 = vrot.lane.b32.xlu0 %v406, 17
      %v659 = vpop.permute.xlu0 %658
      %660 = vrot.lane.b32.xlu0 %v407, 17
      %v661 = vpop.permute.xlu0 %660
      %662 = vrot.lane.b32.xlu0 %v408, 17
      %v663 = vpop.permute.xlu0 %662
      %664 = vrot.lane.b32.xlu0 %v409, 17
      %v665 = vpop.permute.xlu0 %664
      %666 = vrot.lane.b32.xlu0 %v410, 17
      %v667 = vpop.permute.xlu0 %666
      %vm668 = vcmask 138240
      %v669 = vsel %vm668, %v657, %v659
      %v670 = vsel %vm668, %v659, %v661
      %v671 = vsel %vm668, %v663, %v665
      %v672 = vsel %vm668, %v665, %v667
      %v678 = vsel %vm478, %v648, 0
      %v681 = vsel %vm478, %v649, 0
      %v684 = vsel %vm478, %v650, 0
      %v687 = vsel %vm478, %v651, 0
      %v690 = vsel %vm478, %v652, 0
      %v693 = vsel %vm478, %v653, 0
      %v696 = vsel %vm478, %v654, 0
      %v699 = vsel %vm478, %v655, 0
      %701 = vmatprep.subr.bf16.mxu0 %v670
      %702 = vmatpush1.bf16.msra.mxu0 %v669
      %703 = vmatprep.subr.bf16.mxu0 %v672
      %704 = vmatpush1.bf16.msra.mxu0 %v671
      %705 = vmatprep.subr.bf16.mxu0 0
      %706 = vmatpush1.bf16.msra.mxu0 0
      %707 = vmatprep.subr.bf16.mxu0 0
      %708 = vmatpush1.bf16.msra.mxu0 0
      %709 = vmatprep.subr.bf16.mxu0 0
      %710 = vmatpush1.bf16.msra.mxu0 0
      %711 = vmatprep.subr.bf16.mxu0 0
      %712 = vmatpush1.bf16.msra.mxu0 0
      %713 = vmatprep.subr.bf16.mxu0 0
      %714 = vmatpush1.bf16.msra.mxu0 0
      %715 = vmatprep.subr.bf16.mxu0 0
      %716 = vmatpush1.bf16.msra.mxu0 0
      %717 = vmatprep.subr.bf16.mxu0 0
      %718 = vmatpush1.bf16.msra.mxu0 0
      %719 = vmatprep.subr.bf16.mxu0 0
      %720 = vmatpush1.bf16.msra.mxu0 0
      %721 = vmatprep.subr.bf16.mxu0 0
      %722 = vmatpush1.bf16.msra.mxu0 0
      %723 = vmatprep.subr.bf16.mxu0 0
      %724 = vmatpush1.bf16.msra.mxu0 0
      %725 = vmatprep.subr.bf16.mxu0 0
      %726 = vmatpush1.bf16.msra.mxu0 0
      %727 = vmatprep.subr.bf16.mxu0 0
      %728 = vmatpush1.bf16.msra.mxu0 0
      %729 = vmatprep.subr.bf16.mxu0 0
      %730 = vmatpush1.bf16.msra.mxu0 0
      %731 = vmatprep.subr.bf16.mxu0 0
      %732 = vmatpush1.bf16.msra.mxu0 0
      %733 = vmatprep.mubr.bf16.mxu0 0
      %734 = vmatmul.mubr.bf16.gmra.mrb[0].mxu0 %v678
      %v735 = vpop.f32.mrb[0].mxu0
      %v736 = vadd.f32 %v538, %v735
      %v737 = vpop.f32.mrb[0].mxu0
      %v738 = vadd.f32 %v540, %v737
      %v739 = vpop.f32.mrb[0].mxu0
      %v740 = vadd.f32 %v542, %v739
      %v741 = vpop.f32.mrb[0].mxu0
      %v742 = vadd.f32 %v544, %v741
      %743 = vmatprep.mubr.bf16.mxu0 0
      %744 = vmatmul.mubr.bf16.gmra.mrb[0].mxu0 %v681
      %v745 = vpop.f32.mrb[0].mxu0
      %v746 = vadd.f32 %v548, %v745
      %v747 = vpop.f32.mrb[0].mxu0
      %v748 = vadd.f32 %v550, %v747
      %v749 = vpop.f32.mrb[0].mxu0
      %v750 = vadd.f32 %v552, %v749
      %v751 = vpop.f32.mrb[0].mxu0
      %v752 = vadd.f32 %v554, %v751
      %753 = vmatprep.mubr.bf16.mxu0 0
      %754 = vmatmul.mubr.bf16.gmra.mrb[0].mxu0 %v684
      %v755 = vpop.f32.mrb[0].mxu0
      %v756 = vadd.f32 %v558, %v755
      %v757 = vpop.f32.mrb[0].mxu0
      %v758 = vadd.f32 %v560, %v757
      %v759 = vpop.f32.mrb[0].mxu0
      %v760 = vadd.f32 %v562, %v759
      %v761 = vpop.f32.mrb[0].mxu0
      %v762 = vadd.f32 %v564, %v761
      %763 = vmatprep.mubr.bf16.mxu0 0
      %764 = vmatmul.mubr.bf16.gmra.mrb[0].mxu0 %v687
      %v765 = vpop.f32.mrb[0].mxu0
      %v766 = vadd.f32 %v568, %v765
      %v767 = vpop.f32.mrb[0].mxu0
      %v768 = vadd.f32 %v570, %v767
      %v769 = vpop.f32.mrb[0].mxu0
      %v770 = vadd.f32 %v572, %v769
      %v771 = vpop.f32.mrb[0].mxu0
      %v772 = vadd.f32 %v574, %v771
      %773 = vmatprep.mubr.bf16.mxu0 0
      %774 = vmatmul.mubr.bf16.gmra.mrb[0].mxu0 %v690
      %v775 = vpop.f32.mrb[0].mxu0
      %v776 = vadd.f32 %v578, %v775
      %v777 = vpop.f32.mrb[0].mxu0
      %v778 = vadd.f32 %v580, %v777
      %v779 = vpop.f32.mrb[0].mxu0
      %v780 = vadd.f32 %v582, %v779
      %v781 = vpop.f32.mrb[0].mxu0
      %v782 = vadd.f32 %v584, %v781
      %783 = vmatprep.mubr.bf16.mxu0 0
      %784 = vmatmul.mubr.bf16.gmra.mrb[0].mxu0 %v693
      %v785 = vpop.f32.mrb[0].mxu0
      %v786 = vadd.f32 %v588, %v785
      %v787 = vpop.f32.mrb[0].mxu0
      %v788 = vadd.f32 %v590, %v787
      %v789 = vpop.f32.mrb[0].mxu0
      %v790 = vadd.f32 %v592, %v789
      %v791 = vpop.f32.mrb[0].mxu0
      %v792 = vadd.f32 %v594, %v791
      %793 = vmatprep.mubr.bf16.mxu0 0
      %794 = vmatmul.mubr.bf16.gmra.mrb[0].mxu0 %v696
      %v795 = vpop.f32.mrb[0].mxu0
      %v796 = vadd.f32 %v598, %v795
      %v797 = vpop.f32.mrb[0].mxu0
      %v798 = vadd.f32 %v600, %v797
      %v799 = vpop.f32.mrb[0].mxu0
      %v800 = vadd.f32 %v602, %v799
      %v801 = vpop.f32.mrb[0].mxu0
      %v802 = vadd.f32 %v604, %v801
      %803 = vmatprep.mubr.bf16.mxu0 0
      %804 = vmatmul.mubr.bf16.gmra.mrb[0].mxu0 %v699
      %v805 = vpop.f32.mrb[0].mxu0
      %v806 = vadd.f32 %v608, %v805
      %v807 = vpop.f32.mrb[0].mxu0
      %v808 = vadd.f32 %v610, %v807
      %v809 = vpop.f32.mrb[0].mxu0
      %v810 = vadd.f32 %v612, %v809
      %v811 = vpop.f32.mrb[0].mxu0
      %v812 = vadd.f32 %v614, %v811
      %813 = vdwg.mxu0
      %v814 = vld [vmem:[#allocation2 + $0x8] sm:$0xff]
      %v815 = vld [vmem:[#allocation2 + $0x10] sm:$0xff]
      %v816 = vld [vmem:[#allocation2 + $0x18] sm:$0xff]
      %v817 = vld [vmem:[#allocation2 + $0x28] sm:$0xff]
      %v818 = vld [vmem:[#allocation2 + $0x30] sm:$0xff]
      %v819 = vld [vmem:[#allocation2 + $0x38] sm:$0xff]
      %v836 = vunpack.c.l.b16 %v317
      %v837 = vunpack.c.l.b16 %v318
      %v838 = vunpack.c.l.b16 %v319
      %v839 = vunpack.c.l.b16 %v320
      %v840 = vunpack.c.l.b16 %v321
      %v841 = vunpack.c.l.b16 %v322
      %v842 = vunpack.c.l.b16 %v323
      %v843 = vunpack.c.l.b16 %v324
      %v844 = vunpack.c.l.b16 %v325
      %v845 = vunpack.c.l.b16 %v326
      %v846 = vunpack.c.l.b16 %v327
      %v847 = vunpack.c.l.b16 %v328
      %v848 = vunpack.c.l.b16 %v329
      %v849 = vunpack.c.l.b16 %v330
      %v850 = vunpack.c.l.b16 %v331
      %v851 = vunpack.c.l.b16 %v332
      %v852 = vpack.c.b16 %v837, %v836
      %v853 = vpack.c.b16 %v839, %v838
      %v854 = vpack.c.b16 %v841, %v840
      %v855 = vpack.c.b16 %v843, %v842
      %v856 = vpack.c.b16 %v845, %v844
      %v857 = vpack.c.b16 %v847, %v846
      %v858 = vpack.c.b16 %v849, %v848
      %v859 = vpack.c.b16 %v851, %v850
      %866 = vrot.lane.b32.xlu0 %v814, 113
      %v867 = vpop.permute.xlu0 %866
      %868 = vrot.lane.b32.xlu0 %v815, 113
      %v869 = vpop.permute.xlu0 %868
      %870 = vrot.lane.b32.xlu0 %v816, 113
      %v871 = vpop.permute.xlu0 %870
      %872 = vrot.lane.b32.xlu0 %v817, 113
      %v873 = vpop.permute.xlu0 %872
      %874 = vrot.lane.b32.xlu0 %v818, 113
      %v875 = vpop.permute.xlu0 %874
      %876 = vrot.lane.b32.xlu0 %v819, 113
      %v877 = vpop.permute.xlu0 %876
      %vm878 = vcmask 924672
      %v879 = vsel %vm878, %v867, %v869
      %v880 = vsel %vm878, %v869, %v871
      %v881 = vsel %vm878, %v873, %v875
      %v882 = vsel %vm878, %v875, %v877
      %v888 = vsel %vm478, %v852, 0
      %v891 = vsel %vm478, %v853, 0
      %v894 = vsel %vm478, %v854, 0
      %v897 = vsel %vm478, %v855, 0
      %v900 = vsel %vm478, %v856, 0
      %v903 = vsel %vm478, %v857, 0
      %v906 = vsel %vm478, %v858, 0
      %v909 = vsel %vm478, %v859, 0
      %911 = vmatprep.subr.bf16.mxu0 %v880
      %912 = vmatpush1.bf16.msra.mxu0 %v879
      %913 = vmatprep.subr.bf16.mxu0 %v882
      %914 = vmatpush1.bf16.msra.mxu0 %v881
      %915 = vmatprep.subr.bf16.mxu0 0
      %916 = vmatpush1.bf16.msra.mxu0 0
      %917 = vmatprep.subr.bf16.mxu0 0
      %918 = vmatpush1.bf16.msra.mxu0 0
      %919 = vmatprep.subr.bf16.mxu0 0
      %920 = vmatpush1.bf16.msra.mxu0 0
      %921 = vmatprep.subr.bf16.mxu0 0
      %922 = vmatpush1.bf16.msra.mxu0 0
      %923 = vmatprep.subr.bf16.mxu0 0
      %924 = vmatpush1.bf16.msra.mxu0 0
      %925 = vmatprep.subr.bf16.mxu0 0
      %926 = vmatpush1.bf16.msra.mxu0 0
      %927 = vmatprep.subr.bf16.mxu0 0
      %928 = vmatpush1.bf16.msra.mxu0 0
      %929 = vmatprep.subr.bf16.mxu0 0
      %930 = vmatpush1.bf16.msra.mxu0 0
      %931 = vmatprep.subr.bf16.mxu0 0
      %932 = vmatpush1.bf16.msra.mxu0 0
      %933 = vmatprep.subr.bf16.mxu0 0
      %934 = vmatpush1.bf16.msra.mxu0 0
      %935 = vmatprep.subr.bf16.mxu0 0
      %936 = vmatpush1.bf16.msra.mxu0 0
      %937 = vmatprep.subr.bf16.mxu0 0
      %938 = vmatpush1.bf16.msra.mxu0 0
      %939 = vmatprep.subr.bf16.mxu0 0
      %940 = vmatpush1.bf16.msra.mxu0 0
      %941 = vmatprep.subr.bf16.mxu0 0
      %942 = vmatpush1.bf16.msra.mxu0 0
      %943 = vmatprep.mubr.bf16.mxu0 0
      %944 = vmatmul.mubr.bf16.gmra.mrb[0].mxu0 %v888
      %v945 = vpop.f32.mrb[0].mxu0
      %v946 = vadd.f32 0.0, %v945
      %v947 = vpop.f32.mrb[0].mxu0
      %v948 = vadd.f32 0.0, %v947
      %v949 = vpop.f32.mrb[0].mxu0
      %v950 = vadd.f32 0.0, %v949
      %v951 = vpop.f32.mrb[0].mxu0
      %v952 = vadd.f32 0.0, %v951
      %953 = vmatprep.mubr.bf16.mxu0 0
      %954 = vmatmul.mubr.bf16.gmra.mrb[0].mxu0 %v891
      %v955 = vpop.f32.mrb[0].mxu0
      %v956 = vadd.f32 0.0, %v955
      %v957 = vpop.f32.mrb[0].mxu0
      %v958 = vadd.f32 0.0, %v957
      %v959 = vpop.f32.mrb[0].mxu0
      %v960 = vadd.f32 0.0, %v959
      %v961 = vpop.f32.mrb[0].mxu0
      %v962 = vadd.f32 0.0, %v961
      %963 = vmatprep.mubr.bf16.mxu0 0
      %964 = vmatmul.mubr.bf16.gmra.mrb[0].mxu0 %v894
      %v965 = vpop.f32.mrb[0].mxu0
      %v966 = vadd.f32 0.0, %v965
      %v967 = vpop.f32.mrb[0].mxu0
      %v968 = vadd.f32 0.0, %v967
      %v969 = vpop.f32.mrb[0].mxu0
      %v970 = vadd.f32 0.0, %v969
      %v971 = vpop.f32.mrb[0].mxu0
      %v972 = vadd.f32 0.0, %v971
      %973 = vmatprep.mubr.bf16.mxu0 0
      %974 = vmatmul.mubr.bf16.gmra.mrb[0].mxu0 %v897
      %v975 = vpop.f32.mrb[0].mxu0
      %v976 = vadd.f32 0.0, %v975
      %v977 = vpop.f32.mrb[0].mxu0
      %v978 = vadd.f32 0.0, %v977
      %v979 = vpop.f32.mrb[0].mxu0
      %v980 = vadd.f32 0.0, %v979
      %v981 = vpop.f32.mrb[0].mxu0
      %v982 = vadd.f32 0.0, %v981
      %983 = vmatprep.mubr.bf16.mxu0 0
      %984 = vmatmul.mubr.bf16.gmra.mrb[0].mxu0 %v900
      %v985 = vpop.f32.mrb[0].mxu0
      %v986 = vadd.f32 0.0, %v985
      %v987 = vpop.f32.mrb[0].mxu0
      %v988 = vadd.f32 0.0, %v987
      %v989 = vpop.f32.mrb[0].mxu0
      %v990 = vadd.f32 0.0, %v989
      %v991 = vpop.f32.mrb[0].mxu0
      %v992 = vadd.f32 0.0, %v991
      %993 = vmatprep.mubr.bf16.mxu0 0
      %994 = vmatmul.mubr.bf16.gmra.mrb[0].mxu0 %v903
      %v995 = vpop.f32.mrb[0].mxu0
      %v996 = vadd.f32 0.0, %v995
      %v997 = vpop.f32.mrb[0].mxu0
      %v998 = vadd.f32 0.0, %v997
      %v999 = vpop.f32.mrb[0].mxu0
      %v1000 = vadd.f32 0.0, %v999
      %v1001 = vpop.f32.mrb[0].mxu0
      %v1002 = vadd.f32 0.0, %v1001
      %1003 = vmatprep.mubr.bf16.mxu0 0
      %1004 = vmatmul.mubr.bf16.gmra.mrb[0].mxu0 %v906
      %v1005 = vpop.f32.mrb[0].mxu0
      %v1006 = vadd.f32 0.0, %v1005
      %v1007 = vpop.f32.mrb[0].mxu0
      %v1008 = vadd.f32 0.0, %v1007
      %v1009 = vpop.f32.mrb[0].mxu0
      %v1010 = vadd.f32 0.0, %v1009
      %v1011 = vpop.f32.mrb[0].mxu0
      %v1012 = vadd.f32 0.0, %v1011
      %1013 = vmatprep.mubr.bf16.mxu0 0
      %1014 = vmatmul.mubr.bf16.gmra.mrb[0].mxu0 %v909
      %v1015 = vpop.f32.mrb[0].mxu0
      %v1016 = vadd.f32 0.0, %v1015
      %v1017 = vpop.f32.mrb[0].mxu0
      %v1018 = vadd.f32 0.0, %v1017
      %v1019 = vpop.f32.mrb[0].mxu0
      %v1020 = vadd.f32 0.0, %v1019
      %v1021 = vpop.f32.mrb[0].mxu0
      %v1022 = vadd.f32 0.0, %v1021
      %1023 = vdwg.mxu0
      %v1024 = vadd.f32 %v736, %v946
      %v1025 = vadd.f32 %v738, %v948
      %v1026 = vadd.f32 %v740, %v950
      %v1027 = vadd.f32 %v742, %v952
      %v1028 = vadd.f32 %v746, %v956
      %v1029 = vadd.f32 %v748, %v958
      %v1030 = vadd.f32 %v750, %v960
      %v1031 = vadd.f32 %v752, %v962
      %v1032 = vadd.f32 %v756, %v966
      %v1033 = vadd.f32 %v758, %v968
      %v1034 = vadd.f32 %v760, %v970
      %v1035 = vadd.f32 %v762, %v972
      %v1036 = vadd.f32 %v766, %v976
      %v1037 = vadd.f32 %v768, %v978
      %v1038 = vadd.f32 %v770, %v980
      %v1039 = vadd.f32 %v772, %v982
      %v1040 = vadd.f32 %v776, %v986
      %v1041 = vadd.f32 %v778, %v988
      %v1042 = vadd.f32 %v780, %v990
      %v1043 = vadd.f32 %v782, %v992
      %v1044 = vadd.f32 %v786, %v996
      %v1045 = vadd.f32 %v788, %v998
      %v1046 = vadd.f32 %v790, %v1000
      %v1047 = vadd.f32 %v792, %v1002
      %v1048 = vadd.f32 %v796, %v1006
      %v1049 = vadd.f32 %v798, %v1008
      %v1050 = vadd.f32 %v800, %v1010
      %v1051 = vadd.f32 %v802, %v1012
      %v1052 = vadd.f32 %v806, %v1016
      %v1053 = vadd.f32 %v808, %v1018
      %v1054 = vadd.f32 %v810, %v1020
      %v1055 = vadd.f32 %v812, %v1022
      %v1056 = vmul.f32 %v1024, %v209
      %v1057 = vmul.f32 %v1025, %v210
      %v1058 = vmul.f32 %v1026, %v209
      %v1059 = vmul.f32 %v1027, %v210
      %v1060 = vmul.f32 %v1028, %v209
      %v1061 = vmul.f32 %v1029, %v210
      %v1062 = vmul.f32 %v1030, %v209
      %v1063 = vmul.f32 %v1031, %v210
      %v1064 = vmul.f32 %v1032, %v209
      %v1065 = vmul.f32 %v1033, %v210
      %v1066 = vmul.f32 %v1034, %v209
      %v1067 = vmul.f32 %v1035, %v210
      %v1068 = vmul.f32 %v1036, %v209
      %v1069 = vmul.f32 %v1037, %v210
      %v1070 = vmul.f32 %v1038, %v209
      %v1071 = vmul.f32 %v1039, %v210
      %v1072 = vmul.f32 %v1040, %v209
      %v1073 = vmul.f32 %v1041, %v210
      %v1074 = vmul.f32 %v1042, %v209
      %v1075 = vmul.f32 %v1043, %v210
      %v1076 = vmul.f32 %v1044, %v209
      %v1077 = vmul.f32 %v1045, %v210
      %v1078 = vmul.f32 %v1046, %v209
      %v1079 = vmul.f32 %v1047, %v210
      %v1080 = vmul.f32 %v1048, %v209
      %v1081 = vmul.f32 %v1049, %v210
      %v1082 = vmul.f32 %v1050, %v209
      %v1083 = vmul.f32 %v1051, %v210
      %v1084 = vmul.f32 %v1052, %v209
      %v1085 = vmul.f32 %v1053, %v210
      %v1086 = vmul.f32 %v1054, %v209
      %v1087 = vmul.f32 %v1055, %v210
      %v1104 = vunpack.c.l.b16 %v285
      %v1105 = vunpack.c.l.b16 %v286
      %v1106 = vunpack.c.l.b16 %v287
      %v1107 = vunpack.c.l.b16 %v288
      %v1108 = vunpack.c.l.b16 %v289
      %v1109 = vunpack.c.l.b16 %v290
      %v1110 = vunpack.c.l.b16 %v291
      %v1111 = vunpack.c.l.b16 %v292
      %v1112 = vunpack.c.l.b16 %v293
      %v1113 = vunpack.c.l.b16 %v294
      %v1114 = vunpack.c.l.b16 %v295
      %v1115 = vunpack.c.l.b16 %v296
      %v1116 = vunpack.c.l.b16 %v297
      %v1117 = vunpack.c.l.b16 %v298
      %v1118 = vunpack.c.l.b16 %v299
      %v1119 = vunpack.c.l.b16 %v300
      %v1120 = vpack.c.b16 %v1105, %v1104
      %v1121 = vpack.c.b16 %v1107, %v1106
      %v1122 = vpack.c.b16 %v1109, %v1108
      %v1123 = vpack.c.b16 %v1111, %v1110
      %v1124 = vpack.c.b16 %v1113, %v1112
      %v1125 = vpack.c.b16 %v1115, %v1114
      %v1126 = vpack.c.b16 %v1117, %v1116
      %v1127 = vpack.c.b16 %v1119, %v1118
      %v1129 = vsel %vm478, %v1120, 0
      %v1132 = vsel %vm478, %v1121, 0
      %v1135 = vsel %vm478, %v1122, 0
      %v1138 = vsel %vm478, %v1123, 0
      %v1141 = vsel %vm478, %v1124, 0
      %v1144 = vsel %vm478, %v1125, 0
      %v1147 = vsel %vm478, %v1126, 0
      %v1150 = vsel %vm478, %v1127, 0
      %1152 = vmatprep.subr.bf16.mxu0 %v407
      %1153 = vmatpush1.bf16.msra.mxu0 %v406
      %1154 = vmatprep.subr.bf16.mxu0 %v410
      %1155 = vmatpush1.bf16.msra.mxu0 %v409
      %1156 = vmatprep.subr.bf16.mxu0 0
      %1157 = vmatpush1.bf16.msra.mxu0 0
      %1158 = vmatprep.subr.bf16.mxu0 0
      %1159 = vmatpush1.bf16.msra.mxu0 0
      %1160 = vmatprep.subr.bf16.mxu0 0
      %1161 = vmatpush1.bf16.msra.mxu0 0
      %1162 = vmatprep.subr.bf16.mxu0 0
      %1163 = vmatpush1.bf16.msra.mxu0 0
      %1164 = vmatprep.subr.bf16.mxu0 0
      %1165 = vmatpush1.bf16.msra.mxu0 0
      %1166 = vmatprep.subr.bf16.mxu0 0
      %1167 = vmatpush1.bf16.msra.mxu0 0
      %1168 = vmatprep.subr.bf16.mxu0 0
      %1169 = vmatpush1.bf16.msra.mxu0 0
      %1170 = vmatprep.subr.bf16.mxu0 0
      %1171 = vmatpush1.bf16.msra.mxu0 0
      %1172 = vmatprep.subr.bf16.mxu0 0
      %1173 = vmatpush1.bf16.msra.mxu0 0
      %1174 = vmatprep.subr.bf16.mxu0 0
      %1175 = vmatpush1.bf16.msra.mxu0 0
      %1176 = vmatprep.subr.bf16.mxu0 0
      %1177 = vmatpush1.bf16.msra.mxu0 0
      %1178 = vmatprep.subr.bf16.mxu0 0
      %1179 = vmatpush1.bf16.msra.mxu0 0
      %1180 = vmatprep.subr.bf16.mxu0 0
      %1181 = vmatpush1.bf16.msra.mxu0 0
      %1182 = vmatprep.subr.bf16.mxu0 0
      %1183 = vmatpush1.bf16.msra.mxu0 0
      %1184 = vmatprep.mubr.bf16.mxu0 0
      %1185 = vmatmul.mubr.bf16.gmra.mrb[0].mxu0 %v1129
      %v1186 = vpop.f32.mrb[0].mxu0
      %v1187 = vadd.f32 0.0, %v1186
      %v1188 = vpop.f32.mrb[0].mxu0
      %v1189 = vadd.f32 0.0, %v1188
      %v1190 = vpop.f32.mrb[0].mxu0
      %v1191 = vadd.f32 0.0, %v1190
      %v1192 = vpop.f32.mrb[0].mxu0
      %v1193 = vadd.f32 0.0, %v1192
      %1194 = vmatprep.mubr.bf16.mxu0 0
      %1195 = vmatmul.mubr.bf16.gmra.mrb[0].mxu0 %v1132
      %v1196 = vpop.f32.mrb[0].mxu0
      %v1197 = vadd.f32 0.0, %v1196
      %v1198 = vpop.f32.mrb[0].mxu0
      %v1199 = vadd.f32 0.0, %v1198
      %v1200 = vpop.f32.mrb[0].mxu0
      %v1201 = vadd.f32 0.0, %v1200
      %v1202 = vpop.f32.mrb[0].mxu0
      %v1203 = vadd.f32 0.0, %v1202
      %1204 = vmatprep.mubr.bf16.mxu0 0
      %1205 = vmatmul.mubr.bf16.gmra.mrb[0].mxu0 %v1135
      %v1206 = vpop.f32.mrb[0].mxu0
      %v1207 = vadd.f32 0.0, %v1206
      %v1208 = vpop.f32.mrb[0].mxu0
      %v1209 = vadd.f32 0.0, %v1208
      %v1210 = vpop.f32.mrb[0].mxu0
      %v1211 = vadd.f32 0.0, %v1210
      %v1212 = vpop.f32.mrb[0].mxu0
      %v1213 = vadd.f32 0.0, %v1212
      %1214 = vmatprep.mubr.bf16.mxu0 0
      %1215 = vmatmul.mubr.bf16.gmra.mrb[0].mxu0 %v1138
      %v1216 = vpop.f32.mrb[0].mxu0
      %v1217 = vadd.f32 0.0, %v1216
      %v1218 = vpop.f32.mrb[0].mxu0
      %v1219 = vadd.f32 0.0, %v1218
      %v1220 = vpop.f32.mrb[0].mxu0
      %v1221 = vadd.f32 0.0, %v1220
      %v1222 = vpop.f32.mrb[0].mxu0
      %v1223 = vadd.f32 0.0, %v1222
      %1224 = vmatprep.mubr.bf16.mxu0 0
      %1225 = vmatmul.mubr.bf16.gmra.mrb[0].mxu0 %v1141
      %v1226 = vpop.f32.mrb[0].mxu0
      %v1227 = vadd.f32 0.0, %v1226
      %v1228 = vpop.f32.mrb[0].mxu0
      %v1229 = vadd.f32 0.0, %v1228
      %v1230 = vpop.f32.mrb[0].mxu0
      %v1231 = vadd.f32 0.0, %v1230
      %v1232 = vpop.f32.mrb[0].mxu0
      %v1233 = vadd.f32 0.0, %v1232
      %1234 = vmatprep.mubr.bf16.mxu0 0
      %1235 = vmatmul.mubr.bf16.gmra.mrb[0].mxu0 %v1144
      %v1236 = vpop.f32.mrb[0].mxu0
      %v1237 = vadd.f32 0.0, %v1236
      %v1238 = vpop.f32.mrb[0].mxu0
      %v1239 = vadd.f32 0.0, %v1238
      %v1240 = vpop.f32.mrb[0].mxu0
      %v1241 = vadd.f32 0.0, %v1240
      %v1242 = vpop.f32.mrb[0].mxu0
      %v1243 = vadd.f32 0.0, %v1242
      %1244 = vmatprep.mubr.bf16.mxu0 0
      %1245 = vmatmul.mubr.bf16.gmra.mrb[0].mxu0 %v1147
      %v1246 = vpop.f32.mrb[0].mxu0
      %v1247 = vadd.f32 0.0, %v1246
      %v1248 = vpop.f32.mrb[0].mxu0
      %v1249 = vadd.f32 0.0, %v1248
      %v1250 = vpop.f32.mrb[0].mxu0
      %v1251 = vadd.f32 0.0, %v1250
      %v1252 = vpop.f32.mrb[0].mxu0
      %v1253 = vadd.f32 0.0, %v1252
      %1254 = vmatprep.mubr.bf16.mxu0 0
      %1255 = vmatmul.mubr.bf16.gmra.mrb[0].mxu0 %v1150
      %v1256 = vpop.f32.mrb[0].mxu0
      %v1257 = vadd.f32 0.0, %v1256
      %v1258 = vpop.f32.mrb[0].mxu0
      %v1259 = vadd.f32 0.0, %v1258
      %v1260 = vpop.f32.mrb[0].mxu0
      %v1261 = vadd.f32 0.0, %v1260
      %v1262 = vpop.f32.mrb[0].mxu0
      %v1263 = vadd.f32 0.0, %v1262
      %1264 = vdwg.mxu0
      %v1281 = vunpack.c.l.b16 %v237
      %v1282 = vunpack.c.l.b16 %v238
      %v1283 = vunpack.c.l.b16 %v239
      %v1284 = vunpack.c.l.b16 %v240
      %v1285 = vunpack.c.l.b16 %v241
      %v1286 = vunpack.c.l.b16 %v242
      %v1287 = vunpack.c.l.b16 %v243
      %v1288 = vunpack.c.l.b16 %v244
      %v1289 = vunpack.c.l.b16 %v245
      %v1290 = vunpack.c.l.b16 %v246
      %v1291 = vunpack.c.l.b16 %v247
      %v1292 = vunpack.c.l.b16 %v248
      %v1293 = vunpack.c.l.b16 %v249
      %v1294 = vunpack.c.l.b16 %v250
      %v1295 = vunpack.c.l.b16 %v251
      %v1296 = vunpack.c.l.b16 %v252
      %v1297 = vpack.c.b16 %v1282, %v1281
      %v1298 = vpack.c.b16 %v1284, %v1283
      %v1299 = vpack.c.b16 %v1286, %v1285
      %v1300 = vpack.c.b16 %v1288, %v1287
      %v1301 = vpack.c.b16 %v1290, %v1289
      %v1302 = vpack.c.b16 %v1292, %v1291
      %v1303 = vpack.c.b16 %v1294, %v1293
      %v1304 = vpack.c.b16 %v1296, %v1295
      %1305 = vrot.lane.b32.xlu0 %v405, 16
      %v1306 = vpop.permute.xlu0 %1305
      %1307 = vrot.lane.b32.xlu0 %v406, 16
      %v1308 = vpop.permute.xlu0 %1307
      %1309 = vrot.lane.b32.xlu0 %v407, 16
      %v1310 = vpop.permute.xlu0 %1309
      %1311 = vrot.lane.b32.xlu0 %v408, 16
      %v1312 = vpop.permute.xlu0 %1311
      %1313 = vrot.lane.b32.xlu0 %v409, 16
      %v1314 = vpop.permute.xlu0 %1313
      %1315 = vrot.lane.b32.xlu0 %v410, 16
      %v1316 = vpop.permute.xlu0 %1315
      %vm1317 = vcmask 130048
      %v1318 = vsel %vm1317, %v1306, %v1308
      %v1319 = vsel %vm1317, %v1308, %v1310
      %v1320 = vsel %vm1317, %v1312, %v1314
      %v1321 = vsel %vm1317, %v1314, %v1316
      %v1327 = vsel %vm478, %v1297, 0
      %v1330 = vsel %vm478, %v1298, 0
      %v1333 = vsel %vm478, %v1299, 0
      %v1336 = vsel %vm478, %v1300, 0
      %v1339 = vsel %vm478, %v1301, 0
      %v1342 = vsel %vm478, %v1302, 0
      %v1345 = vsel %vm478, %v1303, 0
      %v1348 = vsel %vm478, %v1304, 0
      %1350 = vmatprep.subr.bf16.mxu0 %v1319
      %1351 = vmatpush1.bf16.msra.mxu0 %v1318
      %1352 = vmatprep.subr.bf16.mxu0 %v1321
      %1353 = vmatpush1.bf16.msra.mxu0 %v1320
      %1354 = vmatprep.subr.bf16.mxu0 0
      %1355 = vmatpush1.bf16.msra.mxu0 0
      %1356 = vmatprep.subr.bf16.mxu0 0
      %1357 = vmatpush1.bf16.msra.mxu0 0
      %1358 = vmatprep.subr.bf16.mxu0 0
      %1359 = vmatpush1.bf16.msra.mxu0 0
      %1360 = vmatprep.subr.bf16.mxu0 0
      %1361 = vmatpush1.bf16.msra.mxu0 0
      %1362 = vmatprep.subr.bf16.mxu0 0
      %1363 = vmatpush1.bf16.msra.mxu0 0
      %1364 = vmatprep.subr.bf16.mxu0 0
      %1365 = vmatpush1.bf16.msra.mxu0 0
      %1366 = vmatprep.subr.bf16.mxu0 0
      %1367 = vmatpush1.bf16.msra.mxu0 0
      %1368 = vmatprep.subr.bf16.mxu0 0
      %1369 = vmatpush1.bf16.msra.mxu0 0
      %1370 = vmatprep.subr.bf16.mxu0 0
      %1371 = vmatpush1.bf16.msra.mxu0 0
      %1372 = vmatprep.subr.bf16.mxu0 0
      %1373 = vmatpush1.bf16.msra.mxu0 0
      %1374 = vmatprep.subr.bf16.mxu0 0
      %1375 = vmatpush1.bf16.msra.mxu0 0
      %1376 = vmatprep.subr.bf16.mxu0 0
      %1377 = vmatpush1.bf16.msra.mxu0 0
      %1378 = vmatprep.subr.bf16.mxu0 0
      %1379 = vmatpush1.bf16.msra.mxu0 0
      %1380 = vmatprep.subr.bf16.mxu0 0
      %1381 = vmatpush1.bf16.msra.mxu0 0
      %1382 = vmatprep.mubr.bf16.mxu0 0
      %1383 = vmatmul.mubr.bf16.gmra.mrb[0].mxu0 %v1327
      %v1384 = vpop.f32.mrb[0].mxu0
      %v1385 = vadd.f32 %v1187, %v1384
      %v1386 = vpop.f32.mrb[0].mxu0
      %v1387 = vadd.f32 %v1189, %v1386
      %v1388 = vpop.f32.mrb[0].mxu0
      %v1389 = vadd.f32 %v1191, %v1388
      %v1390 = vpop.f32.mrb[0].mxu0
      %v1391 = vadd.f32 %v1193, %v1390
      %1392 = vmatprep.mubr.bf16.mxu0 0
      %1393 = vmatmul.mubr.bf16.gmra.mrb[0].mxu0 %v1330
      %v1394 = vpop.f32.mrb[0].mxu0
      %v1395 = vadd.f32 %v1197, %v1394
      %v1396 = vpop.f32.mrb[0].mxu0
      %v1397 = vadd.f32 %v1199, %v1396
      %v1398 = vpop.f32.mrb[0].mxu0
      %v1399 = vadd.f32 %v1201, %v1398
      %v1400 = vpop.f32.mrb[0].mxu0
      %v1401 = vadd.f32 %v1203, %v1400
      %1402 = vmatprep.mubr.bf16.mxu0 0
      %1403 = vmatmul.mubr.bf16.gmra.mrb[0].mxu0 %v1333
      %v1404 = vpop.f32.mrb[0].mxu0
      %v1405 = vadd.f32 %v1207, %v1404
      %v1406 = vpop.f32.mrb[0].mxu0
      %v1407 = vadd.f32 %v1209, %v1406
      %v1408 = vpop.f32.mrb[0].mxu0
      %v1409 = vadd.f32 %v1211, %v1408
      %v1410 = vpop.f32.mrb[0].mxu0
      %v1411 = vadd.f32 %v1213, %v1410
      %1412 = vmatprep.mubr.bf16.mxu0 0
      %1413 = vmatmul.mubr.bf16.gmra.mrb[0].mxu0 %v1336
      %v1414 = vpop.f32.mrb[0].mxu0
      %v1415 = vadd.f32 %v1217, %v1414
      %v1416 = vpop.f32.mrb[0].mxu0
      %v1417 = vadd.f32 %v1219, %v1416
      %v1418 = vpop.f32.mrb[0].mxu0
      %v1419 = vadd.f32 %v1221, %v1418
      %v1420 = vpop.f32.mrb[0].mxu0
      %v1421 = vadd.f32 %v1223, %v1420
      %1422 = vmatprep.mubr.bf16.mxu0 0
      %1423 = vmatmul.mubr.bf16.gmra.mrb[0].mxu0 %v1339
      %v1424 = vpop.f32.mrb[0].mxu0
      %v1425 = vadd.f32 %v1227, %v1424
      %v1426 = vpop.f32.mrb[0].mxu0
      %v1427 = vadd.f32 %v1229, %v1426
      %v1428 = vpop.f32.mrb[0].mxu0
      %v1429 = vadd.f32 %v1231, %v1428
      %v1430 = vpop.f32.mrb[0].mxu0
      %v1431 = vadd.f32 %v1233, %v1430
      %1432 = vmatprep.mubr.bf16.mxu0 0
      %1433 = vmatmul.mubr.bf16.gmra.mrb[0].mxu0 %v1342
      %v1434 = vpop.f32.mrb[0].mxu0
      %v1435 = vadd.f32 %v1237, %v1434
      %v1436 = vpop.f32.mrb[0].mxu0
      %v1437 = vadd.f32 %v1239, %v1436
      %v1438 = vpop.f32.mrb[0].mxu0
      %v1439 = vadd.f32 %v1241, %v1438
      %v1440 = vpop.f32.mrb[0].mxu0
      %v1441 = vadd.f32 %v1243, %v1440
      %1442 = vmatprep.mubr.bf16.mxu0 0
      %1443 = vmatmul.mubr.bf16.gmra.mrb[0].mxu0 %v1345
      %v1444 = vpop.f32.mrb[0].mxu0
      %v1445 = vadd.f32 %v1247, %v1444
      %v1446 = vpop.f32.mrb[0].mxu0
      %v1447 = vadd.f32 %v1249, %v1446
      %v1448 = vpop.f32.mrb[0].mxu0
      %v1449 = vadd.f32 %v1251, %v1448
      %v1450 = vpop.f32.mrb[0].mxu0
      %v1451 = vadd.f32 %v1253, %v1450
      %1452 = vmatprep.mubr.bf16.mxu0 0
      %1453 = vmatmul.mubr.bf16.gmra.mrb[0].mxu0 %v1348
      %v1454 = vpop.f32.mrb[0].mxu0
      %v1455 = vadd.f32 %v1257, %v1454
      %v1456 = vpop.f32.mrb[0].mxu0
      %v1457 = vadd.f32 %v1259, %v1456
      %v1458 = vpop.f32.mrb[0].mxu0
      %v1459 = vadd.f32 %v1261, %v1458
      %v1460 = vpop.f32.mrb[0].mxu0
      %v1461 = vadd.f32 %v1263, %v1460
      %1462 = vdwg.mxu0
      %v1479 = vunpack.c.l.b16 %v333
      %v1480 = vunpack.c.l.b16 %v334
      %v1481 = vunpack.c.l.b16 %v335
      %v1482 = vunpack.c.l.b16 %v336
      %v1483 = vunpack.c.l.b16 %v337
      %v1484 = vunpack.c.l.b16 %v338
      %v1485 = vunpack.c.l.b16 %v339
      %v1486 = vunpack.c.l.b16 %v340
      %v1487 = vunpack.c.l.b16 %v341
      %v1488 = vunpack.c.l.b16 %v342
      %v1489 = vunpack.c.l.b16 %v343
      %v1490 = vunpack.c.l.b16 %v344
      %v1491 = vunpack.c.l.b16 %v345
      %v1492 = vunpack.c.l.b16 %v346
      %v1493 = vunpack.c.l.b16 %v347
      %v1494 = vunpack.c.l.b16 %v348
      %v1495 = vpack.c.b16 %v1480, %v1479
      %v1496 = vpack.c.b16 %v1482, %v1481
      %v1497 = vpack.c.b16 %v1484, %v1483
      %v1498 = vpack.c.b16 %v1486, %v1485
      %v1499 = vpack.c.b16 %v1488, %v1487
      %v1500 = vpack.c.b16 %v1490, %v1489
      %v1501 = vpack.c.b16 %v1492, %v1491
      %v1502 = vpack.c.b16 %v1494, %v1493
      %1503 = vrot.lane.b32.xlu0 %v814, 112
      %v1504 = vpop.permute.xlu0 %1503
      %1505 = vrot.lane.b32.xlu0 %v815, 112
      %v1506 = vpop.permute.xlu0 %1505
      %1507 = vrot.lane.b32.xlu0 %v816, 112
      %v1508 = vpop.permute.xlu0 %1507
      %1509 = vrot.lane.b32.xlu0 %v817, 112
      %v1510 = vpop.permute.xlu0 %1509
      %1511 = vrot.lane.b32.xlu0 %v818, 112
      %v1512 = vpop.permute.xlu0 %1511
      %1513 = vrot.lane.b32.xlu0 %v819, 112
      %v1514 = vpop.permute.xlu0 %1513
      %vm1515 = vcmask 916480
      %v1516 = vsel %vm1515, %v1504, %v1506
      %v1517 = vsel %vm1515, %v1506, %v1508
      %v1518 = vsel %vm1515, %v1510, %v1512
      %v1519 = vsel %vm1515, %v1512, %v1514
      %v1525 = vsel %vm478, %v1495, 0
      %v1528 = vsel %vm478, %v1496, 0
      %v1531 = vsel %vm478, %v1497, 0
      %v1534 = vsel %vm478, %v1498, 0
      %v1537 = vsel %vm478, %v1499, 0
      %v1540 = vsel %vm478, %v1500, 0
      %v1543 = vsel %vm478, %v1501, 0
      %v1546 = vsel %vm478, %v1502, 0
      %1548 = vmatprep.subr.bf16.mxu0 %v1517
      %1549 = vmatpush1.bf16.msra.mxu0 %v1516
      %1550 = vmatprep.subr.bf16.mxu0 %v1519
      %1551 = vmatpush1.bf16.msra.mxu0 %v1518
      %1552 = vmatprep.subr.bf16.mxu0 0
      %1553 = vmatpush1.bf16.msra.mxu0 0
      %1554 = vmatprep.subr.bf16.mxu0 0
      %1555 = vmatpush1.bf16.msra.mxu0 0
      %1556 = vmatprep.subr.bf16.mxu0 0
      %1557 = vmatpush1.bf16.msra.mxu0 0
      %1558 = vmatprep.subr.bf16.mxu0 0
      %1559 = vmatpush1.bf16.msra.mxu0 0
      %1560 = vmatprep.subr.bf16.mxu0 0
      %1561 = vmatpush1.bf16.msra.mxu0 0
      %1562 = vmatprep.subr.bf16.mxu0 0
      %1563 = vmatpush1.bf16.msra.mxu0 0
      %1564 = vmatprep.subr.bf16.mxu0 0
      %1565 = vmatpush1.bf16.msra.mxu0 0
      %1566 = vmatprep.subr.bf16.mxu0 0
      %1567 = vmatpush1.bf16.msra.mxu0 0
      %1568 = vmatprep.subr.bf16.mxu0 0
      %1569 = vmatpush1.bf16.msra.mxu0 0
      %1570 = vmatprep.subr.bf16.mxu0 0
      %1571 = vmatpush1.bf16.msra.mxu0 0
      %1572 = vmatprep.subr.bf16.mxu0 0
      %1573 = vmatpush1.bf16.msra.mxu0 0
      %1574 = vmatprep.subr.bf16.mxu0 0
      %1575 = vmatpush1.bf16.msra.mxu0 0
      %1576 = vmatprep.subr.bf16.mxu0 0
      %1577 = vmatpush1.bf16.msra.mxu0 0
      %1578 = vmatprep.subr.bf16.mxu0 0
      %1579 = vmatpush1.bf16.msra.mxu0 0
      %1580 = vmatprep.mubr.bf16.mxu0 0
      %1581 = vmatmul.mubr.bf16.gmra.mrb[0].mxu0 %v1525
      %v1582 = vpop.f32.mrb[0].mxu0
      %v1583 = vadd.f32 0.0, %v1582
      %v1584 = vpop.f32.mrb[0].mxu0
      %v1585 = vadd.f32 0.0, %v1584
      %v1586 = vpop.f32.mrb[0].mxu0
      %v1587 = vadd.f32 0.0, %v1586
      %v1588 = vpop.f32.mrb[0].mxu0
      %v1589 = vadd.f32 0.0, %v1588
      %1590 = vmatprep.mubr.bf16.mxu0 0
      %1591 = vmatmul.mubr.bf16.gmra.mrb[0].mxu0 %v1528
      %v1592 = vpop.f32.mrb[0].mxu0
      %v1593 = vadd.f32 0.0, %v1592
      %v1594 = vpop.f32.mrb[0].mxu0
      %v1595 = vadd.f32 0.0, %v1594
      %v1596 = vpop.f32.mrb[0].mxu0
      %v1597 = vadd.f32 0.0, %v1596
      %v1598 = vpop.f32.mrb[0].mxu0
      %v1599 = vadd.f32 0.0, %v1598
      %1600 = vmatprep.mubr.bf16.mxu0 0
      %1601 = vmatmul.mubr.bf16.gmra.mrb[0].mxu0 %v1531
      %v1602 = vpop.f32.mrb[0].mxu0
      %v1603 = vadd.f32 0.0, %v1602
      %v1604 = vpop.f32.mrb[0].mxu0
      %v1605 = vadd.f32 0.0, %v1604
      %v1606 = vpop.f32.mrb[0].mxu0
      %v1607 = vadd.f32 0.0, %v1606
      %v1608 = vpop.f32.mrb[0].mxu0
      %v1609 = vadd.f32 0.0, %v1608
      %1610 = vmatprep.mubr.bf16.mxu0 0
      %1611 = vmatmul.mubr.bf16.gmra.mrb[0].mxu0 %v1534
      %v1612 = vpop.f32.mrb[0].mxu0
      %v1613 = vadd.f32 0.0, %v1612
      %v1614 = vpop.f32.mrb[0].mxu0
      %v1615 = vadd.f32 0.0, %v1614
      %v1616 = vpop.f32.mrb[0].mxu0
      %v1617 = vadd.f32 0.0, %v1616
      %v1618 = vpop.f32.mrb[0].mxu0
      %v1619 = vadd.f32 0.0, %v1618
      %1620 = vmatprep.mubr.bf16.mxu0 0
      %1621 = vmatmul.mubr.bf16.gmra.mrb[0].mxu0 %v1537
      %v1622 = vpop.f32.mrb[0].mxu0
      %v1623 = vadd.f32 0.0, %v1622
      %v1624 = vpop.f32.mrb[0].mxu0
      %v1625 = vadd.f32 0.0, %v1624
      %v1626 = vpop.f32.mrb[0].mxu0
      %v1627 = vadd.f32 0.0, %v1626
      %v1628 = vpop.f32.mrb[0].mxu0
      %v1629 = vadd.f32 0.0, %v1628
      %1630 = vmatprep.mubr.bf16.mxu0 0
      %1631 = vmatmul.mubr.bf16.gmra.mrb[0].mxu0 %v1540
      %v1632 = vpop.f32.mrb[0].mxu0
      %v1633 = vadd.f32 0.0, %v1632
      %v1634 = vpop.f32.mrb[0].mxu0
      %v1635 = vadd.f32 0.0, %v1634
      %v1636 = vpop.f32.mrb[0].mxu0
      %v1637 = vadd.f32 0.0, %v1636
      %v1638 = vpop.f32.mrb[0].mxu0
      %v1639 = vadd.f32 0.0, %v1638
      %1640 = vmatprep.mubr.bf16.mxu0 0
      %1641 = vmatmul.mubr.bf16.gmra.mrb[0].mxu0 %v1543
      %v1642 = vpop.f32.mrb[0].mxu0
      %v1643 = vadd.f32 0.0, %v1642
      %v1644 = vpop.f32.mrb[0].mxu0
      %v1645 = vadd.f32 0.0, %v1644
      %v1646 = vpop.f32.mrb[0].mxu0
      %v1647 = vadd.f32 0.0, %v1646
      %v1648 = vpop.f32.mrb[0].mxu0
      %v1649 = vadd.f32 0.0, %v1648
      %1650 = vmatprep.mubr.bf16.mxu0 0
      %1651 = vmatmul.mubr.bf16.gmra.mrb[0].mxu0 %v1546
      %v1652 = vpop.f32.mrb[0].mxu0
      %v1653 = vadd.f32 0.0, %v1652
      %v1654 = vpop.f32.mrb[0].mxu0
      %v1655 = vadd.f32 0.0, %v1654
      %v1656 = vpop.f32.mrb[0].mxu0
      %v1657 = vadd.f32 0.0, %v1656
      %v1658 = vpop.f32.mrb[0].mxu0
      %v1659 = vadd.f32 0.0, %v1658
      %1660 = vdwg.mxu0
      %v1661 = vadd.f32 %v1385, %v1583
      %v1662 = vadd.f32 %v1387, %v1585
      %v1663 = vadd.f32 %v1389, %v1587
      %v1664 = vadd.f32 %v1391, %v1589
      %v1665 = vadd.f32 %v1395, %v1593
      %v1666 = vadd.f32 %v1397, %v1595
      %v1667 = vadd.f32 %v1399, %v1597
      %v1668 = vadd.f32 %v1401, %v1599
      %v1669 = vadd.f32 %v1405, %v1603
      %v1670 = vadd.f32 %v1407, %v1605
      %v1671 = vadd.f32 %v1409, %v1607
      %v1672 = vadd.f32 %v1411, %v1609
      %v1673 = vadd.f32 %v1415, %v1613
      %v1674 = vadd.f32 %v1417, %v1615
      %v1675 = vadd.f32 %v1419, %v1617
      %v1676 = vadd.f32 %v1421, %v1619
      %v1677 = vadd.f32 %v1425, %v1623
      %v1678 = vadd.f32 %v1427, %v1625
      %v1679 = vadd.f32 %v1429, %v1627
      %v1680 = vadd.f32 %v1431, %v1629
      %v1681 = vadd.f32 %v1435, %v1633
      %v1682 = vadd.f32 %v1437, %v1635
      %v1683 = vadd.f32 %v1439, %v1637
      %v1684 = vadd.f32 %v1441, %v1639
      %v1685 = vadd.f32 %v1445, %v1643
      %v1686 = vadd.f32 %v1447, %v1645
      %v1687 = vadd.f32 %v1449, %v1647
      %v1688 = vadd.f32 %v1451, %v1649
      %v1689 = vadd.f32 %v1455, %v1653
      %v1690 = vadd.f32 %v1457, %v1655
      %v1691 = vadd.f32 %v1459, %v1657
      %v1692 = vadd.f32 %v1461, %v1659
      %v1693 = vadd.f32 %v1056, %v1661
      %v1694 = vadd.f32 %v1057, %v1662
      %v1695 = vadd.f32 %v1058, %v1663
      %v1696 = vadd.f32 %v1059, %v1664
      %v1697 = vadd.f32 %v1060, %v1665
      %v1698 = vadd.f32 %v1061, %v1666
      %v1699 = vadd.f32 %v1062, %v1667
      %v1700 = vadd.f32 %v1063, %v1668
      %v1701 = vadd.f32 %v1064, %v1669
      %v1702 = vadd.f32 %v1065, %v1670
      %v1703 = vadd.f32 %v1066, %v1671
      %v1704 = vadd.f32 %v1067, %v1672
      %v1705 = vadd.f32 %v1068, %v1673
      %v1706 = vadd.f32 %v1069, %v1674
      %v1707 = vadd.f32 %v1070, %v1675
      %v1708 = vadd.f32 %v1071, %v1676
      %v1709 = vadd.f32 %v1072, %v1677
      %v1710 = vadd.f32 %v1073, %v1678
      %v1711 = vadd.f32 %v1074, %v1679
      %v1712 = vadd.f32 %v1075, %v1680
      %v1713 = vadd.f32 %v1076, %v1681
      %v1714 = vadd.f32 %v1077, %v1682
      %v1715 = vadd.f32 %v1078, %v1683
      %v1716 = vadd.f32 %v1079, %v1684
      %v1717 = vadd.f32 %v1080, %v1685
      %v1718 = vadd.f32 %v1081, %v1686
      %v1719 = vadd.f32 %v1082, %v1687
      %v1720 = vadd.f32 %v1083, %v1688
      %v1721 = vadd.f32 %v1084, %v1689
      %v1722 = vadd.f32 %v1085, %v1690
      %v1723 = vadd.f32 %v1086, %v1691
      %v1724 = vadd.f32 %v1087, %v1692
      %v1741 = vunpack.c.l.b16 %v301
      %v1742 = vunpack.c.l.b16 %v302
      %v1743 = vunpack.c.l.b16 %v303
      %v1744 = vunpack.c.l.b16 %v304
      %v1745 = vunpack.c.l.b16 %v305
      %v1746 = vunpack.c.l.b16 %v306
      %v1747 = vunpack.c.l.b16 %v307
      %v1748 = vunpack.c.l.b16 %v308
      %v1749 = vunpack.c.l.b16 %v309
      %v1750 = vunpack.c.l.b16 %v310
      %v1751 = vunpack.c.l.b16 %v311
      %v1752 = vunpack.c.l.b16 %v312
      %v1753 = vunpack.c.l.b16 %v313
      %v1754 = vunpack.c.l.b16 %v314
      %v1755 = vunpack.c.l.b16 %v315
      %v1756 = vunpack.c.l.b16 %v316
      %v1757 = vpack.c.b16 %v1742, %v1741
      %v1758 = vpack.c.b16 %v1744, %v1743
      %v1759 = vpack.c.b16 %v1746, %v1745
      %v1760 = vpack.c.b16 %v1748, %v1747
      %v1761 = vpack.c.b16 %v1750, %v1749
      %v1762 = vpack.c.b16 %v1752, %v1751
      %v1763 = vpack.c.b16 %v1754, %v1753
      %v1764 = vpack.c.b16 %v1756, %v1755
      %1765 = vrot.lane.b32.xlu0 %v814, 127
      %v1766 = vpop.permute.xlu0 %1765
      %1767 = vrot.lane.b32.xlu0 %v815, 127
      %v1768 = vpop.permute.xlu0 %1767
      %1769 = vrot.lane.b32.xlu0 %v816, 127
      %v1770 = vpop.permute.xlu0 %1769
      %1771 = vrot.lane.b32.xlu0 %v817, 127
      %v1772 = vpop.permute.xlu0 %1771
      %1773 = vrot.lane.b32.xlu0 %v818, 127
      %v1774 = vpop.permute.xlu0 %1773
      %1775 = vrot.lane.b32.xlu0 %v819, 127
      %v1776 = vpop.permute.xlu0 %1775
      %vm1777 = vcmask 1039360
      %v1778 = vsel %vm1777, %v1766, %v1768
      %v1779 = vsel %vm1777, %v1768, %v1770
      %v1780 = vsel %vm1777, %v1772, %v1774
      %v1781 = vsel %vm1777, %v1774, %v1776
      %v1787 = vsel %vm478, %v1757, 0
      %v1790 = vsel %vm478, %v1758, 0
      %v1793 = vsel %vm478, %v1759, 0
      %v1796 = vsel %vm478, %v1760, 0
      %v1799 = vsel %vm478, %v1761, 0
      %v1802 = vsel %vm478, %v1762, 0
      %v1805 = vsel %vm478, %v1763, 0
      %v1808 = vsel %vm478, %v1764, 0
      %1810 = vmatprep.subr.bf16.mxu0 %v1779
      %1811 = vmatpush1.bf16.msra.mxu0 %v1778
      %1812 = vmatprep.subr.bf16.mxu0 %v1781
      %1813 = vmatpush1.bf16.msra.mxu0 %v1780
      %1814 = vmatprep.subr.bf16.mxu0 0
      %1815 = vmatpush1.bf16.msra.mxu0 0
      %1816 = vmatprep.subr.bf16.mxu0 0
      %1817 = vmatpush1.bf16.msra.mxu0 0
      %1818 = vmatprep.subr.bf16.mxu0 0
      %1819 = vmatpush1.bf16.msra.mxu0 0
      %1820 = vmatprep.subr.bf16.mxu0 0
      %1821 = vmatpush1.bf16.msra.mxu0 0
      %1822 = vmatprep.subr.bf16.mxu0 0
      %1823 = vmatpush1.bf16.msra.mxu0 0
      %1824 = vmatprep.subr.bf16.mxu0 0
      %1825 = vmatpush1.bf16.msra.mxu0 0
      %1826 = vmatprep.subr.bf16.mxu0 0
      %1827 = vmatpush1.bf16.msra.mxu0 0
      %1828 = vmatprep.subr.bf16.mxu0 0
      %1829 = vmatpush1.bf16.msra.mxu0 0
      %1830 = vmatprep.subr.bf16.mxu0 0
      %1831 = vmatpush1.bf16.msra.mxu0 0
      %1832 = vmatprep.subr.bf16.mxu0 0
      %1833 = vmatpush1.bf16.msra.mxu0 0
      %1834 = vmatprep.subr.bf16.mxu0 0
      %1835 = vmatpush1.bf16.msra.mxu0 0
      %1836 = vmatprep.subr.bf16.mxu0 0
      %1837 = vmatpush1.bf16.msra.mxu0 0
      %1838 = vmatprep.subr.bf16.mxu0 0
      %1839 = vmatpush1.bf16.msra.mxu0 0
      %1840 = vmatprep.subr.bf16.mxu0 0
      %1841 = vmatpush1.bf16.msra.mxu0 0
      %1842 = vmatprep.mubr.bf16.mxu0 0
      %1843 = vmatmul.mubr.bf16.gmra.mrb[0].mxu0 %v1787
      %v1844 = vpop.f32.mrb[0].mxu0
      %v1845 = vadd.f32 0.0, %v1844
      %v1846 = vpop.f32.mrb[0].mxu0
      %v1847 = vadd.f32 0.0, %v1846
      %v1848 = vpop.f32.mrb[0].mxu0
      %v1849 = vadd.f32 0.0, %v1848
      %v1850 = vpop.f32.mrb[0].mxu0
      %v1851 = vadd.f32 0.0, %v1850
      %1852 = vmatprep.mubr.bf16.mxu0 0
      %1853 = vmatmul.mubr.bf16.gmra.mrb[0].mxu0 %v1790
      %v1854 = vpop.f32.mrb[0].mxu0
      %v1855 = vadd.f32 0.0, %v1854
      %v1856 = vpop.f32.mrb[0].mxu0
      %v1857 = vadd.f32 0.0, %v1856
      %v1858 = vpop.f32.mrb[0].mxu0
      %v1859 = vadd.f32 0.0, %v1858
      %v1860 = vpop.f32.mrb[0].mxu0
      %v1861 = vadd.f32 0.0, %v1860
      %1862 = vmatprep.mubr.bf16.mxu0 0
      %1863 = vmatmul.mubr.bf16.gmra.mrb[0].mxu0 %v1793
      %v1864 = vpop.f32.mrb[0].mxu0
      %v1865 = vadd.f32 0.0, %v1864
      %v1866 = vpop.f32.mrb[0].mxu0
      %v1867 = vadd.f32 0.0, %v1866
      %v1868 = vpop.f32.mrb[0].mxu0
      %v1869 = vadd.f32 0.0, %v1868
      %v1870 = vpop.f32.mrb[0].mxu0
      %v1871 = vadd.f32 0.0, %v1870
      %1872 = vmatprep.mubr.bf16.mxu0 0
      %1873 = vmatmul.mubr.bf16.gmra.mrb[0].mxu0 %v1796
      %v1874 = vpop.f32.mrb[0].mxu0
      %v1875 = vadd.f32 0.0, %v1874
      %v1876 = vpop.f32.mrb[0].mxu0
      %v1877 = vadd.f32 0.0, %v1876
      %v1878 = vpop.f32.mrb[0].mxu0
      %v1879 = vadd.f32 0.0, %v1878
      %v1880 = vpop.f32.mrb[0].mxu0
      %v1881 = vadd.f32 0.0, %v1880
      %1882 = vmatprep.mubr.bf16.mxu0 0
      %1883 = vmatmul.mubr.bf16.gmra.mrb[0].mxu0 %v1799
      %v1884 = vpop.f32.mrb[0].mxu0
      %v1885 = vadd.f32 0.0, %v1884
      %v1886 = vpop.f32.mrb[0].mxu0
      %v1887 = vadd.f32 0.0, %v1886
      %v1888 = vpop.f32.mrb[0].mxu0
      %v1889 = vadd.f32 0.0, %v1888
      %v1890 = vpop.f32.mrb[0].mxu0
      %v1891 = vadd.f32 0.0, %v1890
      %1892 = vmatprep.mubr.bf16.mxu0 0
      %1893 = vmatmul.mubr.bf16.gmra.mrb[0].mxu0 %v1802
      %v1894 = vpop.f32.mrb[0].mxu0
      %v1895 = vadd.f32 0.0, %v1894
      %v1896 = vpop.f32.mrb[0].mxu0
      %v1897 = vadd.f32 0.0, %v1896
      %v1898 = vpop.f32.mrb[0].mxu0
      %v1899 = vadd.f32 0.0, %v1898
      %v1900 = vpop.f32.mrb[0].mxu0
      %v1901 = vadd.f32 0.0, %v1900
      %1902 = vmatprep.mubr.bf16.mxu0 0
      %1903 = vmatmul.mubr.bf16.gmra.mrb[0].mxu0 %v1805
      %v1904 = vpop.f32.mrb[0].mxu0
      %v1905 = vadd.f32 0.0, %v1904
      %v1906 = vpop.f32.mrb[0].mxu0
      %v1907 = vadd.f32 0.0, %v1906
      %v1908 = vpop.f32.mrb[0].mxu0
      %v1909 = vadd.f32 0.0, %v1908
      %v1910 = vpop.f32.mrb[0].mxu0
      %v1911 = vadd.f32 0.0, %v1910
      %1912 = vmatprep.mubr.bf16.mxu0 0
      %1913 = vmatmul.mubr.bf16.gmra.mrb[0].mxu0 %v1808
      %v1914 = vpop.f32.mrb[0].mxu0
      %v1915 = vadd.f32 0.0, %v1914
      %v1916 = vpop.f32.mrb[0].mxu0
      %v1917 = vadd.f32 0.0, %v1916
      %v1918 = vpop.f32.mrb[0].mxu0
      %v1919 = vadd.f32 0.0, %v1918
      %v1920 = vpop.f32.mrb[0].mxu0
      %v1921 = vadd.f32 0.0, %v1920
      %1922 = vdwg.mxu0
      %v1939 = vunpack.c.l.b16 %v253
      %v1940 = vunpack.c.l.b16 %v254
      %v1941 = vunpack.c.l.b16 %v255
      %v1942 = vunpack.c.l.b16 %v256
      %v1943 = vunpack.c.l.b16 %v257
      %v1944 = vunpack.c.l.b16 %v258
      %v1945 = vunpack.c.l.b16 %v259
      %v1946 = vunpack.c.l.b16 %v260
      %v1947 = vunpack.c.l.b16 %v261
      %v1948 = vunpack.c.l.b16 %v262
      %v1949 = vunpack.c.l.b16 %v263
      %v1950 = vunpack.c.l.b16 %v264
      %v1951 = vunpack.c.l.b16 %v265
      %v1952 = vunpack.c.l.b16 %v266
      %v1953 = vunpack.c.l.b16 %v267
      %v1954 = vunpack.c.l.b16 %v268
      %v1955 = vpack.c.b16 %v1940, %v1939
      %v1956 = vpack.c.b16 %v1942, %v1941
      %v1957 = vpack.c.b16 %v1944, %v1943
      %v1958 = vpack.c.b16 %v1946, %v1945
      %v1959 = vpack.c.b16 %v1948, %v1947
      %v1960 = vpack.c.b16 %v1950, %v1949
      %v1961 = vpack.c.b16 %v1952, %v1951
      %v1962 = vpack.c.b16 %v1954, %v1953
      %1963 = vrot.lane.b32.xlu0 %v405, 15
      %v1964 = vpop.permute.xlu0 %1963
      %1965 = vrot.lane.b32.xlu0 %v406, 15
      %v1966 = vpop.permute.xlu0 %1965
      %1967 = vrot.lane.b32.xlu0 %v407, 15
      %v1968 = vpop.permute.xlu0 %1967
      %1969 = vrot.lane.b32.xlu0 %v408, 15
      %v1970 = vpop.permute.xlu0 %1969
      %1971 = vrot.lane.b32.xlu0 %v409, 15
      %v1972 = vpop.permute.xlu0 %1971
      %1973 = vrot.lane.b32.xlu0 %v410, 15
      %v1974 = vpop.permute.xlu0 %1973
      %vm1975 = vcmask 121856
      %v1976 = vsel %vm1975, %v1964, %v1966
      %v1977 = vsel %vm1975, %v1966, %v1968
      %v1978 = vsel %vm1975, %v1970, %v1972
      %v1979 = vsel %vm1975, %v1972, %v1974
      %v1985 = vsel %vm478, %v1955, 0
      %v1988 = vsel %vm478, %v1956, 0
      %v1991 = vsel %vm478, %v1957, 0
      %v1994 = vsel %vm478, %v1958, 0
      %v1997 = vsel %vm478, %v1959, 0
      %v2000 = vsel %vm478, %v1960, 0
      %v2003 = vsel %vm478, %v1961, 0
      %v2006 = vsel %vm478, %v1962, 0
      %2008 = vmatprep.subr.bf16.mxu0 %v1977
      %2009 = vmatpush1.bf16.msra.mxu0 %v1976
      %2010 = vmatprep.subr.bf16.mxu0 %v1979
      %2011 = vmatpush1.bf16.msra.mxu0 %v1978
      %2012 = vmatprep.subr.bf16.mxu0 0
      %2013 = vmatpush1.bf16.msra.mxu0 0
      %2014 = vmatprep.subr.bf16.mxu0 0
      %2015 = vmatpush1.bf16.msra.mxu0 0
      %2016 = vmatprep.subr.bf16.mxu0 0
      %2017 = vmatpush1.bf16.msra.mxu0 0
      %2018 = vmatprep.subr.bf16.mxu0 0
      %2019 = vmatpush1.bf16.msra.mxu0 0
      %2020 = vmatprep.subr.bf16.mxu0 0
      %2021 = vmatpush1.bf16.msra.mxu0 0
      %2022 = vmatprep.subr.bf16.mxu0 0
      %2023 = vmatpush1.bf16.msra.mxu0 0
      %2024 = vmatprep.subr.bf16.mxu0 0
      %2025 = vmatpush1.bf16.msra.mxu0 0
      %2026 = vmatprep.subr.bf16.mxu0 0
      %2027 = vmatpush1.bf16.msra.mxu0 0
      %2028 = vmatprep.subr.bf16.mxu0 0
      %2029 = vmatpush1.bf16.msra.mxu0 0
      %2030 = vmatprep.subr.bf16.mxu0 0
      %2031 = vmatpush1.bf16.msra.mxu0 0
      %2032 = vmatprep.subr.bf16.mxu0 0
      %2033 = vmatpush1.bf16.msra.mxu0 0
      %2034 = vmatprep.subr.bf16.mxu0 0
      %2035 = vmatpush1.bf16.msra.mxu0 0
      %2036 = vmatprep.subr.bf16.mxu0 0
      %2037 = vmatpush1.bf16.msra.mxu0 0
      %2038 = vmatprep.subr.bf16.mxu0 0
      %2039 = vmatpush1.bf16.msra.mxu0 0
      %2040 = vmatprep.mubr.bf16.mxu0 0
      %2041 = vmatmul.mubr.bf16.gmra.mrb[0].mxu0 %v1985
      %v2042 = vpop.f32.mrb[0].mxu0
      %v2043 = vadd.f32 %v1845, %v2042
      %v2044 = vpop.f32.mrb[0].mxu0
      %v2045 = vadd.f32 %v1847, %v2044
      %v2046 = vpop.f32.mrb[0].mxu0
      %v2047 = vadd.f32 %v1849, %v2046
      %v2048 = vpop.f32.mrb[0].mxu0
      %v2049 = vadd.f32 %v1851, %v2048
      %2050 = vmatprep.mubr.bf16.mxu0 0
      %2051 = vmatmul.mubr.bf16.gmra.mrb[0].mxu0 %v1988
      %v2052 = vpop.f32.mrb[0].mxu0
      %v2053 = vadd.f32 %v1855, %v2052
      %v2054 = vpop.f32.mrb[0].mxu0
      %v2055 = vadd.f32 %v1857, %v2054
      %v2056 = vpop.f32.mrb[0].mxu0
      %v2057 = vadd.f32 %v1859, %v2056
      %v2058 = vpop.f32.mrb[0].mxu0
      %v2059 = vadd.f32 %v1861, %v2058
      %2060 = vmatprep.mubr.bf16.mxu0 0
      %2061 = vmatmul.mubr.bf16.gmra.mrb[0].mxu0 %v1991
      %v2062 = vpop.f32.mrb[0].mxu0
      %v2063 = vadd.f32 %v1865, %v2062
      %v2064 = vpop.f32.mrb[0].mxu0
      %v2065 = vadd.f32 %v1867, %v2064
      %v2066 = vpop.f32.mrb[0].mxu0
      %v2067 = vadd.f32 %v1869, %v2066
      %v2068 = vpop.f32.mrb[0].mxu0
      %v2069 = vadd.f32 %v1871, %v2068
      %2070 = vmatprep.mubr.bf16.mxu0 0
      %2071 = vmatmul.mubr.bf16.gmra.mrb[0].mxu0 %v1994
      %v2072 = vpop.f32.mrb[0].mxu0
      %v2073 = vadd.f32 %v1875, %v2072
      %v2074 = vpop.f32.mrb[0].mxu0
      %v2075 = vadd.f32 %v1877, %v2074
      %v2076 = vpop.f32.mrb[0].mxu0
      %v2077 = vadd.f32 %v1879, %v2076
      %v2078 = vpop.f32.mrb[0].mxu0
      %v2079 = vadd.f32 %v1881, %v2078
      %2080 = vmatprep.mubr.bf16.mxu0 0
      %2081 = vmatmul.mubr.bf16.gmra.mrb[0].mxu0 %v1997
      %v2082 = vpop.f32.mrb[0].mxu0
      %v2083 = vadd.f32 %v1885, %v2082
      %v2084 = vpop.f32.mrb[0].mxu0
      %v2085 = vadd.f32 %v1887, %v2084
      %v2086 = vpop.f32.mrb[0].mxu0
      %v2087 = vadd.f32 %v1889, %v2086
      %v2088 = vpop.f32.mrb[0].mxu0
      %v2089 = vadd.f32 %v1891, %v2088
      %2090 = vmatprep.mubr.bf16.mxu0 0
      %2091 = vmatmul.mubr.bf16.gmra.mrb[0].mxu0 %v2000
      %v2092 = vpop.f32.mrb[0].mxu0
      %v2093 = vadd.f32 %v1895, %v2092
      %v2094 = vpop.f32.mrb[0].mxu0
      %v2095 = vadd.f32 %v1897, %v2094
      %v2096 = vpop.f32.mrb[0].mxu0
      %v2097 = vadd.f32 %v1899, %v2096
      %v2098 = vpop.f32.mrb[0].mxu0
      %v2099 = vadd.f32 %v1901, %v2098
      %2100 = vmatprep.mubr.bf16.mxu0 0
      %2101 = vmatmul.mubr.bf16.gmra.mrb[0].mxu0 %v2003
      %v2102 = vpop.f32.mrb[0].mxu0
      %v2103 = vadd.f32 %v1905, %v2102
      %v2104 = vpop.f32.mrb[0].mxu0
      %v2105 = vadd.f32 %v1907, %v2104
      %v2106 = vpop.f32.mrb[0].mxu0
      %v2107 = vadd.f32 %v1909, %v2106
      %v2108 = vpop.f32.mrb[0].mxu0
      %v2109 = vadd.f32 %v1911, %v2108
      %2110 = vmatprep.mubr.bf16.mxu0 0
      %2111 = vmatmul.mubr.bf16.gmra.mrb[0].mxu0 %v2006
      %v2112 = vpop.f32.mrb[0].mxu0
      %v2113 = vadd.f32 %v1915, %v2112
      %v2114 = vpop.f32.mrb[0].mxu0
      %v2115 = vadd.f32 %v1917, %v2114
      %v2116 = vpop.f32.mrb[0].mxu0
      %v2117 = vadd.f32 %v1919, %v2116
      %v2118 = vpop.f32.mrb[0].mxu0
      %v2119 = vadd.f32 %v1921, %v2118
      %2120 = vdwg.mxu0
      %v2137 = vunpack.c.l.b16 %v349
      %v2138 = vunpack.c.l.b16 %v350
      %v2139 = vunpack.c.l.b16 %v351
      %v2140 = vunpack.c.l.b16 %v352
      %v2141 = vunpack.c.l.b16 %v353
      %v2142 = vunpack.c.l.b16 %v354
      %v2143 = vunpack.c.l.b16 %v355
      %v2144 = vunpack.c.l.b16 %v356
      %v2145 = vunpack.c.l.b16 %v357
      %v2146 = vunpack.c.l.b16 %v358
      %v2147 = vunpack.c.l.b16 %v359
      %v2148 = vunpack.c.l.b16 %v360
      %v2149 = vunpack.c.l.b16 %v361
      %v2150 = vunpack.c.l.b16 %v362
      %v2151 = vunpack.c.l.b16 %v363
      %v2152 = vunpack.c.l.b16 %v364
      %v2153 = vpack.c.b16 %v2138, %v2137
      %v2154 = vpack.c.b16 %v2140, %v2139
      %v2155 = vpack.c.b16 %v2142, %v2141
      %v2156 = vpack.c.b16 %v2144, %v2143
      %v2157 = vpack.c.b16 %v2146, %v2145
      %v2158 = vpack.c.b16 %v2148, %v2147
      %v2159 = vpack.c.b16 %v2150, %v2149
      %v2160 = vpack.c.b16 %v2152, %v2151
      %2161 = vrot.lane.b32.xlu0 %v814, 111
      %v2162 = vpop.permute.xlu0 %2161
      %2163 = vrot.lane.b32.xlu0 %v815, 111
      %v2164 = vpop.permute.xlu0 %2163
      %2165 = vrot.lane.b32.xlu0 %v816, 111
      %v2166 = vpop.permute.xlu0 %2165
      %2167 = vrot.lane.b32.xlu0 %v817, 111
      %v2168 = vpop.permute.xlu0 %2167
      %2169 = vrot.lane.b32.xlu0 %v818, 111
      %v2170 = vpop.permute.xlu0 %2169
      %2171 = vrot.lane.b32.xlu0 %v819, 111
      %v2172 = vpop.permute.xlu0 %2171
      %vm2173 = vcmask 908288
      %v2174 = vsel %vm2173, %v2162, %v2164
      %v2175 = vsel %vm2173, %v2164, %v2166
      %v2176 = vsel %vm2173, %v2168, %v2170
      %v2177 = vsel %vm2173, %v2170, %v2172
      %v2183 = vsel %vm478, %v2153, 0
      %v2186 = vsel %vm478, %v2154, 0
      %v2189 = vsel %vm478, %v2155, 0
      %v2192 = vsel %vm478, %v2156, 0
      %v2195 = vsel %vm478, %v2157, 0
      %v2198 = vsel %vm478, %v2158, 0
      %v2201 = vsel %vm478, %v2159, 0
      %v2204 = vsel %vm478, %v2160, 0
      %2206 = vmatprep.subr.bf16.mxu0 %v2175
      %2207 = vmatpush1.bf16.msra.mxu0 %v2174
      %2208 = vmatprep.subr.bf16.mxu0 %v2177
      %2209 = vmatpush1.bf16.msra.mxu0 %v2176
      %2210 = vmatprep.subr.bf16.mxu0 0
      %2211 = vmatpush1.bf16.msra.mxu0 0
      %2212 = vmatprep.subr.bf16.mxu0 0
      %2213 = vmatpush1.bf16.msra.mxu0 0
      %2214 = vmatprep.subr.bf16.mxu0 0
      %2215 = vmatpush1.bf16.msra.mxu0 0
      %2216 = vmatprep.subr.bf16.mxu0 0
      %2217 = vmatpush1.bf16.msra.mxu0 0
      %2218 = vmatprep.subr.bf16.mxu0 0
      %2219 = vmatpush1.bf16.msra.mxu0 0
      %2220 = vmatprep.subr.bf16.mxu0 0
      %2221 = vmatpush1.bf16.msra.mxu0 0
      %2222 = vmatprep.subr.bf16.mxu0 0
      %2223 = vmatpush1.bf16.msra.mxu0 0
      %2224 = vmatprep.subr.bf16.mxu0 0
      %2225 = vmatpush1.bf16.msra.mxu0 0
      %2226 = vmatprep.subr.bf16.mxu0 0
      %2227 = vmatpush1.bf16.msra.mxu0 0
      %2228 = vmatprep.subr.bf16.mxu0 0
      %2229 = vmatpush1.bf16.msra.mxu0 0
      %2230 = vmatprep.subr.bf16.mxu0 0
      %2231 = vmatpush1.bf16.msra.mxu0 0
      %2232 = vmatprep.subr.bf16.mxu0 0
      %2233 = vmatpush1.bf16.msra.mxu0 0
      %2234 = vmatprep.subr.bf16.mxu0 0
      %2235 = vmatpush1.bf16.msra.mxu0 0
      %2236 = vmatprep.subr.bf16.mxu0 0
      %2237 = vmatpush1.bf16.msra.mxu0 0
      %2238 = vmatprep.mubr.bf16.mxu0 0
      %2239 = vmatmul.mubr.bf16.gmra.mrb[0].mxu0 %v2183
      %v2240 = vpop.f32.mrb[0].mxu0
      %v2241 = vadd.f32 0.0, %v2240
      %v2242 = vpop.f32.mrb[0].mxu0
      %v2243 = vadd.f32 0.0, %v2242
      %v2244 = vpop.f32.mrb[0].mxu0
      %v2245 = vadd.f32 0.0, %v2244
      %v2246 = vpop.f32.mrb[0].mxu0
      %v2247 = vadd.f32 0.0, %v2246
      %2248 = vmatprep.mubr.bf16.mxu0 0
      %2249 = vmatmul.mubr.bf16.gmra.mrb[0].mxu0 %v2186
      %v2250 = vpop.f32.mrb[0].mxu0
      %v2251 = vadd.f32 0.0, %v2250
      %v2252 = vpop.f32.mrb[0].mxu0
      %v2253 = vadd.f32 0.0, %v2252
      %v2254 = vpop.f32.mrb[0].mxu0
      %v2255 = vadd.f32 0.0, %v2254
      %v2256 = vpop.f32.mrb[0].mxu0
      %v2257 = vadd.f32 0.0, %v2256
      %2258 = vmatprep.mubr.bf16.mxu0 0
      %2259 = vmatmul.mubr.bf16.gmra.mrb[0].mxu0 %v2189
      %v2260 = vpop.f32.mrb[0].mxu0
      %v2261 = vadd.f32 0.0, %v2260
      %v2262 = vpop.f32.mrb[0].mxu0
      %v2263 = vadd.f32 0.0, %v2262
      %v2264 = vpop.f32.mrb[0].mxu0
      %v2265 = vadd.f32 0.0, %v2264
      %v2266 = vpop.f32.mrb[0].mxu0
      %v2267 = vadd.f32 0.0, %v2266
      %2268 = vmatprep.mubr.bf16.mxu0 0
      %2269 = vmatmul.mubr.bf16.gmra.mrb[0].mxu0 %v2192
      %v2270 = vpop.f32.mrb[0].mxu0
      %v2271 = vadd.f32 0.0, %v2270
      %v2272 = vpop.f32.mrb[0].mxu0
      %v2273 = vadd.f32 0.0, %v2272
      %v2274 = vpop.f32.mrb[0].mxu0
      %v2275 = vadd.f32 0.0, %v2274
      %v2276 = vpop.f32.mrb[0].mxu0
      %v2277 = vadd.f32 0.0, %v2276
      %2278 = vmatprep.mubr.bf16.mxu0 0
      %2279 = vmatmul.mubr.bf16.gmra.mrb[0].mxu0 %v2195
      %v2280 = vpop.f32.mrb[0].mxu0
      %v2281 = vadd.f32 0.0, %v2280
      %v2282 = vpop.f32.mrb[0].mxu0
      %v2283 = vadd.f32 0.0, %v2282
      %v2284 = vpop.f32.mrb[0].mxu0
      %v2285 = vadd.f32 0.0, %v2284
      %v2286 = vpop.f32.mrb[0].mxu0
      %v2287 = vadd.f32 0.0, %v2286
      %2288 = vmatprep.mubr.bf16.mxu0 0
      %2289 = vmatmul.mubr.bf16.gmra.mrb[0].mxu0 %v2198
      %v2290 = vpop.f32.mrb[0].mxu0
      %v2291 = vadd.f32 0.0, %v2290
      %v2292 = vpop.f32.mrb[0].mxu0
      %v2293 = vadd.f32 0.0, %v2292
      %v2294 = vpop.f32.mrb[0].mxu0
      %v2295 = vadd.f32 0.0, %v2294
      %v2296 = vpop.f32.mrb[0].mxu0
      %v2297 = vadd.f32 0.0, %v2296
      %2298 = vmatprep.mubr.bf16.mxu0 0
      %2299 = vmatmul.mubr.bf16.gmra.mrb[0].mxu0 %v2201
      %v2300 = vpop.f32.mrb[0].mxu0
      %v2301 = vadd.f32 0.0, %v2300
      %v2302 = vpop.f32.mrb[0].mxu0
      %v2303 = vadd.f32 0.0, %v2302
      %v2304 = vpop.f32.mrb[0].mxu0
      %v2305 = vadd.f32 0.0, %v2304
      %v2306 = vpop.f32.mrb[0].mxu0
      %v2307 = vadd.f32 0.0, %v2306
      %2308 = vmatprep.mubr.bf16.mxu0 0
      %2309 = vmatmul.mubr.bf16.gmra.mrb[0].mxu0 %v2204
      %v2310 = vpop.f32.mrb[0].mxu0
      %v2311 = vadd.f32 0.0, %v2310
      %v2312 = vpop.f32.mrb[0].mxu0
      %v2313 = vadd.f32 0.0, %v2312
      %v2314 = vpop.f32.mrb[0].mxu0
      %v2315 = vadd.f32 0.0, %v2314
      %v2316 = vpop.f32.mrb[0].mxu0
      %v2317 = vadd.f32 0.0, %v2316
      %2318 = vdwg.mxu0
      %v2319 = vadd.f32 %v2043, %v2241
      %v2320 = vadd.f32 %v2045, %v2243
      %v2321 = vadd.f32 %v2047, %v2245
      %v2322 = vadd.f32 %v2049, %v2247
      %v2323 = vadd.f32 %v2053, %v2251
      %v2324 = vadd.f32 %v2055, %v2253
      %v2325 = vadd.f32 %v2057, %v2255
      %v2326 = vadd.f32 %v2059, %v2257
      %v2327 = vadd.f32 %v2063, %v2261
      %v2328 = vadd.f32 %v2065, %v2263
      %v2329 = vadd.f32 %v2067, %v2265
      %v2330 = vadd.f32 %v2069, %v2267
      %v2331 = vadd.f32 %v2073, %v2271
      %v2332 = vadd.f32 %v2075, %v2273
      %v2333 = vadd.f32 %v2077, %v2275
      %v2334 = vadd.f32 %v2079, %v2277
      %v2335 = vadd.f32 %v2083, %v2281
      %v2336 = vadd.f32 %v2085, %v2283
      %v2337 = vadd.f32 %v2087, %v2285
      %v2338 = vadd.f32 %v2089, %v2287
      %v2339 = vadd.f32 %v2093, %v2291
      %v2340 = vadd.f32 %v2095, %v2293
      %v2341 = vadd.f32 %v2097, %v2295
      %v2342 = vadd.f32 %v2099, %v2297
      %v2343 = vadd.f32 %v2103, %v2301
      %v2344 = vadd.f32 %v2105, %v2303
      %v2345 = vadd.f32 %v2107, %v2305
      %v2346 = vadd.f32 %v2109, %v2307
      %v2347 = vadd.f32 %v2113, %v2311
      %v2348 = vadd.f32 %v2115, %v2313
      %v2349 = vadd.f32 %v2117, %v2315
      %v2350 = vadd.f32 %v2119, %v2317
      %v2351 = vmul.f32 %v2319, %v215
      %v2352 = vmul.f32 %v2320, %v216
      %v2353 = vmul.f32 %v2321, %v215
      %v2354 = vmul.f32 %v2322, %v216
      %v2355 = vmul.f32 %v2323, %v215
      %v2356 = vmul.f32 %v2324, %v216
      %v2357 = vmul.f32 %v2325, %v215
      %v2358 = vmul.f32 %v2326, %v216
      %v2359 = vmul.f32 %v2327, %v215
      %v2360 = vmul.f32 %v2328, %v216
      %v2361 = vmul.f32 %v2329, %v215
      %v2362 = vmul.f32 %v2330, %v216
      %v2363 = vmul.f32 %v2331, %v215
      %v2364 = vmul.f32 %v2332, %v216
      %v2365 = vmul.f32 %v2333, %v215
      %v2366 = vmul.f32 %v2334, %v216
      %v2367 = vmul.f32 %v2335, %v215
      %v2368 = vmul.f32 %v2336, %v216
      %v2369 = vmul.f32 %v2337, %v215
      %v2370 = vmul.f32 %v2338, %v216
      %v2371 = vmul.f32 %v2339, %v215
      %v2372 = vmul.f32 %v2340, %v216
      %v2373 = vmul.f32 %v2341, %v215
      %v2374 = vmul.f32 %v2342, %v216
      %v2375 = vmul.f32 %v2343, %v215
      %v2376 = vmul.f32 %v2344, %v216
      %v2377 = vmul.f32 %v2345, %v215
      %v2378 = vmul.f32 %v2346, %v216
      %v2379 = vmul.f32 %v2347, %v215
      %v2380 = vmul.f32 %v2348, %v216
      %v2381 = vmul.f32 %v2349, %v215
      %v2382 = vmul.f32 %v2350, %v216
      %v2383 = vadd.f32 %v1693, %v2351
      %v2384 = vadd.f32 %v1694, %v2352
      %v2385 = vadd.f32 %v1695, %v2353
      %v2386 = vadd.f32 %v1696, %v2354
      %v2387 = vadd.f32 %v1697, %v2355
      %v2388 = vadd.f32 %v1698, %v2356
      %v2389 = vadd.f32 %v1699, %v2357
      %v2390 = vadd.f32 %v1700, %v2358
      %v2391 = vadd.f32 %v1701, %v2359
      %v2392 = vadd.f32 %v1702, %v2360
      %v2393 = vadd.f32 %v1703, %v2361
      %v2394 = vadd.f32 %v1704, %v2362
      %v2395 = vadd.f32 %v1705, %v2363
      %v2396 = vadd.f32 %v1706, %v2364
      %v2397 = vadd.f32 %v1707, %v2365
      %v2398 = vadd.f32 %v1708, %v2366
      %v2399 = vadd.f32 %v1709, %v2367
      %v2400 = vadd.f32 %v1710, %v2368
      %v2401 = vadd.f32 %v1711, %v2369
      %v2402 = vadd.f32 %v1712, %v2370
      %v2403 = vadd.f32 %v1713, %v2371
      %v2404 = vadd.f32 %v1714, %v2372
      %v2405 = vadd.f32 %v1715, %v2373
      %v2406 = vadd.f32 %v1716, %v2374
      %v2407 = vadd.f32 %v1717, %v2375
      %v2408 = vadd.f32 %v1718, %v2376
      %v2409 = vadd.f32 %v1719, %v2377
      %v2410 = vadd.f32 %v1720, %v2378
      %v2411 = vadd.f32 %v1721, %v2379
      %v2412 = vadd.f32 %v1722, %v2380
      %v2413 = vadd.f32 %v1723, %v2381
      %v2414 = vadd.f32 %v1724, %v2382
      %2416 = vset.pattern.permute.xlu0 0
      %2417 = vperm.xlu0 %2416, %v365
      %v2418 = vpop.permute.xlu0 %2417
      %2421 = vset.pattern.permute.xlu0 0
      %2422 = vperm.xlu0 %2421, %v366
      %v2423 = vpop.permute.xlu0 %2422
      %2426 = vset.pattern.permute.xlu0 0
      %2427 = vperm.xlu0 %2426, %v367
      %v2428 = vpop.permute.xlu0 %2427
      %2431 = vset.pattern.permute.xlu0 0
      %2432 = vperm.xlu0 %2431, %v368
      %v2433 = vpop.permute.xlu0 %2432
      %2436 = vset.pattern.permute.xlu0 0
      %2437 = vperm.xlu0 %2436, %v369
      %v2438 = vpop.permute.xlu0 %2437
      %2441 = vset.pattern.permute.xlu0 0
      %2442 = vperm.xlu0 %2441, %v370
      %v2443 = vpop.permute.xlu0 %2442
      %2446 = vset.pattern.permute.xlu0 0
      %2447 = vperm.xlu0 %2446, %v371
      %v2448 = vpop.permute.xlu0 %2447
      %2451 = vset.pattern.permute.xlu0 0
      %2452 = vperm.xlu0 %2451, %v372
      %v2453 = vpop.permute.xlu0 %2452
      %2456 = vset.pattern.permute.xlu0 0
      %2457 = vperm.xlu0 %2456, %v373
      %v2458 = vpop.permute.xlu0 %2457
      %2461 = vset.pattern.permute.xlu0 0
      %2462 = vperm.xlu0 %2461, %v374
      %v2463 = vpop.permute.xlu0 %2462
      %2466 = vset.pattern.permute.xlu0 0
      %2467 = vperm.xlu0 %2466, %v375
      %v2468 = vpop.permute.xlu0 %2467
      %2471 = vset.pattern.permute.xlu0 0
      %2472 = vperm.xlu0 %2471, %v376
      %v2473 = vpop.permute.xlu0 %2472
      %2476 = vset.pattern.permute.xlu0 0
      %2477 = vperm.xlu0 %2476, %v377
      %v2478 = vpop.permute.xlu0 %2477
      %2481 = vset.pattern.permute.xlu0 0
      %2482 = vperm.xlu0 %2481, %v378
      %v2483 = vpop.permute.xlu0 %2482
      %2486 = vset.pattern.permute.xlu0 0
      %2487 = vperm.xlu0 %2486, %v379
      %v2488 = vpop.permute.xlu0 %2487
      %2491 = vset.pattern.permute.xlu0 0
      %2492 = vperm.xlu0 %2491, %v380
      %v2493 = vpop.permute.xlu0 %2492
      %v2495 = vadd.f32 %v2383, %v2418
      %v2496 = vadd.f32 %v2384, %v2418
      %v2497 = vadd.f32 %v2385, %v2423
      %v2498 = vadd.f32 %v2386, %v2423
      %v2499 = vadd.f32 %v2387, %v2428
      %v2500 = vadd.f32 %v2388, %v2428
      %v2501 = vadd.f32 %v2389, %v2433
      %v2502 = vadd.f32 %v2390, %v2433
      %v2503 = vadd.f32 %v2391, %v2438
      %v2504 = vadd.f32 %v2392, %v2438
      %v2505 = vadd.f32 %v2393, %v2443
      %v2506 = vadd.f32 %v2394, %v2443
      %v2507 = vadd.f32 %v2395, %v2448
      %v2508 = vadd.f32 %v2396, %v2448
      %v2509 = vadd.f32 %v2397, %v2453
      %v2510 = vadd.f32 %v2398, %v2453
      %v2511 = vadd.f32 %v2399, %v2458
      %v2512 = vadd.f32 %v2400, %v2458
      %v2513 = vadd.f32 %v2401, %v2463
      %v2514 = vadd.f32 %v2402, %v2463
      %v2515 = vadd.f32 %v2403, %v2468
      %v2516 = vadd.f32 %v2404, %v2468
      %v2517 = vadd.f32 %v2405, %v2473
      %v2518 = vadd.f32 %v2406, %v2473
      %v2519 = vadd.f32 %v2407, %v2478
      %v2520 = vadd.f32 %v2408, %v2478
      %v2521 = vadd.f32 %v2409, %v2483
      %v2522 = vadd.f32 %v2410, %v2483
      %v2523 = vadd.f32 %v2411, %v2488
      %v2524 = vadd.f32 %v2412, %v2488
      %v2525 = vadd.f32 %v2413, %v2493
      %v2526 = vadd.f32 %v2414, %v2493
      %v2527 = vpack.c.bf16 %v2497, %v2495
      %v2528 = vpack.c.bf16 %v2498, %v2496
      %v2529 = vpack.c.bf16 %v2501, %v2499
      %v2530 = vpack.c.bf16 %v2502, %v2500
      %v2531 = vpack.c.bf16 %v2505, %v2503
      %v2532 = vpack.c.bf16 %v2506, %v2504
      %v2533 = vpack.c.bf16 %v2509, %v2507
      %v2534 = vpack.c.bf16 %v2510, %v2508
      %v2535 = vpack.c.bf16 %v2513, %v2511
      %v2536 = vpack.c.bf16 %v2514, %v2512
      %v2537 = vpack.c.bf16 %v2517, %v2515
      %v2538 = vpack.c.bf16 %v2518, %v2516
      %v2539 = vpack.c.bf16 %v2521, %v2519
      %v2540 = vpack.c.bf16 %v2522, %v2520
      %v2541 = vpack.c.bf16 %v2525, %v2523
      %v2542 = vpack.c.bf16 %v2526, %v2524
      %v2559 = vunpack.c.l.b16 %v2527
      %v2560 = vunpack.c.l.b16 %v2528
      %v2561 = vunpack.c.h.b16 %v2527
      %v2562 = vunpack.c.h.b16 %v2528
      %v2563 = vunpack.c.l.b16 %v2529
      %v2564 = vunpack.c.l.b16 %v2530
      %v2565 = vunpack.c.h.b16 %v2529
      %v2566 = vunpack.c.h.b16 %v2530
      %v2567 = vunpack.c.l.b16 %v2531
      %v2568 = vunpack.c.l.b16 %v2532
      %v2569 = vunpack.c.h.b16 %v2531
      %v2570 = vunpack.c.h.b16 %v2532
      %v2571 = vunpack.c.l.b16 %v2533
      %v2572 = vunpack.c.l.b16 %v2534
      %v2573 = vunpack.c.h.b16 %v2533
      %v2574 = vunpack.c.h.b16 %v2534
      %v2575 = vunpack.c.l.b16 %v2535
      %v2576 = vunpack.c.l.b16 %v2536
      %v2577 = vunpack.c.h.b16 %v2535
      %v2578 = vunpack.c.h.b16 %v2536
      %v2579 = vunpack.c.l.b16 %v2537
      %v2580 = vunpack.c.l.b16 %v2538
      %v2581 = vunpack.c.h.b16 %v2537
      %v2582 = vunpack.c.h.b16 %v2538
      %v2583 = vunpack.c.l.b16 %v2539
      %v2584 = vunpack.c.l.b16 %v2540
      %v2585 = vunpack.c.h.b16 %v2539
      %v2586 = vunpack.c.h.b16 %v2540
      %v2587 = vunpack.c.l.b16 %v2541
      %v2588 = vunpack.c.l.b16 %v2542
      %v2589 = vunpack.c.h.b16 %v2541
      %v2590 = vunpack.c.h.b16 %v2542
      %v2591 = vpack.c.b16 %v2560, %v2559
      %v2592 = vpack.c.b16 %v2562, %v2561
      %v2593 = vpack.c.b16 %v2564, %v2563
      %v2594 = vpack.c.b16 %v2566, %v2565
      %v2595 = vpack.c.b16 %v2568, %v2567
      %v2596 = vpack.c.b16 %v2570, %v2569
      %v2597 = vpack.c.b16 %v2572, %v2571
      %v2598 = vpack.c.b16 %v2574, %v2573
      %v2599 = vpack.c.b16 %v2576, %v2575
      %v2600 = vpack.c.b16 %v2578, %v2577
      %v2601 = vpack.c.b16 %v2580, %v2579
      %v2602 = vpack.c.b16 %v2582, %v2581
      %v2603 = vpack.c.b16 %v2584, %v2583
      %v2604 = vpack.c.b16 %v2586, %v2585
      %v2605 = vpack.c.b16 %v2588, %v2587
      %v2606 = vpack.c.b16 %v2590, %v2589
      %2623 = vst [vmem:[%s170] sm:$0xff] %v2591
      %2624 = vst [vmem:[%s170 + $0x8] sm:$0xff] %v2592
      %2625 = vst [vmem:[%s170 + $0x10] sm:$0xff] %v2593
      %2626 = vst [vmem:[%s170 + $0x18] sm:$0xff] %v2594
      %2627 = vst [vmem:[%s170 + $0x20] sm:$0xff] %v2595
      %2628 = vst [vmem:[%s170 + $0x28] sm:$0xff] %v2596
      %2629 = vst [vmem:[%s170 + $0x30] sm:$0xff] %v2597
      %2630 = vst [vmem:[%s170 + $0x38] sm:$0xff] %v2598
      %2631 = vst [vmem:[%s170 + $0x40] sm:$0xff] %v2599
      %2632 = vst [vmem:[%s170 + $0x48] sm:$0xff] %v2600
      %2633 = vst [vmem:[%s170 + $0x50] sm:$0xff] %v2601
      %2634 = vst [vmem:[%s170 + $0x58] sm:$0xff] %v2602
      %2635 = vst [vmem:[%s170 + $0x60] sm:$0xff] %v2603
      %2636 = vst [vmem:[%s170 + $0x68] sm:$0xff] %v2604
      %2637 = vst [vmem:[%s170 + $0x70] sm:$0xff] %v2605
      %2638 = vst [vmem:[%s170 + $0x78] sm:$0xff] %v2606
      %p2639 = scmp.lt.s32.totalorder %s14, 1
      %s2640 = scalar_select %p2639, %s14, 1
      %s2641 = smul.addr %s2640, 32
      %s2642 = smul.addr %s2641, 4
      %s2643 = scalar_lea.vmem %s3, %s2642
      // Predicated region
      $region33: #{edsr_forward.4} parent=31 // pred_check
        %p2644 = pneg %p100
      $region34: #{edsr_forward.4} parent=31 // pred_check_branch
        %2646 = sbr.rel (%p2644) target = $region36
      $region35: #{edsr_forward.4} parent=31 // pred_region
        _
      $region36: #{edsr_forward.4} parent=31 // pred_fallthru
        _
    $region32: #{edsr_forward.4} parent=5 // pred_fallthru
      _
    %p2647 = scmp.le.s32.totalorder 2, %s9
    // Predicated region
    $region37: #{edsr_forward.4} parent=5 // pred_check
      %p2648 = pneg %p2647
    $region38: #{edsr_forward.4} parent=5 // pred_check_branch
      %2650 = sbr.rel (%p2648) target = $region40
    $region39: #{edsr_forward.4} parent=5 // pred_region
      %s2651 = ssub.s32 %s9, 2
      // Predicated region
      $region41: #{edsr_forward.4} parent=39 // pred_check
        %p2652 = pneg %p106
      $region42: #{edsr_forward.4} parent=39 // pred_check_branch
        %2654 = sbr.rel (%p2652) target = $region44
      $region43: #{edsr_forward.4} parent=39 // pred_region
        %p2655 = scmp.lt.s32.totalorder %s15, 1
        %s2656 = scalar_select %p2655, %s15, 1
        %s2657 = smul.addr %s2656, 32
        %s2658 = smul.addr %s2657, 4
        %s2659 = scalar_lea.vmem %s3, %s2658
      $region44: #{edsr_forward.4} parent=39 // pred_fallthru
        _
    $region40: #{edsr_forward.4} parent=5 // pred_fallthru
      _
  $region6: #{edsr_forward.4} parent=0 // loop_footer
    %s13 = sadd.s32 1, %s9
  $region7: #{edsr_forward.4} parent=0 // loop_footer_branch
    %8 = sbr.rel target = $region3
  $region8: #{edsr_forward.4} parent=0 // loop_exit
    _

// kernel: edsr_forward.3
$region0: #{edsr_forward.3}
  #allocation0 [shape = 'u32[]', space=smem, size = 0x4, offset = 0x4, fixed_abs, tag = 'smem constant byte address 0x4 - core index']
  #allocation1 [shape = 'u32[144,128]{1,0:T(1,128)}', space=vmem, size = 0x12000, scoped, tag = 'internal scratch']
  #allocation2 [shape = 'bf16[32,401]{1,0:T(16,128)(2,1)}', space=vmem, size = 0x8000, scoped, tag = 'scratch operand']
  %s0 = inlined_call_operand.vmem [shape: f32[2,4,256], index: 0, kind: input, shape index: {}]
  %s1 = inlined_call_operand.vmem [shape: f32[4,1], index: 1, kind: input, shape index: {}]
  %s2 = inlined_call_operand.vmem [shape: bf16[288,4], index: 2, kind: input, shape index: {}]
  %s3 = inlined_call_operand.vmem [shape: f32[32,1], index: 3, kind: input, shape index: {}]
  %s4 = inlined_call_operand.vmem [shape: bf16[2,576,32], index: 4, kind: input, shape index: {}]
  %s5 = inlined_call_operand.vmem [shape: f32[2,64,1], index: 5, kind: input, shape index: {}]
  %s6 = inlined_call_operand.vmem [shape: bf16[288,32], index: 6, kind: input, shape index: {}]
  %s7 = inlined_call_operand.vmem [shape: f32[32,1], index: 7, kind: input, shape index: {}]
  %s8 = inlined_call_operand.vmem [shape: bf16[2,32,256], index: 8, kind: output, shape index: {}]
  %s9 = sld [smem:[#allocation0]]
  $region72: #{edsr_forward.3} parent=0
    _
  %s11 = ssub.s32 1, %s9
  %s12 = scalar_select 0, %s11, %s9
  loop: start=0, step=1, limit=4
  $region2: #{edsr_forward.3} parent=0 // loop_pre_header
    _
  $region3: #{edsr_forward.3} parent=0 // loop_header
    %s14 = sphi 0, %s18
    %p15 = scmp.ge.s32.totalorder %s14, 4
    %s24 = sphi 0, %s26
    %s27 = sphi 0, %s24
    %s28 = sphi 0, %s27
    %s44 = sphi 0, %s28
    %s48 = sphi 0, %s48
    %s50 = sphi 0, %s48
    %s51 = sphi 0, %s50
    %s65 = sphi 0, %s51
    %s69 = sphi 0, %s69
    %s71 = sphi 0, %s69
    %s72 = sphi 0, %s71
    %s86 = sphi 0, %s72
    %s90 = sphi 0, %s90
    %s92 = sphi 0, %s90
    %s93 = sphi 0, %s92
    %s107 = sphi 0, %s93
    %s111 = sphi 0, %s111
    %s113 = sphi 0, %s111
    %s114 = sphi 0, %s113
    %s128 = sphi 0, %s114
    %s132 = sphi 0, %s132
    %s134 = sphi 0, %s132
    %s135 = sphi 0, %s134
    %s149 = sphi 0, %s135
    %s153 = sphi 0, %s153
    %s155 = sphi 0, %s153
    %s156 = sphi 0, %s155
    %s170 = sphi 0, %s156
    %s174 = sphi 0, %s174
    %s176 = sphi 0, %s174
    %s177 = sphi 0, %s176
    %s191 = sphi 0, %s177
    %s197 = sphi 0, %s199
    %s200 = sphi 0, %s197
    %s201 = sphi 0, %s200
    %s217 = sphi 0, %s201
  $region4: #{edsr_forward.3} parent=0 // loop_header_branch
    %17 = sbr.rel (%p15) target = $region8
  $region5: #{edsr_forward.3} parent=0 // loop_body
    %s19 = ssub.s32 %s14, 1
    %s20 = ssub.s32 %s14, 2
    %s21 = sadd.s32 %s14, 1
    %s22 = ssub.s32 %s14, %s21
    %p23 = scmp.eq.s32.totalorder %s22, 0
    %s25 = sadd.s32 %s24, 1
    %s26 = scalar_select %p23, %s24, %s25
    %p29 = pneg %p23
    %p30 = scmp.eq.s32.totalorder %s14, 1
    %p31 = por %p29, %p30
    %p32 = scmp.ne.s32.totalorder %s24, %s27
    %p33 = scmp.eq.s32.totalorder %s14, 0
    %p34 = por %p32, %p33
    %p35 = scmp.ne.s32.totalorder %s24, %s27
    %p36 = scmp.eq.s32.totalorder %s19, 1
    %p37 = por %p35, %p36
    %p38 = scmp.ne.s32.totalorder %s27, %s28
    %p39 = scmp.eq.s32.totalorder %s19, 0
    %p40 = por %p38, %p39
    %p41 = scmp.ne.s32.totalorder %s27, %s28
    %p42 = scmp.eq.s32.totalorder %s20, 1
    %p43 = por %p41, %p42
    %p45 = scmp.ne.s32.totalorder %s28, %s44
    %p46 = scmp.eq.s32.totalorder %s20, 0
    %p47 = por %p45, %p46
    %s49 = sadd.s32 %s48, 1
    %p52 = scmp.eq.s32.totalorder %s14, 1
    %p53 = scmp.ne.s32.totalorder %s48, %s50
    %p54 = scmp.eq.s32.totalorder %s14, 0
    %p55 = por %p53, %p54
    %p56 = scmp.ne.s32.totalorder %s48, %s50
    %p57 = scmp.eq.s32.totalorder %s19, 1
    %p58 = por %p56, %p57
    %p59 = scmp.ne.s32.totalorder %s50, %s51
    %p60 = scmp.eq.s32.totalorder %s19, 0
    %p61 = por %p59, %p60
    %p62 = scmp.ne.s32.totalorder %s50, %s51
    %p63 = scmp.eq.s32.totalorder %s20, 1
    %p64 = por %p62, %p63
    %p66 = scmp.ne.s32.totalorder %s51, %s65
    %p67 = scmp.eq.s32.totalorder %s20, 0
    %p68 = por %p66, %p67
    %s70 = sadd.s32 %s69, 1
    %p73 = scmp.eq.s32.totalorder %s14, 1
    %p74 = scmp.ne.s32.totalorder %s69, %s71
    %p75 = scmp.eq.s32.totalorder %s14, 0
    %p76 = por %p74, %p75
    %p77 = scmp.ne.s32.totalorder %s69, %s71
    %p78 = scmp.eq.s32.totalorder %s19, 1
    %p79 = por %p77, %p78
    %p80 = scmp.ne.s32.totalorder %s71, %s72
    %p81 = scmp.eq.s32.totalorder %s19, 0
    %p82 = por %p80, %p81
    %p83 = scmp.ne.s32.totalorder %s71, %s72
    %p84 = scmp.eq.s32.totalorder %s20, 1
    %p85 = por %p83, %p84
    %p87 = scmp.ne.s32.totalorder %s72, %s86
    %p88 = scmp.eq.s32.totalorder %s20, 0
    %p89 = por %p87, %p88
    %s91 = sadd.s32 %s90, 1
    %p94 = scmp.eq.s32.totalorder %s14, 1
    %p95 = scmp.ne.s32.totalorder %s90, %s92
    %p96 = scmp.eq.s32.totalorder %s14, 0
    %p97 = por %p95, %p96
    %p98 = scmp.ne.s32.totalorder %s90, %s92
    %p99 = scmp.eq.s32.totalorder %s19, 1
    %p100 = por %p98, %p99
    %p101 = scmp.ne.s32.totalorder %s92, %s93
    %p102 = scmp.eq.s32.totalorder %s19, 0
    %p103 = por %p101, %p102
    %p104 = scmp.ne.s32.totalorder %s92, %s93
    %p105 = scmp.eq.s32.totalorder %s20, 1
    %p106 = por %p104, %p105
    %p108 = scmp.ne.s32.totalorder %s93, %s107
    %p109 = scmp.eq.s32.totalorder %s20, 0
    %p110 = por %p108, %p109
    %s112 = sadd.s32 %s111, 1
    %p115 = scmp.eq.s32.totalorder %s14, 1
    %p116 = scmp.ne.s32.totalorder %s111, %s113
    %p117 = scmp.eq.s32.totalorder %s14, 0
    %p118 = por %p116, %p117
    %p119 = scmp.ne.s32.totalorder %s111, %s113
    %p120 = scmp.eq.s32.totalorder %s19, 1
    %p121 = por %p119, %p120
    %p122 = scmp.ne.s32.totalorder %s113, %s114
    %p123 = scmp.eq.s32.totalorder %s19, 0
    %p124 = por %p122, %p123
    %p125 = scmp.ne.s32.totalorder %s113, %s114
    %p126 = scmp.eq.s32.totalorder %s20, 1
    %p127 = por %p125, %p126
    %p129 = scmp.ne.s32.totalorder %s114, %s128
    %p130 = scmp.eq.s32.totalorder %s20, 0
    %p131 = por %p129, %p130
    %s133 = sadd.s32 %s132, 1
    %p136 = scmp.eq.s32.totalorder %s14, 1
    %p137 = scmp.ne.s32.totalorder %s132, %s134
    %p138 = scmp.eq.s32.totalorder %s14, 0
    %p139 = por %p137, %p138
    %p140 = scmp.ne.s32.totalorder %s132, %s134
    %p141 = scmp.eq.s32.totalorder %s19, 1
    %p142 = por %p140, %p141
    %p143 = scmp.ne.s32.totalorder %s134, %s135
    %p144 = scmp.eq.s32.totalorder %s19, 0
    %p145 = por %p143, %p144
    %p146 = scmp.ne.s32.totalorder %s134, %s135
    %p147 = scmp.eq.s32.totalorder %s20, 1
    %p148 = por %p146, %p147
    %p150 = scmp.ne.s32.totalorder %s135, %s149
    %p151 = scmp.eq.s32.totalorder %s20, 0
    %p152 = por %p150, %p151
    %s154 = sadd.s32 %s153, 1
    %p157 = scmp.eq.s32.totalorder %s14, 1
    %p158 = scmp.ne.s32.totalorder %s153, %s155
    %p159 = scmp.eq.s32.totalorder %s14, 0
    %p160 = por %p158, %p159
    %p161 = scmp.ne.s32.totalorder %s153, %s155
    %p162 = scmp.eq.s32.totalorder %s19, 1
    %p163 = por %p161, %p162
    %p164 = scmp.ne.s32.totalorder %s155, %s156
    %p165 = scmp.eq.s32.totalorder %s19, 0
    %p166 = por %p164, %p165
    %p167 = scmp.ne.s32.totalorder %s155, %s156
    %p168 = scmp.eq.s32.totalorder %s20, 1
    %p169 = por %p167, %p168
    %p171 = scmp.ne.s32.totalorder %s156, %s170
    %p172 = scmp.eq.s32.totalorder %s20, 0
    %p173 = por %p171, %p172
    %s175 = sadd.s32 %s174, 1
    %p178 = scmp.eq.s32.totalorder %s14, 1
    %p179 = scmp.ne.s32.totalorder %s174, %s176
    %p180 = scmp.eq.s32.totalorder %s14, 0
    %p181 = por %p179, %p180
    %p182 = scmp.ne.s32.totalorder %s174, %s176
    %p183 = scmp.eq.s32.totalorder %s19, 1
    %p184 = por %p182, %p183
    %p185 = scmp.ne.s32.totalorder %s176, %s177
    %p186 = scmp.eq.s32.totalorder %s19, 0
    %p187 = por %p185, %p186
    %p188 = scmp.ne.s32.totalorder %s176, %s177
    %p189 = scmp.eq.s32.totalorder %s20, 1
    %p190 = por %p188, %p189
    %p192 = scmp.ne.s32.totalorder %s177, %s191
    %p193 = scmp.eq.s32.totalorder %s20, 0
    %p194 = por %p192, %p193
    %s195 = ssub.s32 %s14, %s21
    %p196 = scmp.eq.s32.totalorder %s195, 0
    %s198 = sadd.s32 %s197, 1
    %s199 = scalar_select %p196, %s197, %s198
    %p202 = pneg %p196
    %p203 = scmp.eq.s32.totalorder %s14, 1
    %p204 = por %p202, %p203
    %p205 = scmp.ne.s32.totalorder %s197, %s200
    %p206 = scmp.eq.s32.totalorder %s14, 0
    %p207 = por %p205, %p206
    %p208 = scmp.ne.s32.totalorder %s197, %s200
    %p209 = scmp.eq.s32.totalorder %s19, 1
    %p210 = por %p208, %p209
    %p211 = scmp.ne.s32.totalorder %s200, %s201
    %p212 = scmp.eq.s32.totalorder %s19, 0
    %p213 = por %p211, %p212
    %p214 = scmp.ne.s32.totalorder %s200, %s201
    %p215 = scmp.eq.s32.totalorder %s20, 1
    %p216 = por %p214, %p215
    %p218 = scmp.ne.s32.totalorder %s201, %s217
    %p219 = scmp.eq.s32.totalorder %s20, 0
    %p220 = por %p218, %p219
    %p221 = scmp.le.s32.totalorder 1, %s14
    %p222 = scmp.lt.s32.totalorder %s14, 3
    %p223 = pnand %p221, %p222
    %p224 = pneg %p223
    // Predicated region
    $region9: #{edsr_forward.3} parent=5 // pred_check
      _
    $region10: #{edsr_forward.3} parent=5 // pred_check_branch
      %226 = sbr.rel (%p223) target = $region12
    $region11: #{edsr_forward.3} parent=5 // pred_region
      %s227 = ssub.s32 %s14, 1
      // Predicated region
      $region13: #{edsr_forward.3} parent=11 // pred_check
        %p228 = pneg %p61
      $region14: #{edsr_forward.3} parent=11 // pred_check_branch
        %230 = sbr.rel (%p228) target = $region16
      $region15: #{edsr_forward.3} parent=11 // pred_region
        _
      $region16: #{edsr_forward.3} parent=11 // pred_fallthru
        _
      // Predicated region
      $region17: #{edsr_forward.3} parent=11 // pred_check
        %p231 = pneg %p82
      $region18: #{edsr_forward.3} parent=11 // pred_check_branch
        %233 = sbr.rel (%p231) target = $region20
      $region19: #{edsr_forward.3} parent=11 // pred_region
        _
      $region20: #{edsr_forward.3} parent=11 // pred_fallthru
        _
      // Predicated region
      $region21: #{edsr_forward.3} parent=11 // pred_check
        %p234 = pneg %p103
      $region22: #{edsr_forward.3} parent=11 // pred_check_branch
        %236 = sbr.rel (%p234) target = $region24
      $region23: #{edsr_forward.3} parent=11 // pred_region
        _
      $region24: #{edsr_forward.3} parent=11 // pred_fallthru
        _
      // Predicated region
      $region25: #{edsr_forward.3} parent=11 // pred_check
        %p237 = pneg %p124
      $region26: #{edsr_forward.3} parent=11 // pred_check_branch
        %239 = sbr.rel (%p237) target = $region28
      $region27: #{edsr_forward.3} parent=11 // pred_region
        _
      $region28: #{edsr_forward.3} parent=11 // pred_fallthru
        _
      // Predicated region
      $region29: #{edsr_forward.3} parent=11 // pred_check
        %p240 = pneg %p145
      $region30: #{edsr_forward.3} parent=11 // pred_check_branch
        %242 = sbr.rel (%p240) target = $region32
      $region31: #{edsr_forward.3} parent=11 // pred_region
        _
      $region32: #{edsr_forward.3} parent=11 // pred_fallthru
        _
      // Predicated region
      $region33: #{edsr_forward.3} parent=11 // pred_check
        %p243 = pneg %p166
      $region34: #{edsr_forward.3} parent=11 // pred_check_branch
        %245 = sbr.rel (%p243) target = $region36
      $region35: #{edsr_forward.3} parent=11 // pred_region
        _
      $region36: #{edsr_forward.3} parent=11 // pred_fallthru
        _
      // Predicated region
      $region37: #{edsr_forward.3} parent=11 // pred_check
        %p246 = pneg %p187
      $region38: #{edsr_forward.3} parent=11 // pred_check_branch
        %248 = sbr.rel (%p246) target = $region40
      $region39: #{edsr_forward.3} parent=11 // pred_region
        _
      $region40: #{edsr_forward.3} parent=11 // pred_fallthru
        _
    $region12: #{edsr_forward.3} parent=5 // pred_fallthru
      _
    %p249 = scmp.lt.s32.totalorder %s14, 2
    // Predicated region
    $region41: #{edsr_forward.3} parent=5 // pred_check
      %p250 = pneg %p249
    $region42: #{edsr_forward.3} parent=5 // pred_check_branch
      %252 = sbr.rel (%p250) target = $region44
    $region43: #{edsr_forward.3} parent=5 // pred_region
      // Predicated region
      $region45: #{edsr_forward.3} parent=43 // pred_check
        %p253 = pneg %p34
      $region46: #{edsr_forward.3} parent=43 // pred_check_branch
        %255 = sbr.rel (%p253) target = $region48
      $region47: #{edsr_forward.3} parent=43 // pred_region
        %p256 = scmp.lt.s32.totalorder %s14, 1
        %s257 = scalar_select %p256, %s14, 1
        %s258 = smul.addr %s257, 2
        %s259 = smul.addr %s258, 4
        %s260 = scalar_lea.vmem %s0, %s259
      $region48: #{edsr_forward.3} parent=43 // pred_fallthru
        _
    $region44: #{edsr_forward.3} parent=5 // pred_fallthru
      _
    %p261 = scmp.le.s32.totalorder 1, %s14
    %p262 = scmp.lt.s32.totalorder %s14, 3
    %p263 = pnand %p261, %p262
    %p264 = pneg %p263
    // Predicated region
    $region49: #{edsr_forward.3} parent=5 // pred_check
      _
    $region50: #{edsr_forward.3} parent=5 // pred_check_branch
      %266 = sbr.rel (%p263) target = $region52
    $region51: #{edsr_forward.3} parent=5 // pred_region
      %s267 = ssub.s32 %s14, 1
      %p268 = scmp.lt.s32.totalorder %s19, 1
      %s269 = scalar_select %p268, %s19, 1
      %s270 = smul.addr %s269, 2
      %s271 = smul.addr %s270, 4
      %s272 = scalar_lea.vmem %s0, %s271
      %p273 = pneg %p40
      %p274 = pneg %p37
      %p275 = pneg %p61
      %p276 = pneg %p58
      %p277 = pneg %p82
      %p278 = pneg %p79
      %p279 = pneg %p103
      %p280 = pneg %p100
      %p281 = pneg %p124
      %p282 = pneg %p121
      %p283 = pneg %p145
      %p284 = pneg %p142
      %p285 = pneg %p166
      %p286 = pneg %p163
      %p287 = pneg %p187
      %p288 = pneg %p184
      %p289 = pneg %p213
      %p290 = pneg %p210
      %p291 = scmp.lt.s32.totalorder %s19, 1
      %s292 = scalar_select %p291, %s19, 1
      %s293 = smul.addr %s292, 8
      %s294 = smul.addr %s293, 4
      %s295 = scalar_lea.vmem %s8, %s294
      %p296 = scmp.lt.s32.totalorder %s19, 1
      %s297 = scalar_select %p296, %s19, 1
      %s298 = smul.addr %s297, 2
      %s299 = smul.addr %s298, 4
      %s300 = scalar_lea.vmem %s0, %s299
      %p301 = scmp.lt.s32.totalorder %s19, 1
      %s302 = scalar_select %p301, %s19, 1
      %s303 = smul.addr %s302, 8
      %s304 = smul.addr %s303, 4
      %s305 = scalar_lea.vmem %s8, %s304
      %vm307 = vcmask 1048440
      %308 = vst.msk [vmem:[#allocation2] sm:$0xff] %vm307, 0
      %309 = vst.msk [vmem:[#allocation2 + $0x20] sm:$0xff] %vm307, 0
      %vm310 = vcmask 138240
      %311 = vst.msk [vmem:[#allocation2 + $0x18] sm:$0xff] %vm310, 0
      %312 = vst.msk [vmem:[#allocation2 + $0x38] sm:$0xff] %vm310, 0
      %v313 = vlaneseq
      %v314 = vand.u32 %v313, 127
      %v315 = vadd.s32 %v314, 128
      %vm316 = vcmp.lt.s32.totalorder %v314, 0
      %v317 = vsub.s32 0, %v314
      %v318 = vsel %vm316, %v317, %v314
      %v319 = vshrl.u32 %v318, 4
      %v320 = vand.u32 %v318, 15
      %v321 = vsub.s32 0, %v320
      %v322 = vsel %vm316, %v321, %v320
      %vm323 = vcmp.lt.s32.totalorder %v315, 0
      %v324 = vsub.s32 0, %v315
      %v325 = vsel %vm323, %v324, %v315
      %v326 = vshrl.u32 %v325, 4
      %v327 = vand.u32 %v325, 15
      %v328 = vsub.s32 0, %v327
      %v329 = vsel %vm323, %v328, %v327
      %vm330 = vcmp.ne.s32.totalorder %v322, 0
      %vm331 = vcmp.ne.s32.totalorder %v329, 0
      %vm332 = vcmp.lt.s32.totalorder %v322, 0
      %vm333 = vcmp.lt.s32.totalorder %v329, 0
      %vm334 = vmand %vm332, %vm330
      %vm335 = vmand %vm333, %vm331
      %v336 = vadd.s32 %v322, 16
      %v337 = vadd.s32 %v329, 16
      %v338 = vsel %vm334, %v336, %v322
      %v339 = vsel %vm335, %v337, %v329
      %vm340 = vcmp.ne.s32.totalorder %v338, 0
      %vm341 = vcmp.ne.s32.totalorder %v339, 0
      %v342 = vsel %vm340, 1, 0
      %v343 = vsel %vm341, 1, 0
      %v344 = vcvt.s32.f32 %v342
      %v345 = vcvt.s32.f32 %v343
      %vm346 = vcmp.ne.s32.totalorder %v338, 15
      %vm347 = vcmp.ne.s32.totalorder %v339, 15
      %v348 = vsel %vm346, 1, 0
      %v349 = vsel %vm347, 1, 0
      %v350 = vcvt.s32.f32 %v348
      %v351 = vcvt.s32.f32 %v349
      %v352 = vld [vmem:[%s300] sm:$0xff]
      %v353 = vld [vmem:[%s1] sm:$0xf]
      %355 = vset.pattern.permute.xlu0 0
      %356 = vperm.xlu0 %355, %v353
      %v357 = vpop.permute.xlu0 %356
      %v359 = vunpack.c.l.s4 839922192
      %v360 = vunpack.c.0.s8 %v359
      %v361 = vlaneseq
      %v362 = vshrl.u32 %v361, 7
      %v363 = vsub.s32 %v360, %v362
      %v364 = vrot.slane %v357, %v363
      %v366 = vsub.f32 %v352, %v364
      %v367 = vld [vmem:[%s2] sm:$0xf]
      %v368 = vld [vmem:[%s2 + $0x4] sm:$0xf]
      %v369 = vld [vmem:[%s2 + $0x8] sm:$0xf]
      %v370 = vld [vmem:[%s2 + $0xc] sm:$0xf]
      %v371 = vld [vmem:[%s2 + $0x10] sm:$0xf]
      %v372 = vld [vmem:[%s2 + $0x14] sm:$0xf]
      %v373 = vld [vmem:[%s2 + $0x18] sm:$0xf]
      %v374 = vld [vmem:[%s2 + $0x1c] sm:$0xf]
      %v375 = vld [vmem:[%s2 + $0x20] sm:$0xf]
      %v376 = vld [vmem:[%s2 + $0x24] sm:$0xf]
      %v377 = vld [vmem:[%s2 + $0x28] sm:$0xf]
      %v378 = vld [vmem:[%s2 + $0x2c] sm:$0xf]
      %v379 = vld [vmem:[%s2 + $0x30] sm:$0xf]
      %v380 = vld [vmem:[%s2 + $0x34] sm:$0xf]
      %v381 = vld [vmem:[%s2 + $0x38] sm:$0xf]
      %v382 = vld [vmem:[%s2 + $0x3c] sm:$0xf]
      %v383 = vld [vmem:[%s2 + $0x40] sm:$0xf]
      %v384 = vld [vmem:[%s2 + $0x44] sm:$0xf]
      %v385 = vld [vmem:[%s2 + $0x48] sm:$0xf]
      %v386 = vld [vmem:[%s2 + $0x4c] sm:$0xf]
      %v387 = vld [vmem:[%s2 + $0x50] sm:$0xf]
      %v388 = vld [vmem:[%s2 + $0x54] sm:$0xf]
      %v389 = vld [vmem:[%s2 + $0x58] sm:$0xf]
      %v390 = vld [vmem:[%s2 + $0x5c] sm:$0xf]
      %v391 = vld [vmem:[%s2 + $0x60] sm:$0xf]
      %v392 = vld [vmem:[%s2 + $0x64] sm:$0xf]
      %v393 = vld [vmem:[%s2 + $0x68] sm:$0xf]
      %v394 = vld [vmem:[%s2 + $0x6c] sm:$0xf]
      %v395 = vld [vmem:[%s2 + $0x70] sm:$0xf]
      %v396 = vld [vmem:[%s2 + $0x74] sm:$0xf]
      %v397 = vld [vmem:[%s2 + $0x78] sm:$0xf]
      %v398 = vld [vmem:[%s2 + $0x7c] sm:$0xf]
      %v399 = vld [vmem:[%s2 + $0x80] sm:$0xf]
      %v400 = vld [vmem:[%s2 + $0x84] sm:$0xf]
      %v401 = vld [vmem:[%s2 + $0x88] sm:$0xf]
      %v402 = vld [vmem:[%s2 + $0x8c] sm:$0xf]
      %v403 = vld [vmem:[%s3] sm:$0xff]
      %v404 = vld [vmem:[%s3 + $0x8] sm:$0xff]
      %v405 = vld [vmem:[%s3 + $0x10] sm:$0xff]
      %v406 = vld [vmem:[%s3 + $0x18] sm:$0xff]
      %v408 = vcombine.high %v366, %v366
      %v410 = vpack.c.bf16 %v366, %v366
      %v411 = vpack.c.bf16 %v408, %v408
      %412 = vst [vmem:[#allocation2 + $0x8] sm:$0x3] %v410
      %413 = vst [vmem:[#allocation2 + $0x10] sm:$0x3] %v411
      %v414 = vld [vmem:[#allocation2] sm:$0x3]
      %v415 = vld [vmem:[#allocation2 + $0x8] sm:$0x3]
      %v416 = vld [vmem:[#allocation2 + $0x10] sm:$0x3]
      %v421 = vunpack.c.l.b16 %v379
      %v422 = vunpack.c.l.b16 %v380
      %v423 = vunpack.c.l.b16 %v381
      %v424 = vunpack.c.l.b16 %v382
      %v425 = vpack.c.b16 %v422, %v421
      %v426 = vpack.c.b16 %v424, %v423
      %430 = vrot.lane.b32.xlu0 %v414, 1
      %v431 = vpop.permute.xlu0 %430
      %432 = vrot.lane.b32.xlu0 %v415, 1
      %v433 = vpop.permute.xlu0 %432
      %434 = vrot.lane.b32.xlu0 %v416, 1
      %v435 = vpop.permute.xlu0 %434
      %vm436 = vcmask 7168
      %v437 = vsel %vm436, %v431, %v433
      %v438 = vsel %vm436, %v433, %v435
      %vm439 = vcmask 31744
      %v441 = vsel %vm439, %v425, 0
      %v444 = vsel %vm439, %v426, 0
      %vm446 = vcmask 1041408
      %v448 = vsel %vm446, %v437, 0
      %v451 = vsel %vm446, %v438, 0
      %453 = vmatprep.subr.bf16.mxu0 %v451
      %454 = vmatpush1.bf16.msra.mxu0 %v448
      %455 = vmatprep.subr.bf16.mxu0 0
      %456 = vmatpush1.bf16.msra.mxu0 0
      %457 = vmatprep.subr.bf16.mxu0 0
      %458 = vmatpush1.bf16.msra.mxu0 0
      %459 = vmatprep.subr.bf16.mxu0 0
      %460 = vmatpush1.bf16.msra.mxu0 0
      %461 = vmatprep.subr.bf16.mxu0 0
      %462 = vmatpush1.bf16.msra.mxu0 0
      %463 = vmatprep.subr.bf16.mxu0 0
      %464 = vmatpush1.bf16.msra.mxu0 0
      %465 = vmatprep.subr.bf16.mxu0 0
      %466 = vmatpush1.bf16.msra.mxu0 0
      %467 = vmatprep.subr.bf16.mxu0 0
      %468 = vmatpush1.bf16.msra.mxu0 0
      %469 = vmatprep.subr.bf16.mxu0 0
      %470 = vmatpush1.bf16.msra.mxu0 0
      %471 = vmatprep.subr.bf16.mxu0 0
      %472 = vmatpush1.bf16.msra.mxu0 0
      %473 = vmatprep.subr.bf16.mxu0 0
      %474 = vmatpush1.bf16.msra.mxu0 0
      %475 = vmatprep.subr.bf16.mxu0 0
      %476 = vmatpush1.bf16.msra.mxu0 0
      %477 = vmatprep.subr.bf16.mxu0 0
      %478 = vmatpush1.bf16.msra.mxu0 0
      %479 = vmatprep.subr.bf16.mxu0 0
      %480 = vmatpush1.bf16.msra.mxu0 0
      %481 = vmatprep.subr.bf16.mxu0 0
      %482 = vmatpush1.bf16.msra.mxu0 0
      %483 = vmatprep.subr.bf16.mxu0 0
      %484 = vmatpush1.bf16.msra.mxu0 0
      %485 = vmatprep.mubr.bf16.mxu0 0
      %486 = vmatmul.mubr.bf16.gmra.mrb[0].mxu0 %v441
      %v487 = vpop.f32.mrb[0].mxu0
      %v488 = vadd.f32 0.0, %v487
      %v489 = vpop.f32.mrb[0].mxu0
      %v490 = vadd.f32 0.0, %v489
      %v491 = vpop.f32.mrb[0].mxu0
      %v492 = vadd.f32 0.0, %v491
      %v493 = vpop.f32.mrb[0].mxu0
      %v494 = vadd.f32 0.0, %v493
      %495 = vmatprep.mubr.bf16.mxu0 0
      %496 = vmatmul.mubr.bf16.gmra.mrb[0].mxu0 %v444
      %v497 = vpop.f32.mrb[0].mxu0
      %v498 = vadd.f32 0.0, %v497
      %v499 = vpop.f32.mrb[0].mxu0
      %v500 = vadd.f32 0.0, %v499
      %v501 = vpop.f32.mrb[0].mxu0
      %v502 = vadd.f32 0.0, %v501
      %v503 = vpop.f32.mrb[0].mxu0
      %v504 = vadd.f32 0.0, %v503
      %505 = vdwg.mxu0
      %v510 = vunpack.c.l.b16 %v367
      %v511 = vunpack.c.l.b16 %v368
      %v512 = vunpack.c.l.b16 %v369
      %v513 = vunpack.c.l.b16 %v370
      %v514 = vpack.c.b16 %v511, %v510
      %v515 = vpack.c.b16 %v513, %v512
      %516 = vrot.lane.b32.xlu0 %v414, 17
      %v517 = vpop.permute.xlu0 %516
      %518 = vrot.lane.b32.xlu0 %v415, 17
      %v519 = vpop.permute.xlu0 %518
      %520 = vrot.lane.b32.xlu0 %v416, 17
      %v521 = vpop.permute.xlu0 %520
      %vm522 = vcmask 138240
      %v523 = vsel %vm522, %v517, %v519
      %v524 = vsel %vm522, %v519, %v521
      %v526 = vsel %vm439, %v514, 0
      %v529 = vsel %vm439, %v515, 0
      %v532 = vsel %vm446, %v523, 0
      %v535 = vsel %vm446, %v524, 0
      %537 = vmatprep.subr.bf16.mxu0 %v535
      %538 = vmatpush1.bf16.msra.mxu0 %v532
      %539 = vmatprep.subr.bf16.mxu0 0
      %540 = vmatpush1.bf16.msra.mxu0 0
      %541 = vmatprep.subr.bf16.mxu0 0
      %542 = vmatpush1.bf16.msra.mxu0 0
      %543 = vmatprep.subr.bf16.mxu0 0
      %544 = vmatpush1.bf16.msra.mxu0 0
      %545 = vmatprep.subr.bf16.mxu0 0
      %546 = vmatpush1.bf16.msra.mxu0 0
      %547 = vmatprep.subr.bf16.mxu0 0
      %548 = vmatpush1.bf16.msra.mxu0 0
      %549 = vmatprep.subr.bf16.mxu0 0
      %550 = vmatpush1.bf16.msra.mxu0 0
      %551 = vmatprep.subr.bf16.mxu0 0
      %552 = vmatpush1.bf16.msra.mxu0 0
      %553 = vmatprep.subr.bf16.mxu0 0
      %554 = vmatpush1.bf16.msra.mxu0 0
      %555 = vmatprep.subr.bf16.mxu0 0
      %556 = vmatpush1.bf16.msra.mxu0 0
      %557 = vmatprep.subr.bf16.mxu0 0
      %558 = vmatpush1.bf16.msra.mxu0 0
      %559 = vmatprep.subr.bf16.mxu0 0
      %560 = vmatpush1.bf16.msra.mxu0 0
      %561 = vmatprep.subr.bf16.mxu0 0
      %562 = vmatpush1.bf16.msra.mxu0 0
      %563 = vmatprep.subr.bf16.mxu0 0
      %564 = vmatpush1.bf16.msra.mxu0 0
      %565 = vmatprep.subr.bf16.mxu0 0
      %566 = vmatpush1.bf16.msra.mxu0 0
      %567 = vmatprep.subr.bf16.mxu0 0
      %568 = vmatpush1.bf16.msra.mxu0 0
      %569 = vmatprep.mubr.bf16.mxu0 0
      %570 = vmatmul.mubr.bf16.gmra.mrb[0].mxu0 %v526
      %v571 = vpop.f32.mrb[0].mxu0
      %v572 = vadd.f32 %v488, %v571
      %v573 = vpop.f32.mrb[0].mxu0
      %v574 = vadd.f32 %v490, %v573
      %v575 = vpop.f32.mrb[0].mxu0
      %v576 = vadd.f32 %v492, %v575
      %v577 = vpop.f32.mrb[0].mxu0
      %v578 = vadd.f32 %v494, %v577
      %579 = vmatprep.mubr.bf16.mxu0 0
      %580 = vmatmul.mubr.bf16.gmra.mrb[0].mxu0 %v529
      %v581 = vpop.f32.mrb[0].mxu0
      %v582 = vadd.f32 %v498, %v581
      %v583 = vpop.f32.mrb[0].mxu0
      %v584 = vadd.f32 %v500, %v583
      %v585 = vpop.f32.mrb[0].mxu0
      %v586 = vadd.f32 %v502, %v585
      %v587 = vpop.f32.mrb[0].mxu0
      %v588 = vadd.f32 %v504, %v587
      %589 = vdwg.mxu0
      %v590 = vld [vmem:[#allocation2 + $0x8] sm:$0x3]
      %v591 = vld [vmem:[#allocation2 + $0x10] sm:$0x3]
      %v592 = vld [vmem:[#allocation2 + $0x18] sm:$0x3]
      %v597 = vunpack.c.l.b16 %v391
      %v598 = vunpack.c.l.b16 %v392
      %v599 = vunpack.c.l.b16 %v393
      %v600 = vunpack.c.l.b16 %v394
      %v601 = vpack.c.b16 %v598, %v597
      %v602 = vpack.c.b16 %v600, %v599
      %606 = vrot.lane.b32.xlu0 %v590, 113
      %v607 = vpop.permute.xlu0 %606
      %608 = vrot.lane.b32.xlu0 %v591, 113
      %v609 = vpop.permute.xlu0 %608
      %610 = vrot.lane.b32.xlu0 %v592, 113
      %v611 = vpop.permute.xlu0 %610
      %vm612 = vcmask 924672
      %v613 = vsel %vm612, %v607, %v609
      %v614 = vsel %vm612, %v609, %v611
      %v616 = vsel %vm439, %v601, 0
      %v619 = vsel %vm439, %v602, 0
      %v622 = vsel %vm446, %v613, 0
      %v625 = vsel %vm446, %v614, 0
      %627 = vmatprep.subr.bf16.mxu0 %v625
      %628 = vmatpush1.bf16.msra.mxu0 %v622
      %629 = vmatprep.subr.bf16.mxu0 0
      %630 = vmatpush1.bf16.msra.mxu0 0
      %631 = vmatprep.subr.bf16.mxu0 0
      %632 = vmatpush1.bf16.msra.mxu0 0
      %633 = vmatprep.subr.bf16.mxu0 0
      %634 = vmatpush1.bf16.msra.mxu0 0
      %635 = vmatprep.subr.bf16.mxu0 0
      %636 = vmatpush1.bf16.msra.mxu0 0
      %637 = vmatprep.subr.bf16.mxu0 0
      %638 = vmatpush1.bf16.msra.mxu0 0
      %639 = vmatprep.subr.bf16.mxu0 0
      %640 = vmatpush1.bf16.msra.mxu0 0
      %641 = vmatprep.subr.bf16.mxu0 0
      %642 = vmatpush1.bf16.msra.mxu0 0
      %643 = vmatprep.subr.bf16.mxu0 0
      %644 = vmatpush1.bf16.msra.mxu0 0
      %645 = vmatprep.subr.bf16.mxu0 0
      %646 = vmatpush1.bf16.msra.mxu0 0
      %647 = vmatprep.subr.bf16.mxu0 0
      %648 = vmatpush1.bf16.msra.mxu0 0
      %649 = vmatprep.subr.bf16.mxu0 0
      %650 = vmatpush1.bf16.msra.mxu0 0
      %651 = vmatprep.subr.bf16.mxu0 0
      %652 = vmatpush1.bf16.msra.mxu0 0
      %653 = vmatprep.subr.bf16.mxu0 0
      %654 = vmatpush1.bf16.msra.mxu0 0
      %655 = vmatprep.subr.bf16.mxu0 0
      %656 = vmatpush1.bf16.msra.mxu0 0
      %657 = vmatprep.subr.bf16.mxu0 0
      %658 = vmatpush1.bf16.msra.mxu0 0
      %659 = vmatprep.mubr.bf16.mxu0 0
      %660 = vmatmul.mubr.bf16.gmra.mrb[0].mxu0 %v616
      %v661 = vpop.f32.mrb[0].mxu0
      %v662 = vadd.f32 0.0, %v661
      %v663 = vpop.f32.mrb[0].mxu0
      %v664 = vadd.f32 0.0, %v663
      %v665 = vpop.f32.mrb[0].mxu0
      %v666 = vadd.f32 0.0, %v665
      %v667 = vpop.f32.mrb[0].mxu0
      %v668 = vadd.f32 0.0, %v667
      %669 = vmatprep.mubr.bf16.mxu0 0
      %670 = vmatmul.mubr.bf16.gmra.mrb[0].mxu0 %v619
      %v671 = vpop.f32.mrb[0].mxu0
      %v672 = vadd.f32 0.0, %v671
      %v673 = vpop.f32.mrb[0].mxu0
      %v674 = vadd.f32 0.0, %v673
      %v675 = vpop.f32.mrb[0].mxu0
      %v676 = vadd.f32 0.0, %v675
      %v677 = vpop.f32.mrb[0].mxu0
      %v678 = vadd.f32 0.0, %v677
      %679 = vdwg.mxu0
      %v680 = vadd.f32 %v572, %v662
      %v681 = vadd.f32 %v574, %v664
      %v682 = vadd.f32 %v576, %v666
      %v683 = vadd.f32 %v578, %v668
      %v684 = vadd.f32 %v582, %v672
      %v685 = vadd.f32 %v584, %v674
      %v686 = vadd.f32 %v586, %v676
      %v687 = vadd.f32 %v588, %v678
      %v688 = vmul.f32 %v680, %v344
      %v689 = vmul.f32 %v681, %v345
      %v690 = vmul.f32 %v682, %v344
      %v691 = vmul.f32 %v683, %v345
      %v692 = vmul.f32 %v684, %v344
      %v693 = vmul.f32 %v685, %v345
      %v694 = vmul.f32 %v686, %v344
      %v695 = vmul.f32 %v687, %v345
      %v700 = vunpack.c.l.b16 %v383
      %v701 = vunpack.c.l.b16 %v384
      %v702 = vunpack.c.l.b16 %v385
      %v703 = vunpack.c.l.b16 %v386
      %v704 = vpack.c.b16 %v701, %v700
      %v705 = vpack.c.b16 %v703, %v702
      %v707 = vsel %vm439, %v704, 0
      %v710 = vsel %vm439, %v705, 0
      %v713 = vsel %vm446, %v415, 0
      %v716 = vsel %vm446, %v416, 0
      %718 = vmatprep.subr.bf16.mxu0 %v716
      %719 = vmatpush1.bf16.msra.mxu0 %v713
      %720 = vmatprep.subr.bf16.mxu0 0
      %721 = vmatpush1.bf16.msra.mxu0 0
      %722 = vmatprep.subr.bf16.mxu0 0
      %723 = vmatpush1.bf16.msra.mxu0 0
      %724 = vmatprep.subr.bf16.mxu0 0
      %725 = vmatpush1.bf16.msra.mxu0 0
      %726 = vmatprep.subr.bf16.mxu0 0
      %727 = vmatpush1.bf16.msra.mxu0 0
      %728 = vmatprep.subr.bf16.mxu0 0
      %729 = vmatpush1.bf16.msra.mxu0 0
      %730 = vmatprep.subr.bf16.mxu0 0
      %731 = vmatpush1.bf16.msra.mxu0 0
      %732 = vmatprep.subr.bf16.mxu0 0
      %733 = vmatpush1.bf16.msra.mxu0 0
      %734 = vmatprep.subr.bf16.mxu0 0
      %735 = vmatpush1.bf16.msra.mxu0 0
      %736 = vmatprep.subr.bf16.mxu0 0
      %737 = vmatpush1.bf16.msra.mxu0 0
      %738 = vmatprep.subr.bf16.mxu0 0
      %739 = vmatpush1.bf16.msra.mxu0 0
      %740 = vmatprep.subr.bf16.mxu0 0
      %741 = vmatpush1.bf16.msra.mxu0 0
      %742 = vmatprep.subr.bf16.mxu0 0
      %743 = vmatpush1.bf16.msra.mxu0 0
      %744 = vmatprep.subr.bf16.mxu0 0
      %745 = vmatpush1.bf16.msra.mxu0 0
      %746 = vmatprep.subr.bf16.mxu0 0
      %747 = vmatpush1.bf16.msra.mxu0 0
      %748 = vmatprep.subr.bf16.mxu0 0
      %749 = vmatpush1.bf16.msra.mxu0 0
      %750 = vmatprep.mubr.bf16.mxu0 0
      %751 = vmatmul.mubr.bf16.gmra.mrb[0].mxu0 %v707
      %v752 = vpop.f32.mrb[0].mxu0
      %v753 = vadd.f32 0.0, %v752
      %v754 = vpop.f32.mrb[0].mxu0
      %v755 = vadd.f32 0.0, %v754
      %v756 = vpop.f32.mrb[0].mxu0
      %v757 = vadd.f32 0.0, %v756
      %v758 = vpop.f32.mrb[0].mxu0
      %v759 = vadd.f32 0.0, %v758
      %760 = vmatprep.mubr.bf16.mxu0 0
      %761 = vmatmul.mubr.bf16.gmra.mrb[0].mxu0 %v710
      %v762 = vpop.f32.mrb[0].mxu0
      %v763 = vadd.f32 0.0, %v762
      %v764 = vpop.f32.mrb[0].mxu0
      %v765 = vadd.f32 0.0, %v764
      %v766 = vpop.f32.mrb[0].mxu0
      %v767 = vadd.f32 0.0, %v766
      %v768 = vpop.f32.mrb[0].mxu0
      %v769 = vadd.f32 0.0, %v768
      %770 = vdwg.mxu0
      %v775 = vunpack.c.l.b16 %v371
      %v776 = vunpack.c.l.b16 %v372
      %v777 = vunpack.c.l.b16 %v373
      %v778 = vunpack.c.l.b16 %v374
      %v779 = vpack.c.b16 %v776, %v775
      %v780 = vpack.c.b16 %v778, %v777
      %781 = vrot.lane.b32.xlu0 %v414, 16
      %v782 = vpop.permute.xlu0 %781
      %783 = vrot.lane.b32.xlu0 %v415, 16
      %v784 = vpop.permute.xlu0 %783
      %785 = vrot.lane.b32.xlu0 %v416, 16
      %v786 = vpop.permute.xlu0 %785
      %vm787 = vcmask 130048
      %v788 = vsel %vm787, %v782, %v784
      %v789 = vsel %vm787, %v784, %v786
      %v791 = vsel %vm439, %v779, 0
      %v794 = vsel %vm439, %v780, 0
      %v797 = vsel %vm446, %v788, 0
      %v800 = vsel %vm446, %v789, 0
      %802 = vmatprep.subr.bf16.mxu0 %v800
      %803 = vmatpush1.bf16.msra.mxu0 %v797
      %804 = vmatprep.subr.bf16.mxu0 0
      %805 = vmatpush1.bf16.msra.mxu0 0
      %806 = vmatprep.subr.bf16.mxu0 0
      %807 = vmatpush1.bf16.msra.mxu0 0
      %808 = vmatprep.subr.bf16.mxu0 0
      %809 = vmatpush1.bf16.msra.mxu0 0
      %810 = vmatprep.subr.bf16.mxu0 0
      %811 = vmatpush1.bf16.msra.mxu0 0
      %812 = vmatprep.subr.bf16.mxu0 0
      %813 = vmatpush1.bf16.msra.mxu0 0
      %814 = vmatprep.subr.bf16.mxu0 0
      %815 = vmatpush1.bf16.msra.mxu0 0
      %816 = vmatprep.subr.bf16.mxu0 0
      %817 = vmatpush1.bf16.msra.mxu0 0
      %818 = vmatprep.subr.bf16.mxu0 0
      %819 = vmatpush1.bf16.msra.mxu0 0
      %820 = vmatprep.subr.bf16.mxu0 0
      %821 = vmatpush1.bf16.msra.mxu0 0
      %822 = vmatprep.subr.bf16.mxu0 0
      %823 = vmatpush1.bf16.msra.mxu0 0
      %824 = vmatprep.subr.bf16.mxu0 0
      %825 = vmatpush1.bf16.msra.mxu0 0
      %826 = vmatprep.subr.bf16.mxu0 0
      %827 = vmatpush1.bf16.msra.mxu0 0
      %828 = vmatprep.subr.bf16.mxu0 0
      %829 = vmatpush1.bf16.msra.mxu0 0
      %830 = vmatprep.subr.bf16.mxu0 0
      %831 = vmatpush1.bf16.msra.mxu0 0
      %832 = vmatprep.subr.bf16.mxu0 0
      %833 = vmatpush1.bf16.msra.mxu0 0
      %834 = vmatprep.mubr.bf16.mxu0 0
      %835 = vmatmul.mubr.bf16.gmra.mrb[0].mxu0 %v791
      %v836 = vpop.f32.mrb[0].mxu0
      %v837 = vadd.f32 %v753, %v836
      %v838 = vpop.f32.mrb[0].mxu0
      %v839 = vadd.f32 %v755, %v838
      %v840 = vpop.f32.mrb[0].mxu0
      %v841 = vadd.f32 %v757, %v840
      %v842 = vpop.f32.mrb[0].mxu0
      %v843 = vadd.f32 %v759, %v842
      %844 = vmatprep.mubr.bf16.mxu0 0
      %845 = vmatmul.mubr.bf16.gmra.mrb[0].mxu0 %v794
      %v846 = vpop.f32.mrb[0].mxu0
      %v847 = vadd.f32 %v763, %v846
      %v848 = vpop.f32.mrb[0].mxu0
      %v849 = vadd.f32 %v765, %v848
      %v850 = vpop.f32.mrb[0].mxu0
      %v851 = vadd.f32 %v767, %v850
      %v852 = vpop.f32.mrb[0].mxu0
      %v853 = vadd.f32 %v769, %v852
      %854 = vdwg.mxu0
      %v859 = vunpack.c.l.b16 %v395
      %v860 = vunpack.c.l.b16 %v396
      %v861 = vunpack.c.l.b16 %v397
      %v862 = vunpack.c.l.b16 %v398
      %v863 = vpack.c.b16 %v860, %v859
      %v864 = vpack.c.b16 %v862, %v861
      %865 = vrot.lane.b32.xlu0 %v590, 112
      %v866 = vpop.permute.xlu0 %865
      %867 = vrot.lane.b32.xlu0 %v591, 112
      %v868 = vpop.permute.xlu0 %867
      %869 = vrot.lane.b32.xlu0 %v592, 112
      %v870 = vpop.permute.xlu0 %869
      %vm871 = vcmask 916480
      %v872 = vsel %vm871, %v866, %v868
      %v873 = vsel %vm871, %v868, %v870
      %v875 = vsel %vm439, %v863, 0
      %v878 = vsel %vm439, %v864, 0
      %v881 = vsel %vm446, %v872, 0
      %v884 = vsel %vm446, %v873, 0
      %886 = vmatprep.subr.bf16.mxu0 %v884
      %887 = vmatpush1.bf16.msra.mxu0 %v881
      %888 = vmatprep.subr.bf16.mxu0 0
      %889 = vmatpush1.bf16.msra.mxu0 0
      %890 = vmatprep.subr.bf16.mxu0 0
      %891 = vmatpush1.bf16.msra.mxu0 0
      %892 = vmatprep.subr.bf16.mxu0 0
      %893 = vmatpush1.bf16.msra.mxu0 0
      %894 = vmatprep.subr.bf16.mxu0 0
      %895 = vmatpush1.bf16.msra.mxu0 0
      %896 = vmatprep.subr.bf16.mxu0 0
      %897 = vmatpush1.bf16.msra.mxu0 0
      %898 = vmatprep.subr.bf16.mxu0 0
      %899 = vmatpush1.bf16.msra.mxu0 0
      %900 = vmatprep.subr.bf16.mxu0 0
      %901 = vmatpush1.bf16.msra.mxu0 0
      %902 = vmatprep.subr.bf16.mxu0 0
      %903 = vmatpush1.bf16.msra.mxu0 0
      %904 = vmatprep.subr.bf16.mxu0 0
      %905 = vmatpush1.bf16.msra.mxu0 0
      %906 = vmatprep.subr.bf16.mxu0 0
      %907 = vmatpush1.bf16.msra.mxu0 0
      %908 = vmatprep.subr.bf16.mxu0 0
      %909 = vmatpush1.bf16.msra.mxu0 0
      %910 = vmatprep.subr.bf16.mxu0 0
      %911 = vmatpush1.bf16.msra.mxu0 0
      %912 = vmatprep.subr.bf16.mxu0 0
      %913 = vmatpush1.bf16.msra.mxu0 0
      %914 = vmatprep.subr.bf16.mxu0 0
      %915 = vmatpush1.bf16.msra.mxu0 0
      %916 = vmatprep.subr.bf16.mxu0 0
      %917 = vmatpush1.bf16.msra.mxu0 0
      %918 = vmatprep.mubr.bf16.mxu0 0
      %919 = vmatmul.mubr.bf16.gmra.mrb[0].mxu0 %v875
      %v920 = vpop.f32.mrb[0].mxu0
      %v921 = vadd.f32 0.0, %v920
      %v922 = vpop.f32.mrb[0].mxu0
      %v923 = vadd.f32 0.0, %v922
      %v924 = vpop.f32.mrb[0].mxu0
      %v925 = vadd.f32 0.0, %v924
      %v926 = vpop.f32.mrb[0].mxu0
      %v927 = vadd.f32 0.0, %v926
      %928 = vmatprep.mubr.bf16.mxu0 0
      %929 = vmatmul.mubr.bf16.gmra.mrb[0].mxu0 %v878
      %v930 = vpop.f32.mrb[0].mxu0
      %v931 = vadd.f32 0.0, %v930
      %v932 = vpop.f32.mrb[0].mxu0
      %v933 = vadd.f32 0.0, %v932
      %v934 = vpop.f32.mrb[0].mxu0
      %v935 = vadd.f32 0.0, %v934
      %v936 = vpop.f32.mrb[0].mxu0
      %v937 = vadd.f32 0.0, %v936
      %938 = vdwg.mxu0
      %v939 = vadd.f32 %v837, %v921
      %v940 = vadd.f32 %v839, %v923
      %v941 = vadd.f32 %v841, %v925
      %v942 = vadd.f32 %v843, %v927
      %v943 = vadd.f32 %v847, %v931
      %v944 = vadd.f32 %v849, %v933
      %v945 = vadd.f32 %v851, %v935
      %v946 = vadd.f32 %v853, %v937
      %v947 = vadd.f32 %v688, %v939
      %v948 = vadd.f32 %v689, %v940
      %v949 = vadd.f32 %v690, %v941
      %v950 = vadd.f32 %v691, %v942
      %v951 = vadd.f32 %v692, %v943
      %v952 = vadd.f32 %v693, %v944
      %v953 = vadd.f32 %v694, %v945
      %v954 = vadd.f32 %v695, %v946
      %v959 = vunpack.c.l.b16 %v387
      %v960 = vunpack.c.l.b16 %v388
      %v961 = vunpack.c.l.b16 %v389
      %v962 = vunpack.c.l.b16 %v390
      %v963 = vpack.c.b16 %v960, %v959
      %v964 = vpack.c.b16 %v962, %v961
      %965 = vrot.lane.b32.xlu0 %v590, 127
      %v966 = vpop.permute.xlu0 %965
      %967 = vrot.lane.b32.xlu0 %v591, 127
      %v968 = vpop.permute.xlu0 %967
      %969 = vrot.lane.b32.xlu0 %v592, 127
      %v970 = vpop.permute.xlu0 %969
      %vm971 = vcmask 1039360
      %v972 = vsel %vm971, %v966, %v968
      %v973 = vsel %vm971, %v968, %v970
      %v975 = vsel %vm439, %v963, 0
      %v978 = vsel %vm439, %v964, 0
      %v981 = vsel %vm446, %v972, 0
      %v984 = vsel %vm446, %v973, 0
      %986 = vmatprep.subr.bf16.mxu0 %v984
      %987 = vmatpush1.bf16.msra.mxu0 %v981
      %988 = vmatprep.subr.bf16.mxu0 0
      %989 = vmatpush1.bf16.msra.mxu0 0
      %990 = vmatprep.subr.bf16.mxu0 0
      %991 = vmatpush1.bf16.msra.mxu0 0
      %992 = vmatprep.subr.bf16.mxu0 0
      %993 = vmatpush1.bf16.msra.mxu0 0
      %994 = vmatprep.subr.bf16.mxu0 0
      %995 = vmatpush1.bf16.msra.mxu0 0
      %996 = vmatprep.subr.bf16.mxu0 0
      %997 = vmatpush1.bf16.msra.mxu0 0
      %998 = vmatprep.subr.bf16.mxu0 0
      %999 = vmatpush1.bf16.msra.mxu0 0
      %1000 = vmatprep.subr.bf16.mxu0 0
      %1001 = vmatpush1.bf16.msra.mxu0 0
      %1002 = vmatprep.subr.bf16.mxu0 0
      %1003 = vmatpush1.bf16.msra.mxu0 0
      %1004 = vmatprep.subr.bf16.mxu0 0
      %1005 = vmatpush1.bf16.msra.mxu0 0
      %1006 = vmatprep.subr.bf16.mxu0 0
      %1007 = vmatpush1.bf16.msra.mxu0 0
      %1008 = vmatprep.subr.bf16.mxu0 0
      %1009 = vmatpush1.bf16.msra.mxu0 0
      %1010 = vmatprep.subr.bf16.mxu0 0
      %1011 = vmatpush1.bf16.msra.mxu0 0
      %1012 = vmatprep.subr.bf16.mxu0 0
      %1013 = vmatpush1.bf16.msra.mxu0 0
      %1014 = vmatprep.subr.bf16.mxu0 0
      %1015 = vmatpush1.bf16.msra.mxu0 0
      %1016 = vmatprep.subr.bf16.mxu0 0
      %1017 = vmatpush1.bf16.msra.mxu0 0
      %1018 = vmatprep.mubr.bf16.mxu0 0
      %1019 = vmatmul.mubr.bf16.gmra.mrb[0].mxu0 %v975
      %v1020 = vpop.f32.mrb[0].mxu0
      %v1021 = vadd.f32 0.0, %v1020
      %v1022 = vpop.f32.mrb[0].mxu0
      %v1023 = vadd.f32 0.0, %v1022
      %v1024 = vpop.f32.mrb[0].mxu0
      %v1025 = vadd.f32 0.0, %v1024
      %v1026 = vpop.f32.mrb[0].mxu0
      %v1027 = vadd.f32 0.0, %v1026
      %1028 = vmatprep.mubr.bf16.mxu0 0
      %1029 = vmatmul.mubr.bf16.gmra.mrb[0].mxu0 %v978
      %v1030 = vpop.f32.mrb[0].mxu0
      %v1031 = vadd.f32 0.0, %v1030
      %v1032 = vpop.f32.mrb[0].mxu0
      %v1033 = vadd.f32 0.0, %v1032
      %v1034 = vpop.f32.mrb[0].mxu0
      %v1035 = vadd.f32 0.0, %v1034
      %v1036 = vpop.f32.mrb[0].mxu0
      %v1037 = vadd.f32 0.0, %v1036
      %1038 = vdwg.mxu0
      %v1043 = vunpack.c.l.b16 %v375
      %v1044 = vunpack.c.l.b16 %v376
      %v1045 = vunpack.c.l.b16 %v377
      %v1046 = vunpack.c.l.b16 %v378
      %v1047 = vpack.c.b16 %v1044, %v1043
      %v1048 = vpack.c.b16 %v1046, %v1045
      %1049 = vrot.lane.b32.xlu0 %v414, 15
      %v1050 = vpop.permute.xlu0 %1049
      %1051 = vrot.lane.b32.xlu0 %v415, 15
      %v1052 = vpop.permute.xlu0 %1051
      %1053 = vrot.lane.b32.xlu0 %v416, 15
      %v1054 = vpop.permute.xlu0 %1053
      %vm1055 = vcmask 121856
      %v1056 = vsel %vm1055, %v1050, %v1052
      %v1057 = vsel %vm1055, %v1052, %v1054
      %v1059 = vsel %vm439, %v1047, 0
      %v1062 = vsel %vm439, %v1048, 0
      %v1065 = vsel %vm446, %v1056, 0
      %v1068 = vsel %vm446, %v1057, 0
      %1070 = vmatprep.subr.bf16.mxu0 %v1068
      %1071 = vmatpush1.bf16.msra.mxu0 %v1065
      %1072 = vmatprep.subr.bf16.mxu0 0
      %1073 = vmatpush1.bf16.msra.mxu0 0
      %1074 = vmatprep.subr.bf16.mxu0 0
      %1075 = vmatpush1.bf16.msra.mxu0 0
      %1076 = vmatprep.subr.bf16.mxu0 0
      %1077 = vmatpush1.bf16.msra.mxu0 0
      %1078 = vmatprep.subr.bf16.mxu0 0
      %1079 = vmatpush1.bf16.msra.mxu0 0
      %1080 = vmatprep.subr.bf16.mxu0 0
      %1081 = vmatpush1.bf16.msra.mxu0 0
      %1082 = vmatprep.subr.bf16.mxu0 0
      %1083 = vmatpush1.bf16.msra.mxu0 0
      %1084 = vmatprep.subr.bf16.mxu0 0
      %1085 = vmatpush1.bf16.msra.mxu0 0
      %1086 = vmatprep.subr.bf16.mxu0 0
      %1087 = vmatpush1.bf16.msra.mxu0 0
      %1088 = vmatprep.subr.bf16.mxu0 0
      %1089 = vmatpush1.bf16.msra.mxu0 0
      %1090 = vmatprep.subr.bf16.mxu0 0
      %1091 = vmatpush1.bf16.msra.mxu0 0
      %1092 = vmatprep.subr.bf16.mxu0 0
      %1093 = vmatpush1.bf16.msra.mxu0 0
      %1094 = vmatprep.subr.bf16.mxu0 0
      %1095 = vmatpush1.bf16.msra.mxu0 0
      %1096 = vmatprep.subr.bf16.mxu0 0
      %1097 = vmatpush1.bf16.msra.mxu0 0
      %1098 = vmatprep.subr.bf16.mxu0 0
      %1099 = vmatpush1.bf16.msra.mxu0 0
      %1100 = vmatprep.subr.bf16.mxu0 0
      %1101 = vmatpush1.bf16.msra.mxu0 0
      %1102 = vmatprep.mubr.bf16.mxu0 0
      %1103 = vmatmul.mubr.bf16.gmra.mrb[0].mxu0 %v1059
      %v1104 = vpop.f32.mrb[0].mxu0
      %v1105 = vadd.f32 %v1021, %v1104
      %v1106 = vpop.f32.mrb[0].mxu0
      %v1107 = vadd.f32 %v1023, %v1106
      %v1108 = vpop.f32.mrb[0].mxu0
      %v1109 = vadd.f32 %v1025, %v1108
      %v1110 = vpop.f32.mrb[0].mxu0
      %v1111 = vadd.f32 %v1027, %v1110
      %1112 = vmatprep.mubr.bf16.mxu0 0
      %1113 = vmatmul.mubr.bf16.gmra.mrb[0].mxu0 %v1062
      %v1114 = vpop.f32.mrb[0].mxu0
      %v1115 = vadd.f32 %v1031, %v1114
      %v1116 = vpop.f32.mrb[0].mxu0
      %v1117 = vadd.f32 %v1033, %v1116
      %v1118 = vpop.f32.mrb[0].mxu0
      %v1119 = vadd.f32 %v1035, %v1118
      %v1120 = vpop.f32.mrb[0].mxu0
      %v1121 = vadd.f32 %v1037, %v1120
      %1122 = vdwg.mxu0
      %v1127 = vunpack.c.l.b16 %v399
      %v1128 = vunpack.c.l.b16 %v400
      %v1129 = vunpack.c.l.b16 %v401
      %v1130 = vunpack.c.l.b16 %v402
      %v1131 = vpack.c.b16 %v1128, %v1127
      %v1132 = vpack.c.b16 %v1130, %v1129
      %1133 = vrot.lane.b32.xlu0 %v590, 111
      %v1134 = vpop.permute.xlu0 %1133
      %1135 = vrot.lane.b32.xlu0 %v591, 111
      %v1136 = vpop.permute.xlu0 %1135
      %1137 = vrot.lane.b32.xlu0 %v592, 111
      %v1138 = vpop.permute.xlu0 %1137
      %vm1139 = vcmask 908288
      %v1140 = vsel %vm1139, %v1134, %v1136
      %v1141 = vsel %vm1139, %v1136, %v1138
      %v1143 = vsel %vm439, %v1131, 0
      %v1146 = vsel %vm439, %v1132, 0
      %v1149 = vsel %vm446, %v1140, 0
      %v1152 = vsel %vm446, %v1141, 0
      %1154 = vmatprep.subr.bf16.mxu0 %v1152
      %1155 = vmatpush1.bf16.msra.mxu0 %v1149
      %1156 = vmatprep.subr.bf16.mxu0 0
      %1157 = vmatpush1.bf16.msra.mxu0 0
      %1158 = vmatprep.subr.bf16.mxu0 0
      %1159 = vmatpush1.bf16.msra.mxu0 0
      %1160 = vmatprep.subr.bf16.mxu0 0
      %1161 = vmatpush1.bf16.msra.mxu0 0
      %1162 = vmatprep.subr.bf16.mxu0 0
      %1163 = vmatpush1.bf16.msra.mxu0 0
      %1164 = vmatprep.subr.bf16.mxu0 0
      %1165 = vmatpush1.bf16.msra.mxu0 0
      %1166 = vmatprep.subr.bf16.mxu0 0
      %1167 = vmatpush1.bf16.msra.mxu0 0
      %1168 = vmatprep.subr.bf16.mxu0 0
      %1169 = vmatpush1.bf16.msra.mxu0 0
      %1170 = vmatprep.subr.bf16.mxu0 0
      %1171 = vmatpush1.bf16.msra.mxu0 0
      %1172 = vmatprep.subr.bf16.mxu0 0
      %1173 = vmatpush1.bf16.msra.mxu0 0
      %1174 = vmatprep.subr.bf16.mxu0 0
      %1175 = vmatpush1.bf16.msra.mxu0 0
      %1176 = vmatprep.subr.bf16.mxu0 0
      %1177 = vmatpush1.bf16.msra.mxu0 0
      %1178 = vmatprep.subr.bf16.mxu0 0
      %1179 = vmatpush1.bf16.msra.mxu0 0
      %1180 = vmatprep.subr.bf16.mxu0 0
      %1181 = vmatpush1.bf16.msra.mxu0 0
      %1182 = vmatprep.subr.bf16.mxu0 0
      %1183 = vmatpush1.bf16.msra.mxu0 0
      %1184 = vmatprep.subr.bf16.mxu0 0
      %1185 = vmatpush1.bf16.msra.mxu0 0
      %1186 = vmatprep.mubr.bf16.mxu0 0
      %1187 = vmatmul.mubr.bf16.gmra.mrb[0].mxu0 %v1143
      %v1188 = vpop.f32.mrb[0].mxu0
      %v1189 = vadd.f32 0.0, %v1188
      %v1190 = vpop.f32.mrb[0].mxu0
      %v1191 = vadd.f32 0.0, %v1190
      %v1192 = vpop.f32.mrb[0].mxu0
      %v1193 = vadd.f32 0.0, %v1192
      %v1194 = vpop.f32.mrb[0].mxu0
      %v1195 = vadd.f32 0.0, %v1194
      %1196 = vmatprep.mubr.bf16.mxu0 0
      %1197 = vmatmul.mubr.bf16.gmra.mrb[0].mxu0 %v1146
      %v1198 = vpop.f32.mrb[0].mxu0
      %v1199 = vadd.f32 0.0, %v1198
      %v1200 = vpop.f32.mrb[0].mxu0
      %v1201 = vadd.f32 0.0, %v1200
      %v1202 = vpop.f32.mrb[0].mxu0
      %v1203 = vadd.f32 0.0, %v1202
      %v1204 = vpop.f32.mrb[0].mxu0
      %v1205 = vadd.f32 0.0, %v1204
      %1206 = vdwg.mxu0
      %v1207 = vadd.f32 %v1105, %v1189
      %v1208 = vadd.f32 %v1107, %v1191
      %v1209 = vadd.f32 %v1109, %v1193
      %v1210 = vadd.f32 %v1111, %v1195
      %v1211 = vadd.f32 %v1115, %v1199
      %v1212 = vadd.f32 %v1117, %v1201
      %v1213 = vadd.f32 %v1119, %v1203
      %v1214 = vadd.f32 %v1121, %v1205
      %v1215 = vmul.f32 %v1207, %v350
      %v1216 = vmul.f32 %v1208, %v351
      %v1217 = vmul.f32 %v1209, %v350
      %v1218 = vmul.f32 %v1210, %v351
      %v1219 = vmul.f32 %v1211, %v350
      %v1220 = vmul.f32 %v1212, %v351
      %v1221 = vmul.f32 %v1213, %v350
      %v1222 = vmul.f32 %v1214, %v351
      %v1223 = vadd.f32 %v947, %v1215
      %v1224 = vadd.f32 %v948, %v1216
      %v1225 = vadd.f32 %v949, %v1217
      %v1226 = vadd.f32 %v950, %v1218
      %v1227 = vadd.f32 %v951, %v1219
      %v1228 = vadd.f32 %v952, %v1220
      %v1229 = vadd.f32 %v953, %v1221
      %v1230 = vadd.f32 %v954, %v1222
      %1232 = vset.pattern.permute.xlu0 0
      %1233 = vperm.xlu0 %1232, %v403
      %v1234 = vpop.permute.xlu0 %1233
      %1237 = vset.pattern.permute.xlu0 0
      %1238 = vperm.xlu0 %1237, %v404
      %v1239 = vpop.permute.xlu0 %1238
      %1242 = vset.pattern.permute.xlu0 0
      %1243 = vperm.xlu0 %1242, %v405
      %v1244 = vpop.permute.xlu0 %1243
      %1247 = vset.pattern.permute.xlu0 0
      %1248 = vperm.xlu0 %1247, %v406
      %v1249 = vpop.permute.xlu0 %1248
      %v1251 = vadd.f32 %v1223, %v1234
      %v1252 = vadd.f32 %v1224, %v1234
      %v1253 = vadd.f32 %v1225, %v1239
      %v1254 = vadd.f32 %v1226, %v1239
      %v1255 = vadd.f32 %v1227, %v1244
      %v1256 = vadd.f32 %v1228, %v1244
      %v1257 = vadd.f32 %v1229, %v1249
      %v1258 = vadd.f32 %v1230, %v1249
      loop: start=0, step=1, limit=2
      $region53: #{edsr_forward.3} parent=51 // loop_pre_header
        _
      $region54: #{edsr_forward.3} parent=51 // loop_header
        %s1260 = sphi 0, %s1264
        %p1261 = scmp.ge.s32.totalorder %s1260, 2
        %v1265 = vphi %v1251, %v3169
        %v1266 = vphi %v1252, %v3170
        %v1267 = vphi %v1253, %v3171
        %v1268 = vphi %v1254, %v3172
        %v1269 = vphi %v1255, %v3173
        %v1270 = vphi %v1256, %v3174
        %v1271 = vphi %v1257, %v3175
        %v1272 = vphi %v1258, %v3176
      $region55: #{edsr_forward.3} parent=51 // loop_header_branch
        %1263 = sbr.rel (%p1261) target = $region59
      $region56: #{edsr_forward.3} parent=51 // loop_body
        %s1273 = smul.u32 %s1260, 72
        %s1274 = smul.addr %s1273, 4
        %s1275 = scalar_lea.vmem %s4, %s1274
        %v1276 = vld [vmem:[%s1275] sm:$0xf]
        %v1277 = vld [vmem:[%s1275 + $0x4] sm:$0xf]
        %v1278 = vld [vmem:[%s1275 + $0x8] sm:$0xf]
        %v1279 = vld [vmem:[%s1275 + $0xc] sm:$0xf]
        %v1280 = vld [vmem:[%s1275 + $0x10] sm:$0xf]
        %v1281 = vld [vmem:[%s1275 + $0x14] sm:$0xf]
        %v1282 = vld [vmem:[%s1275 + $0x18] sm:$0xf]
        %v1283 = vld [vmem:[%s1275 + $0x1c] sm:$0xf]
        %v1284 = vld [vmem:[%s1275 + $0x20] sm:$0xf]
        %v1285 = vld [vmem:[%s1275 + $0x24] sm:$0xf]
        %v1286 = vld [vmem:[%s1275 + $0x28] sm:$0xf]
        %v1287 = vld [vmem:[%s1275 + $0x2c] sm:$0xf]
        %v1288 = vld [vmem:[%s1275 + $0x30] sm:$0xf]
        %v1289 = vld [vmem:[%s1275 + $0x34] sm:$0xf]
        %v1290 = vld [vmem:[%s1275 + $0x38] sm:$0xf]
        %v1291 = vld [vmem:[%s1275 + $0x3c] sm:$0xf]
        %v1292 = vld [vmem:[%s1275 + $0x40] sm:$0xf]
        %v1293 = vld [vmem:[%s1275 + $0x44] sm:$0xf]
        %v1294 = vld [vmem:[%s1275 + $0x48] sm:$0xf]
        %v1295 = vld [vmem:[%s1275 + $0x4c] sm:$0xf]
        %v1296 = vld [vmem:[%s1275 + $0x50] sm:$0xf]
        %v1297 = vld [vmem:[%s1275 + $0x54] sm:$0xf]
        %v1298 = vld [vmem:[%s1275 + $0x58] sm:$0xf]
        %v1299 = vld [vmem:[%s1275 + $0x5c] sm:$0xf]
        %v1300 = vld [vmem:[%s1275 + $0x60] sm:$0xf]
        %v1301 = vld [vmem:[%s1275 + $0x64] sm:$0xf]
        %v1302 = vld [vmem:[%s1275 + $0x68] sm:$0xf]
        %v1303 = vld [vmem:[%s1275 + $0x6c] sm:$0xf]
        %v1304 = vld [vmem:[%s1275 + $0x70] sm:$0xf]
        %v1305 = vld [vmem:[%s1275 + $0x74] sm:$0xf]
        %v1306 = vld [vmem:[%s1275 + $0x78] sm:$0xf]
        %v1307 = vld [vmem:[%s1275 + $0x7c] sm:$0xf]
        %v1308 = vld [vmem:[%s1275 + $0x80] sm:$0xf]
        %v1309 = vld [vmem:[%s1275 + $0x84] sm:$0xf]
        %v1310 = vld [vmem:[%s1275 + $0x88] sm:$0xf]
        %v1311 = vld [vmem:[%s1275 + $0x8c] sm:$0xf]
        %v1312 = vld [vmem:[%s1275 + $0x90] sm:$0xf]
        %v1313 = vld [vmem:[%s1275 + $0x94] sm:$0xf]
        %v1314 = vld [vmem:[%s1275 + $0x98] sm:$0xf]
        %v1315 = vld [vmem:[%s1275 + $0x9c] sm:$0xf]
        %v1316 = vld [vmem:[%s1275 + $0xa0] sm:$0xf]
        %v1317 = vld [vmem:[%s1275 + $0xa4] sm:$0xf]
        %v1318 = vld [vmem:[%s1275 + $0xa8] sm:$0xf]
        %v1319 = vld [vmem:[%s1275 + $0xac] sm:$0xf]
        %v1320 = vld [vmem:[%s1275 + $0xb0] sm:$0xf]
        %v1321 = vld [vmem:[%s1275 + $0xb4] sm:$0xf]
        %v1322 = vld [vmem:[%s1275 + $0xb8] sm:$0xf]
        %v1323 = vld [vmem:[%s1275 + $0xbc] sm:$0xf]
        %v1324 = vld [vmem:[%s1275 + $0xc0] sm:$0xf]
        %v1325 = vld [vmem:[%s1275 + $0xc4] sm:$0xf]
        %v1326 = vld [vmem:[%s1275 + $0xc8] sm:$0xf]
        %v1327 = vld [vmem:[%s1275 + $0xcc] sm:$0xf]
        %v1328 = vld [vmem:[%s1275 + $0xd0] sm:$0xf]
        %v1329 = vld [vmem:[%s1275 + $0xd4] sm:$0xf]
        %v1330 = vld [vmem:[%s1275 + $0xd8] sm:$0xf]
        %v1331 = vld [vmem:[%s1275 + $0xdc] sm:$0xf]
        %v1332 = vld [vmem:[%s1275 + $0xe0] sm:$0xf]
        %v1333 = vld [vmem:[%s1275 + $0xe4] sm:$0xf]
        %v1334 = vld [vmem:[%s1275 + $0xe8] sm:$0xf]
        %v1335 = vld [vmem:[%s1275 + $0xec] sm:$0xf]
        %v1336 = vld [vmem:[%s1275 + $0xf0] sm:$0xf]
        %v1337 = vld [vmem:[%s1275 + $0xf4] sm:$0xf]
        %v1338 = vld [vmem:[%s1275 + $0xf8] sm:$0xf]
        %v1339 = vld [vmem:[%s1275 + $0xfc] sm:$0xf]
        %v1340 = vld [vmem:[%s1275 + $0x100] sm:$0xf]
        %v1341 = vld [vmem:[%s1275 + $0x104] sm:$0xf]
        %v1342 = vld [vmem:[%s1275 + $0x108] sm:$0xf]
        %v1343 = vld [vmem:[%s1275 + $0x10c] sm:$0xf]
        %v1344 = vld [vmem:[%s1275 + $0x110] sm:$0xf]
        %v1345 = vld [vmem:[%s1275 + $0x114] sm:$0xf]
        %v1346 = vld [vmem:[%s1275 + $0x118] sm:$0xf]
        %v1347 = vld [vmem:[%s1275 + $0x11c] sm:$0xf]
        %s1348 = smul.u32 %s1260, 64
        %s1349 = scalar_lea.vmem %s5, %s1348
        %v1350 = vld [vmem:[%s1349] sm:$0xff]
        %v1351 = vld [vmem:[%s1349 + $0x8] sm:$0xff]
        %v1352 = vld [vmem:[%s1349 + $0x10] sm:$0xff]
        %v1353 = vld [vmem:[%s1349 + $0x18] sm:$0xff]
        %v1354 = vld [vmem:[%s1349 + $0x20] sm:$0xff]
        %v1355 = vld [vmem:[%s1349 + $0x28] sm:$0xff]
        %v1356 = vld [vmem:[%s1349 + $0x30] sm:$0xff]
        %v1357 = vld [vmem:[%s1349 + $0x38] sm:$0xff]
        %v1358 = vpack.c.bf16 %v1267, %v1265
        %v1359 = vpack.c.bf16 %v1268, %v1266
        %v1360 = vpack.c.bf16 %v1271, %v1269
        %v1361 = vpack.c.bf16 %v1272, %v1270
        %1362 = vst [vmem:[#allocation2 + $0x8] sm:$0xff] %v1358
        %1363 = vst [vmem:[#allocation2 + $0x10] sm:$0xff] %v1359
        %1364 = vst [vmem:[#allocation2 + $0x28] sm:$0xff] %v1360
        %1365 = vst [vmem:[#allocation2 + $0x30] sm:$0xff] %v1361
        %v1366 = vld [vmem:[#allocation2] sm:$0xff]
        %v1367 = vld [vmem:[#allocation2 + $0x8] sm:$0xff]
        %v1368 = vld [vmem:[#allocation2 + $0x10] sm:$0xff]
        %v1369 = vld [vmem:[#allocation2 + $0x20] sm:$0xff]
        %v1370 = vld [vmem:[#allocation2 + $0x28] sm:$0xff]
        %v1371 = vld [vmem:[#allocation2 + $0x30] sm:$0xff]
        %v1376 = vunpack.c.l.b16 %v1288
        %v1377 = vunpack.c.l.b16 %v1289
        %v1378 = vunpack.c.l.b16 %v1290
        %v1379 = vunpack.c.l.b16 %v1291
        %v1380 = vpack.c.b16 %v1377, %v1376
        %v1381 = vpack.c.b16 %v1379, %v1378
        %1388 = vrot.lane.b32.xlu0 %v1366, 1
        %v1389 = vpop.permute.xlu0 %1388
        %1390 = vrot.lane.b32.xlu0 %v1367, 1
        %v1391 = vpop.permute.xlu0 %1390
        %1392 = vrot.lane.b32.xlu0 %v1368, 1
        %v1393 = vpop.permute.xlu0 %1392
        %1394 = vrot.lane.b32.xlu0 %v1369, 1
        %v1395 = vpop.permute.xlu0 %1394
        %1396 = vrot.lane.b32.xlu0 %v1370, 1
        %v1397 = vpop.permute.xlu0 %1396
        %1398 = vrot.lane.b32.xlu0 %v1371, 1
        %v1399 = vpop.permute.xlu0 %1398
        %v1400 = vsel %vm436, %v1389, %v1391
        %v1401 = vsel %vm436, %v1391, %v1393
        %v1402 = vsel %vm436, %v1395, %v1397
        %v1403 = vsel %vm436, %v1397, %v1399
        %vm1408 = vcmask 261120
        %v1410 = vsel %vm1408, %v1380, 0
        %v1413 = vsel %vm1408, %v1381, 0
        %1415 = vmatprep.subr.bf16.mxu0 %v1401
        %1416 = vmatpush1.bf16.msra.mxu0 %v1400
        %1417 = vmatprep.subr.bf16.mxu0 %v1403
        %1418 = vmatpush1.bf16.msra.mxu0 %v1402
        %1419 = vmatprep.subr.bf16.mxu0 0
        %1420 = vmatpush1.bf16.msra.mxu0 0
        %1421 = vmatprep.subr.bf16.mxu0 0
        %1422 = vmatpush1.bf16.msra.mxu0 0
        %1423 = vmatprep.subr.bf16.mxu0 0
        %1424 = vmatpush1.bf16.msra.mxu0 0
        %1425 = vmatprep.subr.bf16.mxu0 0
        %1426 = vmatpush1.bf16.msra.mxu0 0
        %1427 = vmatprep.subr.bf16.mxu0 0
        %1428 = vmatpush1.bf16.msra.mxu0 0
        %1429 = vmatprep.subr.bf16.mxu0 0
        %1430 = vmatpush1.bf16.msra.mxu0 0
        %1431 = vmatprep.subr.bf16.mxu0 0
        %1432 = vmatpush1.bf16.msra.mxu0 0
        %1433 = vmatprep.subr.bf16.mxu0 0
        %1434 = vmatpush1.bf16.msra.mxu0 0
        %1435 = vmatprep.subr.bf16.mxu0 0
        %1436 = vmatpush1.bf16.msra.mxu0 0
        %1437 = vmatprep.subr.bf16.mxu0 0
        %1438 = vmatpush1.bf16.msra.mxu0 0
        %1439 = vmatprep.subr.bf16.mxu0 0
        %1440 = vmatpush1.bf16.msra.mxu0 0
        %1441 = vmatprep.subr.bf16.mxu0 0
        %1442 = vmatpush1.bf16.msra.mxu0 0
        %1443 = vmatprep.subr.bf16.mxu0 0
        %1444 = vmatpush1.bf16.msra.mxu0 0
        %1445 = vmatprep.subr.bf16.mxu0 0
        %1446 = vmatpush1.bf16.msra.mxu0 0
        %1447 = vmatprep.mubr.bf16.mxu0 0
        %1448 = vmatmul.mubr.bf16.gmra.mrb[0].mxu0 %v1410
        %v1449 = vpop.f32.mrb[0].mxu0
        %v1450 = vadd.f32 0.0, %v1449
        %v1451 = vpop.f32.mrb[0].mxu0
        %v1452 = vadd.f32 0.0, %v1451
        %v1453 = vpop.f32.mrb[0].mxu0
        %v1454 = vadd.f32 0.0, %v1453
        %v1455 = vpop.f32.mrb[0].mxu0
        %v1456 = vadd.f32 0.0, %v1455
        %1457 = vmatprep.mubr.bf16.mxu0 0
        %1458 = vmatmul.mubr.bf16.gmra.mrb[0].mxu0 %v1413
        %v1459 = vpop.f32.mrb[0].mxu0
        %v1460 = vadd.f32 0.0, %v1459
        %v1461 = vpop.f32.mrb[0].mxu0
        %v1462 = vadd.f32 0.0, %v1461
        %v1463 = vpop.f32.mrb[0].mxu0
        %v1464 = vadd.f32 0.0, %v1463
        %v1465 = vpop.f32.mrb[0].mxu0
        %v1466 = vadd.f32 0.0, %v1465
        %1467 = vdwg.mxu0
        %v1472 = vunpack.c.l.b16 %v1276
        %v1473 = vunpack.c.l.b16 %v1277
        %v1474 = vunpack.c.l.b16 %v1278
        %v1475 = vunpack.c.l.b16 %v1279
        %v1476 = vpack.c.b16 %v1473, %v1472
        %v1477 = vpack.c.b16 %v1475, %v1474
        %1478 = vrot.lane.b32.xlu0 %v1366, 17
        %v1479 = vpop.permute.xlu0 %1478
        %1480 = vrot.lane.b32.xlu0 %v1367, 17
        %v1481 = vpop.permute.xlu0 %1480
        %1482 = vrot.lane.b32.xlu0 %v1368, 17
        %v1483 = vpop.permute.xlu0 %1482
        %1484 = vrot.lane.b32.xlu0 %v1369, 17
        %v1485 = vpop.permute.xlu0 %1484
        %1486 = vrot.lane.b32.xlu0 %v1370, 17
        %v1487 = vpop.permute.xlu0 %1486
        %1488 = vrot.lane.b32.xlu0 %v1371, 17
        %v1489 = vpop.permute.xlu0 %1488
        %v1490 = vsel %vm522, %v1479, %v1481
        %v1491 = vsel %vm522, %v1481, %v1483
        %v1492 = vsel %vm522, %v1485, %v1487
        %v1493 = vsel %vm522, %v1487, %v1489
        %v1499 = vsel %vm1408, %v1476, 0
        %v1502 = vsel %vm1408, %v1477, 0
        %1504 = vmatprep.subr.bf16.mxu0 %v1491
        %1505 = vmatpush1.bf16.msra.mxu0 %v1490
        %1506 = vmatprep.subr.bf16.mxu0 %v1493
        %1507 = vmatpush1.bf16.msra.mxu0 %v1492
        %1508 = vmatprep.subr.bf16.mxu0 0
        %1509 = vmatpush1.bf16.msra.mxu0 0
        %1510 = vmatprep.subr.bf16.mxu0 0
        %1511 = vmatpush1.bf16.msra.mxu0 0
        %1512 = vmatprep.subr.bf16.mxu0 0
        %1513 = vmatpush1.bf16.msra.mxu0 0
        %1514 = vmatprep.subr.bf16.mxu0 0
        %1515 = vmatpush1.bf16.msra.mxu0 0
        %1516 = vmatprep.subr.bf16.mxu0 0
        %1517 = vmatpush1.bf16.msra.mxu0 0
        %1518 = vmatprep.subr.bf16.mxu0 0
        %1519 = vmatpush1.bf16.msra.mxu0 0
        %1520 = vmatprep.subr.bf16.mxu0 0
        %1521 = vmatpush1.bf16.msra.mxu0 0
        %1522 = vmatprep.subr.bf16.mxu0 0
        %1523 = vmatpush1.bf16.msra.mxu0 0
        %1524 = vmatprep.subr.bf16.mxu0 0
        %1525 = vmatpush1.bf16.msra.mxu0 0
        %1526 = vmatprep.subr.bf16.mxu0 0
        %1527 = vmatpush1.bf16.msra.mxu0 0
        %1528 = vmatprep.subr.bf16.mxu0 0
        %1529 = vmatpush1.bf16.msra.mxu0 0
        %1530 = vmatprep.subr.bf16.mxu0 0
        %1531 = vmatpush1.bf16.msra.mxu0 0
        %1532 = vmatprep.subr.bf16.mxu0 0
        %1533 = vmatpush1.bf16.msra.mxu0 0
        %1534 = vmatprep.subr.bf16.mxu0 0
        %1535 = vmatpush1.bf16.msra.mxu0 0
        %1536 = vmatprep.mubr.bf16.mxu0 0
        %1537 = vmatmul.mubr.bf16.gmra.mrb[0].mxu0 %v1499
        %v1538 = vpop.f32.mrb[0].mxu0
        %v1539 = vadd.f32 %v1450, %v1538
        %v1540 = vpop.f32.mrb[0].mxu0
        %v1541 = vadd.f32 %v1452, %v1540
        %v1542 = vpop.f32.mrb[0].mxu0
        %v1543 = vadd.f32 %v1454, %v1542
        %v1544 = vpop.f32.mrb[0].mxu0
        %v1545 = vadd.f32 %v1456, %v1544
        %1546 = vmatprep.mubr.bf16.mxu0 0
        %1547 = vmatmul.mubr.bf16.gmra.mrb[0].mxu0 %v1502
        %v1548 = vpop.f32.mrb[0].mxu0
        %v1549 = vadd.f32 %v1460, %v1548
        %v1550 = vpop.f32.mrb[0].mxu0
        %v1551 = vadd.f32 %v1462, %v1550
        %v1552 = vpop.f32.mrb[0].mxu0
        %v1553 = vadd.f32 %v1464, %v1552
        %v1554 = vpop.f32.mrb[0].mxu0
        %v1555 = vadd.f32 %v1466, %v1554
        %1556 = vdwg.mxu0
        %v1557 = vld [vmem:[#allocation2 + $0x8] sm:$0xff]
        %v1558 = vld [vmem:[#allocation2 + $0x10] sm:$0xff]
        %v1559 = vld [vmem:[#allocation2 + $0x18] sm:$0xff]
        %v1560 = vld [vmem:[#allocation2 + $0x28] sm:$0xff]
        %v1561 = vld [vmem:[#allocation2 + $0x30] sm:$0xff]
        %v1562 = vld [vmem:[#allocation2 + $0x38] sm:$0xff]
        %v1567 = vunpack.c.l.b16 %v1300
        %v1568 = vunpack.c.l.b16 %v1301
        %v1569 = vunpack.c.l.b16 %v1302
        %v1570 = vunpack.c.l.b16 %v1303
        %v1571 = vpack.c.b16 %v1568, %v1567
        %v1572 = vpack.c.b16 %v1570, %v1569
        %1579 = vrot.lane.b32.xlu0 %v1557, 113
        %v1580 = vpop.permute.xlu0 %1579
        %1581 = vrot.lane.b32.xlu0 %v1558, 113
        %v1582 = vpop.permute.xlu0 %1581
        %1583 = vrot.lane.b32.xlu0 %v1559, 113
        %v1584 = vpop.permute.xlu0 %1583
        %1585 = vrot.lane.b32.xlu0 %v1560, 113
        %v1586 = vpop.permute.xlu0 %1585
        %1587 = vrot.lane.b32.xlu0 %v1561, 113
        %v1588 = vpop.permute.xlu0 %1587
        %1589 = vrot.lane.b32.xlu0 %v1562, 113
        %v1590 = vpop.permute.xlu0 %1589
        %v1591 = vsel %vm612, %v1580, %v1582
        %v1592 = vsel %vm612, %v1582, %v1584
        %v1593 = vsel %vm612, %v1586, %v1588
        %v1594 = vsel %vm612, %v1588, %v1590
        %v1600 = vsel %vm1408, %v1571, 0
        %v1603 = vsel %vm1408, %v1572, 0
        %1605 = vmatprep.subr.bf16.mxu0 %v1592
        %1606 = vmatpush1.bf16.msra.mxu0 %v1591
        %1607 = vmatprep.subr.bf16.mxu0 %v1594
        %1608 = vmatpush1.bf16.msra.mxu0 %v1593
        %1609 = vmatprep.subr.bf16.mxu0 0
        %1610 = vmatpush1.bf16.msra.mxu0 0
        %1611 = vmatprep.subr.bf16.mxu0 0
        %1612 = vmatpush1.bf16.msra.mxu0 0
        %1613 = vmatprep.subr.bf16.mxu0 0
        %1614 = vmatpush1.bf16.msra.mxu0 0
        %1615 = vmatprep.subr.bf16.mxu0 0
        %1616 = vmatpush1.bf16.msra.mxu0 0
        %1617 = vmatprep.subr.bf16.mxu0 0
        %1618 = vmatpush1.bf16.msra.mxu0 0
        %1619 = vmatprep.subr.bf16.mxu0 0
        %1620 = vmatpush1.bf16.msra.mxu0 0
        %1621 = vmatprep.subr.bf16.mxu0 0
        %1622 = vmatpush1.bf16.msra.mxu0 0
        %1623 = vmatprep.subr.bf16.mxu0 0
        %1624 = vmatpush1.bf16.msra.mxu0 0
        %1625 = vmatprep.subr.bf16.mxu0 0
        %1626 = vmatpush1.bf16.msra.mxu0 0
        %1627 = vmatprep.subr.bf16.mxu0 0
        %1628 = vmatpush1.bf16.msra.mxu0 0
        %1629 = vmatprep.subr.bf16.mxu0 0
        %1630 = vmatpush1.bf16.msra.mxu0 0
        %1631 = vmatprep.subr.bf16.mxu0 0
        %1632 = vmatpush1.bf16.msra.mxu0 0
        %1633 = vmatprep.subr.bf16.mxu0 0
        %1634 = vmatpush1.bf16.msra.mxu0 0
        %1635 = vmatprep.subr.bf16.mxu0 0
        %1636 = vmatpush1.bf16.msra.mxu0 0
        %1637 = vmatprep.mubr.bf16.mxu0 0
        %1638 = vmatmul.mubr.bf16.gmra.mrb[0].mxu0 %v1600
        %v1639 = vpop.f32.mrb[0].mxu0
        %v1640 = vadd.f32 0.0, %v1639
        %v1641 = vpop.f32.mrb[0].mxu0
        %v1642 = vadd.f32 0.0, %v1641
        %v1643 = vpop.f32.mrb[0].mxu0
        %v1644 = vadd.f32 0.0, %v1643
        %v1645 = vpop.f32.mrb[0].mxu0
        %v1646 = vadd.f32 0.0, %v1645
        %1647 = vmatprep.mubr.bf16.mxu0 0
        %1648 = vmatmul.mubr.bf16.gmra.mrb[0].mxu0 %v1603
        %v1649 = vpop.f32.mrb[0].mxu0
        %v1650 = vadd.f32 0.0, %v1649
        %v1651 = vpop.f32.mrb[0].mxu0
        %v1652 = vadd.f32 0.0, %v1651
        %v1653 = vpop.f32.mrb[0].mxu0
        %v1654 = vadd.f32 0.0, %v1653
        %v1655 = vpop.f32.mrb[0].mxu0
        %v1656 = vadd.f32 0.0, %v1655
        %1657 = vdwg.mxu0
        %v1658 = vadd.f32 %v1539, %v1640
        %v1659 = vadd.f32 %v1541, %v1642
        %v1660 = vadd.f32 %v1543, %v1644
        %v1661 = vadd.f32 %v1545, %v1646
        %v1662 = vadd.f32 %v1549, %v1650
        %v1663 = vadd.f32 %v1551, %v1652
        %v1664 = vadd.f32 %v1553, %v1654
        %v1665 = vadd.f32 %v1555, %v1656
        %v1666 = vmul.f32 %v1658, %v344
        %v1667 = vmul.f32 %v1659, %v345
        %v1668 = vmul.f32 %v1660, %v344
        %v1669 = vmul.f32 %v1661, %v345
        %v1670 = vmul.f32 %v1662, %v344
        %v1671 = vmul.f32 %v1663, %v345
        %v1672 = vmul.f32 %v1664, %v344
        %v1673 = vmul.f32 %v1665, %v345
        %v1678 = vunpack.c.l.b16 %v1292
        %v1679 = vunpack.c.l.b16 %v1293
        %v1680 = vunpack.c.l.b16 %v1294
        %v1681 = vunpack.c.l.b16 %v1295
        %v1682 = vpack.c.b16 %v1679, %v1678
        %v1683 = vpack.c.b16 %v1681, %v1680
        %v1685 = vsel %vm1408, %v1682, 0
        %v1688 = vsel %vm1408, %v1683, 0
        %1690 = vmatprep.subr.bf16.mxu0 %v1368
        %1691 = vmatpush1.bf16.msra.mxu0 %v1367
        %1692 = vmatprep.subr.bf16.mxu0 %v1371
        %1693 = vmatpush1.bf16.msra.mxu0 %v1370
        %1694 = vmatprep.subr.bf16.mxu0 0
        %1695 = vmatpush1.bf16.msra.mxu0 0
        %1696 = vmatprep.subr.bf16.mxu0 0
        %1697 = vmatpush1.bf16.msra.mxu0 0
        %1698 = vmatprep.subr.bf16.mxu0 0
        %1699 = vmatpush1.bf16.msra.mxu0 0
        %1700 = vmatprep.subr.bf16.mxu0 0
        %1701 = vmatpush1.bf16.msra.mxu0 0
        %1702 = vmatprep.subr.bf16.mxu0 0
        %1703 = vmatpush1.bf16.msra.mxu0 0
        %1704 = vmatprep.subr.bf16.mxu0 0
        %1705 = vmatpush1.bf16.msra.mxu0 0
        %1706 = vmatprep.subr.bf16.mxu0 0
        %1707 = vmatpush1.bf16.msra.mxu0 0
        %1708 = vmatprep.subr.bf16.mxu0 0
        %1709 = vmatpush1.bf16.msra.mxu0 0
        %1710 = vmatprep.subr.bf16.mxu0 0
        %1711 = vmatpush1.bf16.msra.mxu0 0
        %1712 = vmatprep.subr.bf16.mxu0 0
        %1713 = vmatpush1.bf16.msra.mxu0 0
        %1714 = vmatprep.subr.bf16.mxu0 0
        %1715 = vmatpush1.bf16.msra.mxu0 0
        %1716 = vmatprep.subr.bf16.mxu0 0
        %1717 = vmatpush1.bf16.msra.mxu0 0
        %1718 = vmatprep.subr.bf16.mxu0 0
        %1719 = vmatpush1.bf16.msra.mxu0 0
        %1720 = vmatprep.subr.bf16.mxu0 0
        %1721 = vmatpush1.bf16.msra.mxu0 0
        %1722 = vmatprep.mubr.bf16.mxu0 0
        %1723 = vmatmul.mubr.bf16.gmra.mrb[0].mxu0 %v1685
        %v1724 = vpop.f32.mrb[0].mxu0
        %v1725 = vadd.f32 0.0, %v1724
        %v1726 = vpop.f32.mrb[0].mxu0
        %v1727 = vadd.f32 0.0, %v1726
        %v1728 = vpop.f32.mrb[0].mxu0
        %v1729 = vadd.f32 0.0, %v1728
        %v1730 = vpop.f32.mrb[0].mxu0
        %v1731 = vadd.f32 0.0, %v1730
        %1732 = vmatprep.mubr.bf16.mxu0 0
        %1733 = vmatmul.mubr.bf16.gmra.mrb[0].mxu0 %v1688
        %v1734 = vpop.f32.mrb[0].mxu0
        %v1735 = vadd.f32 0.0, %v1734
        %v1736 = vpop.f32.mrb[0].mxu0
        %v1737 = vadd.f32 0.0, %v1736
        %v1738 = vpop.f32.mrb[0].mxu0
        %v1739 = vadd.f32 0.0, %v1738
        %v1740 = vpop.f32.mrb[0].mxu0
        %v1741 = vadd.f32 0.0, %v1740
        %1742 = vdwg.mxu0
        %v1747 = vunpack.c.l.b16 %v1280
        %v1748 = vunpack.c.l.b16 %v1281
        %v1749 = vunpack.c.l.b16 %v1282
        %v1750 = vunpack.c.l.b16 %v1283
        %v1751 = vpack.c.b16 %v1748, %v1747
        %v1752 = vpack.c.b16 %v1750, %v1749
        %1753 = vrot.lane.b32.xlu0 %v1366, 16
        %v1754 = vpop.permute.xlu0 %1753
        %1755 = vrot.lane.b32.xlu0 %v1367, 16
        %v1756 = vpop.permute.xlu0 %1755
        %1757 = vrot.lane.b32.xlu0 %v1368, 16
        %v1758 = vpop.permute.xlu0 %1757
        %1759 = vrot.lane.b32.xlu0 %v1369, 16
        %v1760 = vpop.permute.xlu0 %1759
        %1761 = vrot.lane.b32.xlu0 %v1370, 16
        %v1762 = vpop.permute.xlu0 %1761
        %1763 = vrot.lane.b32.xlu0 %v1371, 16
        %v1764 = vpop.permute.xlu0 %1763
        %v1765 = vsel %vm787, %v1754, %v1756
        %v1766 = vsel %vm787, %v1756, %v1758
        %v1767 = vsel %vm787, %v1760, %v1762
        %v1768 = vsel %vm787, %v1762, %v1764
        %v1774 = vsel %vm1408, %v1751, 0
        %v1777 = vsel %vm1408, %v1752, 0
        %1779 = vmatprep.subr.bf16.mxu0 %v1766
        %1780 = vmatpush1.bf16.msra.mxu0 %v1765
        %1781 = vmatprep.subr.bf16.mxu0 %v1768
        %1782 = vmatpush1.bf16.msra.mxu0 %v1767
        %1783 = vmatprep.subr.bf16.mxu0 0
        %1784 = vmatpush1.bf16.msra.mxu0 0
        %1785 = vmatprep.subr.bf16.mxu0 0
        %1786 = vmatpush1.bf16.msra.mxu0 0
        %1787 = vmatprep.subr.bf16.mxu0 0
        %1788 = vmatpush1.bf16.msra.mxu0 0
        %1789 = vmatprep.subr.bf16.mxu0 0
        %1790 = vmatpush1.bf16.msra.mxu0 0
        %1791 = vmatprep.subr.bf16.mxu0 0
        %1792 = vmatpush1.bf16.msra.mxu0 0
        %1793 = vmatprep.subr.bf16.mxu0 0
        %1794 = vmatpush1.bf16.msra.mxu0 0
        %1795 = vmatprep.subr.bf16.mxu0 0
        %1796 = vmatpush1.bf16.msra.mxu0 0
        %1797 = vmatprep.subr.bf16.mxu0 0
        %1798 = vmatpush1.bf16.msra.mxu0 0
        %1799 = vmatprep.subr.bf16.mxu0 0
        %1800 = vmatpush1.bf16.msra.mxu0 0
        %1801 = vmatprep.subr.bf16.mxu0 0
        %1802 = vmatpush1.bf16.msra.mxu0 0
        %1803 = vmatprep.subr.bf16.mxu0 0
        %1804 = vmatpush1.bf16.msra.mxu0 0
        %1805 = vmatprep.subr.bf16.mxu0 0
        %1806 = vmatpush1.bf16.msra.mxu0 0
        %1807 = vmatprep.subr.bf16.mxu0 0
        %1808 = vmatpush1.bf16.msra.mxu0 0
        %1809 = vmatprep.subr.bf16.mxu0 0
        %1810 = vmatpush1.bf16.msra.mxu0 0
        %1811 = vmatprep.mubr.bf16.mxu0 0
        %1812 = vmatmul.mubr.bf16.gmra.mrb[0].mxu0 %v1774
        %v1813 = vpop.f32.mrb[0].mxu0
        %v1814 = vadd.f32 %v1725, %v1813
        %v1815 = vpop.f32.mrb[0].mxu0
        %v1816 = vadd.f32 %v1727, %v1815
        %v1817 = vpop.f32.mrb[0].mxu0
        %v1818 = vadd.f32 %v1729, %v1817
        %v1819 = vpop.f32.mrb[0].mxu0
        %v1820 = vadd.f32 %v1731, %v1819
        %1821 = vmatprep.mubr.bf16.mxu0 0
        %1822 = vmatmul.mubr.bf16.gmra.mrb[0].mxu0 %v1777
        %v1823 = vpop.f32.mrb[0].mxu0
        %v1824 = vadd.f32 %v1735, %v1823
        %v1825 = vpop.f32.mrb[0].mxu0
        %v1826 = vadd.f32 %v1737, %v1825
        %v1827 = vpop.f32.mrb[0].mxu0
        %v1828 = vadd.f32 %v1739, %v1827
        %v1829 = vpop.f32.mrb[0].mxu0
        %v1830 = vadd.f32 %v1741, %v1829
        %1831 = vdwg.mxu0
        %v1836 = vunpack.c.l.b16 %v1304
        %v1837 = vunpack.c.l.b16 %v1305
        %v1838 = vunpack.c.l.b16 %v1306
        %v1839 = vunpack.c.l.b16 %v1307
        %v1840 = vpack.c.b16 %v1837, %v1836
        %v1841 = vpack.c.b16 %v1839, %v1838
        %1842 = vrot.lane.b32.xlu0 %v1557, 112
        %v1843 = vpop.permute.xlu0 %1842
        %1844 = vrot.lane.b32.xlu0 %v1558, 112
        %v1845 = vpop.permute.xlu0 %1844
        %1846 = vrot.lane.b32.xlu0 %v1559, 112
        %v1847 = vpop.permute.xlu0 %1846
        %1848 = vrot.lane.b32.xlu0 %v1560, 112
        %v1849 = vpop.permute.xlu0 %1848
        %1850 = vrot.lane.b32.xlu0 %v1561, 112
        %v1851 = vpop.permute.xlu0 %1850
        %1852 = vrot.lane.b32.xlu0 %v1562, 112
        %v1853 = vpop.permute.xlu0 %1852
        %v1854 = vsel %vm871, %v1843, %v1845
        %v1855 = vsel %vm871, %v1845, %v1847
        %v1856 = vsel %vm871, %v1849, %v1851
        %v1857 = vsel %vm871, %v1851, %v1853
        %v1863 = vsel %vm1408, %v1840, 0
        %v1866 = vsel %vm1408, %v1841, 0
        %1868 = vmatprep.subr.bf16.mxu0 %v1855
        %1869 = vmatpush1.bf16.msra.mxu0 %v1854
        %1870 = vmatprep.subr.bf16.mxu0 %v1857
        %1871 = vmatpush1.bf16.msra.mxu0 %v1856
        %1872 = vmatprep.subr.bf16.mxu0 0
        %1873 = vmatpush1.bf16.msra.mxu0 0
        %1874 = vmatprep.subr.bf16.mxu0 0
        %1875 = vmatpush1.bf16.msra.mxu0 0
        %1876 = vmatprep.subr.bf16.mxu0 0
        %1877 = vmatpush1.bf16.msra.mxu0 0
        %1878 = vmatprep.subr.bf16.mxu0 0
        %1879 = vmatpush1.bf16.msra.mxu0 0
        %1880 = vmatprep.subr.bf16.mxu0 0
        %1881 = vmatpush1.bf16.msra.mxu0 0
        %1882 = vmatprep.subr.bf16.mxu0 0
        %1883 = vmatpush1.bf16.msra.mxu0 0
        %1884 = vmatprep.subr.bf16.mxu0 0
        %1885 = vmatpush1.bf16.msra.mxu0 0
        %1886 = vmatprep.subr.bf16.mxu0 0
        %1887 = vmatpush1.bf16.msra.mxu0 0
        %1888 = vmatprep.subr.bf16.mxu0 0
        %1889 = vmatpush1.bf16.msra.mxu0 0
        %1890 = vmatprep.subr.bf16.mxu0 0
        %1891 = vmatpush1.bf16.msra.mxu0 0
        %1892 = vmatprep.subr.bf16.mxu0 0
        %1893 = vmatpush1.bf16.msra.mxu0 0
        %1894 = vmatprep.subr.bf16.mxu0 0
        %1895 = vmatpush1.bf16.msra.mxu0 0
        %1896 = vmatprep.subr.bf16.mxu0 0
        %1897 = vmatpush1.bf16.msra.mxu0 0
        %1898 = vmatprep.subr.bf16.mxu0 0
        %1899 = vmatpush1.bf16.msra.mxu0 0
        %1900 = vmatprep.mubr.bf16.mxu0 0
        %1901 = vmatmul.mubr.bf16.gmra.mrb[0].mxu0 %v1863
        %v1902 = vpop.f32.mrb[0].mxu0
        %v1903 = vadd.f32 0.0, %v1902
        %v1904 = vpop.f32.mrb[0].mxu0
        %v1905 = vadd.f32 0.0, %v1904
        %v1906 = vpop.f32.mrb[0].mxu0
        %v1907 = vadd.f32 0.0, %v1906
        %v1908 = vpop.f32.mrb[0].mxu0
        %v1909 = vadd.f32 0.0, %v1908
        %1910 = vmatprep.mubr.bf16.mxu0 0
        %1911 = vmatmul.mubr.bf16.gmra.mrb[0].mxu0 %v1866
        %v1912 = vpop.f32.mrb[0].mxu0
        %v1913 = vadd.f32 0.0, %v1912
        %v1914 = vpop.f32.mrb[0].mxu0
        %v1915 = vadd.f32 0.0, %v1914
        %v1916 = vpop.f32.mrb[0].mxu0
        %v1917 = vadd.f32 0.0, %v1916
        %v1918 = vpop.f32.mrb[0].mxu0
        %v1919 = vadd.f32 0.0, %v1918
        %1920 = vdwg.mxu0
        %v1921 = vadd.f32 %v1814, %v1903
        %v1922 = vadd.f32 %v1816, %v1905
        %v1923 = vadd.f32 %v1818, %v1907
        %v1924 = vadd.f32 %v1820, %v1909
        %v1925 = vadd.f32 %v1824, %v1913
        %v1926 = vadd.f32 %v1826, %v1915
        %v1927 = vadd.f32 %v1828, %v1917
        %v1928 = vadd.f32 %v1830, %v1919
        %v1929 = vadd.f32 %v1666, %v1921
        %v1930 = vadd.f32 %v1667, %v1922
        %v1931 = vadd.f32 %v1668, %v1923
        %v1932 = vadd.f32 %v1669, %v1924
        %v1933 = vadd.f32 %v1670, %v1925
        %v1934 = vadd.f32 %v1671, %v1926
        %v1935 = vadd.f32 %v1672, %v1927
        %v1936 = vadd.f32 %v1673, %v1928
        %v1941 = vunpack.c.l.b16 %v1296
        %v1942 = vunpack.c.l.b16 %v1297
        %v1943 = vunpack.c.l.b16 %v1298
        %v1944 = vunpack.c.l.b16 %v1299
        %v1945 = vpack.c.b16 %v1942, %v1941
        %v1946 = vpack.c.b16 %v1944, %v1943
        %1947 = vrot.lane.b32.xlu0 %v1557, 127
        %v1948 = vpop.permute.xlu0 %1947
        %1949 = vrot.lane.b32.xlu0 %v1558, 127
        %v1950 = vpop.permute.xlu0 %1949
        %1951 = vrot.lane.b32.xlu0 %v1559, 127
        %v1952 = vpop.permute.xlu0 %1951
        %1953 = vrot.lane.b32.xlu0 %v1560, 127
        %v1954 = vpop.permute.xlu0 %1953
        %1955 = vrot.lane.b32.xlu0 %v1561, 127
        %v1956 = vpop.permute.xlu0 %1955
        %1957 = vrot.lane.b32.xlu0 %v1562, 127
        %v1958 = vpop.permute.xlu0 %1957
        %v1959 = vsel %vm971, %v1948, %v1950
        %v1960 = vsel %vm971, %v1950, %v1952
        %v1961 = vsel %vm971, %v1954, %v1956
        %v1962 = vsel %vm971, %v1956, %v1958
        %v1968 = vsel %vm1408, %v1945, 0
        %v1971 = vsel %vm1408, %v1946, 0
        %1973 = vmatprep.subr.bf16.mxu0 %v1960
        %1974 = vmatpush1.bf16.msra.mxu0 %v1959
        %1975 = vmatprep.subr.bf16.mxu0 %v1962
        %1976 = vmatpush1.bf16.msra.mxu0 %v1961
        %1977 = vmatprep.subr.bf16.mxu0 0
        %1978 = vmatpush1.bf16.msra.mxu0 0
        %1979 = vmatprep.subr.bf16.mxu0 0
        %1980 = vmatpush1.bf16.msra.mxu0 0
        %1981 = vmatprep.subr.bf16.mxu0 0
        %1982 = vmatpush1.bf16.msra.mxu0 0
        %1983 = vmatprep.subr.bf16.mxu0 0
        %1984 = vmatpush1.bf16.msra.mxu0 0
        %1985 = vmatprep.subr.bf16.mxu0 0
        %1986 = vmatpush1.bf16.msra.mxu0 0
        %1987 = vmatprep.subr.bf16.mxu0 0
        %1988 = vmatpush1.bf16.msra.mxu0 0
        %1989 = vmatprep.subr.bf16.mxu0 0
        %1990 = vmatpush1.bf16.msra.mxu0 0
        %1991 = vmatprep.subr.bf16.mxu0 0
        %1992 = vmatpush1.bf16.msra.mxu0 0
        %1993 = vmatprep.subr.bf16.mxu0 0
        %1994 = vmatpush1.bf16.msra.mxu0 0
        %1995 = vmatprep.subr.bf16.mxu0 0
        %1996 = vmatpush1.bf16.msra.mxu0 0
        %1997 = vmatprep.subr.bf16.mxu0 0
        %1998 = vmatpush1.bf16.msra.mxu0 0
        %1999 = vmatprep.subr.bf16.mxu0 0
        %2000 = vmatpush1.bf16.msra.mxu0 0
        %2001 = vmatprep.subr.bf16.mxu0 0
        %2002 = vmatpush1.bf16.msra.mxu0 0
        %2003 = vmatprep.subr.bf16.mxu0 0
        %2004 = vmatpush1.bf16.msra.mxu0 0
        %2005 = vmatprep.mubr.bf16.mxu0 0
        %2006 = vmatmul.mubr.bf16.gmra.mrb[0].mxu0 %v1968
        %v2007 = vpop.f32.mrb[0].mxu0
        %v2008 = vadd.f32 0.0, %v2007
        %v2009 = vpop.f32.mrb[0].mxu0
        %v2010 = vadd.f32 0.0, %v2009
        %v2011 = vpop.f32.mrb[0].mxu0
        %v2012 = vadd.f32 0.0, %v2011
        %v2013 = vpop.f32.mrb[0].mxu0
        %v2014 = vadd.f32 0.0, %v2013
        %2015 = vmatprep.mubr.bf16.mxu0 0
        %2016 = vmatmul.mubr.bf16.gmra.mrb[0].mxu0 %v1971
        %v2017 = vpop.f32.mrb[0].mxu0
        %v2018 = vadd.f32 0.0, %v2017
        %v2019 = vpop.f32.mrb[0].mxu0
        %v2020 = vadd.f32 0.0, %v2019
        %v2021 = vpop.f32.mrb[0].mxu0
        %v2022 = vadd.f32 0.0, %v2021
        %v2023 = vpop.f32.mrb[0].mxu0
        %v2024 = vadd.f32 0.0, %v2023
        %2025 = vdwg.mxu0
        %v2030 = vunpack.c.l.b16 %v1284
        %v2031 = vunpack.c.l.b16 %v1285
        %v2032 = vunpack.c.l.b16 %v1286
        %v2033 = vunpack.c.l.b16 %v1287
        %v2034 = vpack.c.b16 %v2031, %v2030
        %v2035 = vpack.c.b16 %v2033, %v2032
        %2036 = vrot.lane.b32.xlu0 %v1366, 15
        %v2037 = vpop.permute.xlu0 %2036
        %2038 = vrot.lane.b32.xlu0 %v1367, 15
        %v2039 = vpop.permute.xlu0 %2038
        %2040 = vrot.lane.b32.xlu0 %v1368, 15
        %v2041 = vpop.permute.xlu0 %2040
        %2042 = vrot.lane.b32.xlu0 %v1369, 15
        %v2043 = vpop.permute.xlu0 %2042
        %2044 = vrot.lane.b32.xlu0 %v1370, 15
        %v2045 = vpop.permute.xlu0 %2044
        %2046 = vrot.lane.b32.xlu0 %v1371, 15
        %v2047 = vpop.permute.xlu0 %2046
        %v2048 = vsel %vm1055, %v2037, %v2039
        %v2049 = vsel %vm1055, %v2039, %v2041
        %v2050 = vsel %vm1055, %v2043, %v2045
        %v2051 = vsel %vm1055, %v2045, %v2047
        %v2057 = vsel %vm1408, %v2034, 0
        %v2060 = vsel %vm1408, %v2035, 0
        %2062 = vmatprep.subr.bf16.mxu0 %v2049
        %2063 = vmatpush1.bf16.msra.mxu0 %v2048
        %2064 = vmatprep.subr.bf16.mxu0 %v2051
        %2065 = vmatpush1.bf16.msra.mxu0 %v2050
        %2066 = vmatprep.subr.bf16.mxu0 0
        %2067 = vmatpush1.bf16.msra.mxu0 0
        %2068 = vmatprep.subr.bf16.mxu0 0
        %2069 = vmatpush1.bf16.msra.mxu0 0
        %2070 = vmatprep.subr.bf16.mxu0 0
        %2071 = vmatpush1.bf16.msra.mxu0 0
        %2072 = vmatprep.subr.bf16.mxu0 0
        %2073 = vmatpush1.bf16.msra.mxu0 0
        %2074 = vmatprep.subr.bf16.mxu0 0
        %2075 = vmatpush1.bf16.msra.mxu0 0
        %2076 = vmatprep.subr.bf16.mxu0 0
        %2077 = vmatpush1.bf16.msra.mxu0 0
        %2078 = vmatprep.subr.bf16.mxu0 0
        %2079 = vmatpush1.bf16.msra.mxu0 0
        %2080 = vmatprep.subr.bf16.mxu0 0
        %2081 = vmatpush1.bf16.msra.mxu0 0
        %2082 = vmatprep.subr.bf16.mxu0 0
        %2083 = vmatpush1.bf16.msra.mxu0 0
        %2084 = vmatprep.subr.bf16.mxu0 0
        %2085 = vmatpush1.bf16.msra.mxu0 0
        %2086 = vmatprep.subr.bf16.mxu0 0
        %2087 = vmatpush1.bf16.msra.mxu0 0
        %2088 = vmatprep.subr.bf16.mxu0 0
        %2089 = vmatpush1.bf16.msra.mxu0 0
        %2090 = vmatprep.subr.bf16.mxu0 0
        %2091 = vmatpush1.bf16.msra.mxu0 0
        %2092 = vmatprep.subr.bf16.mxu0 0
        %2093 = vmatpush1.bf16.msra.mxu0 0
        %2094 = vmatprep.mubr.bf16.mxu0 0
        %2095 = vmatmul.mubr.bf16.gmra.mrb[0].mxu0 %v2057
        %v2096 = vpop.f32.mrb[0].mxu0
        %v2097 = vadd.f32 %v2008, %v2096
        %v2098 = vpop.f32.mrb[0].mxu0
        %v2099 = vadd.f32 %v2010, %v2098
        %v2100 = vpop.f32.mrb[0].mxu0
        %v2101 = vadd.f32 %v2012, %v2100
        %v2102 = vpop.f32.mrb[0].mxu0
        %v2103 = vadd.f32 %v2014, %v2102
        %2104 = vmatprep.mubr.bf16.mxu0 0
        %2105 = vmatmul.mubr.bf16.gmra.mrb[0].mxu0 %v2060
        %v2106 = vpop.f32.mrb[0].mxu0
        %v2107 = vadd.f32 %v2018, %v2106
        %v2108 = vpop.f32.mrb[0].mxu0
        %v2109 = vadd.f32 %v2020, %v2108
        %v2110 = vpop.f32.mrb[0].mxu0
        %v2111 = vadd.f32 %v2022, %v2110
        %v2112 = vpop.f32.mrb[0].mxu0
        %v2113 = vadd.f32 %v2024, %v2112
        %2114 = vdwg.mxu0
        %v2119 = vunpack.c.l.b16 %v1308
        %v2120 = vunpack.c.l.b16 %v1309
        %v2121 = vunpack.c.l.b16 %v1310
        %v2122 = vunpack.c.l.b16 %v1311
        %v2123 = vpack.c.b16 %v2120, %v2119
        %v2124 = vpack.c.b16 %v2122, %v2121
        %2125 = vrot.lane.b32.xlu0 %v1557, 111
        %v2126 = vpop.permute.xlu0 %2125
        %2127 = vrot.lane.b32.xlu0 %v1558, 111
        %v2128 = vpop.permute.xlu0 %2127
        %2129 = vrot.lane.b32.xlu0 %v1559, 111
        %v2130 = vpop.permute.xlu0 %2129
        %2131 = vrot.lane.b32.xlu0 %v1560, 111
        %v2132 = vpop.permute.xlu0 %2131
        %2133 = vrot.lane.b32.xlu0 %v1561, 111
        %v2134 = vpop.permute.xlu0 %2133
        %2135 = vrot.lane.b32.xlu0 %v1562, 111
        %v2136 = vpop.permute.xlu0 %2135
        %v2137 = vsel %vm1139, %v2126, %v2128
        %v2138 = vsel %vm1139, %v2128, %v2130
        %v2139 = vsel %vm1139, %v2132, %v2134
        %v2140 = vsel %vm1139, %v2134, %v2136
        %v2146 = vsel %vm1408, %v2123, 0
        %v2149 = vsel %vm1408, %v2124, 0
        %2151 = vmatprep.subr.bf16.mxu0 %v2138
        %2152 = vmatpush1.bf16.msra.mxu0 %v2137
        %2153 = vmatprep.subr.bf16.mxu0 %v2140
        %2154 = vmatpush1.bf16.msra.mxu0 %v2139
        %2155 = vmatprep.subr.bf16.mxu0 0
        %2156 = vmatpush1.bf16.msra.mxu0 0
        %2157 = vmatprep.subr.bf16.mxu0 0
        %2158 = vmatpush1.bf16.msra.mxu0 0
        %2159 = vmatprep.subr.bf16.mxu0 0
        %2160 = vmatpush1.bf16.msra.mxu0 0
        %2161 = vmatprep.subr.bf16.mxu0 0
        %2162 = vmatpush1.bf16.msra.mxu0 0
        %2163 = vmatprep.subr.bf16.mxu0 0
        %2164 = vmatpush1.bf16.msra.mxu0 0
        %2165 = vmatprep.subr.bf16.mxu0 0
        %2166 = vmatpush1.bf16.msra.mxu0 0
        %2167 = vmatprep.subr.bf16.mxu0 0
        %2168 = vmatpush1.bf16.msra.mxu0 0
        %2169 = vmatprep.subr.bf16.mxu0 0
        %2170 = vmatpush1.bf16.msra.mxu0 0
        %2171 = vmatprep.subr.bf16.mxu0 0
        %2172 = vmatpush1.bf16.msra.mxu0 0
        %2173 = vmatprep.subr.bf16.mxu0 0
        %2174 = vmatpush1.bf16.msra.mxu0 0
        %2175 = vmatprep.subr.bf16.mxu0 0
        %2176 = vmatpush1.bf16.msra.mxu0 0
        %2177 = vmatprep.subr.bf16.mxu0 0
        %2178 = vmatpush1.bf16.msra.mxu0 0
        %2179 = vmatprep.subr.bf16.mxu0 0
        %2180 = vmatpush1.bf16.msra.mxu0 0
        %2181 = vmatprep.subr.bf16.mxu0 0
        %2182 = vmatpush1.bf16.msra.mxu0 0
        %2183 = vmatprep.mubr.bf16.mxu0 0
        %2184 = vmatmul.mubr.bf16.gmra.mrb[0].mxu0 %v2146
        %v2185 = vpop.f32.mrb[0].mxu0
        %v2186 = vadd.f32 0.0, %v2185
        %v2187 = vpop.f32.mrb[0].mxu0
        %v2188 = vadd.f32 0.0, %v2187
        %v2189 = vpop.f32.mrb[0].mxu0
        %v2190 = vadd.f32 0.0, %v2189
        %v2191 = vpop.f32.mrb[0].mxu0
        %v2192 = vadd.f32 0.0, %v2191
        %2193 = vmatprep.mubr.bf16.mxu0 0
        %2194 = vmatmul.mubr.bf16.gmra.mrb[0].mxu0 %v2149
        %v2195 = vpop.f32.mrb[0].mxu0
        %v2196 = vadd.f32 0.0, %v2195
        %v2197 = vpop.f32.mrb[0].mxu0
        %v2198 = vadd.f32 0.0, %v2197
        %v2199 = vpop.f32.mrb[0].mxu0
        %v2200 = vadd.f32 0.0, %v2199
        %v2201 = vpop.f32.mrb[0].mxu0
        %v2202 = vadd.f32 0.0, %v2201
        %2203 = vdwg.mxu0
        %v2204 = vadd.f32 %v2097, %v2186
        %v2205 = vadd.f32 %v2099, %v2188
        %v2206 = vadd.f32 %v2101, %v2190
        %v2207 = vadd.f32 %v2103, %v2192
        %v2208 = vadd.f32 %v2107, %v2196
        %v2209 = vadd.f32 %v2109, %v2198
        %v2210 = vadd.f32 %v2111, %v2200
        %v2211 = vadd.f32 %v2113, %v2202
        %v2212 = vmul.f32 %v2204, %v350
        %v2213 = vmul.f32 %v2205, %v351
        %v2214 = vmul.f32 %v2206, %v350
        %v2215 = vmul.f32 %v2207, %v351
        %v2216 = vmul.f32 %v2208, %v350
        %v2217 = vmul.f32 %v2209, %v351
        %v2218 = vmul.f32 %v2210, %v350
        %v2219 = vmul.f32 %v2211, %v351
        %v2220 = vadd.f32 %v1929, %v2212
        %v2221 = vadd.f32 %v1930, %v2213
        %v2222 = vadd.f32 %v1931, %v2214
        %v2223 = vadd.f32 %v1932, %v2215
        %v2224 = vadd.f32 %v1933, %v2216
        %v2225 = vadd.f32 %v1934, %v2217
        %v2226 = vadd.f32 %v1935, %v2218
        %v2227 = vadd.f32 %v1936, %v2219
        %2229 = vset.pattern.permute.xlu0 0
        %2230 = vperm.xlu0 %2229, %v1350
        %v2231 = vpop.permute.xlu0 %2230
        %2234 = vset.pattern.permute.xlu0 0
        %2235 = vperm.xlu0 %2234, %v1351
        %v2236 = vpop.permute.xlu0 %2235
        %2239 = vset.pattern.permute.xlu0 0
        %2240 = vperm.xlu0 %2239, %v1352
        %v2241 = vpop.permute.xlu0 %2240
        %2244 = vset.pattern.permute.xlu0 0
        %2245 = vperm.xlu0 %2244, %v1353
        %v2246 = vpop.permute.xlu0 %2245
        %v2248 = vadd.f32 %v2220, %v2231
        %v2249 = vadd.f32 %v2221, %v2231
        %v2250 = vadd.f32 %v2222, %v2236
        %v2251 = vadd.f32 %v2223, %v2236
        %v2252 = vadd.f32 %v2224, %v2241
        %v2253 = vadd.f32 %v2225, %v2241
        %v2254 = vadd.f32 %v2226, %v2246
        %v2255 = vadd.f32 %v2227, %v2246
        %v2256 = vmax.f32 %v2248, 0.0
        %v2257 = vmax.f32 %v2249, 0.0
        %v2258 = vmax.f32 %v2250, 0.0
        %v2259 = vmax.f32 %v2251, 0.0
        %v2260 = vmax.f32 %v2252, 0.0
        %v2261 = vmax.f32 %v2253, 0.0
        %v2262 = vmax.f32 %v2254, 0.0
        %v2263 = vmax.f32 %v2255, 0.0
        %v2264 = vpack.c.bf16 %v2258, %v2256
        %v2265 = vpack.c.bf16 %v2259, %v2257
        %v2266 = vpack.c.bf16 %v2262, %v2260
        %v2267 = vpack.c.bf16 %v2263, %v2261
        %2268 = vst [vmem:[#allocation2 + $0x8] sm:$0xff] %v2264
        %2269 = vst [vmem:[#allocation2 + $0x10] sm:$0xff] %v2265
        %2270 = vst [vmem:[#allocation2 + $0x28] sm:$0xff] %v2266
        %2271 = vst [vmem:[#allocation2 + $0x30] sm:$0xff] %v2267
        %v2272 = vld [vmem:[#allocation2] sm:$0xff]
        %v2273 = vld [vmem:[#allocation2 + $0x8] sm:$0xff]
        %v2274 = vld [vmem:[#allocation2 + $0x10] sm:$0xff]
        %v2275 = vld [vmem:[#allocation2 + $0x20] sm:$0xff]
        %v2276 = vld [vmem:[#allocation2 + $0x28] sm:$0xff]
        %v2277 = vld [vmem:[#allocation2 + $0x30] sm:$0xff]
        %v2282 = vunpack.c.l.b16 %v1324
        %v2283 = vunpack.c.l.b16 %v1325
        %v2284 = vunpack.c.l.b16 %v1326
        %v2285 = vunpack.c.l.b16 %v1327
        %v2286 = vpack.c.b16 %v2283, %v2282
        %v2287 = vpack.c.b16 %v2285, %v2284
        %2294 = vrot.lane.b32.xlu0 %v2272, 1
        %v2295 = vpop.permute.xlu0 %2294
        %2296 = vrot.lane.b32.xlu0 %v2273, 1
        %v2297 = vpop.permute.xlu0 %2296
        %2298 = vrot.lane.b32.xlu0 %v2274, 1
        %v2299 = vpop.permute.xlu0 %2298
        %2300 = vrot.lane.b32.xlu0 %v2275, 1
        %v2301 = vpop.permute.xlu0 %2300
        %2302 = vrot.lane.b32.xlu0 %v2276, 1
        %v2303 = vpop.permute.xlu0 %2302
        %2304 = vrot.lane.b32.xlu0 %v2277, 1
        %v2305 = vpop.permute.xlu0 %2304
        %v2306 = vsel %vm436, %v2295, %v2297
        %v2307 = vsel %vm436, %v2297, %v2299
        %v2308 = vsel %vm436, %v2301, %v2303
        %v2309 = vsel %vm436, %v2303, %v2305
        %v2315 = vsel %vm1408, %v2286, 0
        %v2318 = vsel %vm1408, %v2287, 0
        %2320 = vmatprep.subr.bf16.mxu0 %v2307
        %2321 = vmatpush1.bf16.msra.mxu0 %v2306
        %2322 = vmatprep.subr.bf16.mxu0 %v2309
        %2323 = vmatpush1.bf16.msra.mxu0 %v2308
        %2324 = vmatprep.subr.bf16.mxu0 0
        %2325 = vmatpush1.bf16.msra.mxu0 0
        %2326 = vmatprep.subr.bf16.mxu0 0
        %2327 = vmatpush1.bf16.msra.mxu0 0
        %2328 = vmatprep.subr.bf16.mxu0 0
        %2329 = vmatpush1.bf16.msra.mxu0 0
        %2330 = vmatprep.subr.bf16.mxu0 0
        %2331 = vmatpush1.bf16.msra.mxu0 0
        %2332 = vmatprep.subr.bf16.mxu0 0
        %2333 = vmatpush1.bf16.msra.mxu0 0
        %2334 = vmatprep.subr.bf16.mxu0 0
        %2335 = vmatpush1.bf16.msra.mxu0 0
        %2336 = vmatprep.subr.bf16.mxu0 0
        %2337 = vmatpush1.bf16.msra.mxu0 0
        %2338 = vmatprep.subr.bf16.mxu0 0
        %2339 = vmatpush1.bf16.msra.mxu0 0
        %2340 = vmatprep.subr.bf16.mxu0 0
        %2341 = vmatpush1.bf16.msra.mxu0 0
        %2342 = vmatprep.subr.bf16.mxu0 0
        %2343 = vmatpush1.bf16.msra.mxu0 0
        %2344 = vmatprep.subr.bf16.mxu0 0
        %2345 = vmatpush1.bf16.msra.mxu0 0
        %2346 = vmatprep.subr.bf16.mxu0 0
        %2347 = vmatpush1.bf16.msra.mxu0 0
        %2348 = vmatprep.subr.bf16.mxu0 0
        %2349 = vmatpush1.bf16.msra.mxu0 0
        %2350 = vmatprep.subr.bf16.mxu0 0
        %2351 = vmatpush1.bf16.msra.mxu0 0
        %2352 = vmatprep.mubr.bf16.mxu0 0
        %2353 = vmatmul.mubr.bf16.gmra.mrb[0].mxu0 %v2315
        %v2354 = vpop.f32.mrb[0].mxu0
        %v2355 = vadd.f32 0.0, %v2354
        %v2356 = vpop.f32.mrb[0].mxu0
        %v2357 = vadd.f32 0.0, %v2356
        %v2358 = vpop.f32.mrb[0].mxu0
        %v2359 = vadd.f32 0.0, %v2358
        %v2360 = vpop.f32.mrb[0].mxu0
        %v2361 = vadd.f32 0.0, %v2360
        %2362 = vmatprep.mubr.bf16.mxu0 0
        %2363 = vmatmul.mubr.bf16.gmra.mrb[0].mxu0 %v2318
        %v2364 = vpop.f32.mrb[0].mxu0
        %v2365 = vadd.f32 0.0, %v2364
        %v2366 = vpop.f32.mrb[0].mxu0
        %v2367 = vadd.f32 0.0, %v2366
        %v2368 = vpop.f32.mrb[0].mxu0
        %v2369 = vadd.f32 0.0, %v2368
        %v2370 = vpop.f32.mrb[0].mxu0
        %v2371 = vadd.f32 0.0, %v2370
        %2372 = vdwg.mxu0
        %v2377 = vunpack.c.l.b16 %v1312
        %v2378 = vunpack.c.l.b16 %v1313
        %v2379 = vunpack.c.l.b16 %v1314
        %v2380 = vunpack.c.l.b16 %v1315
        %v2381 = vpack.c.b16 %v2378, %v2377
        %v2382 = vpack.c.b16 %v2380, %v2379
        %2383 = vrot.lane.b32.xlu0 %v2272, 17
        %v2384 = vpop.permute.xlu0 %2383
        %2385 = vrot.lane.b32.xlu0 %v2273, 17
        %v2386 = vpop.permute.xlu0 %2385
        %2387 = vrot.lane.b32.xlu0 %v2274, 17
        %v2388 = vpop.permute.xlu0 %2387
        %2389 = vrot.lane.b32.xlu0 %v2275, 17
        %v2390 = vpop.permute.xlu0 %2389
        %2391 = vrot.lane.b32.xlu0 %v2276, 17
        %v2392 = vpop.permute.xlu0 %2391
        %2393 = vrot.lane.b32.xlu0 %v2277, 17
        %v2394 = vpop.permute.xlu0 %2393
        %v2395 = vsel %vm522, %v2384, %v2386
        %v2396 = vsel %vm522, %v2386, %v2388
        %v2397 = vsel %vm522, %v2390, %v2392
        %v2398 = vsel %vm522, %v2392, %v2394
        %v2404 = vsel %vm1408, %v2381, 0
        %v2407 = vsel %vm1408, %v2382, 0
        %2409 = vmatprep.subr.bf16.mxu0 %v2396
        %2410 = vmatpush1.bf16.msra.mxu0 %v2395
        %2411 = vmatprep.subr.bf16.mxu0 %v2398
        %2412 = vmatpush1.bf16.msra.mxu0 %v2397
        %2413 = vmatprep.subr.bf16.mxu0 0
        %2414 = vmatpush1.bf16.msra.mxu0 0
        %2415 = vmatprep.subr.bf16.mxu0 0
        %2416 = vmatpush1.bf16.msra.mxu0 0
        %2417 = vmatprep.subr.bf16.mxu0 0
        %2418 = vmatpush1.bf16.msra.mxu0 0
        %2419 = vmatprep.subr.bf16.mxu0 0
        %2420 = vmatpush1.bf16.msra.mxu0 0
        %2421 = vmatprep.subr.bf16.mxu0 0
        %2422 = vmatpush1.bf16.msra.mxu0 0
        %2423 = vmatprep.subr.bf16.mxu0 0
        %2424 = vmatpush1.bf16.msra.mxu0 0
        %2425 = vmatprep.subr.bf16.mxu0 0
        %2426 = vmatpush1.bf16.msra.mxu0 0
        %2427 = vmatprep.subr.bf16.mxu0 0
        %2428 = vmatpush1.bf16.msra.mxu0 0
        %2429 = vmatprep.subr.bf16.mxu0 0
        %2430 = vmatpush1.bf16.msra.mxu0 0
        %2431 = vmatprep.subr.bf16.mxu0 0
        %2432 = vmatpush1.bf16.msra.mxu0 0
        %2433 = vmatprep.subr.bf16.mxu0 0
        %2434 = vmatpush1.bf16.msra.mxu0 0
        %2435 = vmatprep.subr.bf16.mxu0 0
        %2436 = vmatpush1.bf16.msra.mxu0 0
        %2437 = vmatprep.subr.bf16.mxu0 0
        %2438 = vmatpush1.bf16.msra.mxu0 0
        %2439 = vmatprep.subr.bf16.mxu0 0
        %2440 = vmatpush1.bf16.msra.mxu0 0
        %2441 = vmatprep.mubr.bf16.mxu0 0
        %2442 = vmatmul.mubr.bf16.gmra.mrb[0].mxu0 %v2404
        %v2443 = vpop.f32.mrb[0].mxu0
        %v2444 = vadd.f32 %v2355, %v2443
        %v2445 = vpop.f32.mrb[0].mxu0
        %v2446 = vadd.f32 %v2357, %v2445
        %v2447 = vpop.f32.mrb[0].mxu0
        %v2448 = vadd.f32 %v2359, %v2447
        %v2449 = vpop.f32.mrb[0].mxu0
        %v2450 = vadd.f32 %v2361, %v2449
        %2451 = vmatprep.mubr.bf16.mxu0 0
        %2452 = vmatmul.mubr.bf16.gmra.mrb[0].mxu0 %v2407
        %v2453 = vpop.f32.mrb[0].mxu0
        %v2454 = vadd.f32 %v2365, %v2453
        %v2455 = vpop.f32.mrb[0].mxu0
        %v2456 = vadd.f32 %v2367, %v2455
        %v2457 = vpop.f32.mrb[0].mxu0
        %v2458 = vadd.f32 %v2369, %v2457
        %v2459 = vpop.f32.mrb[0].mxu0
        %v2460 = vadd.f32 %v2371, %v2459
        %2461 = vdwg.mxu0
        %v2462 = vld [vmem:[#allocation2 + $0x8] sm:$0xff]
        %v2463 = vld [vmem:[#allocation2 + $0x10] sm:$0xff]
        %v2464 = vld [vmem:[#allocation2 + $0x18] sm:$0xff]
        %v2465 = vld [vmem:[#allocation2 + $0x28] sm:$0xff]
        %v2466 = vld [vmem:[#allocation2 + $0x30] sm:$0xff]
        %v2467 = vld [vmem:[#allocation2 + $0x38] sm:$0xff]
        %v2472 = vunpack.c.l.b16 %v1336
        %v2473 = vunpack.c.l.b16 %v1337
        %v2474 = vunpack.c.l.b16 %v1338
        %v2475 = vunpack.c.l.b16 %v1339
        %v2476 = vpack.c.b16 %v2473, %v2472
        %v2477 = vpack.c.b16 %v2475, %v2474
        %2484 = vrot.lane.b32.xlu0 %v2462, 113
        %v2485 = vpop.permute.xlu0 %2484
        %2486 = vrot.lane.b32.xlu0 %v2463, 113
        %v2487 = vpop.permute.xlu0 %2486
        %2488 = vrot.lane.b32.xlu0 %v2464, 113
        %v2489 = vpop.permute.xlu0 %2488
        %2490 = vrot.lane.b32.xlu0 %v2465, 113
        %v2491 = vpop.permute.xlu0 %2490
        %2492 = vrot.lane.b32.xlu0 %v2466, 113
        %v2493 = vpop.permute.xlu0 %2492
        %2494 = vrot.lane.b32.xlu0 %v2467, 113
        %v2495 = vpop.permute.xlu0 %2494
        %v2496 = vsel %vm612, %v2485, %v2487
        %v2497 = vsel %vm612, %v2487, %v2489
        %v2498 = vsel %vm612, %v2491, %v2493
        %v2499 = vsel %vm612, %v2493, %v2495
        %v2505 = vsel %vm1408, %v2476, 0
        %v2508 = vsel %vm1408, %v2477, 0
        %2510 = vmatprep.subr.bf16.mxu0 %v2497
        %2511 = vmatpush1.bf16.msra.mxu0 %v2496
        %2512 = vmatprep.subr.bf16.mxu0 %v2499
        %2513 = vmatpush1.bf16.msra.mxu0 %v2498
        %2514 = vmatprep.subr.bf16.mxu0 0
        %2515 = vmatpush1.bf16.msra.mxu0 0
        %2516 = vmatprep.subr.bf16.mxu0 0
        %2517 = vmatpush1.bf16.msra.mxu0 0
        %2518 = vmatprep.subr.bf16.mxu0 0
        %2519 = vmatpush1.bf16.msra.mxu0 0
        %2520 = vmatprep.subr.bf16.mxu0 0
        %2521 = vmatpush1.bf16.msra.mxu0 0
        %2522 = vmatprep.subr.bf16.mxu0 0
        %2523 = vmatpush1.bf16.msra.mxu0 0
        %2524 = vmatprep.subr.bf16.mxu0 0
        %2525 = vmatpush1.bf16.msra.mxu0 0
        %2526 = vmatprep.subr.bf16.mxu0 0
        %2527 = vmatpush1.bf16.msra.mxu0 0
        %2528 = vmatprep.subr.bf16.mxu0 0
        %2529 = vmatpush1.bf16.msra.mxu0 0
        %2530 = vmatprep.subr.bf16.mxu0 0
        %2531 = vmatpush1.bf16.msra.mxu0 0
        %2532 = vmatprep.subr.bf16.mxu0 0
        %2533 = vmatpush1.bf16.msra.mxu0 0
        %2534 = vmatprep.subr.bf16.mxu0 0
        %2535 = vmatpush1.bf16.msra.mxu0 0
        %2536 = vmatprep.subr.bf16.mxu0 0
        %2537 = vmatpush1.bf16.msra.mxu0 0
        %2538 = vmatprep.subr.bf16.mxu0 0
        %2539 = vmatpush1.bf16.msra.mxu0 0
        %2540 = vmatprep.subr.bf16.mxu0 0
        %2541 = vmatpush1.bf16.msra.mxu0 0
        %2542 = vmatprep.mubr.bf16.mxu0 0
        %2543 = vmatmul.mubr.bf16.gmra.mrb[0].mxu0 %v2505
        %v2544 = vpop.f32.mrb[0].mxu0
        %v2545 = vadd.f32 0.0, %v2544
        %v2546 = vpop.f32.mrb[0].mxu0
        %v2547 = vadd.f32 0.0, %v2546
        %v2548 = vpop.f32.mrb[0].mxu0
        %v2549 = vadd.f32 0.0, %v2548
        %v2550 = vpop.f32.mrb[0].mxu0
        %v2551 = vadd.f32 0.0, %v2550
        %2552 = vmatprep.mubr.bf16.mxu0 0
        %2553 = vmatmul.mubr.bf16.gmra.mrb[0].mxu0 %v2508
        %v2554 = vpop.f32.mrb[0].mxu0
        %v2555 = vadd.f32 0.0, %v2554
        %v2556 = vpop.f32.mrb[0].mxu0
        %v2557 = vadd.f32 0.0, %v2556
        %v2558 = vpop.f32.mrb[0].mxu0
        %v2559 = vadd.f32 0.0, %v2558
        %v2560 = vpop.f32.mrb[0].mxu0
        %v2561 = vadd.f32 0.0, %v2560
        %2562 = vdwg.mxu0
        %v2563 = vadd.f32 %v2444, %v2545
        %v2564 = vadd.f32 %v2446, %v2547
        %v2565 = vadd.f32 %v2448, %v2549
        %v2566 = vadd.f32 %v2450, %v2551
        %v2567 = vadd.f32 %v2454, %v2555
        %v2568 = vadd.f32 %v2456, %v2557
        %v2569 = vadd.f32 %v2458, %v2559
        %v2570 = vadd.f32 %v2460, %v2561
        %v2571 = vmul.f32 %v2563, %v344
        %v2572 = vmul.f32 %v2564, %v345
        %v2573 = vmul.f32 %v2565, %v344
        %v2574 = vmul.f32 %v2566, %v345
        %v2575 = vmul.f32 %v2567, %v344
        %v2576 = vmul.f32 %v2568, %v345
        %v2577 = vmul.f32 %v2569, %v344
        %v2578 = vmul.f32 %v2570, %v345
        %v2583 = vunpack.c.l.b16 %v1328
        %v2584 = vunpack.c.l.b16 %v1329
        %v2585 = vunpack.c.l.b16 %v1330
        %v2586 = vunpack.c.l.b16 %v1331
        %v2587 = vpack.c.b16 %v2584, %v2583
        %v2588 = vpack.c.b16 %v2586, %v2585
        %v2590 = vsel %vm1408, %v2587, 0
        %v2593 = vsel %vm1408, %v2588, 0
        %2595 = vmatprep.subr.bf16.mxu0 %v2274
        %2596 = vmatpush1.bf16.msra.mxu0 %v2273
        %2597 = vmatprep.subr.bf16.mxu0 %v2277
        %2598 = vmatpush1.bf16.msra.mxu0 %v2276
        %2599 = vmatprep.subr.bf16.mxu0 0
        %2600 = vmatpush1.bf16.msra.mxu0 0
        %2601 = vmatprep.subr.bf16.mxu0 0
        %2602 = vmatpush1.bf16.msra.mxu0 0
        %2603 = vmatprep.subr.bf16.mxu0 0
        %2604 = vmatpush1.bf16.msra.mxu0 0
        %2605 = vmatprep.subr.bf16.mxu0 0
        %2606 = vmatpush1.bf16.msra.mxu0 0
        %2607 = vmatprep.subr.bf16.mxu0 0
        %2608 = vmatpush1.bf16.msra.mxu0 0
        %2609 = vmatprep.subr.bf16.mxu0 0
        %2610 = vmatpush1.bf16.msra.mxu0 0
        %2611 = vmatprep.subr.bf16.mxu0 0
        %2612 = vmatpush1.bf16.msra.mxu0 0
        %2613 = vmatprep.subr.bf16.mxu0 0
        %2614 = vmatpush1.bf16.msra.mxu0 0
        %2615 = vmatprep.subr.bf16.mxu0 0
        %2616 = vmatpush1.bf16.msra.mxu0 0
        %2617 = vmatprep.subr.bf16.mxu0 0
        %2618 = vmatpush1.bf16.msra.mxu0 0
        %2619 = vmatprep.subr.bf16.mxu0 0
        %2620 = vmatpush1.bf16.msra.mxu0 0
        %2621 = vmatprep.subr.bf16.mxu0 0
        %2622 = vmatpush1.bf16.msra.mxu0 0
        %2623 = vmatprep.subr.bf16.mxu0 0
        %2624 = vmatpush1.bf16.msra.mxu0 0
        %2625 = vmatprep.subr.bf16.mxu0 0
        %2626 = vmatpush1.bf16.msra.mxu0 0
        %2627 = vmatprep.mubr.bf16.mxu0 0
        %2628 = vmatmul.mubr.bf16.gmra.mrb[0].mxu0 %v2590
        %v2629 = vpop.f32.mrb[0].mxu0
        %v2630 = vadd.f32 0.0, %v2629
        %v2631 = vpop.f32.mrb[0].mxu0
        %v2632 = vadd.f32 0.0, %v2631
        %v2633 = vpop.f32.mrb[0].mxu0
        %v2634 = vadd.f32 0.0, %v2633
        %v2635 = vpop.f32.mrb[0].mxu0
        %v2636 = vadd.f32 0.0, %v2635
        %2637 = vmatprep.mubr.bf16.mxu0 0
        %2638 = vmatmul.mubr.bf16.gmra.mrb[0].mxu0 %v2593
        %v2639 = vpop.f32.mrb[0].mxu0
        %v2640 = vadd.f32 0.0, %v2639
        %v2641 = vpop.f32.mrb[0].mxu0
        %v2642 = vadd.f32 0.0, %v2641
        %v2643 = vpop.f32.mrb[0].mxu0
        %v2644 = vadd.f32 0.0, %v2643
        %v2645 = vpop.f32.mrb[0].mxu0
        %v2646 = vadd.f32 0.0, %v2645
        %2647 = vdwg.mxu0
        %v2652 = vunpack.c.l.b16 %v1316
        %v2653 = vunpack.c.l.b16 %v1317
        %v2654 = vunpack.c.l.b16 %v1318
        %v2655 = vunpack.c.l.b16 %v1319
        %v2656 = vpack.c.b16 %v2653, %v2652
        %v2657 = vpack.c.b16 %v2655, %v2654
        %2658 = vrot.lane.b32.xlu0 %v2272, 16
        %v2659 = vpop.permute.xlu0 %2658
        %2660 = vrot.lane.b32.xlu0 %v2273, 16
        %v2661 = vpop.permute.xlu0 %2660
        %2662 = vrot.lane.b32.xlu0 %v2274, 16
        %v2663 = vpop.permute.xlu0 %2662
        %2664 = vrot.lane.b32.xlu0 %v2275, 16
        %v2665 = vpop.permute.xlu0 %2664
        %2666 = vrot.lane.b32.xlu0 %v2276, 16
        %v2667 = vpop.permute.xlu0 %2666
        %2668 = vrot.lane.b32.xlu0 %v2277, 16
        %v2669 = vpop.permute.xlu0 %2668
        %v2670 = vsel %vm787, %v2659, %v2661
        %v2671 = vsel %vm787, %v2661, %v2663
        %v2672 = vsel %vm787, %v2665, %v2667
        %v2673 = vsel %vm787, %v2667, %v2669
        %v2679 = vsel %vm1408, %v2656, 0
        %v2682 = vsel %vm1408, %v2657, 0
        %2684 = vmatprep.subr.bf16.mxu0 %v2671
        %2685 = vmatpush1.bf16.msra.mxu0 %v2670
        %2686 = vmatprep.subr.bf16.mxu0 %v2673
        %2687 = vmatpush1.bf16.msra.mxu0 %v2672
        %2688 = vmatprep.subr.bf16.mxu0 0
        %2689 = vmatpush1.bf16.msra.mxu0 0
        %2690 = vmatprep.subr.bf16.mxu0 0
        %2691 = vmatpush1.bf16.msra.mxu0 0
        %2692 = vmatprep.subr.bf16.mxu0 0
        %2693 = vmatpush1.bf16.msra.mxu0 0
        %2694 = vmatprep.subr.bf16.mxu0 0
        %2695 = vmatpush1.bf16.msra.mxu0 0
        %2696 = vmatprep.subr.bf16.mxu0 0
        %2697 = vmatpush1.bf16.msra.mxu0 0
        %2698 = vmatprep.subr.bf16.mxu0 0
        %2699 = vmatpush1.bf16.msra.mxu0 0
        %2700 = vmatprep.subr.bf16.mxu0 0
        %2701 = vmatpush1.bf16.msra.mxu0 0
        %2702 = vmatprep.subr.bf16.mxu0 0
        %2703 = vmatpush1.bf16.msra.mxu0 0
        %2704 = vmatprep.subr.bf16.mxu0 0
        %2705 = vmatpush1.bf16.msra.mxu0 0
        %2706 = vmatprep.subr.bf16.mxu0 0
        %2707 = vmatpush1.bf16.msra.mxu0 0
        %2708 = vmatprep.subr.bf16.mxu0 0
        %2709 = vmatpush1.bf16.msra.mxu0 0
        %2710 = vmatprep.subr.bf16.mxu0 0
        %2711 = vmatpush1.bf16.msra.mxu0 0
        %2712 = vmatprep.subr.bf16.mxu0 0
        %2713 = vmatpush1.bf16.msra.mxu0 0
        %2714 = vmatprep.subr.bf16.mxu0 0
        %2715 = vmatpush1.bf16.msra.mxu0 0
        %2716 = vmatprep.mubr.bf16.mxu0 0
        %2717 = vmatmul.mubr.bf16.gmra.mrb[0].mxu0 %v2679
        %v2718 = vpop.f32.mrb[0].mxu0
        %v2719 = vadd.f32 %v2630, %v2718
        %v2720 = vpop.f32.mrb[0].mxu0
        %v2721 = vadd.f32 %v2632, %v2720
        %v2722 = vpop.f32.mrb[0].mxu0
        %v2723 = vadd.f32 %v2634, %v2722
        %v2724 = vpop.f32.mrb[0].mxu0
        %v2725 = vadd.f32 %v2636, %v2724
        %2726 = vmatprep.mubr.bf16.mxu0 0
        %2727 = vmatmul.mubr.bf16.gmra.mrb[0].mxu0 %v2682
        %v2728 = vpop.f32.mrb[0].mxu0
        %v2729 = vadd.f32 %v2640, %v2728
        %v2730 = vpop.f32.mrb[0].mxu0
        %v2731 = vadd.f32 %v2642, %v2730
        %v2732 = vpop.f32.mrb[0].mxu0
        %v2733 = vadd.f32 %v2644, %v2732
        %v2734 = vpop.f32.mrb[0].mxu0
        %v2735 = vadd.f32 %v2646, %v2734
        %2736 = vdwg.mxu0
        %v2741 = vunpack.c.l.b16 %v1340
        %v2742 = vunpack.c.l.b16 %v1341
        %v2743 = vunpack.c.l.b16 %v1342
        %v2744 = vunpack.c.l.b16 %v1343
        %v2745 = vpack.c.b16 %v2742, %v2741
        %v2746 = vpack.c.b16 %v2744, %v2743
        %2747 = vrot.lane.b32.xlu0 %v2462, 112
        %v2748 = vpop.permute.xlu0 %2747
        %2749 = vrot.lane.b32.xlu0 %v2463, 112
        %v2750 = vpop.permute.xlu0 %2749
        %2751 = vrot.lane.b32.xlu0 %v2464, 112
        %v2752 = vpop.permute.xlu0 %2751
        %2753 = vrot.lane.b32.xlu0 %v2465, 112
        %v2754 = vpop.permute.xlu0 %2753
        %2755 = vrot.lane.b32.xlu0 %v2466, 112
        %v2756 = vpop.permute.xlu0 %2755
        %2757 = vrot.lane.b32.xlu0 %v2467, 112
        %v2758 = vpop.permute.xlu0 %2757
        %v2759 = vsel %vm871, %v2748, %v2750
        %v2760 = vsel %vm871, %v2750, %v2752
        %v2761 = vsel %vm871, %v2754, %v2756
        %v2762 = vsel %vm871, %v2756, %v2758
        %v2768 = vsel %vm1408, %v2745, 0
        %v2771 = vsel %vm1408, %v2746, 0
        %2773 = vmatprep.subr.bf16.mxu0 %v2760
        %2774 = vmatpush1.bf16.msra.mxu0 %v2759
        %2775 = vmatprep.subr.bf16.mxu0 %v2762
        %2776 = vmatpush1.bf16.msra.mxu0 %v2761
        %2777 = vmatprep.subr.bf16.mxu0 0
        %2778 = vmatpush1.bf16.msra.mxu0 0
        %2779 = vmatprep.subr.bf16.mxu0 0
        %2780 = vmatpush1.bf16.msra.mxu0 0
        %2781 = vmatprep.subr.bf16.mxu0 0
        %2782 = vmatpush1.bf16.msra.mxu0 0
        %2783 = vmatprep.subr.bf16.mxu0 0
        %2784 = vmatpush1.bf16.msra.mxu0 0
        %2785 = vmatprep.subr.bf16.mxu0 0
        %2786 = vmatpush1.bf16.msra.mxu0 0
        %2787 = vmatprep.subr.bf16.mxu0 0
        %2788 = vmatpush1.bf16.msra.mxu0 0
        %2789 = vmatprep.subr.bf16.mxu0 0
        %2790 = vmatpush1.bf16.msra.mxu0 0
        %2791 = vmatprep.subr.bf16.mxu0 0
        %2792 = vmatpush1.bf16.msra.mxu0 0
        %2793 = vmatprep.subr.bf16.mxu0 0
        %2794 = vmatpush1.bf16.msra.mxu0 0
        %2795 = vmatprep.subr.bf16.mxu0 0
        %2796 = vmatpush1.bf16.msra.mxu0 0
        %2797 = vmatprep.subr.bf16.mxu0 0
        %2798 = vmatpush1.bf16.msra.mxu0 0
        %2799 = vmatprep.subr.bf16.mxu0 0
        %2800 = vmatpush1.bf16.msra.mxu0 0
        %2801 = vmatprep.subr.bf16.mxu0 0
        %2802 = vmatpush1.bf16.msra.mxu0 0
        %2803 = vmatprep.subr.bf16.mxu0 0
        %2804 = vmatpush1.bf16.msra.mxu0 0
        %2805 = vmatprep.mubr.bf16.mxu0 0
        %2806 = vmatmul.mubr.bf16.gmra.mrb[0].mxu0 %v2768
        %v2807 = vpop.f32.mrb[0].mxu0
        %v2808 = vadd.f32 0.0, %v2807
        %v2809 = vpop.f32.mrb[0].mxu0
        %v2810 = vadd.f32 0.0, %v2809
        %v2811 = vpop.f32.mrb[0].mxu0
        %v2812 = vadd.f32 0.0, %v2811
        %v2813 = vpop.f32.mrb[0].mxu0
        %v2814 = vadd.f32 0.0, %v2813
        %2815 = vmatprep.mubr.bf16.mxu0 0
        %2816 = vmatmul.mubr.bf16.gmra.mrb[0].mxu0 %v2771
        %v2817 = vpop.f32.mrb[0].mxu0
        %v2818 = vadd.f32 0.0, %v2817
        %v2819 = vpop.f32.mrb[0].mxu0
        %v2820 = vadd.f32 0.0, %v2819
        %v2821 = vpop.f32.mrb[0].mxu0
        %v2822 = vadd.f32 0.0, %v2821
        %v2823 = vpop.f32.mrb[0].mxu0
        %v2824 = vadd.f32 0.0, %v2823
        %2825 = vdwg.mxu0
        %v2826 = vadd.f32 %v2719, %v2808
        %v2827 = vadd.f32 %v2721, %v2810
        %v2828 = vadd.f32 %v2723, %v2812
        %v2829 = vadd.f32 %v2725, %v2814
        %v2830 = vadd.f32 %v2729, %v2818
        %v2831 = vadd.f32 %v2731, %v2820
        %v2832 = vadd.f32 %v2733, %v2822
        %v2833 = vadd.f32 %v2735, %v2824
        %v2834 = vadd.f32 %v2571, %v2826
        %v2835 = vadd.f32 %v2572, %v2827
        %v2836 = vadd.f32 %v2573, %v2828
        %v2837 = vadd.f32 %v2574, %v2829
        %v2838 = vadd.f32 %v2575, %v2830
        %v2839 = vadd.f32 %v2576, %v2831
        %v2840 = vadd.f32 %v2577, %v2832
        %v2841 = vadd.f32 %v2578, %v2833
        %v2846 = vunpack.c.l.b16 %v1332
        %v2847 = vunpack.c.l.b16 %v1333
        %v2848 = vunpack.c.l.b16 %v1334
        %v2849 = vunpack.c.l.b16 %v1335
        %v2850 = vpack.c.b16 %v2847, %v2846
        %v2851 = vpack.c.b16 %v2849, %v2848
        %2852 = vrot.lane.b32.xlu0 %v2462, 127
        %v2853 = vpop.permute.xlu0 %2852
        %2854 = vrot.lane.b32.xlu0 %v2463, 127
        %v2855 = vpop.permute.xlu0 %2854
        %2856 = vrot.lane.b32.xlu0 %v2464, 127
        %v2857 = vpop.permute.xlu0 %2856
        %2858 = vrot.lane.b32.xlu0 %v2465, 127
        %v2859 = vpop.permute.xlu0 %2858
        %2860 = vrot.lane.b32.xlu0 %v2466, 127
        %v2861 = vpop.permute.xlu0 %2860
        %2862 = vrot.lane.b32.xlu0 %v2467, 127
        %v2863 = vpop.permute.xlu0 %2862
        %v2864 = vsel %vm971, %v2853, %v2855
        %v2865 = vsel %vm971, %v2855, %v2857
        %v2866 = vsel %vm971, %v2859, %v2861
        %v2867 = vsel %vm971, %v2861, %v2863
        %v2873 = vsel %vm1408, %v2850, 0
        %v2876 = vsel %vm1408, %v2851, 0
        %2878 = vmatprep.subr.bf16.mxu0 %v2865
        %2879 = vmatpush1.bf16.msra.mxu0 %v2864
        %2880 = vmatprep.subr.bf16.mxu0 %v2867
        %2881 = vmatpush1.bf16.msra.mxu0 %v2866
        %2882 = vmatprep.subr.bf16.mxu0 0
        %2883 = vmatpush1.bf16.msra.mxu0 0
        %2884 = vmatprep.subr.bf16.mxu0 0
        %2885 = vmatpush1.bf16.msra.mxu0 0
        %2886 = vmatprep.subr.bf16.mxu0 0
        %2887 = vmatpush1.bf16.msra.mxu0 0
        %2888 = vmatprep.subr.bf16.mxu0 0
        %2889 = vmatpush1.bf16.msra.mxu0 0
        %2890 = vmatprep.subr.bf16.mxu0 0
        %2891 = vmatpush1.bf16.msra.mxu0 0
        %2892 = vmatprep.subr.bf16.mxu0 0
        %2893 = vmatpush1.bf16.msra.mxu0 0
        %2894 = vmatprep.subr.bf16.mxu0 0
        %2895 = vmatpush1.bf16.msra.mxu0 0
        %2896 = vmatprep.subr.bf16.mxu0 0
        %2897 = vmatpush1.bf16.msra.mxu0 0
        %2898 = vmatprep.subr.bf16.mxu0 0
        %2899 = vmatpush1.bf16.msra.mxu0 0
        %2900 = vmatprep.subr.bf16.mxu0 0
        %2901 = vmatpush1.bf16.msra.mxu0 0
        %2902 = vmatprep.subr.bf16.mxu0 0
        %2903 = vmatpush1.bf16.msra.mxu0 0
        %2904 = vmatprep.subr.bf16.mxu0 0
        %2905 = vmatpush1.bf16.msra.mxu0 0
        %2906 = vmatprep.subr.bf16.mxu0 0
        %2907 = vmatpush1.bf16.msra.mxu0 0
        %2908 = vmatprep.subr.bf16.mxu0 0
        %2909 = vmatpush1.bf16.msra.mxu0 0
        %2910 = vmatprep.mubr.bf16.mxu0 0
        %2911 = vmatmul.mubr.bf16.gmra.mrb[0].mxu0 %v2873
        %v2912 = vpop.f32.mrb[0].mxu0
        %v2913 = vadd.f32 0.0, %v2912
        %v2914 = vpop.f32.mrb[0].mxu0
        %v2915 = vadd.f32 0.0, %v2914
        %v2916 = vpop.f32.mrb[0].mxu0
        %v2917 = vadd.f32 0.0, %v2916
        %v2918 = vpop.f32.mrb[0].mxu0
        %v2919 = vadd.f32 0.0, %v2918
        %2920 = vmatprep.mubr.bf16.mxu0 0
        %2921 = vmatmul.mubr.bf16.gmra.mrb[0].mxu0 %v2876
        %v2922 = vpop.f32.mrb[0].mxu0
        %v2923 = vadd.f32 0.0, %v2922
        %v2924 = vpop.f32.mrb[0].mxu0
        %v2925 = vadd.f32 0.0, %v2924
        %v2926 = vpop.f32.mrb[0].mxu0
        %v2927 = vadd.f32 0.0, %v2926
        %v2928 = vpop.f32.mrb[0].mxu0
        %v2929 = vadd.f32 0.0, %v2928
        %2930 = vdwg.mxu0
        %v2935 = vunpack.c.l.b16 %v1320
        %v2936 = vunpack.c.l.b16 %v1321
        %v2937 = vunpack.c.l.b16 %v1322
        %v2938 = vunpack.c.l.b16 %v1323
        %v2939 = vpack.c.b16 %v2936, %v2935
        %v2940 = vpack.c.b16 %v2938, %v2937
        %2941 = vrot.lane.b32.xlu0 %v2272, 15
        %v2942 = vpop.permute.xlu0 %2941
        %2943 = vrot.lane.b32.xlu0 %v2273, 15
        %v2944 = vpop.permute.xlu0 %2943
        %2945 = vrot.lane.b32.xlu0 %v2274, 15
        %v2946 = vpop.permute.xlu0 %2945
        %2947 = vrot.lane.b32.xlu0 %v2275, 15
        %v2948 = vpop.permute.xlu0 %2947
        %2949 = vrot.lane.b32.xlu0 %v2276, 15
        %v2950 = vpop.permute.xlu0 %2949
        %2951 = vrot.lane.b32.xlu0 %v2277, 15
        %v2952 = vpop.permute.xlu0 %2951
        %v2953 = vsel %vm1055, %v2942, %v2944
        %v2954 = vsel %vm1055, %v2944, %v2946
        %v2955 = vsel %vm1055, %v2948, %v2950
        %v2956 = vsel %vm1055, %v2950, %v2952
        %v2962 = vsel %vm1408, %v2939, 0
        %v2965 = vsel %vm1408, %v2940, 0
        %2967 = vmatprep.subr.bf16.mxu0 %v2954
        %2968 = vmatpush1.bf16.msra.mxu0 %v2953
        %2969 = vmatprep.subr.bf16.mxu0 %v2956
        %2970 = vmatpush1.bf16.msra.mxu0 %v2955
        %2971 = vmatprep.subr.bf16.mxu0 0
        %2972 = vmatpush1.bf16.msra.mxu0 0
        %2973 = vmatprep.subr.bf16.mxu0 0
        %2974 = vmatpush1.bf16.msra.mxu0 0
        %2975 = vmatprep.subr.bf16.mxu0 0
        %2976 = vmatpush1.bf16.msra.mxu0 0
        %2977 = vmatprep.subr.bf16.mxu0 0
        %2978 = vmatpush1.bf16.msra.mxu0 0
        %2979 = vmatprep.subr.bf16.mxu0 0
        %2980 = vmatpush1.bf16.msra.mxu0 0
        %2981 = vmatprep.subr.bf16.mxu0 0
        %2982 = vmatpush1.bf16.msra.mxu0 0
        %2983 = vmatprep.subr.bf16.mxu0 0
        %2984 = vmatpush1.bf16.msra.mxu0 0
        %2985 = vmatprep.subr.bf16.mxu0 0
        %2986 = vmatpush1.bf16.msra.mxu0 0
        %2987 = vmatprep.subr.bf16.mxu0 0
        %2988 = vmatpush1.bf16.msra.mxu0 0
        %2989 = vmatprep.subr.bf16.mxu0 0
        %2990 = vmatpush1.bf16.msra.mxu0 0
        %2991 = vmatprep.subr.bf16.mxu0 0
        %2992 = vmatpush1.bf16.msra.mxu0 0
        %2993 = vmatprep.subr.bf16.mxu0 0
        %2994 = vmatpush1.bf16.msra.mxu0 0
        %2995 = vmatprep.subr.bf16.mxu0 0
        %2996 = vmatpush1.bf16.msra.mxu0 0
        %2997 = vmatprep.subr.bf16.mxu0 0
        %2998 = vmatpush1.bf16.msra.mxu0 0
        %2999 = vmatprep.mubr.bf16.mxu0 0
        %3000 = vmatmul.mubr.bf16.gmra.mrb[0].mxu0 %v2962
        %v3001 = vpop.f32.mrb[0].mxu0
        %v3002 = vadd.f32 %v2913, %v3001
        %v3003 = vpop.f32.mrb[0].mxu0
        %v3004 = vadd.f32 %v2915, %v3003
        %v3005 = vpop.f32.mrb[0].mxu0
        %v3006 = vadd.f32 %v2917, %v3005
        %v3007 = vpop.f32.mrb[0].mxu0
        %v3008 = vadd.f32 %v2919, %v3007
        %3009 = vmatprep.mubr.bf16.mxu0 0
        %3010 = vmatmul.mubr.bf16.gmra.mrb[0].mxu0 %v2965
        %v3011 = vpop.f32.mrb[0].mxu0
        %v3012 = vadd.f32 %v2923, %v3011
        %v3013 = vpop.f32.mrb[0].mxu0
        %v3014 = vadd.f32 %v2925, %v3013
        %v3015 = vpop.f32.mrb[0].mxu0
        %v3016 = vadd.f32 %v2927, %v3015
        %v3017 = vpop.f32.mrb[0].mxu0
        %v3018 = vadd.f32 %v2929, %v3017
        %3019 = vdwg.mxu0
        %v3024 = vunpack.c.l.b16 %v1344
        %v3025 = vunpack.c.l.b16 %v1345
        %v3026 = vunpack.c.l.b16 %v1346
        %v3027 = vunpack.c.l.b16 %v1347
        %v3028 = vpack.c.b16 %v3025, %v3024
        %v3029 = vpack.c.b16 %v3027, %v3026
        %3030 = vrot.lane.b32.xlu0 %v2462, 111
        %v3031 = vpop.permute.xlu0 %3030
        %3032 = vrot.lane.b32.xlu0 %v2463, 111
        %v3033 = vpop.permute.xlu0 %3032
        %3034 = vrot.lane.b32.xlu0 %v2464, 111
        %v3035 = vpop.permute.xlu0 %3034
        %3036 = vrot.lane.b32.xlu0 %v2465, 111
        %v3037 = vpop.permute.xlu0 %3036
        %3038 = vrot.lane.b32.xlu0 %v2466, 111
        %v3039 = vpop.permute.xlu0 %3038
        %3040 = vrot.lane.b32.xlu0 %v2467, 111
        %v3041 = vpop.permute.xlu0 %3040
        %v3042 = vsel %vm1139, %v3031, %v3033
        %v3043 = vsel %vm1139, %v3033, %v3035
        %v3044 = vsel %vm1139, %v3037, %v3039
        %v3045 = vsel %vm1139, %v3039, %v3041
        %v3051 = vsel %vm1408, %v3028, 0
        %v3054 = vsel %vm1408, %v3029, 0
        %3056 = vmatprep.subr.bf16.mxu0 %v3043
        %3057 = vmatpush1.bf16.msra.mxu0 %v3042
        %3058 = vmatprep.subr.bf16.mxu0 %v3045
        %3059 = vmatpush1.bf16.msra.mxu0 %v3044
        %3060 = vmatprep.subr.bf16.mxu0 0
        %3061 = vmatpush1.bf16.msra.mxu0 0
        %3062 = vmatprep.subr.bf16.mxu0 0
        %3063 = vmatpush1.bf16.msra.mxu0 0
        %3064 = vmatprep.subr.bf16.mxu0 0
        %3065 = vmatpush1.bf16.msra.mxu0 0
        %3066 = vmatprep.subr.bf16.mxu0 0
        %3067 = vmatpush1.bf16.msra.mxu0 0
        %3068 = vmatprep.subr.bf16.mxu0 0
        %3069 = vmatpush1.bf16.msra.mxu0 0
        %3070 = vmatprep.subr.bf16.mxu0 0
        %3071 = vmatpush1.bf16.msra.mxu0 0
        %3072 = vmatprep.subr.bf16.mxu0 0
        %3073 = vmatpush1.bf16.msra.mxu0 0
        %3074 = vmatprep.subr.bf16.mxu0 0
        %3075 = vmatpush1.bf16.msra.mxu0 0
        %3076 = vmatprep.subr.bf16.mxu0 0
        %3077 = vmatpush1.bf16.msra.mxu0 0
        %3078 = vmatprep.subr.bf16.mxu0 0
        %3079 = vmatpush1.bf16.msra.mxu0 0
        %3080 = vmatprep.subr.bf16.mxu0 0
        %3081 = vmatpush1.bf16.msra.mxu0 0
        %3082 = vmatprep.subr.bf16.mxu0 0
        %3083 = vmatpush1.bf16.msra.mxu0 0
        %3084 = vmatprep.subr.bf16.mxu0 0
        %3085 = vmatpush1.bf16.msra.mxu0 0
        %3086 = vmatprep.subr.bf16.mxu0 0
        %3087 = vmatpush1.bf16.msra.mxu0 0
        %3088 = vmatprep.mubr.bf16.mxu0 0
        %3089 = vmatmul.mubr.bf16.gmra.mrb[0].mxu0 %v3051
        %v3090 = vpop.f32.mrb[0].mxu0
        %v3091 = vadd.f32 0.0, %v3090
        %v3092 = vpop.f32.mrb[0].mxu0
        %v3093 = vadd.f32 0.0, %v3092
        %v3094 = vpop.f32.mrb[0].mxu0
        %v3095 = vadd.f32 0.0, %v3094
        %v3096 = vpop.f32.mrb[0].mxu0
        %v3097 = vadd.f32 0.0, %v3096
        %3098 = vmatprep.mubr.bf16.mxu0 0
        %3099 = vmatmul.mubr.bf16.gmra.mrb[0].mxu0 %v3054
        %v3100 = vpop.f32.mrb[0].mxu0
        %v3101 = vadd.f32 0.0, %v3100
        %v3102 = vpop.f32.mrb[0].mxu0
        %v3103 = vadd.f32 0.0, %v3102
        %v3104 = vpop.f32.mrb[0].mxu0
        %v3105 = vadd.f32 0.0, %v3104
        %v3106 = vpop.f32.mrb[0].mxu0
        %v3107 = vadd.f32 0.0, %v3106
        %3108 = vdwg.mxu0
        %v3109 = vadd.f32 %v3002, %v3091
        %v3110 = vadd.f32 %v3004, %v3093
        %v3111 = vadd.f32 %v3006, %v3095
        %v3112 = vadd.f32 %v3008, %v3097
        %v3113 = vadd.f32 %v3012, %v3101
        %v3114 = vadd.f32 %v3014, %v3103
        %v3115 = vadd.f32 %v3016, %v3105
        %v3116 = vadd.f32 %v3018, %v3107
        %v3117 = vmul.f32 %v3109, %v350
        %v3118 = vmul.f32 %v3110, %v351
        %v3119 = vmul.f32 %v3111, %v350
        %v3120 = vmul.f32 %v3112, %v351
        %v3121 = vmul.f32 %v3113, %v350
        %v3122 = vmul.f32 %v3114, %v351
        %v3123 = vmul.f32 %v3115, %v350
        %v3124 = vmul.f32 %v3116, %v351
        %v3125 = vadd.f32 %v2834, %v3117
        %v3126 = vadd.f32 %v2835, %v3118
        %v3127 = vadd.f32 %v2836, %v3119
        %v3128 = vadd.f32 %v2837, %v3120
        %v3129 = vadd.f32 %v2838, %v3121
        %v3130 = vadd.f32 %v2839, %v3122
        %v3131 = vadd.f32 %v2840, %v3123
        %v3132 = vadd.f32 %v2841, %v3124
        %3134 = vset.pattern.permute.xlu0 0
        %3135 = vperm.xlu0 %3134, %v1354
        %v3136 = vpop.permute.xlu0 %3135
        %3139 = vset.pattern.permute.xlu0 0
        %3140 = vperm.xlu0 %3139, %v1355
        %v3141 = vpop.permute.xlu0 %3140
        %3144 = vset.pattern.permute.xlu0 0
        %3145 = vperm.xlu0 %3144, %v1356
        %v3146 = vpop.permute.xlu0 %3145
        %3149 = vset.pattern.permute.xlu0 0
        %3150 = vperm.xlu0 %3149, %v1357
        %v3151 = vpop.permute.xlu0 %3150
        %v3153 = vadd.f32 %v3125, %v3136
        %v3154 = vadd.f32 %v3126, %v3136
        %v3155 = vadd.f32 %v3127, %v3141
        %v3156 = vadd.f32 %v3128, %v3141
        %v3157 = vadd.f32 %v3129, %v3146
        %v3158 = vadd.f32 %v3130, %v3146
        %v3159 = vadd.f32 %v3131, %v3151
        %v3160 = vadd.f32 %v3132, %v3151
        %v3161 = vmul.f32 %v3153, 0.1
        %v3162 = vmul.f32 %v3154, 0.1
        %v3163 = vmul.f32 %v3155, 0.1
        %v3164 = vmul.f32 %v3156, 0.1
        %v3165 = vmul.f32 %v3157, 0.1
        %v3166 = vmul.f32 %v3158, 0.1
        %v3167 = vmul.f32 %v3159, 0.1
        %v3168 = vmul.f32 %v3160, 0.1
        %v3169 = vadd.f32 %v1265, %v3161
        %v3170 = vadd.f32 %v1266, %v3162
        %v3171 = vadd.f32 %v1267, %v3163
        %v3172 = vadd.f32 %v1268, %v3164
        %v3173 = vadd.f32 %v1269, %v3165
        %v3174 = vadd.f32 %v1270, %v3166
        %v3175 = vadd.f32 %v1271, %v3167
        %v3176 = vadd.f32 %v1272, %v3168
      $region57: #{edsr_forward.3} parent=51 // loop_footer
        %s1264 = sadd.s32 1, %s1260
      $region58: #{edsr_forward.3} parent=51 // loop_footer_branch
        %1259 = sbr.rel target = $region54
      $region59: #{edsr_forward.3} parent=51 // loop_exit
        _
      %v3177 = vld [vmem:[%s6] sm:$0xf]
      %v3178 = vld [vmem:[%s6 + $0x4] sm:$0xf]
      %v3179 = vld [vmem:[%s6 + $0x8] sm:$0xf]
      %v3180 = vld [vmem:[%s6 + $0xc] sm:$0xf]
      %v3181 = vld [vmem:[%s6 + $0x10] sm:$0xf]
      %v3182 = vld [vmem:[%s6 + $0x14] sm:$0xf]
      %v3183 = vld [vmem:[%s6 + $0x18] sm:$0xf]
      %v3184 = vld [vmem:[%s6 + $0x1c] sm:$0xf]
      %v3185 = vld [vmem:[%s6 + $0x20] sm:$0xf]
      %v3186 = vld [vmem:[%s6 + $0x24] sm:$0xf]
      %v3187 = vld [vmem:[%s6 + $0x28] sm:$0xf]
      %v3188 = vld [vmem:[%s6 + $0x2c] sm:$0xf]
      %v3189 = vld [vmem:[%s6 + $0x30] sm:$0xf]
      %v3190 = vld [vmem:[%s6 + $0x34] sm:$0xf]
      %v3191 = vld [vmem:[%s6 + $0x38] sm:$0xf]
      %v3192 = vld [vmem:[%s6 + $0x3c] sm:$0xf]
      %v3193 = vld [vmem:[%s6 + $0x40] sm:$0xf]
      %v3194 = vld [vmem:[%s6 + $0x44] sm:$0xf]
      %v3195 = vld [vmem:[%s6 + $0x48] sm:$0xf]
      %v3196 = vld [vmem:[%s6 + $0x4c] sm:$0xf]
      %v3197 = vld [vmem:[%s6 + $0x50] sm:$0xf]
      %v3198 = vld [vmem:[%s6 + $0x54] sm:$0xf]
      %v3199 = vld [vmem:[%s6 + $0x58] sm:$0xf]
      %v3200 = vld [vmem:[%s6 + $0x5c] sm:$0xf]
      %v3201 = vld [vmem:[%s6 + $0x60] sm:$0xf]
      %v3202 = vld [vmem:[%s6 + $0x64] sm:$0xf]
      %v3203 = vld [vmem:[%s6 + $0x68] sm:$0xf]
      %v3204 = vld [vmem:[%s6 + $0x6c] sm:$0xf]
      %v3205 = vld [vmem:[%s6 + $0x70] sm:$0xf]
      %v3206 = vld [vmem:[%s6 + $0x74] sm:$0xf]
      %v3207 = vld [vmem:[%s6 + $0x78] sm:$0xf]
      %v3208 = vld [vmem:[%s6 + $0x7c] sm:$0xf]
      %v3209 = vld [vmem:[%s6 + $0x80] sm:$0xf]
      %v3210 = vld [vmem:[%s6 + $0x84] sm:$0xf]
      %v3211 = vld [vmem:[%s6 + $0x88] sm:$0xf]
      %v3212 = vld [vmem:[%s6 + $0x8c] sm:$0xf]
      %v3213 = vld [vmem:[%s7] sm:$0xff]
      %v3214 = vld [vmem:[%s7 + $0x8] sm:$0xff]
      %v3215 = vld [vmem:[%s7 + $0x10] sm:$0xff]
      %v3216 = vld [vmem:[%s7 + $0x18] sm:$0xff]
      %v3217 = vpack.c.bf16 %v1267, %v1265
      %v3218 = vpack.c.bf16 %v1268, %v1266
      %v3219 = vpack.c.bf16 %v1271, %v1269
      %v3220 = vpack.c.bf16 %v1272, %v1270
      %3221 = vst [vmem:[#allocation2 + $0x8] sm:$0xff] %v3217
      %3222 = vst [vmem:[#allocation2 + $0x10] sm:$0xff] %v3218
      %3223 = vst [vmem:[#allocation2 + $0x28] sm:$0xff] %v3219
      %3224 = vst [vmem:[#allocation2 + $0x30] sm:$0xff] %v3220
      %v3225 = vld [vmem:[#allocation2] sm:$0xff]
      %v3226 = vld [vmem:[#allocation2 + $0x8] sm:$0xff]
      %v3227 = vld [vmem:[#allocation2 + $0x10] sm:$0xff]
      %v3228 = vld [vmem:[#allocation2 + $0x20] sm:$0xff]
      %v3229 = vld [vmem:[#allocation2 + $0x28] sm:$0xff]
      %v3230 = vld [vmem:[#allocation2 + $0x30] sm:$0xff]
      %v3235 = vunpack.c.l.b16 %v3189
      %v3236 = vunpack.c.l.b16 %v3190
      %v3237 = vunpack.c.l.b16 %v3191
      %v3238 = vunpack.c.l.b16 %v3192
      %v3239 = vpack.c.b16 %v3236, %v3235
      %v3240 = vpack.c.b16 %v3238, %v3237
      %3247 = vrot.lane.b32.xlu0 %v3225, 1
      %v3248 = vpop.permute.xlu0 %3247
      %3249 = vrot.lane.b32.xlu0 %v3226, 1
      %v3250 = vpop.permute.xlu0 %3249
      %3251 = vrot.lane.b32.xlu0 %v3227, 1
      %v3252 = vpop.permute.xlu0 %3251
      %3253 = vrot.lane.b32.xlu0 %v3228, 1
      %v3254 = vpop.permute.xlu0 %3253
      %3255 = vrot.lane.b32.xlu0 %v3229, 1
      %v3256 = vpop.permute.xlu0 %3255
      %3257 = vrot.lane.b32.xlu0 %v3230, 1
      %v3258 = vpop.permute.xlu0 %3257
      %v3259 = vsel %vm436, %v3248, %v3250
      %v3260 = vsel %vm436, %v3250, %v3252
      %v3261 = vsel %vm436, %v3254, %v3256
      %v3262 = vsel %vm436, %v3256, %v3258
      %vm3267 = vcmask 261120
      %v3269 = vsel %vm3267, %v3239, 0
      %v3272 = vsel %vm3267, %v3240, 0
      %3274 = vmatprep.subr.bf16.mxu0 %v3260
      %3275 = vmatpush1.bf16.msra.mxu0 %v3259
      %3276 = vmatprep.subr.bf16.mxu0 %v3262
      %3277 = vmatpush1.bf16.msra.mxu0 %v3261
      %3278 = vmatprep.subr.bf16.mxu0 0
      %3279 = vmatpush1.bf16.msra.mxu0 0
      %3280 = vmatprep.subr.bf16.mxu0 0
      %3281 = vmatpush1.bf16.msra.mxu0 0
      %3282 = vmatprep.subr.bf16.mxu0 0
      %3283 = vmatpush1.bf16.msra.mxu0 0
      %3284 = vmatprep.subr.bf16.mxu0 0
      %3285 = vmatpush1.bf16.msra.mxu0 0
      %3286 = vmatprep.subr.bf16.mxu0 0
      %3287 = vmatpush1.bf16.msra.mxu0 0
      %3288 = vmatprep.subr.bf16.mxu0 0
      %3289 = vmatpush1.bf16.msra.mxu0 0
      %3290 = vmatprep.subr.bf16.mxu0 0
      %3291 = vmatpush1.bf16.msra.mxu0 0
      %3292 = vmatprep.subr.bf16.mxu0 0
      %3293 = vmatpush1.bf16.msra.mxu0 0
      %3294 = vmatprep.subr.bf16.mxu0 0
      %3295 = vmatpush1.bf16.msra.mxu0 0
      %3296 = vmatprep.subr.bf16.mxu0 0
      %3297 = vmatpush1.bf16.msra.mxu0 0
      %3298 = vmatprep.subr.bf16.mxu0 0
      %3299 = vmatpush1.bf16.msra.mxu0 0
      %3300 = vmatprep.subr.bf16.mxu0 0
      %3301 = vmatpush1.bf16.msra.mxu0 0
      %3302 = vmatprep.subr.bf16.mxu0 0
      %3303 = vmatpush1.bf16.msra.mxu0 0
      %3304 = vmatprep.subr.bf16.mxu0 0
      %3305 = vmatpush1.bf16.msra.mxu0 0
      %3306 = vmatprep.mubr.bf16.mxu0 0
      %3307 = vmatmul.mubr.bf16.gmra.mrb[0].mxu0 %v3269
      %v3308 = vpop.f32.mrb[0].mxu0
      %v3309 = vadd.f32 0.0, %v3308
      %v3310 = vpop.f32.mrb[0].mxu0
      %v3311 = vadd.f32 0.0, %v3310
      %v3312 = vpop.f32.mrb[0].mxu0
      %v3313 = vadd.f32 0.0, %v3312
      %v3314 = vpop.f32.mrb[0].mxu0
      %v3315 = vadd.f32 0.0, %v3314
      %3316 = vmatprep.mubr.bf16.mxu0 0
      %3317 = vmatmul.mubr.bf16.gmra.mrb[0].mxu0 %v3272
      %v3318 = vpop.f32.mrb[0].mxu0
      %v3319 = vadd.f32 0.0, %v3318
      %v3320 = vpop.f32.mrb[0].mxu0
      %v3321 = vadd.f32 0.0, %v3320
      %v3322 = vpop.f32.mrb[0].mxu0
      %v3323 = vadd.f32 0.0, %v3322
      %v3324 = vpop.f32.mrb[0].mxu0
      %v3325 = vadd.f32 0.0, %v3324
      %3326 = vdwg.mxu0
      %v3331 = vunpack.c.l.b16 %v3177
      %v3332 = vunpack.c.l.b16 %v3178
      %v3333 = vunpack.c.l.b16 %v3179
      %v3334 = vunpack.c.l.b16 %v3180
      %v3335 = vpack.c.b16 %v3332, %v3331
      %v3336 = vpack.c.b16 %v3334, %v3333
      %3337 = vrot.lane.b32.xlu0 %v3225, 17
      %v3338 = vpop.permute.xlu0 %3337
      %3339 = vrot.lane.b32.xlu0 %v3226, 17
      %v3340 = vpop.permute.xlu0 %3339
      %3341 = vrot.lane.b32.xlu0 %v3227, 17
      %v3342 = vpop.permute.xlu0 %3341
      %3343 = vrot.lane.b32.xlu0 %v3228, 17
      %v3344 = vpop.permute.xlu0 %3343
      %3345 = vrot.lane.b32.xlu0 %v3229, 17
      %v3346 = vpop.permute.xlu0 %3345
      %3347 = vrot.lane.b32.xlu0 %v3230, 17
      %v3348 = vpop.permute.xlu0 %3347
      %v3349 = vsel %vm522, %v3338, %v3340
      %v3350 = vsel %vm522, %v3340, %v3342
      %v3351 = vsel %vm522, %v3344, %v3346
      %v3352 = vsel %vm522, %v3346, %v3348
      %v3358 = vsel %vm3267, %v3335, 0
      %v3361 = vsel %vm3267, %v3336, 0
      %3363 = vmatprep.subr.bf16.mxu0 %v3350
      %3364 = vmatpush1.bf16.msra.mxu0 %v3349
      %3365 = vmatprep.subr.bf16.mxu0 %v3352
      %3366 = vmatpush1.bf16.msra.mxu0 %v3351
      %3367 = vmatprep.subr.bf16.mxu0 0
      %3368 = vmatpush1.bf16.msra.mxu0 0
      %3369 = vmatprep.subr.bf16.mxu0 0
      %3370 = vmatpush1.bf16.msra.mxu0 0
      %3371 = vmatprep.subr.bf16.mxu0 0
      %3372 = vmatpush1.bf16.msra.mxu0 0
      %3373 = vmatprep.subr.bf16.mxu0 0
      %3374 = vmatpush1.bf16.msra.mxu0 0
      %3375 = vmatprep.subr.bf16.mxu0 0
      %3376 = vmatpush1.bf16.msra.mxu0 0
      %3377 = vmatprep.subr.bf16.mxu0 0
      %3378 = vmatpush1.bf16.msra.mxu0 0
      %3379 = vmatprep.subr.bf16.mxu0 0
      %3380 = vmatpush1.bf16.msra.mxu0 0
      %3381 = vmatprep.subr.bf16.mxu0 0
      %3382 = vmatpush1.bf16.msra.mxu0 0
      %3383 = vmatprep.subr.bf16.mxu0 0
      %3384 = vmatpush1.bf16.msra.mxu0 0
      %3385 = vmatprep.subr.bf16.mxu0 0
      %3386 = vmatpush1.bf16.msra.mxu0 0
      %3387 = vmatprep.subr.bf16.mxu0 0
      %3388 = vmatpush1.bf16.msra.mxu0 0
      %3389 = vmatprep.subr.bf16.mxu0 0
      %3390 = vmatpush1.bf16.msra.mxu0 0
      %3391 = vmatprep.subr.bf16.mxu0 0
      %3392 = vmatpush1.bf16.msra.mxu0 0
      %3393 = vmatprep.subr.bf16.mxu0 0
      %3394 = vmatpush1.bf16.msra.mxu0 0
      %3395 = vmatprep.mubr.bf16.mxu0 0
      %3396 = vmatmul.mubr.bf16.gmra.mrb[0].mxu0 %v3358
      %v3397 = vpop.f32.mrb[0].mxu0
      %v3398 = vadd.f32 %v3309, %v3397
      %v3399 = vpop.f32.mrb[0].mxu0
      %v3400 = vadd.f32 %v3311, %v3399
      %v3401 = vpop.f32.mrb[0].mxu0
      %v3402 = vadd.f32 %v3313, %v3401
      %v3403 = vpop.f32.mrb[0].mxu0
      %v3404 = vadd.f32 %v3315, %v3403
      %3405 = vmatprep.mubr.bf16.mxu0 0
      %3406 = vmatmul.mubr.bf16.gmra.mrb[0].mxu0 %v3361
      %v3407 = vpop.f32.mrb[0].mxu0
      %v3408 = vadd.f32 %v3319, %v3407
      %v3409 = vpop.f32.mrb[0].mxu0
      %v3410 = vadd.f32 %v3321, %v3409
      %v3411 = vpop.f32.mrb[0].mxu0
      %v3412 = vadd.f32 %v3323, %v3411
      %v3413 = vpop.f32.mrb[0].mxu0
      %v3414 = vadd.f32 %v3325, %v3413
      %3415 = vdwg.mxu0
      %v3416 = vld [vmem:[#allocation2 + $0x8] sm:$0xff]
      %v3417 = vld [vmem:[#allocation2 + $0x10] sm:$0xff]
      %v3418 = vld [vmem:[#allocation2 + $0x18] sm:$0xff]
      %v3419 = vld [vmem:[#allocation2 + $0x28] sm:$0xff]
      %v3420 = vld [vmem:[#allocation2 + $0x30] sm:$0xff]
      %v3421 = vld [vmem:[#allocation2 + $0x38] sm:$0xff]
      %v3426 = vunpack.c.l.b16 %v3201
      %v3427 = vunpack.c.l.b16 %v3202
      %v3428 = vunpack.c.l.b16 %v3203
      %v3429 = vunpack.c.l.b16 %v3204
      %v3430 = vpack.c.b16 %v3427, %v3426
      %v3431 = vpack.c.b16 %v3429, %v3428
      %3438 = vrot.lane.b32.xlu0 %v3416, 113
      %v3439 = vpop.permute.xlu0 %3438
      %3440 = vrot.lane.b32.xlu0 %v3417, 113
      %v3441 = vpop.permute.xlu0 %3440
      %3442 = vrot.lane.b32.xlu0 %v3418, 113
      %v3443 = vpop.permute.xlu0 %3442
      %3444 = vrot.lane.b32.xlu0 %v3419, 113
      %v3445 = vpop.permute.xlu0 %3444
      %3446 = vrot.lane.b32.xlu0 %v3420, 113
      %v3447 = vpop.permute.xlu0 %3446
      %3448 = vrot.lane.b32.xlu0 %v3421, 113
      %v3449 = vpop.permute.xlu0 %3448
      %v3450 = vsel %vm612, %v3439, %v3441
      %v3451 = vsel %vm612, %v3441, %v3443
      %v3452 = vsel %vm612, %v3445, %v3447
      %v3453 = vsel %vm612, %v3447, %v3449
      %v3459 = vsel %vm3267, %v3430, 0
      %v3462 = vsel %vm3267, %v3431, 0
      %3464 = vmatprep.subr.bf16.mxu0 %v3451
      %3465 = vmatpush1.bf16.msra.mxu0 %v3450
      %3466 = vmatprep.subr.bf16.mxu0 %v3453
      %3467 = vmatpush1.bf16.msra.mxu0 %v3452
      %3468 = vmatprep.subr.bf16.mxu0 0
      %3469 = vmatpush1.bf16.msra.mxu0 0
      %3470 = vmatprep.subr.bf16.mxu0 0
      %3471 = vmatpush1.bf16.msra.mxu0 0
      %3472 = vmatprep.subr.bf16.mxu0 0
      %3473 = vmatpush1.bf16.msra.mxu0 0
      %3474 = vmatprep.subr.bf16.mxu0 0
      %3475 = vmatpush1.bf16.msra.mxu0 0
      %3476 = vmatprep.subr.bf16.mxu0 0
      %3477 = vmatpush1.bf16.msra.mxu0 0
      %3478 = vmatprep.subr.bf16.mxu0 0
      %3479 = vmatpush1.bf16.msra.mxu0 0
      %3480 = vmatprep.subr.bf16.mxu0 0
      %3481 = vmatpush1.bf16.msra.mxu0 0
      %3482 = vmatprep.subr.bf16.mxu0 0
      %3483 = vmatpush1.bf16.msra.mxu0 0
      %3484 = vmatprep.subr.bf16.mxu0 0
      %3485 = vmatpush1.bf16.msra.mxu0 0
      %3486 = vmatprep.subr.bf16.mxu0 0
      %3487 = vmatpush1.bf16.msra.mxu0 0
      %3488 = vmatprep.subr.bf16.mxu0 0
      %3489 = vmatpush1.bf16.msra.mxu0 0
      %3490 = vmatprep.subr.bf16.mxu0 0
      %3491 = vmatpush1.bf16.msra.mxu0 0
      %3492 = vmatprep.subr.bf16.mxu0 0
      %3493 = vmatpush1.bf16.msra.mxu0 0
      %3494 = vmatprep.subr.bf16.mxu0 0
      %3495 = vmatpush1.bf16.msra.mxu0 0
      %3496 = vmatprep.mubr.bf16.mxu0 0
      %3497 = vmatmul.mubr.bf16.gmra.mrb[0].mxu0 %v3459
      %v3498 = vpop.f32.mrb[0].mxu0
      %v3499 = vadd.f32 0.0, %v3498
      %v3500 = vpop.f32.mrb[0].mxu0
      %v3501 = vadd.f32 0.0, %v3500
      %v3502 = vpop.f32.mrb[0].mxu0
      %v3503 = vadd.f32 0.0, %v3502
      %v3504 = vpop.f32.mrb[0].mxu0
      %v3505 = vadd.f32 0.0, %v3504
      %3506 = vmatprep.mubr.bf16.mxu0 0
      %3507 = vmatmul.mubr.bf16.gmra.mrb[0].mxu0 %v3462
      %v3508 = vpop.f32.mrb[0].mxu0
      %v3509 = vadd.f32 0.0, %v3508
      %v3510 = vpop.f32.mrb[0].mxu0
      %v3511 = vadd.f32 0.0, %v3510
      %v3512 = vpop.f32.mrb[0].mxu0
      %v3513 = vadd.f32 0.0, %v3512
      %v3514 = vpop.f32.mrb[0].mxu0
      %v3515 = vadd.f32 0.0, %v3514
      %3516 = vdwg.mxu0
      %v3517 = vadd.f32 %v3398, %v3499
      %v3518 = vadd.f32 %v3400, %v3501
      %v3519 = vadd.f32 %v3402, %v3503
      %v3520 = vadd.f32 %v3404, %v3505
      %v3521 = vadd.f32 %v3408, %v3509
      %v3522 = vadd.f32 %v3410, %v3511
      %v3523 = vadd.f32 %v3412, %v3513
      %v3524 = vadd.f32 %v3414, %v3515
      %v3525 = vmul.f32 %v3517, %v344
      %v3526 = vmul.f32 %v3518, %v345
      %v3527 = vmul.f32 %v3519, %v344
      %v3528 = vmul.f32 %v3520, %v345
      %v3529 = vmul.f32 %v3521, %v344
      %v3530 = vmul.f32 %v3522, %v345
      %v3531 = vmul.f32 %v3523, %v344
      %v3532 = vmul.f32 %v3524, %v345
      %v3537 = vunpack.c.l.b16 %v3193
      %v3538 = vunpack.c.l.b16 %v3194
      %v3539 = vunpack.c.l.b16 %v3195
      %v3540 = vunpack.c.l.b16 %v3196
      %v3541 = vpack.c.b16 %v3538, %v3537
      %v3542 = vpack.c.b16 %v3540, %v3539
      %v3544 = vsel %vm3267, %v3541, 0
      %v3547 = vsel %vm3267, %v3542, 0
      %3549 = vmatprep.subr.bf16.mxu0 %v3227
      %3550 = vmatpush1.bf16.msra.mxu0 %v3226
      %3551 = vmatprep.subr.bf16.mxu0 %v3230
      %3552 = vmatpush1.bf16.msra.mxu0 %v3229
      %3553 = vmatprep.subr.bf16.mxu0 0
      %3554 = vmatpush1.bf16.msra.mxu0 0
      %3555 = vmatprep.subr.bf16.mxu0 0
      %3556 = vmatpush1.bf16.msra.mxu0 0
      %3557 = vmatprep.subr.bf16.mxu0 0
      %3558 = vmatpush1.bf16.msra.mxu0 0
      %3559 = vmatprep.subr.bf16.mxu0 0
      %3560 = vmatpush1.bf16.msra.mxu0 0
      %3561 = vmatprep.subr.bf16.mxu0 0
      %3562 = vmatpush1.bf16.msra.mxu0 0
      %3563 = vmatprep.subr.bf16.mxu0 0
      %3564 = vmatpush1.bf16.msra.mxu0 0
      %3565 = vmatprep.subr.bf16.mxu0 0
      %3566 = vmatpush1.bf16.msra.mxu0 0
      %3567 = vmatprep.subr.bf16.mxu0 0
      %3568 = vmatpush1.bf16.msra.mxu0 0
      %3569 = vmatprep.subr.bf16.mxu0 0
      %3570 = vmatpush1.bf16.msra.mxu0 0
      %3571 = vmatprep.subr.bf16.mxu0 0
      %3572 = vmatpush1.bf16.msra.mxu0 0
      %3573 = vmatprep.subr.bf16.mxu0 0
      %3574 = vmatpush1.bf16.msra.mxu0 0
      %3575 = vmatprep.subr.bf16.mxu0 0
      %3576 = vmatpush1.bf16.msra.mxu0 0
      %3577 = vmatprep.subr.bf16.mxu0 0
      %3578 = vmatpush1.bf16.msra.mxu0 0
      %3579 = vmatprep.subr.bf16.mxu0 0
      %3580 = vmatpush1.bf16.msra.mxu0 0
      %3581 = vmatprep.mubr.bf16.mxu0 0
      %3582 = vmatmul.mubr.bf16.gmra.mrb[0].mxu0 %v3544
      %v3583 = vpop.f32.mrb[0].mxu0
      %v3584 = vadd.f32 0.0, %v3583
      %v3585 = vpop.f32.mrb[0].mxu0
      %v3586 = vadd.f32 0.0, %v3585
      %v3587 = vpop.f32.mrb[0].mxu0
      %v3588 = vadd.f32 0.0, %v3587
      %v3589 = vpop.f32.mrb[0].mxu0
      %v3590 = vadd.f32 0.0, %v3589
      %3591 = vmatprep.mubr.bf16.mxu0 0
      %3592 = vmatmul.mubr.bf16.gmra.mrb[0].mxu0 %v3547
      %v3593 = vpop.f32.mrb[0].mxu0
      %v3594 = vadd.f32 0.0, %v3593
      %v3595 = vpop.f32.mrb[0].mxu0
      %v3596 = vadd.f32 0.0, %v3595
      %v3597 = vpop.f32.mrb[0].mxu0
      %v3598 = vadd.f32 0.0, %v3597
      %v3599 = vpop.f32.mrb[0].mxu0
      %v3600 = vadd.f32 0.0, %v3599
      %3601 = vdwg.mxu0
      %v3606 = vunpack.c.l.b16 %v3181
      %v3607 = vunpack.c.l.b16 %v3182
      %v3608 = vunpack.c.l.b16 %v3183
      %v3609 = vunpack.c.l.b16 %v3184
      %v3610 = vpack.c.b16 %v3607, %v3606
      %v3611 = vpack.c.b16 %v3609, %v3608
      %3612 = vrot.lane.b32.xlu0 %v3225, 16
      %v3613 = vpop.permute.xlu0 %3612
      %3614 = vrot.lane.b32.xlu0 %v3226, 16
      %v3615 = vpop.permute.xlu0 %3614
      %3616 = vrot.lane.b32.xlu0 %v3227, 16
      %v3617 = vpop.permute.xlu0 %3616
      %3618 = vrot.lane.b32.xlu0 %v3228, 16
      %v3619 = vpop.permute.xlu0 %3618
      %3620 = vrot.lane.b32.xlu0 %v3229, 16
      %v3621 = vpop.permute.xlu0 %3620
      %3622 = vrot.lane.b32.xlu0 %v3230, 16
      %v3623 = vpop.permute.xlu0 %3622
      %v3624 = vsel %vm787, %v3613, %v3615
      %v3625 = vsel %vm787, %v3615, %v3617
      %v3626 = vsel %vm787, %v3619, %v3621
      %v3627 = vsel %vm787, %v3621, %v3623
      %v3633 = vsel %vm3267, %v3610, 0
      %v3636 = vsel %vm3267, %v3611, 0
      %3638 = vmatprep.subr.bf16.mxu0 %v3625
      %3639 = vmatpush1.bf16.msra.mxu0 %v3624
      %3640 = vmatprep.subr.bf16.mxu0 %v3627
      %3641 = vmatpush1.bf16.msra.mxu0 %v3626
      %3642 = vmatprep.subr.bf16.mxu0 0
      %3643 = vmatpush1.bf16.msra.mxu0 0
      %3644 = vmatprep.subr.bf16.mxu0 0
      %3645 = vmatpush1.bf16.msra.mxu0 0
      %3646 = vmatprep.subr.bf16.mxu0 0
      %3647 = vmatpush1.bf16.msra.mxu0 0
      %3648 = vmatprep.subr.bf16.mxu0 0
      %3649 = vmatpush1.bf16.msra.mxu0 0
      %3650 = vmatprep.subr.bf16.mxu0 0
      %3651 = vmatpush1.bf16.msra.mxu0 0
      %3652 = vmatprep.subr.bf16.mxu0 0
      %3653 = vmatpush1.bf16.msra.mxu0 0
      %3654 = vmatprep.subr.bf16.mxu0 0
      %3655 = vmatpush1.bf16.msra.mxu0 0
      %3656 = vmatprep.subr.bf16.mxu0 0
      %3657 = vmatpush1.bf16.msra.mxu0 0
      %3658 = vmatprep.subr.bf16.mxu0 0
      %3659 = vmatpush1.bf16.msra.mxu0 0
      %3660 = vmatprep.subr.bf16.mxu0 0
      %3661 = vmatpush1.bf16.msra.mxu0 0
      %3662 = vmatprep.subr.bf16.mxu0 0
      %3663 = vmatpush1.bf16.msra.mxu0 0
      %3664 = vmatprep.subr.bf16.mxu0 0
      %3665 = vmatpush1.bf16.msra.mxu0 0
      %3666 = vmatprep.subr.bf16.mxu0 0
      %3667 = vmatpush1.bf16.msra.mxu0 0
      %3668 = vmatprep.subr.bf16.mxu0 0
      %3669 = vmatpush1.bf16.msra.mxu0 0
      %3670 = vmatprep.mubr.bf16.mxu0 0
      %3671 = vmatmul.mubr.bf16.gmra.mrb[0].mxu0 %v3633
      %v3672 = vpop.f32.mrb[0].mxu0
      %v3673 = vadd.f32 %v3584, %v3672
      %v3674 = vpop.f32.mrb[0].mxu0
      %v3675 = vadd.f32 %v3586, %v3674
      %v3676 = vpop.f32.mrb[0].mxu0
      %v3677 = vadd.f32 %v3588, %v3676
      %v3678 = vpop.f32.mrb[0].mxu0
      %v3679 = vadd.f32 %v3590, %v3678
      %3680 = vmatprep.mubr.bf16.mxu0 0
      %3681 = vmatmul.mubr.bf16.gmra.mrb[0].mxu0 %v3636
      %v3682 = vpop.f32.mrb[0].mxu0
      %v3683 = vadd.f32 %v3594, %v3682
      %v3684 = vpop.f32.mrb[0].mxu0
      %v3685 = vadd.f32 %v3596, %v3684
      %v3686 = vpop.f32.mrb[0].mxu0
      %v3687 = vadd.f32 %v3598, %v3686
      %v3688 = vpop.f32.mrb[0].mxu0
      %v3689 = vadd.f32 %v3600, %v3688
      %3690 = vdwg.mxu0
      %v3695 = vunpack.c.l.b16 %v3205
      %v3696 = vunpack.c.l.b16 %v3206
      %v3697 = vunpack.c.l.b16 %v3207
      %v3698 = vunpack.c.l.b16 %v3208
      %v3699 = vpack.c.b16 %v3696, %v3695
      %v3700 = vpack.c.b16 %v3698, %v3697
      %3701 = vrot.lane.b32.xlu0 %v3416, 112
      %v3702 = vpop.permute.xlu0 %3701
      %3703 = vrot.lane.b32.xlu0 %v3417, 112
      %v3704 = vpop.permute.xlu0 %3703
      %3705 = vrot.lane.b32.xlu0 %v3418, 112
      %v3706 = vpop.permute.xlu0 %3705
      %3707 = vrot.lane.b32.xlu0 %v3419, 112
      %v3708 = vpop.permute.xlu0 %3707
      %3709 = vrot.lane.b32.xlu0 %v3420, 112
      %v3710 = vpop.permute.xlu0 %3709
      %3711 = vrot.lane.b32.xlu0 %v3421, 112
      %v3712 = vpop.permute.xlu0 %3711
      %v3713 = vsel %vm871, %v3702, %v3704
      %v3714 = vsel %vm871, %v3704, %v3706
      %v3715 = vsel %vm871, %v3708, %v3710
      %v3716 = vsel %vm871, %v3710, %v3712
      %v3722 = vsel %vm3267, %v3699, 0
      %v3725 = vsel %vm3267, %v3700, 0
      %3727 = vmatprep.subr.bf16.mxu0 %v3714
      %3728 = vmatpush1.bf16.msra.mxu0 %v3713
      %3729 = vmatprep.subr.bf16.mxu0 %v3716
      %3730 = vmatpush1.bf16.msra.mxu0 %v3715
      %3731 = vmatprep.subr.bf16.mxu0 0
      %3732 = vmatpush1.bf16.msra.mxu0 0
      %3733 = vmatprep.subr.bf16.mxu0 0
      %3734 = vmatpush1.bf16.msra.mxu0 0
      %3735 = vmatprep.subr.bf16.mxu0 0
      %3736 = vmatpush1.bf16.msra.mxu0 0
      %3737 = vmatprep.subr.bf16.mxu0 0
      %3738 = vmatpush1.bf16.msra.mxu0 0
      %3739 = vmatprep.subr.bf16.mxu0 0
      %3740 = vmatpush1.bf16.msra.mxu0 0
      %3741 = vmatprep.subr.bf16.mxu0 0
      %3742 = vmatpush1.bf16.msra.mxu0 0
      %3743 = vmatprep.subr.bf16.mxu0 0
      %3744 = vmatpush1.bf16.msra.mxu0 0
      %3745 = vmatprep.subr.bf16.mxu0 0
      %3746 = vmatpush1.bf16.msra.mxu0 0
      %3747 = vmatprep.subr.bf16.mxu0 0
      %3748 = vmatpush1.bf16.msra.mxu0 0
      %3749 = vmatprep.subr.bf16.mxu0 0
      %3750 = vmatpush1.bf16.msra.mxu0 0
      %3751 = vmatprep.subr.bf16.mxu0 0
      %3752 = vmatpush1.bf16.msra.mxu0 0
      %3753 = vmatprep.subr.bf16.mxu0 0
      %3754 = vmatpush1.bf16.msra.mxu0 0
      %3755 = vmatprep.subr.bf16.mxu0 0
      %3756 = vmatpush1.bf16.msra.mxu0 0
      %3757 = vmatprep.subr.bf16.mxu0 0
      %3758 = vmatpush1.bf16.msra.mxu0 0
      %3759 = vmatprep.mubr.bf16.mxu0 0
      %3760 = vmatmul.mubr.bf16.gmra.mrb[0].mxu0 %v3722
      %v3761 = vpop.f32.mrb[0].mxu0
      %v3762 = vadd.f32 0.0, %v3761
      %v3763 = vpop.f32.mrb[0].mxu0
      %v3764 = vadd.f32 0.0, %v3763
      %v3765 = vpop.f32.mrb[0].mxu0
      %v3766 = vadd.f32 0.0, %v3765
      %v3767 = vpop.f32.mrb[0].mxu0
      %v3768 = vadd.f32 0.0, %v3767
      %3769 = vmatprep.mubr.bf16.mxu0 0
      %3770 = vmatmul.mubr.bf16.gmra.mrb[0].mxu0 %v3725
      %v3771 = vpop.f32.mrb[0].mxu0
      %v3772 = vadd.f32 0.0, %v3771
      %v3773 = vpop.f32.mrb[0].mxu0
      %v3774 = vadd.f32 0.0, %v3773
      %v3775 = vpop.f32.mrb[0].mxu0
      %v3776 = vadd.f32 0.0, %v3775
      %v3777 = vpop.f32.mrb[0].mxu0
      %v3778 = vadd.f32 0.0, %v3777
      %3779 = vdwg.mxu0
      %v3780 = vadd.f32 %v3673, %v3762
      %v3781 = vadd.f32 %v3675, %v3764
      %v3782 = vadd.f32 %v3677, %v3766
      %v3783 = vadd.f32 %v3679, %v3768
      %v3784 = vadd.f32 %v3683, %v3772
      %v3785 = vadd.f32 %v3685, %v3774
      %v3786 = vadd.f32 %v3687, %v3776
      %v3787 = vadd.f32 %v3689, %v3778
      %v3788 = vadd.f32 %v3525, %v3780
      %v3789 = vadd.f32 %v3526, %v3781
      %v3790 = vadd.f32 %v3527, %v3782
      %v3791 = vadd.f32 %v3528, %v3783
      %v3792 = vadd.f32 %v3529, %v3784
      %v3793 = vadd.f32 %v3530, %v3785
      %v3794 = vadd.f32 %v3531, %v3786
      %v3795 = vadd.f32 %v3532, %v3787
      %v3800 = vunpack.c.l.b16 %v3197
      %v3801 = vunpack.c.l.b16 %v3198
      %v3802 = vunpack.c.l.b16 %v3199
      %v3803 = vunpack.c.l.b16 %v3200
      %v3804 = vpack.c.b16 %v3801, %v3800
      %v3805 = vpack.c.b16 %v3803, %v3802
      %3806 = vrot.lane.b32.xlu0 %v3416, 127
      %v3807 = vpop.permute.xlu0 %3806
      %3808 = vrot.lane.b32.xlu0 %v3417, 127
      %v3809 = vpop.permute.xlu0 %3808
      %3810 = vrot.lane.b32.xlu0 %v3418, 127
      %v3811 = vpop.permute.xlu0 %3810
      %3812 = vrot.lane.b32.xlu0 %v3419, 127
      %v3813 = vpop.permute.xlu0 %3812
      %3814 = vrot.lane.b32.xlu0 %v3420, 127
      %v3815 = vpop.permute.xlu0 %3814
      %3816 = vrot.lane.b32.xlu0 %v3421, 127
      %v3817 = vpop.permute.xlu0 %3816
      %v3818 = vsel %vm971, %v3807, %v3809
      %v3819 = vsel %vm971, %v3809, %v3811
      %v3820 = vsel %vm971, %v3813, %v3815
      %v3821 = vsel %vm971, %v3815, %v3817
      %v3827 = vsel %vm3267, %v3804, 0
      %v3830 = vsel %vm3267, %v3805, 0
      %3832 = vmatprep.subr.bf16.mxu0 %v3819
      %3833 = vmatpush1.bf16.msra.mxu0 %v3818
      %3834 = vmatprep.subr.bf16.mxu0 %v3821
      %3835 = vmatpush1.bf16.msra.mxu0 %v3820
      %3836 = vmatprep.subr.bf16.mxu0 0
      %3837 = vmatpush1.bf16.msra.mxu0 0
      %3838 = vmatprep.subr.bf16.mxu0 0
      %3839 = vmatpush1.bf16.msra.mxu0 0
      %3840 = vmatprep.subr.bf16.mxu0 0
      %3841 = vmatpush1.bf16.msra.mxu0 0
      %3842 = vmatprep.subr.bf16.mxu0 0
      %3843 = vmatpush1.bf16.msra.mxu0 0
      %3844 = vmatprep.subr.bf16.mxu0 0
      %3845 = vmatpush1.bf16.msra.mxu0 0
      %3846 = vmatprep.subr.bf16.mxu0 0
      %3847 = vmatpush1.bf16.msra.mxu0 0
      %3848 = vmatprep.subr.bf16.mxu0 0
      %3849 = vmatpush1.bf16.msra.mxu0 0
      %3850 = vmatprep.subr.bf16.mxu0 0
      %3851 = vmatpush1.bf16.msra.mxu0 0
      %3852 = vmatprep.subr.bf16.mxu0 0
      %3853 = vmatpush1.bf16.msra.mxu0 0
      %3854 = vmatprep.subr.bf16.mxu0 0
      %3855 = vmatpush1.bf16.msra.mxu0 0
      %3856 = vmatprep.subr.bf16.mxu0 0
      %3857 = vmatpush1.bf16.msra.mxu0 0
      %3858 = vmatprep.subr.bf16.mxu0 0
      %3859 = vmatpush1.bf16.msra.mxu0 0
      %3860 = vmatprep.subr.bf16.mxu0 0
      %3861 = vmatpush1.bf16.msra.mxu0 0
      %3862 = vmatprep.subr.bf16.mxu0 0
      %3863 = vmatpush1.bf16.msra.mxu0 0
      %3864 = vmatprep.mubr.bf16.mxu0 0
      %3865 = vmatmul.mubr.bf16.gmra.mrb[0].mxu0 %v3827
      %v3866 = vpop.f32.mrb[0].mxu0
      %v3867 = vadd.f32 0.0, %v3866
      %v3868 = vpop.f32.mrb[0].mxu0
      %v3869 = vadd.f32 0.0, %v3868
      %v3870 = vpop.f32.mrb[0].mxu0
      %v3871 = vadd.f32 0.0, %v3870
      %v3872 = vpop.f32.mrb[0].mxu0
      %v3873 = vadd.f32 0.0, %v3872
      %3874 = vmatprep.mubr.bf16.mxu0 0
      %3875 = vmatmul.mubr.bf16.gmra.mrb[0].mxu0 %v3830
      %v3876 = vpop.f32.mrb[0].mxu0
      %v3877 = vadd.f32 0.0, %v3876
      %v3878 = vpop.f32.mrb[0].mxu0
      %v3879 = vadd.f32 0.0, %v3878
      %v3880 = vpop.f32.mrb[0].mxu0
      %v3881 = vadd.f32 0.0, %v3880
      %v3882 = vpop.f32.mrb[0].mxu0
      %v3883 = vadd.f32 0.0, %v3882
      %3884 = vdwg.mxu0
      %v3889 = vunpack.c.l.b16 %v3185
      %v3890 = vunpack.c.l.b16 %v3186
      %v3891 = vunpack.c.l.b16 %v3187
      %v3892 = vunpack.c.l.b16 %v3188
      %v3893 = vpack.c.b16 %v3890, %v3889
      %v3894 = vpack.c.b16 %v3892, %v3891
      %3895 = vrot.lane.b32.xlu0 %v3225, 15
      %v3896 = vpop.permute.xlu0 %3895
      %3897 = vrot.lane.b32.xlu0 %v3226, 15
      %v3898 = vpop.permute.xlu0 %3897
      %3899 = vrot.lane.b32.xlu0 %v3227, 15
      %v3900 = vpop.permute.xlu0 %3899
      %3901 = vrot.lane.b32.xlu0 %v3228, 15
      %v3902 = vpop.permute.xlu0 %3901
      %3903 = vrot.lane.b32.xlu0 %v3229, 15
      %v3904 = vpop.permute.xlu0 %3903
      %3905 = vrot.lane.b32.xlu0 %v3230, 15
      %v3906 = vpop.permute.xlu0 %3905
      %v3907 = vsel %vm1055, %v3896, %v3898
      %v3908 = vsel %vm1055, %v3898, %v3900
      %v3909 = vsel %vm1055, %v3902, %v3904
      %v3910 = vsel %vm1055, %v3904, %v3906
      %v3916 = vsel %vm3267, %v3893, 0
      %v3919 = vsel %vm3267, %v3894, 0
      %3921 = vmatprep.subr.bf16.mxu0 %v3908
      %3922 = vmatpush1.bf16.msra.mxu0 %v3907
      %3923 = vmatprep.subr.bf16.mxu0 %v3910
      %3924 = vmatpush1.bf16.msra.mxu0 %v3909
      %3925 = vmatprep.subr.bf16.mxu0 0
      %3926 = vmatpush1.bf16.msra.mxu0 0
      %3927 = vmatprep.subr.bf16.mxu0 0
      %3928 = vmatpush1.bf16.msra.mxu0 0
      %3929 = vmatprep.subr.bf16.mxu0 0
      %3930 = vmatpush1.bf16.msra.mxu0 0
      %3931 = vmatprep.subr.bf16.mxu0 0
      %3932 = vmatpush1.bf16.msra.mxu0 0
      %3933 = vmatprep.subr.bf16.mxu0 0
      %3934 = vmatpush1.bf16.msra.mxu0 0
      %3935 = vmatprep.subr.bf16.mxu0 0
      %3936 = vmatpush1.bf16.msra.mxu0 0
      %3937 = vmatprep.subr.bf16.mxu0 0
      %3938 = vmatpush1.bf16.msra.mxu0 0
      %3939 = vmatprep.subr.bf16.mxu0 0
      %3940 = vmatpush1.bf16.msra.mxu0 0
      %3941 = vmatprep.subr.bf16.mxu0 0
      %3942 = vmatpush1.bf16.msra.mxu0 0
      %3943 = vmatprep.subr.bf16.mxu0 0
      %3944 = vmatpush1.bf16.msra.mxu0 0
      %3945 = vmatprep.subr.bf16.mxu0 0
      %3946 = vmatpush1.bf16.msra.mxu0 0
      %3947 = vmatprep.subr.bf16.mxu0 0
      %3948 = vmatpush1.bf16.msra.mxu0 0
      %3949 = vmatprep.subr.bf16.mxu0 0
      %3950 = vmatpush1.bf16.msra.mxu0 0
      %3951 = vmatprep.subr.bf16.mxu0 0
      %3952 = vmatpush1.bf16.msra.mxu0 0
      %3953 = vmatprep.mubr.bf16.mxu0 0
      %3954 = vmatmul.mubr.bf16.gmra.mrb[0].mxu0 %v3916
      %v3955 = vpop.f32.mrb[0].mxu0
      %v3956 = vadd.f32 %v3867, %v3955
      %v3957 = vpop.f32.mrb[0].mxu0
      %v3958 = vadd.f32 %v3869, %v3957
      %v3959 = vpop.f32.mrb[0].mxu0
      %v3960 = vadd.f32 %v3871, %v3959
      %v3961 = vpop.f32.mrb[0].mxu0
      %v3962 = vadd.f32 %v3873, %v3961
      %3963 = vmatprep.mubr.bf16.mxu0 0
      %3964 = vmatmul.mubr.bf16.gmra.mrb[0].mxu0 %v3919
      %v3965 = vpop.f32.mrb[0].mxu0
      %v3966 = vadd.f32 %v3877, %v3965
      %v3967 = vpop.f32.mrb[0].mxu0
      %v3968 = vadd.f32 %v3879, %v3967
      %v3969 = vpop.f32.mrb[0].mxu0
      %v3970 = vadd.f32 %v3881, %v3969
      %v3971 = vpop.f32.mrb[0].mxu0
      %v3972 = vadd.f32 %v3883, %v3971
      %3973 = vdwg.mxu0
      %v3978 = vunpack.c.l.b16 %v3209
      %v3979 = vunpack.c.l.b16 %v3210
      %v3980 = vunpack.c.l.b16 %v3211
      %v3981 = vunpack.c.l.b16 %v3212
      %v3982 = vpack.c.b16 %v3979, %v3978
      %v3983 = vpack.c.b16 %v3981, %v3980
      %3984 = vrot.lane.b32.xlu0 %v3416, 111
      %v3985 = vpop.permute.xlu0 %3984
      %3986 = vrot.lane.b32.xlu0 %v3417, 111
      %v3987 = vpop.permute.xlu0 %3986
      %3988 = vrot.lane.b32.xlu0 %v3418, 111
      %v3989 = vpop.permute.xlu0 %3988
      %3990 = vrot.lane.b32.xlu0 %v3419, 111
      %v3991 = vpop.permute.xlu0 %3990
      %3992 = vrot.lane.b32.xlu0 %v3420, 111
      %v3993 = vpop.permute.xlu0 %3992
      %3994 = vrot.lane.b32.xlu0 %v3421, 111
      %v3995 = vpop.permute.xlu0 %3994
      %v3996 = vsel %vm1139, %v3985, %v3987
      %v3997 = vsel %vm1139, %v3987, %v3989
      %v3998 = vsel %vm1139, %v3991, %v3993
      %v3999 = vsel %vm1139, %v3993, %v3995
      %v4005 = vsel %vm3267, %v3982, 0
      %v4008 = vsel %vm3267, %v3983, 0
      %4010 = vmatprep.subr.bf16.mxu0 %v3997
      %4011 = vmatpush1.bf16.msra.mxu0 %v3996
      %4012 = vmatprep.subr.bf16.mxu0 %v3999
      %4013 = vmatpush1.bf16.msra.mxu0 %v3998
      %4014 = vmatprep.subr.bf16.mxu0 0
      %4015 = vmatpush1.bf16.msra.mxu0 0
      %4016 = vmatprep.subr.bf16.mxu0 0
      %4017 = vmatpush1.bf16.msra.mxu0 0
      %4018 = vmatprep.subr.bf16.mxu0 0
      %4019 = vmatpush1.bf16.msra.mxu0 0
      %4020 = vmatprep.subr.bf16.mxu0 0
      %4021 = vmatpush1.bf16.msra.mxu0 0
      %4022 = vmatprep.subr.bf16.mxu0 0
      %4023 = vmatpush1.bf16.msra.mxu0 0
      %4024 = vmatprep.subr.bf16.mxu0 0
      %4025 = vmatpush1.bf16.msra.mxu0 0
      %4026 = vmatprep.subr.bf16.mxu0 0
      %4027 = vmatpush1.bf16.msra.mxu0 0
      %4028 = vmatprep.subr.bf16.mxu0 0
      %4029 = vmatpush1.bf16.msra.mxu0 0
      %4030 = vmatprep.subr.bf16.mxu0 0
      %4031 = vmatpush1.bf16.msra.mxu0 0
      %4032 = vmatprep.subr.bf16.mxu0 0
      %4033 = vmatpush1.bf16.msra.mxu0 0
      %4034 = vmatprep.subr.bf16.mxu0 0
      %4035 = vmatpush1.bf16.msra.mxu0 0
      %4036 = vmatprep.subr.bf16.mxu0 0
      %4037 = vmatpush1.bf16.msra.mxu0 0
      %4038 = vmatprep.subr.bf16.mxu0 0
      %4039 = vmatpush1.bf16.msra.mxu0 0
      %4040 = vmatprep.subr.bf16.mxu0 0
      %4041 = vmatpush1.bf16.msra.mxu0 0
      %4042 = vmatprep.mubr.bf16.mxu0 0
      %4043 = vmatmul.mubr.bf16.gmra.mrb[0].mxu0 %v4005
      %v4044 = vpop.f32.mrb[0].mxu0
      %v4045 = vadd.f32 0.0, %v4044
      %v4046 = vpop.f32.mrb[0].mxu0
      %v4047 = vadd.f32 0.0, %v4046
      %v4048 = vpop.f32.mrb[0].mxu0
      %v4049 = vadd.f32 0.0, %v4048
      %v4050 = vpop.f32.mrb[0].mxu0
      %v4051 = vadd.f32 0.0, %v4050
      %4052 = vmatprep.mubr.bf16.mxu0 0
      %4053 = vmatmul.mubr.bf16.gmra.mrb[0].mxu0 %v4008
      %v4054 = vpop.f32.mrb[0].mxu0
      %v4055 = vadd.f32 0.0, %v4054
      %v4056 = vpop.f32.mrb[0].mxu0
      %v4057 = vadd.f32 0.0, %v4056
      %v4058 = vpop.f32.mrb[0].mxu0
      %v4059 = vadd.f32 0.0, %v4058
      %v4060 = vpop.f32.mrb[0].mxu0
      %v4061 = vadd.f32 0.0, %v4060
      %4062 = vdwg.mxu0
      %v4063 = vadd.f32 %v3956, %v4045
      %v4064 = vadd.f32 %v3958, %v4047
      %v4065 = vadd.f32 %v3960, %v4049
      %v4066 = vadd.f32 %v3962, %v4051
      %v4067 = vadd.f32 %v3966, %v4055
      %v4068 = vadd.f32 %v3968, %v4057
      %v4069 = vadd.f32 %v3970, %v4059
      %v4070 = vadd.f32 %v3972, %v4061
      %v4071 = vmul.f32 %v4063, %v350
      %v4072 = vmul.f32 %v4064, %v351
      %v4073 = vmul.f32 %v4065, %v350
      %v4074 = vmul.f32 %v4066, %v351
      %v4075 = vmul.f32 %v4067, %v350
      %v4076 = vmul.f32 %v4068, %v351
      %v4077 = vmul.f32 %v4069, %v350
      %v4078 = vmul.f32 %v4070, %v351
      %v4079 = vadd.f32 %v3788, %v4071
      %v4080 = vadd.f32 %v3789, %v4072
      %v4081 = vadd.f32 %v3790, %v4073
      %v4082 = vadd.f32 %v3791, %v4074
      %v4083 = vadd.f32 %v3792, %v4075
      %v4084 = vadd.f32 %v3793, %v4076
      %v4085 = vadd.f32 %v3794, %v4077
      %v4086 = vadd.f32 %v3795, %v4078
      %4088 = vset.pattern.permute.xlu0 0
      %4089 = vperm.xlu0 %4088, %v3213
      %v4090 = vpop.permute.xlu0 %4089
      %4093 = vset.pattern.permute.xlu0 0
      %4094 = vperm.xlu0 %4093, %v3214
      %v4095 = vpop.permute.xlu0 %4094
      %4098 = vset.pattern.permute.xlu0 0
      %4099 = vperm.xlu0 %4098, %v3215
      %v4100 = vpop.permute.xlu0 %4099
      %4103 = vset.pattern.permute.xlu0 0
      %4104 = vperm.xlu0 %4103, %v3216
      %v4105 = vpop.permute.xlu0 %4104
      %v4107 = vadd.f32 %v4079, %v4090
      %v4108 = vadd.f32 %v4080, %v4090
      %v4109 = vadd.f32 %v4081, %v4095
      %v4110 = vadd.f32 %v4082, %v4095
      %v4111 = vadd.f32 %v4083, %v4100
      %v4112 = vadd.f32 %v4084, %v4100
      %v4113 = vadd.f32 %v4085, %v4105
      %v4114 = vadd.f32 %v4086, %v4105
      %v4115 = vadd.f32 %v4107, %v1251
      %v4116 = vadd.f32 %v4108, %v1252
      %v4117 = vadd.f32 %v4109, %v1253
      %v4118 = vadd.f32 %v4110, %v1254
      %v4119 = vadd.f32 %v4111, %v1255
      %v4120 = vadd.f32 %v4112, %v1256
      %v4121 = vadd.f32 %v4113, %v1257
      %v4122 = vadd.f32 %v4114, %v1258
      %v4123 = vpack.c.bf16 %v4117, %v4115
      %v4124 = vpack.c.bf16 %v4118, %v4116
      %v4125 = vpack.c.bf16 %v4121, %v4119
      %v4126 = vpack.c.bf16 %v4122, %v4120
      %v4131 = vunpack.c.l.b16 %v4123
      %v4132 = vunpack.c.l.b16 %v4124
      %v4133 = vunpack.c.h.b16 %v4123
      %v4134 = vunpack.c.h.b16 %v4124
      %v4135 = vunpack.c.l.b16 %v4125
      %v4136 = vunpack.c.l.b16 %v4126
      %v4137 = vunpack.c.h.b16 %v4125
      %v4138 = vunpack.c.h.b16 %v4126
      %v4139 = vpack.c.b16 %v4132, %v4131
      %v4140 = vpack.c.b16 %v4134, %v4133
      %v4141 = vpack.c.b16 %v4136, %v4135
      %v4142 = vpack.c.b16 %v4138, %v4137
      %4147 = vst [vmem:[%s305] sm:$0xff] %v4139
      %4148 = vst [vmem:[%s305 + $0x8] sm:$0xff] %v4140
      %4149 = vst [vmem:[%s305 + $0x10] sm:$0xff] %v4141
      %4150 = vst [vmem:[%s305 + $0x18] sm:$0xff] %v4142
      %p4151 = scmp.lt.s32.totalorder %s19, 1
      %s4152 = scalar_select %p4151, %s19, 1
      %s4153 = smul.addr %s4152, 8
      %s4154 = smul.addr %s4153, 4
      %s4155 = scalar_lea.vmem %s8, %s4154
      // Predicated region
      $region60: #{edsr_forward.3} parent=51 // pred_check
        %p4156 = pneg %p210
      $region61: #{edsr_forward.3} parent=51 // pred_check_branch
        %4158 = sbr.rel (%p4156) target = $region63
      $region62: #{edsr_forward.3} parent=51 // pred_region
        _
      $region63: #{edsr_forward.3} parent=51 // pred_fallthru
        _
    $region52: #{edsr_forward.3} parent=5 // pred_fallthru
      _
    %p4159 = scmp.le.s32.totalorder 2, %s14
    // Predicated region
    $region64: #{edsr_forward.3} parent=5 // pred_check
      %p4160 = pneg %p4159
    $region65: #{edsr_forward.3} parent=5 // pred_check_branch
      %4162 = sbr.rel (%p4160) target = $region67
    $region66: #{edsr_forward.3} parent=5 // pred_region
      %s4163 = ssub.s32 %s14, 2
      // Predicated region
      $region68: #{edsr_forward.3} parent=66 // pred_check
        %p4164 = pneg %p216
      $region69: #{edsr_forward.3} parent=66 // pred_check_branch
        %4166 = sbr.rel (%p4164) target = $region71
      $region70: #{edsr_forward.3} parent=66 // pred_region
        %p4167 = scmp.lt.s32.totalorder %s20, 1
        %s4168 = scalar_select %p4167, %s20, 1
        %s4169 = smul.addr %s4168, 8
        %s4170 = smul.addr %s4169, 4
        %s4171 = scalar_lea.vmem %s8, %s4170
      $region71: #{edsr_forward.3} parent=66 // pred_fallthru
        _
    $region67: #{edsr_forward.3} parent=5 // pred_fallthru
      _
  $region6: #{edsr_forward.3} parent=0 // loop_footer
    %s18 = sadd.s32 1, %s14
  $region7: #{edsr_forward.3} parent=0 // loop_footer_branch
    %13 = sbr.rel target = $region3
  $region8: #{edsr_forward.3} parent=0 // loop_exit
    _

// kernel: edsr_forward.5
$region0: #{edsr_forward.5}
  #allocation0 [shape = 'u32[]', space=smem, size = 0x4, offset = 0x4, fixed_abs, tag = 'smem constant byte address 0x4 - core index']
  #allocation1 [shape = 'u32[144,128]{1,0:T(1,128)}', space=vmem, size = 0x12000, scoped, tag = 'internal scratch']
  #allocation2 [shape = 'bf16[32,1185]{1,0:T(16,128)(2,1)}', space=vmem, size = 0x14000, scoped, tag = 'scratch operand']
  %s0 = inlined_call_operand.vmem [shape: bf16[2,32,1024], index: 0, kind: input, shape index: {}]
  %s1 = inlined_call_operand.vmem [shape: bf16[36,32], index: 1, kind: input, shape index: {}]
  %s2 = inlined_call_operand.vmem [shape: f32[4,1], index: 2, kind: input, shape index: {}]
  %s3 = inlined_call_operand.vmem [shape: f32[2,4,1024], index: 3, kind: output, shape index: {}]
  %s4 = sld [smem:[#allocation0]]
  $region45: #{edsr_forward.5} parent=0
    _
  %s6 = ssub.s32 1, %s4
  %s7 = scalar_select 0, %s6, %s4
  loop: start=0, step=1, limit=4
  $region2: #{edsr_forward.5} parent=0 // loop_pre_header
    _
  $region3: #{edsr_forward.5} parent=0 // loop_header
    %s9 = sphi 0, %s13
    %p10 = scmp.ge.s32.totalorder %s9, 4
    %s19 = sphi 0, %s21
    %s22 = sphi 0, %s19
    %s23 = sphi 0, %s22
    %s39 = sphi 0, %s23
    %s43 = sphi 0, %s43
    %s45 = sphi 0, %s43
    %s46 = sphi 0, %s45
    %s60 = sphi 0, %s46
    %s64 = sphi 0, %s64
    %s66 = sphi 0, %s64
    %s67 = sphi 0, %s66
    %s81 = sphi 0, %s67
    %s87 = sphi 0, %s89
    %s90 = sphi 0, %s87
    %s91 = sphi 0, %s90
    %s107 = sphi 0, %s91
  $region4: #{edsr_forward.5} parent=0 // loop_header_branch
    %12 = sbr.rel (%p10) target = $region8
  $region5: #{edsr_forward.5} parent=0 // loop_body
    %s14 = ssub.s32 %s9, 1
    %s15 = ssub.s32 %s9, 2
    %s16 = sadd.s32 %s9, 1
    %s17 = ssub.s32 %s9, %s16
    %p18 = scmp.eq.s32.totalorder %s17, 0
    %s20 = sadd.s32 %s19, 1
    %s21 = scalar_select %p18, %s19, %s20
    %p24 = pneg %p18
    %p25 = scmp.eq.s32.totalorder %s9, 1
    %p26 = por %p24, %p25
    %p27 = scmp.ne.s32.totalorder %s19, %s22
    %p28 = scmp.eq.s32.totalorder %s9, 0
    %p29 = por %p27, %p28
    %p30 = scmp.ne.s32.totalorder %s19, %s22
    %p31 = scmp.eq.s32.totalorder %s14, 1
    %p32 = por %p30, %p31
    %p33 = scmp.ne.s32.totalorder %s22, %s23
    %p34 = scmp.eq.s32.totalorder %s14, 0
    %p35 = por %p33, %p34
    %p36 = scmp.ne.s32.totalorder %s22, %s23
    %p37 = scmp.eq.s32.totalorder %s15, 1
    %p38 = por %p36, %p37
    %p40 = scmp.ne.s32.totalorder %s23, %s39
    %p41 = scmp.eq.s32.totalorder %s15, 0
    %p42 = por %p40, %p41
    %s44 = sadd.s32 %s43, 1
    %p47 = scmp.eq.s32.totalorder %s9, 1
    %p48 = scmp.ne.s32.totalorder %s43, %s45
    %p49 = scmp.eq.s32.totalorder %s9, 0
    %p50 = por %p48, %p49
    %p51 = scmp.ne.s32.totalorder %s43, %s45
    %p52 = scmp.eq.s32.totalorder %s14, 1
    %p53 = por %p51, %p52
    %p54 = scmp.ne.s32.totalorder %s45, %s46
    %p55 = scmp.eq.s32.totalorder %s14, 0
    %p56 = por %p54, %p55
    %p57 = scmp.ne.s32.totalorder %s45, %s46
    %p58 = scmp.eq.s32.totalorder %s15, 1
    %p59 = por %p57, %p58
    %p61 = scmp.ne.s32.totalorder %s46, %s60
    %p62 = scmp.eq.s32.totalorder %s15, 0
    %p63 = por %p61, %p62
    %s65 = sadd.s32 %s64, 1
    %p68 = scmp.eq.s32.totalorder %s9, 1
    %p69 = scmp.ne.s32.totalorder %s64, %s66
    %p70 = scmp.eq.s32.totalorder %s9, 0
    %p71 = por %p69, %p70
    %p72 = scmp.ne.s32.totalorder %s64, %s66
    %p73 = scmp.eq.s32.totalorder %s14, 1
    %p74 = por %p72, %p73
    %p75 = scmp.ne.s32.totalorder %s66, %s67
    %p76 = scmp.eq.s32.totalorder %s14, 0
    %p77 = por %p75, %p76
    %p78 = scmp.ne.s32.totalorder %s66, %s67
    %p79 = scmp.eq.s32.totalorder %s15, 1
    %p80 = por %p78, %p79
    %p82 = scmp.ne.s32.totalorder %s67, %s81
    %p83 = scmp.eq.s32.totalorder %s15, 0
    %p84 = por %p82, %p83
    %s85 = ssub.s32 %s9, %s16
    %p86 = scmp.eq.s32.totalorder %s85, 0
    %s88 = sadd.s32 %s87, 1
    %s89 = scalar_select %p86, %s87, %s88
    %p92 = pneg %p86
    %p93 = scmp.eq.s32.totalorder %s9, 1
    %p94 = por %p92, %p93
    %p95 = scmp.ne.s32.totalorder %s87, %s90
    %p96 = scmp.eq.s32.totalorder %s9, 0
    %p97 = por %p95, %p96
    %p98 = scmp.ne.s32.totalorder %s87, %s90
    %p99 = scmp.eq.s32.totalorder %s14, 1
    %p100 = por %p98, %p99
    %p101 = scmp.ne.s32.totalorder %s90, %s91
    %p102 = scmp.eq.s32.totalorder %s14, 0
    %p103 = por %p101, %p102
    %p104 = scmp.ne.s32.totalorder %s90, %s91
    %p105 = scmp.eq.s32.totalorder %s15, 1
    %p106 = por %p104, %p105
    %p108 = scmp.ne.s32.totalorder %s91, %s107
    %p109 = scmp.eq.s32.totalorder %s15, 0
    %p110 = por %p108, %p109
    %p111 = scmp.le.s32.totalorder 1, %s9
    %p112 = scmp.lt.s32.totalorder %s9, 3
    %p113 = pnand %p111, %p112
    %p114 = pneg %p113
    // Predicated region
    $region9: #{edsr_forward.5} parent=5 // pred_check
      _
    $region10: #{edsr_forward.5} parent=5 // pred_check_branch
      %116 = sbr.rel (%p113) target = $region12
    $region11: #{edsr_forward.5} parent=5 // pred_region
      %s117 = ssub.s32 %s9, 1
      // Predicated region
      $region13: #{edsr_forward.5} parent=11 // pred_check
        %p118 = pneg %p56
      $region14: #{edsr_forward.5} parent=11 // pred_check_branch
        %120 = sbr.rel (%p118) target = $region16
      $region15: #{edsr_forward.5} parent=11 // pred_region
        _
      $region16: #{edsr_forward.5} parent=11 // pred_fallthru
        _
      // Predicated region
      $region17: #{edsr_forward.5} parent=11 // pred_check
        %p121 = pneg %p77
      $region18: #{edsr_forward.5} parent=11 // pred_check_branch
        %123 = sbr.rel (%p121) target = $region20
      $region19: #{edsr_forward.5} parent=11 // pred_region
        _
      $region20: #{edsr_forward.5} parent=11 // pred_fallthru
        _
    $region12: #{edsr_forward.5} parent=5 // pred_fallthru
      _
    %p124 = scmp.lt.s32.totalorder %s9, 2
    // Predicated region
    $region21: #{edsr_forward.5} parent=5 // pred_check
      %p125 = pneg %p124
    $region22: #{edsr_forward.5} parent=5 // pred_check_branch
      %127 = sbr.rel (%p125) target = $region24
    $region23: #{edsr_forward.5} parent=5 // pred_region
      // Predicated region
      $region25: #{edsr_forward.5} parent=23 // pred_check
        %p128 = pneg %p29
      $region26: #{edsr_forward.5} parent=23 // pred_check_branch
        %130 = sbr.rel (%p128) target = $region28
      $region27: #{edsr_forward.5} parent=23 // pred_region
        %p131 = scmp.lt.s32.totalorder %s9, 1
        %s132 = scalar_select %p131, %s9, 1
        %s133 = smul.addr %s132, 32
        %s134 = smul.addr %s133, 4
        %s135 = scalar_lea.vmem %s0, %s134
      $region28: #{edsr_forward.5} parent=23 // pred_fallthru
        _
    $region24: #{edsr_forward.5} parent=5 // pred_fallthru
      _
    %p136 = scmp.le.s32.totalorder 1, %s9
    %p137 = scmp.lt.s32.totalorder %s9, 3
    %p138 = pnand %p136, %p137
    %p139 = pneg %p138
    // Predicated region
    $region29: #{edsr_forward.5} parent=5 // pred_check
      _
    $region30: #{edsr_forward.5} parent=5 // pred_check_branch
      %141 = sbr.rel (%p138) target = $region32
    $region31: #{edsr_forward.5} parent=5 // pred_region
      %s142 = ssub.s32 %s9, 1
      %p143 = scmp.lt.s32.totalorder %s14, 1
      %s144 = scalar_select %p143, %s14, 1
      %s145 = smul.addr %s144, 32
      %s146 = smul.addr %s145, 4
      %s147 = scalar_lea.vmem %s0, %s146
      %p148 = pneg %p35
      %p149 = pneg %p32
      %p150 = pneg %p56
      %p151 = pneg %p53
      %p152 = pneg %p77
      %p153 = pneg %p74
      %p154 = pneg %p103
      %p155 = pneg %p100
      %p156 = scmp.lt.s32.totalorder %s14, 1
      %s157 = scalar_select %p156, %s14, 1
      %s158 = smul.addr %s157, 8
      %s159 = smul.addr %s158, 4
      %s160 = scalar_lea.vmem %s3, %s159
      %p161 = scmp.lt.s32.totalorder %s14, 1
      %s162 = scalar_select %p161, %s14, 1
      %s163 = smul.addr %s162, 32
      %s164 = smul.addr %s163, 4
      %s165 = scalar_lea.vmem %s0, %s164
      %p166 = scmp.lt.s32.totalorder %s14, 1
      %s167 = scalar_select %p166, %s14, 1
      %s168 = smul.addr %s167, 8
      %s169 = smul.addr %s168, 4
      %s170 = scalar_lea.vmem %s3, %s169
      %vm172 = vcmask 1048312
      %173 = vst.msk [vmem:[#allocation2] sm:$0xff] %vm172, 0
      %174 = vst.msk [vmem:[#allocation2 + $0x50] sm:$0xff] %vm172, 0
      %vm175 = vcmask 269312
      %176 = vst.msk [vmem:[#allocation2 + $0x48] sm:$0xff] %vm175, 0
      %177 = vst.msk [vmem:[#allocation2 + $0x98] sm:$0xff] %vm175, 0
      %v178 = vlaneseq
      %v179 = vand.u32 %v178, 127
      %v180 = vadd.s32 %v179, 128
      %v181 = vadd.s32 %v179, 256
      %v182 = vadd.s32 %v179, 384
      %v183 = vadd.s32 %v179, 512
      %v184 = vadd.s32 %v179, 640
      %v185 = vadd.s32 %v179, 768
      %v186 = vadd.s32 %v179, 896
      %vm187 = vcmp.lt.s32.totalorder %v179, 0
      %v188 = vsub.s32 0, %v179
      %v189 = vsel %vm187, %v188, %v179
      %v190 = vshrl.u32 %v189, 5
      %v191 = vand.u32 %v189, 31
      %v192 = vsub.s32 0, %v191
      %v193 = vsel %vm187, %v192, %v191
      %vm194 = vcmp.lt.s32.totalorder %v180, 0
      %v195 = vsub.s32 0, %v180
      %v196 = vsel %vm194, %v195, %v180
      %v197 = vshrl.u32 %v196, 5
      %v198 = vand.u32 %v196, 31
      %v199 = vsub.s32 0, %v198
      %v200 = vsel %vm194, %v199, %v198
      %vm201 = vcmp.lt.s32.totalorder %v181, 0
      %v202 = vsub.s32 0, %v181
      %v203 = vsel %vm201, %v202, %v181
      %v204 = vshrl.u32 %v203, 5
      %v205 = vand.u32 %v203, 31
      %v206 = vsub.s32 0, %v205
      %v207 = vsel %vm201, %v206, %v205
      %vm208 = vcmp.lt.s32.totalorder %v182, 0
      %v209 = vsub.s32 0, %v182
      %v210 = vsel %vm208, %v209, %v182
      %v211 = vshrl.u32 %v210, 5
      %v212 = vand.u32 %v210, 31
      %v213 = vsub.s32 0, %v212
      %v214 = vsel %vm208, %v213, %v212
      %vm215 = vcmp.lt.s32.totalorder %v183, 0
      %v216 = vsub.s32 0, %v183
      %v217 = vsel %vm215, %v216, %v183
      %v218 = vshrl.u32 %v217, 5
      %v219 = vand.u32 %v217, 31
      %v220 = vsub.s32 0, %v219
      %v221 = vsel %vm215, %v220, %v219
      %vm222 = vcmp.lt.s32.totalorder %v184, 0
      %v223 = vsub.s32 0, %v184
      %v224 = vsel %vm222, %v223, %v184
      %v225 = vshrl.u32 %v224, 5
      %v226 = vand.u32 %v224, 31
      %v227 = vsub.s32 0, %v226
      %v228 = vsel %vm222, %v227, %v226
      %vm229 = vcmp.lt.s32.totalorder %v185, 0
      %v230 = vsub.s32 0, %v185
      %v231 = vsel %vm229, %v230, %v185
      %v232 = vshrl.u32 %v231, 5
      %v233 = vand.u32 %v231, 31
      %v234 = vsub.s32 0, %v233
      %v235 = vsel %vm229, %v234, %v233
      %vm236 = vcmp.lt.s32.totalorder %v186, 0
      %v237 = vsub.s32 0, %v186
      %v238 = vsel %vm236, %v237, %v186
      %v239 = vshrl.u32 %v238, 5
      %v240 = vand.u32 %v238, 31
      %v241 = vsub.s32 0, %v240
      %v242 = vsel %vm236, %v241, %v240
      %vm243 = vcmp.ne.s32.totalorder %v193, 0
      %vm244 = vcmp.ne.s32.totalorder %v200, 0
      %vm245 = vcmp.ne.s32.totalorder %v207, 0
      %vm246 = vcmp.ne.s32.totalorder %v214, 0
      %vm247 = vcmp.ne.s32.totalorder %v221, 0
      %vm248 = vcmp.ne.s32.totalorder %v228, 0
      %vm249 = vcmp.ne.s32.totalorder %v235, 0
      %vm250 = vcmp.ne.s32.totalorder %v242, 0
      %vm251 = vcmp.lt.s32.totalorder %v193, 0
      %vm252 = vcmp.lt.s32.totalorder %v200, 0
      %vm253 = vcmp.lt.s32.totalorder %v207, 0
      %vm254 = vcmp.lt.s32.totalorder %v214, 0
      %vm255 = vcmp.lt.s32.totalorder %v221, 0
      %vm256 = vcmp.lt.s32.totalorder %v228, 0
      %vm257 = vcmp.lt.s32.totalorder %v235, 0
      %vm258 = vcmp.lt.s32.totalorder %v242, 0
      %vm259 = vmand %vm251, %vm243
      %vm260 = vmand %vm252, %vm244
      %vm261 = vmand %vm253, %vm245
      %vm262 = vmand %vm254, %vm246
      %vm263 = vmand %vm255, %vm247
      %vm264 = vmand %vm256, %vm248
      %vm265 = vmand %vm257, %vm249
      %vm266 = vmand %vm258, %vm250
      %v267 = vadd.s32 %v193, 32
      %v268 = vadd.s32 %v200, 32
      %v269 = vadd.s32 %v207, 32
      %v270 = vadd.s32 %v214, 32
      %v271 = vadd.s32 %v221, 32
      %v272 = vadd.s32 %v228, 32
      %v273 = vadd.s32 %v235, 32
      %v274 = vadd.s32 %v242, 32
      %v275 = vsel %vm259, %v267, %v193
      %v276 = vsel %vm260, %v268, %v200
      %v277 = vsel %vm261, %v269, %v207
      %v278 = vsel %vm262, %v270, %v214
      %v279 = vsel %vm263, %v271, %v221
      %v280 = vsel %vm264, %v272, %v228
      %v281 = vsel %vm265, %v273, %v235
      %v282 = vsel %vm266, %v274, %v242
      %vm283 = vcmp.ne.s32.totalorder %v275, 0
      %vm284 = vcmp.ne.s32.totalorder %v276, 0
      %vm285 = vcmp.ne.s32.totalorder %v277, 0
      %vm286 = vcmp.ne.s32.totalorder %v278, 0
      %vm287 = vcmp.ne.s32.totalorder %v279, 0
      %vm288 = vcmp.ne.s32.totalorder %v280, 0
      %vm289 = vcmp.ne.s32.totalorder %v281, 0
      %vm290 = vcmp.ne.s32.totalorder %v282, 0
      %v291 = vsel %vm283, 1, 0
      %v292 = vsel %vm284, 1, 0
      %v293 = vsel %vm285, 1, 0
      %v294 = vsel %vm286, 1, 0
      %v295 = vsel %vm287, 1, 0
      %v296 = vsel %vm288, 1, 0
      %v297 = vsel %vm289, 1, 0
      %v298 = vsel %vm290, 1, 0
      %v299 = vcvt.s32.f32 %v291
      %v300 = vcvt.s32.f32 %v292
      %v301 = vcvt.s32.f32 %v293
      %v302 = vcvt.s32.f32 %v294
      %v303 = vcvt.s32.f32 %v295
      %v304 = vcvt.s32.f32 %v296
      %v305 = vcvt.s32.f32 %v297
      %v306 = vcvt.s32.f32 %v298
      %vm307 = vcmp.ne.s32.totalorder %v275, 31
      %vm308 = vcmp.ne.s32.totalorder %v276, 31
      %vm309 = vcmp.ne.s32.totalorder %v277, 31
      %vm310 = vcmp.ne.s32.totalorder %v278, 31
      %vm311 = vcmp.ne.s32.totalorder %v279, 31
      %vm312 = vcmp.ne.s32.totalorder %v280, 31
      %vm313 = vcmp.ne.s32.totalorder %v281, 31
      %vm314 = vcmp.ne.s32.totalorder %v282, 31
      %v315 = vsel %vm307, 1, 0
      %v316 = vsel %vm308, 1, 0
      %v317 = vsel %vm309, 1, 0
      %v318 = vsel %vm310, 1, 0
      %v319 = vsel %vm311, 1, 0
      %v320 = vsel %vm312, 1, 0
      %v321 = vsel %vm313, 1, 0
      %v322 = vsel %vm314, 1, 0
      %v323 = vcvt.s32.f32 %v315
      %v324 = vcvt.s32.f32 %v316
      %v325 = vcvt.s32.f32 %v317
      %v326 = vcvt.s32.f32 %v318
      %v327 = vcvt.s32.f32 %v319
      %v328 = vcvt.s32.f32 %v320
      %v329 = vcvt.s32.f32 %v321
      %v330 = vcvt.s32.f32 %v322
      %v331 = vld [vmem:[%s165] sm:$0xff]
      %v332 = vld [vmem:[%s165 + $0x8] sm:$0xff]
      %v333 = vld [vmem:[%s165 + $0x10] sm:$0xff]
      %v334 = vld [vmem:[%s165 + $0x18] sm:$0xff]
      %v335 = vld [vmem:[%s165 + $0x20] sm:$0xff]
      %v336 = vld [vmem:[%s165 + $0x28] sm:$0xff]
      %v337 = vld [vmem:[%s165 + $0x30] sm:$0xff]
      %v338 = vld [vmem:[%s165 + $0x38] sm:$0xff]
      %v339 = vld [vmem:[%s165 + $0x40] sm:$0xff]
      %v340 = vld [vmem:[%s165 + $0x48] sm:$0xff]
      %v341 = vld [vmem:[%s165 + $0x50] sm:$0xff]
      %v342 = vld [vmem:[%s165 + $0x58] sm:$0xff]
      %v343 = vld [vmem:[%s165 + $0x60] sm:$0xff]
      %v344 = vld [vmem:[%s165 + $0x68] sm:$0xff]
      %v345 = vld [vmem:[%s165 + $0x70] sm:$0xff]
      %v346 = vld [vmem:[%s165 + $0x78] sm:$0xff]
      %v347 = vld [vmem:[%s1] sm:$0xf]
      %v348 = vld [vmem:[%s1 + $0x4] sm:$0xf]
      %v349 = vld [vmem:[%s1 + $0x8] sm:$0xf]
      %v350 = vld [vmem:[%s1 + $0xc] sm:$0xf]
      %v351 = vld [vmem:[%s1 + $0x10] sm:$0x3]
      %v352 = vld [vmem:[%s2] sm:$0xf]
      %v369 = vunpack.c.l.b16 %v331
      %v370 = vunpack.c.h.b16 %v331
      %v371 = vunpack.c.l.b16 %v332
      %v372 = vunpack.c.h.b16 %v332
      %v373 = vunpack.c.l.b16 %v333
      %v374 = vunpack.c.h.b16 %v333
      %v375 = vunpack.c.l.b16 %v334
      %v376 = vunpack.c.h.b16 %v334
      %v377 = vunpack.c.l.b16 %v335
      %v378 = vunpack.c.h.b16 %v335
      %v379 = vunpack.c.l.b16 %v336
      %v380 = vunpack.c.h.b16 %v336
      %v381 = vunpack.c.l.b16 %v337
      %v382 = vunpack.c.h.b16 %v337
      %v383 = vunpack.c.l.b16 %v338
      %v384 = vunpack.c.h.b16 %v338
      %v385 = vunpack.c.l.b16 %v339
      %v386 = vunpack.c.h.b16 %v339
      %v387 = vunpack.c.l.b16 %v340
      %v388 = vunpack.c.h.b16 %v340
      %v389 = vunpack.c.l.b16 %v341
      %v390 = vunpack.c.h.b16 %v341
      %v391 = vunpack.c.l.b16 %v342
      %v392 = vunpack.c.h.b16 %v342
      %v393 = vunpack.c.l.b16 %v343
      %v394 = vunpack.c.h.b16 %v343
      %v395 = vunpack.c.l.b16 %v344
      %v396 = vunpack.c.h.b16 %v344
      %v397 = vunpack.c.l.b16 %v345
      %v398 = vunpack.c.h.b16 %v345
      %v399 = vunpack.c.l.b16 %v346
      %v400 = vunpack.c.h.b16 %v346
      %v401 = vpack.c.b16 %v377, %v369
      %v402 = vpack.c.b16 %v378, %v370
      %v403 = vpack.c.b16 %v379, %v371
      %v404 = vpack.c.b16 %v380, %v372
      %v405 = vpack.c.b16 %v381, %v373
      %v406 = vpack.c.b16 %v382, %v374
      %v407 = vpack.c.b16 %v383, %v375
      %v408 = vpack.c.b16 %v384, %v376
      %v409 = vpack.c.b16 %v393, %v385
      %v410 = vpack.c.b16 %v394, %v386
      %v411 = vpack.c.b16 %v395, %v387
      %v412 = vpack.c.b16 %v396, %v388
      %v413 = vpack.c.b16 %v397, %v389
      %v414 = vpack.c.b16 %v398, %v390
      %v415 = vpack.c.b16 %v399, %v391
      %v416 = vpack.c.b16 %v400, %v392
      %433 = vst [vmem:[#allocation2 + $0x8] sm:$0xff] %v401
      %434 = vst [vmem:[#allocation2 + $0x10] sm:$0xff] %v402
      %435 = vst [vmem:[#allocation2 + $0x18] sm:$0xff] %v403
      %436 = vst [vmem:[#allocation2 + $0x20] sm:$0xff] %v404
      %437 = vst [vmem:[#allocation2 + $0x28] sm:$0xff] %v405
      %438 = vst [vmem:[#allocation2 + $0x30] sm:$0xff] %v406
      %439 = vst [vmem:[#allocation2 + $0x38] sm:$0xff] %v407
      %440 = vst [vmem:[#allocation2 + $0x40] sm:$0xff] %v408
      %441 = vst [vmem:[#allocation2 + $0x58] sm:$0xff] %v409
      %442 = vst [vmem:[#allocation2 + $0x60] sm:$0xff] %v410
      %443 = vst [vmem:[#allocation2 + $0x68] sm:$0xff] %v411
      %444 = vst [vmem:[#allocation2 + $0x70] sm:$0xff] %v412
      %445 = vst [vmem:[#allocation2 + $0x78] sm:$0xff] %v413
      %446 = vst [vmem:[#allocation2 + $0x80] sm:$0xff] %v414
      %447 = vst [vmem:[#allocation2 + $0x88] sm:$0xff] %v415
      %448 = vst [vmem:[#allocation2 + $0x90] sm:$0xff] %v416
      %v449 = vld [vmem:[#allocation2] sm:$0xff]
      %v450 = vld [vmem:[#allocation2 + $0x8] sm:$0xff]
      %v451 = vld [vmem:[#allocation2 + $0x10] sm:$0xff]
      %v452 = vld [vmem:[#allocation2 + $0x18] sm:$0xff]
      %v453 = vld [vmem:[#allocation2 + $0x20] sm:$0xff]
      %v454 = vld [vmem:[#allocation2 + $0x28] sm:$0xff]
      %v455 = vld [vmem:[#allocation2 + $0x30] sm:$0xff]
      %v456 = vld [vmem:[#allocation2 + $0x38] sm:$0xff]
      %v457 = vld [vmem:[#allocation2 + $0x40] sm:$0xff]
      %v458 = vld [vmem:[#allocation2 + $0x50] sm:$0xff]
      %v459 = vld [vmem:[#allocation2 + $0x58] sm:$0xff]
      %v460 = vld [vmem:[#allocation2 + $0x60] sm:$0xff]
      %v461 = vld [vmem:[#allocation2 + $0x68] sm:$0xff]
      %v462 = vld [vmem:[#allocation2 + $0x70] sm:$0xff]
      %v463 = vld [vmem:[#allocation2 + $0x78] sm:$0xff]
      %v464 = vld [vmem:[#allocation2 + $0x80] sm:$0xff]
      %v465 = vld [vmem:[#allocation2 + $0x88] sm:$0xff]
      %v466 = vld [vmem:[#allocation2 + $0x90] sm:$0xff]
      %v468 = vunpack.c.l.b16 %v348
      %v469 = vpack.c.b16 %v468, %v468
      %v470 = vrot.slane %v469, 2
      %489 = vrot.lane.b32.xlu0 %v449, 1
      %v490 = vpop.permute.xlu0 %489
      %491 = vrot.lane.b32.xlu0 %v450, 1
      %v492 = vpop.permute.xlu0 %491
      %493 = vrot.lane.b32.xlu0 %v451, 1
      %v494 = vpop.permute.xlu0 %493
      %495 = vrot.lane.b32.xlu0 %v452, 1
      %v496 = vpop.permute.xlu0 %495
      %497 = vrot.lane.b32.xlu0 %v453, 1
      %v498 = vpop.permute.xlu0 %497
      %499 = vrot.lane.b32.xlu0 %v454, 1
      %v500 = vpop.permute.xlu0 %499
      %501 = vrot.lane.b32.xlu0 %v455, 1
      %v502 = vpop.permute.xlu0 %501
      %503 = vrot.lane.b32.xlu0 %v456, 1
      %v504 = vpop.permute.xlu0 %503
      %505 = vrot.lane.b32.xlu0 %v457, 1
      %v506 = vpop.permute.xlu0 %505
      %507 = vrot.lane.b32.xlu0 %v458, 1
      %v508 = vpop.permute.xlu0 %507
      %509 = vrot.lane.b32.xlu0 %v459, 1
      %v510 = vpop.permute.xlu0 %509
      %511 = vrot.lane.b32.xlu0 %v460, 1
      %v512 = vpop.permute.xlu0 %511
      %513 = vrot.lane.b32.xlu0 %v461, 1
      %v514 = vpop.permute.xlu0 %513
      %515 = vrot.lane.b32.xlu0 %v462, 1
      %v516 = vpop.permute.xlu0 %515
      %517 = vrot.lane.b32.xlu0 %v463, 1
      %v518 = vpop.permute.xlu0 %517
      %519 = vrot.lane.b32.xlu0 %v464, 1
      %v520 = vpop.permute.xlu0 %519
      %521 = vrot.lane.b32.xlu0 %v465, 1
      %v522 = vpop.permute.xlu0 %521
      %523 = vrot.lane.b32.xlu0 %v466, 1
      %v524 = vpop.permute.xlu0 %523
      %vm525 = vcmask 7168
      %v526 = vsel %vm525, %v490, %v492
      %v527 = vsel %vm525, %v492, %v494
      %v528 = vsel %vm525, %v494, %v496
      %v529 = vsel %vm525, %v496, %v498
      %v530 = vsel %vm525, %v498, %v500
      %v531 = vsel %vm525, %v500, %v502
      %v532 = vsel %vm525, %v502, %v504
      %v533 = vsel %vm525, %v504, %v506
      %v534 = vsel %vm525, %v508, %v510
      %v535 = vsel %vm525, %v510, %v512
      %v536 = vsel %vm525, %v512, %v514
      %v537 = vsel %vm525, %v514, %v516
      %v538 = vsel %vm525, %v516, %v518
      %v539 = vsel %vm525, %v518, %v520
      %v540 = vsel %vm525, %v520, %v522
      %v541 = vsel %vm525, %v522, %v524
      %vm558 = vcmask 261120
      %v560 = vsel %vm558, %v470, 0
      %562 = vmatprep.subr.bf16.mxu0 %v527
      %563 = vmatpush1.bf16.msra.mxu0 %v526
      %564 = vmatprep.subr.bf16.mxu0 %v535
      %565 = vmatpush1.bf16.msra.mxu0 %v534
      %566 = vmatprep.subr.bf16.mxu0 0
      %567 = vmatpush1.bf16.msra.mxu0 0
      %568 = vmatprep.subr.bf16.mxu0 0
      %569 = vmatpush1.bf16.msra.mxu0 0
      %570 = vmatprep.subr.bf16.mxu0 0
      %571 = vmatpush1.bf16.msra.mxu0 0
      %572 = vmatprep.subr.bf16.mxu0 0
      %573 = vmatpush1.bf16.msra.mxu0 0
      %574 = vmatprep.subr.bf16.mxu0 0
      %575 = vmatpush1.bf16.msra.mxu0 0
      %576 = vmatprep.subr.bf16.mxu0 0
      %577 = vmatpush1.bf16.msra.mxu0 0
      %578 = vmatprep.subr.bf16.mxu0 0
      %579 = vmatpush1.bf16.msra.mxu0 0
      %580 = vmatprep.subr.bf16.mxu0 0
      %581 = vmatpush1.bf16.msra.mxu0 0
      %582 = vmatprep.subr.bf16.mxu0 0
      %583 = vmatpush1.bf16.msra.mxu0 0
      %584 = vmatprep.subr.bf16.mxu0 0
      %585 = vmatpush1.bf16.msra.mxu0 0
      %586 = vmatprep.subr.bf16.mxu0 0
      %587 = vmatpush1.bf16.msra.mxu0 0
      %588 = vmatprep.subr.bf16.mxu0 0
      %589 = vmatpush1.bf16.msra.mxu0 0
      %590 = vmatprep.subr.bf16.mxu0 0
      %591 = vmatpush1.bf16.msra.mxu0 0
      %592 = vmatprep.subr.bf16.mxu0 0
      %593 = vmatpush1.bf16.msra.mxu0 0
      %594 = vmatprep.mubr.bf16.mxu0 0
      %595 = vmatmul.mubr.bf16.gmra.mrb[0].mxu0 %v560
      %v596 = vpop.f32.mrb[0].mxu0
      %v597 = vadd.f32 0.0, %v596
      %v598 = vpop.f32.mrb[0].mxu0
      %v599 = vadd.f32 0.0, %v598
      %v600 = vpop.f32.mrb[0].mxu0
      %v601 = vpop.f32.mrb[0].mxu0
      %602 = vdwg.mxu0
      %603 = vmatprep.subr.bf16.mxu0 %v529
      %604 = vmatpush1.bf16.msra.mxu0 %v528
      %605 = vmatprep.subr.bf16.mxu0 %v537
      %606 = vmatpush1.bf16.msra.mxu0 %v536
      %607 = vmatprep.subr.bf16.mxu0 0
      %608 = vmatpush1.bf16.msra.mxu0 0
      %609 = vmatprep.subr.bf16.mxu0 0
      %610 = vmatpush1.bf16.msra.mxu0 0
      %611 = vmatprep.subr.bf16.mxu0 0
      %612 = vmatpush1.bf16.msra.mxu0 0
      %613 = vmatprep.subr.bf16.mxu0 0
      %614 = vmatpush1.bf16.msra.mxu0 0
      %615 = vmatprep.subr.bf16.mxu0 0
      %616 = vmatpush1.bf16.msra.mxu0 0
      %617 = vmatprep.subr.bf16.mxu0 0
      %618 = vmatpush1.bf16.msra.mxu0 0
      %619 = vmatprep.subr.bf16.mxu0 0
      %620 = vmatpush1.bf16.msra.mxu0 0
      %621 = vmatprep.subr.bf16.mxu0 0
      %622 = vmatpush1.bf16.msra.mxu0 0
      %623 = vmatprep.subr.bf16.mxu0 0
      %624 = vmatpush1.bf16.msra.mxu0 0
      %625 = vmatprep.subr.bf16.mxu0 0
      %626 = vmatpush1.bf16.msra.mxu0 0
      %627 = vmatprep.subr.bf16.mxu0 0
      %628 = vmatpush1.bf16.msra.mxu0 0
      %629 = vmatprep.subr.bf16.mxu0 0
      %630 = vmatpush1.bf16.msra.mxu0 0
      %631 = vmatprep.subr.bf16.mxu0 0
      %632 = vmatpush1.bf16.msra.mxu0 0
      %633 = vmatprep.subr.bf16.mxu0 0
      %634 = vmatpush1.bf16.msra.mxu0 0
      %635 = vmatprep.mubr.bf16.mxu0 0
      %636 = vmatmul.mubr.bf16.gmra.mrb[0].mxu0 %v560
      %v637 = vpop.f32.mrb[0].mxu0
      %v638 = vadd.f32 0.0, %v637
      %v639 = vpop.f32.mrb[0].mxu0
      %v640 = vadd.f32 0.0, %v639
      %v641 = vpop.f32.mrb[0].mxu0
      %v642 = vpop.f32.mrb[0].mxu0
      %643 = vdwg.mxu0
      %644 = vmatprep.subr.bf16.mxu0 %v531
      %645 = vmatpush1.bf16.msra.mxu0 %v530
      %646 = vmatprep.subr.bf16.mxu0 %v539
      %647 = vmatpush1.bf16.msra.mxu0 %v538
      %648 = vmatprep.subr.bf16.mxu0 0
      %649 = vmatpush1.bf16.msra.mxu0 0
      %650 = vmatprep.subr.bf16.mxu0 0
      %651 = vmatpush1.bf16.msra.mxu0 0
      %652 = vmatprep.subr.bf16.mxu0 0
      %653 = vmatpush1.bf16.msra.mxu0 0
      %654 = vmatprep.subr.bf16.mxu0 0
      %655 = vmatpush1.bf16.msra.mxu0 0
      %656 = vmatprep.subr.bf16.mxu0 0
      %657 = vmatpush1.bf16.msra.mxu0 0
      %658 = vmatprep.subr.bf16.mxu0 0
      %659 = vmatpush1.bf16.msra.mxu0 0
      %660 = vmatprep.subr.bf16.mxu0 0
      %661 = vmatpush1.bf16.msra.mxu0 0
      %662 = vmatprep.subr.bf16.mxu0 0
      %663 = vmatpush1.bf16.msra.mxu0 0
      %664 = vmatprep.subr.bf16.mxu0 0
      %665 = vmatpush1.bf16.msra.mxu0 0
      %666 = vmatprep.subr.bf16.mxu0 0
      %667 = vmatpush1.bf16.msra.mxu0 0
      %668 = vmatprep.subr.bf16.mxu0 0
      %669 = vmatpush1.bf16.msra.mxu0 0
      %670 = vmatprep.subr.bf16.mxu0 0
      %671 = vmatpush1.bf16.msra.mxu0 0
      %672 = vmatprep.subr.bf16.mxu0 0
      %673 = vmatpush1.bf16.msra.mxu0 0
      %674 = vmatprep.subr.bf16.mxu0 0
      %675 = vmatpush1.bf16.msra.mxu0 0
      %676 = vmatprep.mubr.bf16.mxu0 0
      %677 = vmatmul.mubr.bf16.gmra.mrb[0].mxu0 %v560
      %v678 = vpop.f32.mrb[0].mxu0
      %v679 = vadd.f32 0.0, %v678
      %v680 = vpop.f32.mrb[0].mxu0
      %v681 = vadd.f32 0.0, %v680
      %v682 = vpop.f32.mrb[0].mxu0
      %v683 = vpop.f32.mrb[0].mxu0
      %684 = vdwg.mxu0
      %685 = vmatprep.subr.bf16.mxu0 %v533
      %686 = vmatpush1.bf16.msra.mxu0 %v532
      %687 = vmatprep.subr.bf16.mxu0 %v541
      %688 = vmatpush1.bf16.msra.mxu0 %v540
      %689 = vmatprep.subr.bf16.mxu0 0
      %690 = vmatpush1.bf16.msra.mxu0 0
      %691 = vmatprep.subr.bf16.mxu0 0
      %692 = vmatpush1.bf16.msra.mxu0 0
      %693 = vmatprep.subr.bf16.mxu0 0
      %694 = vmatpush1.bf16.msra.mxu0 0
      %695 = vmatprep.subr.bf16.mxu0 0
      %696 = vmatpush1.bf16.msra.mxu0 0
      %697 = vmatprep.subr.bf16.mxu0 0
      %698 = vmatpush1.bf16.msra.mxu0 0
      %699 = vmatprep.subr.bf16.mxu0 0
      %700 = vmatpush1.bf16.msra.mxu0 0
      %701 = vmatprep.subr.bf16.mxu0 0
      %702 = vmatpush1.bf16.msra.mxu0 0
      %703 = vmatprep.subr.bf16.mxu0 0
      %704 = vmatpush1.bf16.msra.mxu0 0
      %705 = vmatprep.subr.bf16.mxu0 0
      %706 = vmatpush1.bf16.msra.mxu0 0
      %707 = vmatprep.subr.bf16.mxu0 0
      %708 = vmatpush1.bf16.msra.mxu0 0
      %709 = vmatprep.subr.bf16.mxu0 0
      %710 = vmatpush1.bf16.msra.mxu0 0
      %711 = vmatprep.subr.bf16.mxu0 0
      %712 = vmatpush1.bf16.msra.mxu0 0
      %713 = vmatprep.subr.bf16.mxu0 0
      %714 = vmatpush1.bf16.msra.mxu0 0
      %715 = vmatprep.subr.bf16.mxu0 0
      %716 = vmatpush1.bf16.msra.mxu0 0
      %717 = vmatprep.mubr.bf16.mxu0 0
      %718 = vmatmul.mubr.bf16.gmra.mrb[0].mxu0 %v560
      %v719 = vpop.f32.mrb[0].mxu0
      %v720 = vadd.f32 0.0, %v719
      %v721 = vpop.f32.mrb[0].mxu0
      %v722 = vadd.f32 0.0, %v721
      %v723 = vpop.f32.mrb[0].mxu0
      %v724 = vpop.f32.mrb[0].mxu0
      %725 = vdwg.mxu0
      %726 = vrot.lane.b32.xlu0 %v449, 33
      %v727 = vpop.permute.xlu0 %726
      %728 = vrot.lane.b32.xlu0 %v450, 33
      %v729 = vpop.permute.xlu0 %728
      %730 = vrot.lane.b32.xlu0 %v451, 33
      %v731 = vpop.permute.xlu0 %730
      %732 = vrot.lane.b32.xlu0 %v452, 33
      %v733 = vpop.permute.xlu0 %732
      %734 = vrot.lane.b32.xlu0 %v453, 33
      %v735 = vpop.permute.xlu0 %734
      %736 = vrot.lane.b32.xlu0 %v454, 33
      %v737 = vpop.permute.xlu0 %736
      %738 = vrot.lane.b32.xlu0 %v455, 33
      %v739 = vpop.permute.xlu0 %738
      %740 = vrot.lane.b32.xlu0 %v456, 33
      %v741 = vpop.permute.xlu0 %740
      %742 = vrot.lane.b32.xlu0 %v457, 33
      %v743 = vpop.permute.xlu0 %742
      %744 = vrot.lane.b32.xlu0 %v458, 33
      %v745 = vpop.permute.xlu0 %744
      %746 = vrot.lane.b32.xlu0 %v459, 33
      %v747 = vpop.permute.xlu0 %746
      %748 = vrot.lane.b32.xlu0 %v460, 33
      %v749 = vpop.permute.xlu0 %748
      %750 = vrot.lane.b32.xlu0 %v461, 33
      %v751 = vpop.permute.xlu0 %750
      %752 = vrot.lane.b32.xlu0 %v462, 33
      %v753 = vpop.permute.xlu0 %752
      %754 = vrot.lane.b32.xlu0 %v463, 33
      %v755 = vpop.permute.xlu0 %754
      %756 = vrot.lane.b32.xlu0 %v464, 33
      %v757 = vpop.permute.xlu0 %756
      %758 = vrot.lane.b32.xlu0 %v465, 33
      %v759 = vpop.permute.xlu0 %758
      %760 = vrot.lane.b32.xlu0 %v466, 33
      %v761 = vpop.permute.xlu0 %760
      %vm762 = vcmask 269312
      %v763 = vsel %vm762, %v727, %v729
      %v764 = vsel %vm762, %v729, %v731
      %v765 = vsel %vm762, %v731, %v733
      %v766 = vsel %vm762, %v733, %v735
      %v767 = vsel %vm762, %v735, %v737
      %v768 = vsel %vm762, %v737, %v739
      %v769 = vsel %vm762, %v739, %v741
      %v770 = vsel %vm762, %v741, %v743
      %v771 = vsel %vm762, %v745, %v747
      %v772 = vsel %vm762, %v747, %v749
      %v773 = vsel %vm762, %v749, %v751
      %v774 = vsel %vm762, %v751, %v753
      %v775 = vsel %vm762, %v753, %v755
      %v776 = vsel %vm762, %v755, %v757
      %v777 = vsel %vm762, %v757, %v759
      %v778 = vsel %vm762, %v759, %v761
      %v796 = vsel %vm558, %v347, 0
      %798 = vmatprep.subr.bf16.mxu0 %v764
      %799 = vmatpush1.bf16.msra.mxu0 %v763
      %800 = vmatprep.subr.bf16.mxu0 %v772
      %801 = vmatpush1.bf16.msra.mxu0 %v771
      %802 = vmatprep.subr.bf16.mxu0 0
      %803 = vmatpush1.bf16.msra.mxu0 0
      %804 = vmatprep.subr.bf16.mxu0 0
      %805 = vmatpush1.bf16.msra.mxu0 0
      %806 = vmatprep.subr.bf16.mxu0 0
      %807 = vmatpush1.bf16.msra.mxu0 0
      %808 = vmatprep.subr.bf16.mxu0 0
      %809 = vmatpush1.bf16.msra.mxu0 0
      %810 = vmatprep.subr.bf16.mxu0 0
      %811 = vmatpush1.bf16.msra.mxu0 0
      %812 = vmatprep.subr.bf16.mxu0 0
      %813 = vmatpush1.bf16.msra.mxu0 0
      %814 = vmatprep.subr.bf16.mxu0 0
      %815 = vmatpush1.bf16.msra.mxu0 0
      %816 = vmatprep.subr.bf16.mxu0 0
      %817 = vmatpush1.bf16.msra.mxu0 0
      %818 = vmatprep.subr.bf16.mxu0 0
      %819 = vmatpush1.bf16.msra.mxu0 0
      %820 = vmatprep.subr.bf16.mxu0 0
      %821 = vmatpush1.bf16.msra.mxu0 0
      %822 = vmatprep.subr.bf16.mxu0 0
      %823 = vmatpush1.bf16.msra.mxu0 0
      %824 = vmatprep.subr.bf16.mxu0 0
      %825 = vmatpush1.bf16.msra.mxu0 0
      %826 = vmatprep.subr.bf16.mxu0 0
      %827 = vmatpush1.bf16.msra.mxu0 0
      %828 = vmatprep.subr.bf16.mxu0 0
      %829 = vmatpush1.bf16.msra.mxu0 0
      %830 = vmatprep.mubr.bf16.mxu0 0
      %831 = vmatmul.mubr.bf16.gmra.mrb[0].mxu0 %v796
      %v832 = vpop.f32.mrb[0].mxu0
      %v833 = vadd.f32 %v597, %v832
      %v834 = vpop.f32.mrb[0].mxu0
      %v835 = vadd.f32 %v599, %v834
      %v836 = vpop.f32.mrb[0].mxu0
      %v837 = vpop.f32.mrb[0].mxu0
      %838 = vdwg.mxu0
      %839 = vmatprep.subr.bf16.mxu0 %v766
      %840 = vmatpush1.bf16.msra.mxu0 %v765
      %841 = vmatprep.subr.bf16.mxu0 %v774
      %842 = vmatpush1.bf16.msra.mxu0 %v773
      %843 = vmatprep.subr.bf16.mxu0 0
      %844 = vmatpush1.bf16.msra.mxu0 0
      %845 = vmatprep.subr.bf16.mxu0 0
      %846 = vmatpush1.bf16.msra.mxu0 0
      %847 = vmatprep.subr.bf16.mxu0 0
      %848 = vmatpush1.bf16.msra.mxu0 0
      %849 = vmatprep.subr.bf16.mxu0 0
      %850 = vmatpush1.bf16.msra.mxu0 0
      %851 = vmatprep.subr.bf16.mxu0 0
      %852 = vmatpush1.bf16.msra.mxu0 0
      %853 = vmatprep.subr.bf16.mxu0 0
      %854 = vmatpush1.bf16.msra.mxu0 0
      %855 = vmatprep.subr.bf16.mxu0 0
      %856 = vmatpush1.bf16.msra.mxu0 0
      %857 = vmatprep.subr.bf16.mxu0 0
      %858 = vmatpush1.bf16.msra.mxu0 0
      %859 = vmatprep.subr.bf16.mxu0 0
      %860 = vmatpush1.bf16.msra.mxu0 0
      %861 = vmatprep.subr.bf16.mxu0 0
      %862 = vmatpush1.bf16.msra.mxu0 0
      %863 = vmatprep.subr.bf16.mxu0 0
      %864 = vmatpush1.bf16.msra.mxu0 0
      %865 = vmatprep.subr.bf16.mxu0 0
      %866 = vmatpush1.bf16.msra.mxu0 0
      %867 = vmatprep.subr.bf16.mxu0 0
      %868 = vmatpush1.bf16.msra.mxu0 0
      %869 = vmatprep.subr.bf16.mxu0 0
      %870 = vmatpush1.bf16.msra.mxu0 0
      %871 = vmatprep.mubr.bf16.mxu0 0
      %872 = vmatmul.mubr.bf16.gmra.mrb[0].mxu0 %v796
      %v873 = vpop.f32.mrb[0].mxu0
      %v874 = vadd.f32 %v638, %v873
      %v875 = vpop.f32.mrb[0].mxu0
      %v876 = vadd.f32 %v640, %v875
      %v877 = vpop.f32.mrb[0].mxu0
      %v878 = vpop.f32.mrb[0].mxu0
      %879 = vdwg.mxu0
      %880 = vmatprep.subr.bf16.mxu0 %v768
      %881 = vmatpush1.bf16.msra.mxu0 %v767
      %882 = vmatprep.subr.bf16.mxu0 %v776
      %883 = vmatpush1.bf16.msra.mxu0 %v775
      %884 = vmatprep.subr.bf16.mxu0 0
      %885 = vmatpush1.bf16.msra.mxu0 0
      %886 = vmatprep.subr.bf16.mxu0 0
      %887 = vmatpush1.bf16.msra.mxu0 0
      %888 = vmatprep.subr.bf16.mxu0 0
      %889 = vmatpush1.bf16.msra.mxu0 0
      %890 = vmatprep.subr.bf16.mxu0 0
      %891 = vmatpush1.bf16.msra.mxu0 0
      %892 = vmatprep.subr.bf16.mxu0 0
      %893 = vmatpush1.bf16.msra.mxu0 0
      %894 = vmatprep.subr.bf16.mxu0 0
      %895 = vmatpush1.bf16.msra.mxu0 0
      %896 = vmatprep.subr.bf16.mxu0 0
      %897 = vmatpush1.bf16.msra.mxu0 0
      %898 = vmatprep.subr.bf16.mxu0 0
      %899 = vmatpush1.bf16.msra.mxu0 0
      %900 = vmatprep.subr.bf16.mxu0 0
      %901 = vmatpush1.bf16.msra.mxu0 0
      %902 = vmatprep.subr.bf16.mxu0 0
      %903 = vmatpush1.bf16.msra.mxu0 0
      %904 = vmatprep.subr.bf16.mxu0 0
      %905 = vmatpush1.bf16.msra.mxu0 0
      %906 = vmatprep.subr.bf16.mxu0 0
      %907 = vmatpush1.bf16.msra.mxu0 0
      %908 = vmatprep.subr.bf16.mxu0 0
      %909 = vmatpush1.bf16.msra.mxu0 0
      %910 = vmatprep.subr.bf16.mxu0 0
      %911 = vmatpush1.bf16.msra.mxu0 0
      %912 = vmatprep.mubr.bf16.mxu0 0
      %913 = vmatmul.mubr.bf16.gmra.mrb[0].mxu0 %v796
      %v914 = vpop.f32.mrb[0].mxu0
      %v915 = vadd.f32 %v679, %v914
      %v916 = vpop.f32.mrb[0].mxu0
      %v917 = vadd.f32 %v681, %v916
      %v918 = vpop.f32.mrb[0].mxu0
      %v919 = vpop.f32.mrb[0].mxu0
      %920 = vdwg.mxu0
      %921 = vmatprep.subr.bf16.mxu0 %v770
      %922 = vmatpush1.bf16.msra.mxu0 %v769
      %923 = vmatprep.subr.bf16.mxu0 %v778
      %924 = vmatpush1.bf16.msra.mxu0 %v777
      %925 = vmatprep.subr.bf16.mxu0 0
      %926 = vmatpush1.bf16.msra.mxu0 0
      %927 = vmatprep.subr.bf16.mxu0 0
      %928 = vmatpush1.bf16.msra.mxu0 0
      %929 = vmatprep.subr.bf16.mxu0 0
      %930 = vmatpush1.bf16.msra.mxu0 0
      %931 = vmatprep.subr.bf16.mxu0 0
      %932 = vmatpush1.bf16.msra.mxu0 0
      %933 = vmatprep.subr.bf16.mxu0 0
      %934 = vmatpush1.bf16.msra.mxu0 0
      %935 = vmatprep.subr.bf16.mxu0 0
      %936 = vmatpush1.bf16.msra.mxu0 0
      %937 = vmatprep.subr.bf16.mxu0 0
      %938 = vmatpush1.bf16.msra.mxu0 0
      %939 = vmatprep.subr.bf16.mxu0 0
      %940 = vmatpush1.bf16.msra.mxu0 0
      %941 = vmatprep.subr.bf16.mxu0 0
      %942 = vmatpush1.bf16.msra.mxu0 0
      %943 = vmatprep.subr.bf16.mxu0 0
      %944 = vmatpush1.bf16.msra.mxu0 0
      %945 = vmatprep.subr.bf16.mxu0 0
      %946 = vmatpush1.bf16.msra.mxu0 0
      %947 = vmatprep.subr.bf16.mxu0 0
      %948 = vmatpush1.bf16.msra.mxu0 0
      %949 = vmatprep.subr.bf16.mxu0 0
      %950 = vmatpush1.bf16.msra.mxu0 0
      %951 = vmatprep.subr.bf16.mxu0 0
      %952 = vmatpush1.bf16.msra.mxu0 0
      %953 = vmatprep.mubr.bf16.mxu0 0
      %954 = vmatmul.mubr.bf16.gmra.mrb[0].mxu0 %v796
      %v955 = vpop.f32.mrb[0].mxu0
      %v956 = vadd.f32 %v720, %v955
      %v957 = vpop.f32.mrb[0].mxu0
      %v958 = vadd.f32 %v722, %v957
      %v959 = vpop.f32.mrb[0].mxu0
      %v960 = vpop.f32.mrb[0].mxu0
      %961 = vdwg.mxu0
      %v962 = vld [vmem:[#allocation2 + $0x8] sm:$0xff]
      %v963 = vld [vmem:[#allocation2 + $0x10] sm:$0xff]
      %v964 = vld [vmem:[#allocation2 + $0x18] sm:$0xff]
      %v965 = vld [vmem:[#allocation2 + $0x20] sm:$0xff]
      %v966 = vld [vmem:[#allocation2 + $0x28] sm:$0xff]
      %v967 = vld [vmem:[#allocation2 + $0x30] sm:$0xff]
      %v968 = vld [vmem:[#allocation2 + $0x38] sm:$0xff]
      %v969 = vld [vmem:[#allocation2 + $0x40] sm:$0xff]
      %v970 = vld [vmem:[#allocation2 + $0x48] sm:$0xff]
      %v971 = vld [vmem:[#allocation2 + $0x58] sm:$0xff]
      %v972 = vld [vmem:[#allocation2 + $0x60] sm:$0xff]
      %v973 = vld [vmem:[#allocation2 + $0x68] sm:$0xff]
      %v974 = vld [vmem:[#allocation2 + $0x70] sm:$0xff]
      %v975 = vld [vmem:[#allocation2 + $0x78] sm:$0xff]
      %v976 = vld [vmem:[#allocation2 + $0x80] sm:$0xff]
      %v977 = vld [vmem:[#allocation2 + $0x88] sm:$0xff]
      %v978 = vld [vmem:[#allocation2 + $0x90] sm:$0xff]
      %v979 = vld [vmem:[#allocation2 + $0x98] sm:$0xff]
      %998 = vrot.lane.b32.xlu0 %v962, 97
      %v999 = vpop.permute.xlu0 %998
      %1000 = vrot.lane.b32.xlu0 %v963, 97
      %v1001 = vpop.permute.xlu0 %1000
      %1002 = vrot.lane.b32.xlu0 %v964, 97
      %v1003 = vpop.permute.xlu0 %1002
      %1004 = vrot.lane.b32.xlu0 %v965, 97
      %v1005 = vpop.permute.xlu0 %1004
      %1006 = vrot.lane.b32.xlu0 %v966, 97
      %v1007 = vpop.permute.xlu0 %1006
      %1008 = vrot.lane.b32.xlu0 %v967, 97
      %v1009 = vpop.permute.xlu0 %1008
      %1010 = vrot.lane.b32.xlu0 %v968, 97
      %v1011 = vpop.permute.xlu0 %1010
      %1012 = vrot.lane.b32.xlu0 %v969, 97
      %v1013 = vpop.permute.xlu0 %1012
      %1014 = vrot.lane.b32.xlu0 %v970, 97
      %v1015 = vpop.permute.xlu0 %1014
      %1016 = vrot.lane.b32.xlu0 %v971, 97
      %v1017 = vpop.permute.xlu0 %1016
      %1018 = vrot.lane.b32.xlu0 %v972, 97
      %v1019 = vpop.permute.xlu0 %1018
      %1020 = vrot.lane.b32.xlu0 %v973, 97
      %v1021 = vpop.permute.xlu0 %1020
      %1022 = vrot.lane.b32.xlu0 %v974, 97
      %v1023 = vpop.permute.xlu0 %1022
      %1024 = vrot.lane.b32.xlu0 %v975, 97
      %v1025 = vpop.permute.xlu0 %1024
      %1026 = vrot.lane.b32.xlu0 %v976, 97
      %v1027 = vpop.permute.xlu0 %1026
      %1028 = vrot.lane.b32.xlu0 %v977, 97
      %v1029 = vpop.permute.xlu0 %1028
      %1030 = vrot.lane.b32.xlu0 %v978, 97
      %v1031 = vpop.permute.xlu0 %1030
      %1032 = vrot.lane.b32.xlu0 %v979, 97
      %v1033 = vpop.permute.xlu0 %1032
      %vm1034 = vcmask 793600
      %v1035 = vsel %vm1034, %v999, %v1001
      %v1036 = vsel %vm1034, %v1001, %v1003
      %v1037 = vsel %vm1034, %v1003, %v1005
      %v1038 = vsel %vm1034, %v1005, %v1007
      %v1039 = vsel %vm1034, %v1007, %v1009
      %v1040 = vsel %vm1034, %v1009, %v1011
      %v1041 = vsel %vm1034, %v1011, %v1013
      %v1042 = vsel %vm1034, %v1013, %v1015
      %v1043 = vsel %vm1034, %v1017, %v1019
      %v1044 = vsel %vm1034, %v1019, %v1021
      %v1045 = vsel %vm1034, %v1021, %v1023
      %v1046 = vsel %vm1034, %v1023, %v1025
      %v1047 = vsel %vm1034, %v1025, %v1027
      %v1048 = vsel %vm1034, %v1027, %v1029
      %v1049 = vsel %vm1034, %v1029, %v1031
      %v1050 = vsel %vm1034, %v1031, %v1033
      %v1068 = vsel %vm558, %v350, 0
      %1070 = vmatprep.subr.bf16.mxu0 %v1036
      %1071 = vmatpush1.bf16.msra.mxu0 %v1035
      %1072 = vmatprep.subr.bf16.mxu0 %v1044
      %1073 = vmatpush1.bf16.msra.mxu0 %v1043
      %1074 = vmatprep.subr.bf16.mxu0 0
      %1075 = vmatpush1.bf16.msra.mxu0 0
      %1076 = vmatprep.subr.bf16.mxu0 0
      %1077 = vmatpush1.bf16.msra.mxu0 0
      %1078 = vmatprep.subr.bf16.mxu0 0
      %1079 = vmatpush1.bf16.msra.mxu0 0
      %1080 = vmatprep.subr.bf16.mxu0 0
      %1081 = vmatpush1.bf16.msra.mxu0 0
      %1082 = vmatprep.subr.bf16.mxu0 0
      %1083 = vmatpush1.bf16.msra.mxu0 0
      %1084 = vmatprep.subr.bf16.mxu0 0
      %1085 = vmatpush1.bf16.msra.mxu0 0
      %1086 = vmatprep.subr.bf16.mxu0 0
      %1087 = vmatpush1.bf16.msra.mxu0 0
      %1088 = vmatprep.subr.bf16.mxu0 0
      %1089 = vmatpush1.bf16.msra.mxu0 0
      %1090 = vmatprep.subr.bf16.mxu0 0
      %1091 = vmatpush1.bf16.msra.mxu0 0
      %1092 = vmatprep.subr.bf16.mxu0 0
      %1093 = vmatpush1.bf16.msra.mxu0 0
      %1094 = vmatprep.subr.bf16.mxu0 0
      %1095 = vmatpush1.bf16.msra.mxu0 0
      %1096 = vmatprep.subr.bf16.mxu0 0
      %1097 = vmatpush1.bf16.msra.mxu0 0
      %1098 = vmatprep.subr.bf16.mxu0 0
      %1099 = vmatpush1.bf16.msra.mxu0 0
      %1100 = vmatprep.subr.bf16.mxu0 0
      %1101 = vmatpush1.bf16.msra.mxu0 0
      %1102 = vmatprep.mubr.bf16.mxu0 0
      %1103 = vmatmul.mubr.bf16.gmra.mrb[0].mxu0 %v1068
      %v1104 = vpop.f32.mrb[0].mxu0
      %v1105 = vadd.f32 0.0, %v1104
      %v1106 = vpop.f32.mrb[0].mxu0
      %v1107 = vadd.f32 0.0, %v1106
      %v1108 = vpop.f32.mrb[0].mxu0
      %v1109 = vpop.f32.mrb[0].mxu0
      %1110 = vdwg.mxu0
      %1111 = vmatprep.subr.bf16.mxu0 %v1038
      %1112 = vmatpush1.bf16.msra.mxu0 %v1037
      %1113 = vmatprep.subr.bf16.mxu0 %v1046
      %1114 = vmatpush1.bf16.msra.mxu0 %v1045
      %1115 = vmatprep.subr.bf16.mxu0 0
      %1116 = vmatpush1.bf16.msra.mxu0 0
      %1117 = vmatprep.subr.bf16.mxu0 0
      %1118 = vmatpush1.bf16.msra.mxu0 0
      %1119 = vmatprep.subr.bf16.mxu0 0
      %1120 = vmatpush1.bf16.msra.mxu0 0
      %1121 = vmatprep.subr.bf16.mxu0 0
      %1122 = vmatpush1.bf16.msra.mxu0 0
      %1123 = vmatprep.subr.bf16.mxu0 0
      %1124 = vmatpush1.bf16.msra.mxu0 0
      %1125 = vmatprep.subr.bf16.mxu0 0
      %1126 = vmatpush1.bf16.msra.mxu0 0
      %1127 = vmatprep.subr.bf16.mxu0 0
      %1128 = vmatpush1.bf16.msra.mxu0 0
      %1129 = vmatprep.subr.bf16.mxu0 0
      %1130 = vmatpush1.bf16.msra.mxu0 0
      %1131 = vmatprep.subr.bf16.mxu0 0
      %1132 = vmatpush1.bf16.msra.mxu0 0
      %1133 = vmatprep.subr.bf16.mxu0 0
      %1134 = vmatpush1.bf16.msra.mxu0 0
      %1135 = vmatprep.subr.bf16.mxu0 0
      %1136 = vmatpush1.bf16.msra.mxu0 0
      %1137 = vmatprep.subr.bf16.mxu0 0
      %1138 = vmatpush1.bf16.msra.mxu0 0
      %1139 = vmatprep.subr.bf16.mxu0 0
      %1140 = vmatpush1.bf16.msra.mxu0 0
      %1141 = vmatprep.subr.bf16.mxu0 0
      %1142 = vmatpush1.bf16.msra.mxu0 0
      %1143 = vmatprep.mubr.bf16.mxu0 0
      %1144 = vmatmul.mubr.bf16.gmra.mrb[0].mxu0 %v1068
      %v1145 = vpop.f32.mrb[0].mxu0
      %v1146 = vadd.f32 0.0, %v1145
      %v1147 = vpop.f32.mrb[0].mxu0
      %v1148 = vadd.f32 0.0, %v1147
      %v1149 = vpop.f32.mrb[0].mxu0
      %v1150 = vpop.f32.mrb[0].mxu0
      %1151 = vdwg.mxu0
      %1152 = vmatprep.subr.bf16.mxu0 %v1040
      %1153 = vmatpush1.bf16.msra.mxu0 %v1039
      %1154 = vmatprep.subr.bf16.mxu0 %v1048
      %1155 = vmatpush1.bf16.msra.mxu0 %v1047
      %1156 = vmatprep.subr.bf16.mxu0 0
      %1157 = vmatpush1.bf16.msra.mxu0 0
      %1158 = vmatprep.subr.bf16.mxu0 0
      %1159 = vmatpush1.bf16.msra.mxu0 0
      %1160 = vmatprep.subr.bf16.mxu0 0
      %1161 = vmatpush1.bf16.msra.mxu0 0
      %1162 = vmatprep.subr.bf16.mxu0 0
      %1163 = vmatpush1.bf16.msra.mxu0 0
      %1164 = vmatprep.subr.bf16.mxu0 0
      %1165 = vmatpush1.bf16.msra.mxu0 0
      %1166 = vmatprep.subr.bf16.mxu0 0
      %1167 = vmatpush1.bf16.msra.mxu0 0
      %1168 = vmatprep.subr.bf16.mxu0 0
      %1169 = vmatpush1.bf16.msra.mxu0 0
      %1170 = vmatprep.subr.bf16.mxu0 0
      %1171 = vmatpush1.bf16.msra.mxu0 0
      %1172 = vmatprep.subr.bf16.mxu0 0
      %1173 = vmatpush1.bf16.msra.mxu0 0
      %1174 = vmatprep.subr.bf16.mxu0 0
      %1175 = vmatpush1.bf16.msra.mxu0 0
      %1176 = vmatprep.subr.bf16.mxu0 0
      %1177 = vmatpush1.bf16.msra.mxu0 0
      %1178 = vmatprep.subr.bf16.mxu0 0
      %1179 = vmatpush1.bf16.msra.mxu0 0
      %1180 = vmatprep.subr.bf16.mxu0 0
      %1181 = vmatpush1.bf16.msra.mxu0 0
      %1182 = vmatprep.subr.bf16.mxu0 0
      %1183 = vmatpush1.bf16.msra.mxu0 0
      %1184 = vmatprep.mubr.bf16.mxu0 0
      %1185 = vmatmul.mubr.bf16.gmra.mrb[0].mxu0 %v1068
      %v1186 = vpop.f32.mrb[0].mxu0
      %v1187 = vadd.f32 0.0, %v1186
      %v1188 = vpop.f32.mrb[0].mxu0
      %v1189 = vadd.f32 0.0, %v1188
      %v1190 = vpop.f32.mrb[0].mxu0
      %v1191 = vpop.f32.mrb[0].mxu0
      %1192 = vdwg.mxu0
      %1193 = vmatprep.subr.bf16.mxu0 %v1042
      %1194 = vmatpush1.bf16.msra.mxu0 %v1041
      %1195 = vmatprep.subr.bf16.mxu0 %v1050
      %1196 = vmatpush1.bf16.msra.mxu0 %v1049
      %1197 = vmatprep.subr.bf16.mxu0 0
      %1198 = vmatpush1.bf16.msra.mxu0 0
      %1199 = vmatprep.subr.bf16.mxu0 0
      %1200 = vmatpush1.bf16.msra.mxu0 0
      %1201 = vmatprep.subr.bf16.mxu0 0
      %1202 = vmatpush1.bf16.msra.mxu0 0
      %1203 = vmatprep.subr.bf16.mxu0 0
      %1204 = vmatpush1.bf16.msra.mxu0 0
      %1205 = vmatprep.subr.bf16.mxu0 0
      %1206 = vmatpush1.bf16.msra.mxu0 0
      %1207 = vmatprep.subr.bf16.mxu0 0
      %1208 = vmatpush1.bf16.msra.mxu0 0
      %1209 = vmatprep.subr.bf16.mxu0 0
      %1210 = vmatpush1.bf16.msra.mxu0 0
      %1211 = vmatprep.subr.bf16.mxu0 0
      %1212 = vmatpush1.bf16.msra.mxu0 0
      %1213 = vmatprep.subr.bf16.mxu0 0
      %1214 = vmatpush1.bf16.msra.mxu0 0
      %1215 = vmatprep.subr.bf16.mxu0 0
      %1216 = vmatpush1.bf16.msra.mxu0 0
      %1217 = vmatprep.subr.bf16.mxu0 0
      %1218 = vmatpush1.bf16.msra.mxu0 0
      %1219 = vmatprep.subr.bf16.mxu0 0
      %1220 = vmatpush1.bf16.msra.mxu0 0
      %1221 = vmatprep.subr.bf16.mxu0 0
      %1222 = vmatpush1.bf16.msra.mxu0 0
      %1223 = vmatprep.subr.bf16.mxu0 0
      %1224 = vmatpush1.bf16.msra.mxu0 0
      %1225 = vmatprep.mubr.bf16.mxu0 0
      %1226 = vmatmul.mubr.bf16.gmra.mrb[0].mxu0 %v1068
      %v1227 = vpop.f32.mrb[0].mxu0
      %v1228 = vadd.f32 0.0, %v1227
      %v1229 = vpop.f32.mrb[0].mxu0
      %v1230 = vadd.f32 0.0, %v1229
      %v1231 = vpop.f32.mrb[0].mxu0
      %v1232 = vpop.f32.mrb[0].mxu0
      %1233 = vdwg.mxu0
      %v1234 = vadd.f32 %v833, %v1105
      %v1235 = vadd.f32 %v835, %v1107
      %v1236 = vadd.f32 %v874, %v1146
      %v1237 = vadd.f32 %v876, %v1148
      %v1238 = vadd.f32 %v915, %v1187
      %v1239 = vadd.f32 %v917, %v1189
      %v1240 = vadd.f32 %v956, %v1228
      %v1241 = vadd.f32 %v958, %v1230
      %v1242 = vmul.f32 %v1234, %v299
      %v1243 = vmul.f32 %v1235, %v300
      %v1244 = vmul.f32 %v1236, %v301
      %v1245 = vmul.f32 %v1237, %v302
      %v1246 = vmul.f32 %v1238, %v303
      %v1247 = vmul.f32 %v1239, %v304
      %v1248 = vmul.f32 %v1240, %v305
      %v1249 = vmul.f32 %v1241, %v306
      %v1251 = vsel %vm558, %v349, 0
      %1253 = vmatprep.subr.bf16.mxu0 %v451
      %1254 = vmatpush1.bf16.msra.mxu0 %v450
      %1255 = vmatprep.subr.bf16.mxu0 %v460
      %1256 = vmatpush1.bf16.msra.mxu0 %v459
      %1257 = vmatprep.subr.bf16.mxu0 0
      %1258 = vmatpush1.bf16.msra.mxu0 0
      %1259 = vmatprep.subr.bf16.mxu0 0
      %1260 = vmatpush1.bf16.msra.mxu0 0
      %1261 = vmatprep.subr.bf16.mxu0 0
      %1262 = vmatpush1.bf16.msra.mxu0 0
      %1263 = vmatprep.subr.bf16.mxu0 0
      %1264 = vmatpush1.bf16.msra.mxu0 0
      %1265 = vmatprep.subr.bf16.mxu0 0
      %1266 = vmatpush1.bf16.msra.mxu0 0
      %1267 = vmatprep.subr.bf16.mxu0 0
      %1268 = vmatpush1.bf16.msra.mxu0 0
      %1269 = vmatprep.subr.bf16.mxu0 0
      %1270 = vmatpush1.bf16.msra.mxu0 0
      %1271 = vmatprep.subr.bf16.mxu0 0
      %1272 = vmatpush1.bf16.msra.mxu0 0
      %1273 = vmatprep.subr.bf16.mxu0 0
      %1274 = vmatpush1.bf16.msra.mxu0 0
      %1275 = vmatprep.subr.bf16.mxu0 0
      %1276 = vmatpush1.bf16.msra.mxu0 0
      %1277 = vmatprep.subr.bf16.mxu0 0
      %1278 = vmatpush1.bf16.msra.mxu0 0
      %1279 = vmatprep.subr.bf16.mxu0 0
      %1280 = vmatpush1.bf16.msra.mxu0 0
      %1281 = vmatprep.subr.bf16.mxu0 0
      %1282 = vmatpush1.bf16.msra.mxu0 0
      %1283 = vmatprep.subr.bf16.mxu0 0
      %1284 = vmatpush1.bf16.msra.mxu0 0
      %1285 = vmatprep.mubr.bf16.mxu0 0
      %1286 = vmatmul.mubr.bf16.gmra.mrb[0].mxu0 %v1251
      %v1287 = vpop.f32.mrb[0].mxu0
      %v1288 = vadd.f32 0.0, %v1287
      %v1289 = vpop.f32.mrb[0].mxu0
      %v1290 = vadd.f32 0.0, %v1289
      %v1291 = vpop.f32.mrb[0].mxu0
      %v1292 = vpop.f32.mrb[0].mxu0
      %1293 = vdwg.mxu0
      %1294 = vmatprep.subr.bf16.mxu0 %v453
      %1295 = vmatpush1.bf16.msra.mxu0 %v452
      %1296 = vmatprep.subr.bf16.mxu0 %v462
      %1297 = vmatpush1.bf16.msra.mxu0 %v461
      %1298 = vmatprep.subr.bf16.mxu0 0
      %1299 = vmatpush1.bf16.msra.mxu0 0
      %1300 = vmatprep.subr.bf16.mxu0 0
      %1301 = vmatpush1.bf16.msra.mxu0 0
      %1302 = vmatprep.subr.bf16.mxu0 0
      %1303 = vmatpush1.bf16.msra.mxu0 0
      %1304 = vmatprep.subr.bf16.mxu0 0
      %1305 = vmatpush1.bf16.msra.mxu0 0
      %1306 = vmatprep.subr.bf16.mxu0 0
      %1307 = vmatpush1.bf16.msra.mxu0 0
      %1308 = vmatprep.subr.bf16.mxu0 0
      %1309 = vmatpush1.bf16.msra.mxu0 0
      %1310 = vmatprep.subr.bf16.mxu0 0
      %1311 = vmatpush1.bf16.msra.mxu0 0
      %1312 = vmatprep.subr.bf16.mxu0 0
      %1313 = vmatpush1.bf16.msra.mxu0 0
      %1314 = vmatprep.subr.bf16.mxu0 0
      %1315 = vmatpush1.bf16.msra.mxu0 0
      %1316 = vmatprep.subr.bf16.mxu0 0
      %1317 = vmatpush1.bf16.msra.mxu0 0
      %1318 = vmatprep.subr.bf16.mxu0 0
      %1319 = vmatpush1.bf16.msra.mxu0 0
      %1320 = vmatprep.subr.bf16.mxu0 0
      %1321 = vmatpush1.bf16.msra.mxu0 0
      %1322 = vmatprep.subr.bf16.mxu0 0
      %1323 = vmatpush1.bf16.msra.mxu0 0
      %1324 = vmatprep.subr.bf16.mxu0 0
      %1325 = vmatpush1.bf16.msra.mxu0 0
      %1326 = vmatprep.mubr.bf16.mxu0 0
      %1327 = vmatmul.mubr.bf16.gmra.mrb[0].mxu0 %v1251
      %v1328 = vpop.f32.mrb[0].mxu0
      %v1329 = vadd.f32 0.0, %v1328
      %v1330 = vpop.f32.mrb[0].mxu0
      %v1331 = vadd.f32 0.0, %v1330
      %v1332 = vpop.f32.mrb[0].mxu0
      %v1333 = vpop.f32.mrb[0].mxu0
      %1334 = vdwg.mxu0
      %1335 = vmatprep.subr.bf16.mxu0 %v455
      %1336 = vmatpush1.bf16.msra.mxu0 %v454
      %1337 = vmatprep.subr.bf16.mxu0 %v464
      %1338 = vmatpush1.bf16.msra.mxu0 %v463
      %1339 = vmatprep.subr.bf16.mxu0 0
      %1340 = vmatpush1.bf16.msra.mxu0 0
      %1341 = vmatprep.subr.bf16.mxu0 0
      %1342 = vmatpush1.bf16.msra.mxu0 0
      %1343 = vmatprep.subr.bf16.mxu0 0
      %1344 = vmatpush1.bf16.msra.mxu0 0
      %1345 = vmatprep.subr.bf16.mxu0 0
      %1346 = vmatpush1.bf16.msra.mxu0 0
      %1347 = vmatprep.subr.bf16.mxu0 0
      %1348 = vmatpush1.bf16.msra.mxu0 0
      %1349 = vmatprep.subr.bf16.mxu0 0
      %1350 = vmatpush1.bf16.msra.mxu0 0
      %1351 = vmatprep.subr.bf16.mxu0 0
      %1352 = vmatpush1.bf16.msra.mxu0 0
      %1353 = vmatprep.subr.bf16.mxu0 0
      %1354 = vmatpush1.bf16.msra.mxu0 0
      %1355 = vmatprep.subr.bf16.mxu0 0
      %1356 = vmatpush1.bf16.msra.mxu0 0
      %1357 = vmatprep.subr.bf16.mxu0 0
      %1358 = vmatpush1.bf16.msra.mxu0 0
      %1359 = vmatprep.subr.bf16.mxu0 0
      %1360 = vmatpush1.bf16.msra.mxu0 0
      %1361 = vmatprep.subr.bf16.mxu0 0
      %1362 = vmatpush1.bf16.msra.mxu0 0
      %1363 = vmatprep.subr.bf16.mxu0 0
      %1364 = vmatpush1.bf16.msra.mxu0 0
      %1365 = vmatprep.subr.bf16.mxu0 0
      %1366 = vmatpush1.bf16.msra.mxu0 0
      %1367 = vmatprep.mubr.bf16.mxu0 0
      %1368 = vmatmul.mubr.bf16.gmra.mrb[0].mxu0 %v1251
      %v1369 = vpop.f32.mrb[0].mxu0
      %v1370 = vadd.f32 0.0, %v1369
      %v1371 = vpop.f32.mrb[0].mxu0
      %v1372 = vadd.f32 0.0, %v1371
      %v1373 = vpop.f32.mrb[0].mxu0
      %v1374 = vpop.f32.mrb[0].mxu0
      %1375 = vdwg.mxu0
      %1376 = vmatprep.subr.bf16.mxu0 %v457
      %1377 = vmatpush1.bf16.msra.mxu0 %v456
      %1378 = vmatprep.subr.bf16.mxu0 %v466
      %1379 = vmatpush1.bf16.msra.mxu0 %v465
      %1380 = vmatprep.subr.bf16.mxu0 0
      %1381 = vmatpush1.bf16.msra.mxu0 0
      %1382 = vmatprep.subr.bf16.mxu0 0
      %1383 = vmatpush1.bf16.msra.mxu0 0
      %1384 = vmatprep.subr.bf16.mxu0 0
      %1385 = vmatpush1.bf16.msra.mxu0 0
      %1386 = vmatprep.subr.bf16.mxu0 0
      %1387 = vmatpush1.bf16.msra.mxu0 0
      %1388 = vmatprep.subr.bf16.mxu0 0
      %1389 = vmatpush1.bf16.msra.mxu0 0
      %1390 = vmatprep.subr.bf16.mxu0 0
      %1391 = vmatpush1.bf16.msra.mxu0 0
      %1392 = vmatprep.subr.bf16.mxu0 0
      %1393 = vmatpush1.bf16.msra.mxu0 0
      %1394 = vmatprep.subr.bf16.mxu0 0
      %1395 = vmatpush1.bf16.msra.mxu0 0
      %1396 = vmatprep.subr.bf16.mxu0 0
      %1397 = vmatpush1.bf16.msra.mxu0 0
      %1398 = vmatprep.subr.bf16.mxu0 0
      %1399 = vmatpush1.bf16.msra.mxu0 0
      %1400 = vmatprep.subr.bf16.mxu0 0
      %1401 = vmatpush1.bf16.msra.mxu0 0
      %1402 = vmatprep.subr.bf16.mxu0 0
      %1403 = vmatpush1.bf16.msra.mxu0 0
      %1404 = vmatprep.subr.bf16.mxu0 0
      %1405 = vmatpush1.bf16.msra.mxu0 0
      %1406 = vmatprep.subr.bf16.mxu0 0
      %1407 = vmatpush1.bf16.msra.mxu0 0
      %1408 = vmatprep.mubr.bf16.mxu0 0
      %1409 = vmatmul.mubr.bf16.gmra.mrb[0].mxu0 %v1251
      %v1410 = vpop.f32.mrb[0].mxu0
      %v1411 = vadd.f32 0.0, %v1410
      %v1412 = vpop.f32.mrb[0].mxu0
      %v1413 = vadd.f32 0.0, %v1412
      %v1414 = vpop.f32.mrb[0].mxu0
      %v1415 = vpop.f32.mrb[0].mxu0
      %1416 = vdwg.mxu0
      %v1418 = vunpack.c.l.b16 %v347
      %v1419 = vpack.c.b16 %v1418, %v1418
      %v1420 = vrot.slane %v1419, 2
      %1421 = vrot.lane.b32.xlu0 %v449, 32
      %v1422 = vpop.permute.xlu0 %1421
      %1423 = vrot.lane.b32.xlu0 %v450, 32
      %v1424 = vpop.permute.xlu0 %1423
      %1425 = vrot.lane.b32.xlu0 %v451, 32
      %v1426 = vpop.permute.xlu0 %1425
      %1427 = vrot.lane.b32.xlu0 %v452, 32
      %v1428 = vpop.permute.xlu0 %1427
      %1429 = vrot.lane.b32.xlu0 %v453, 32
      %v1430 = vpop.permute.xlu0 %1429
      %1431 = vrot.lane.b32.xlu0 %v454, 32
      %v1432 = vpop.permute.xlu0 %1431
      %1433 = vrot.lane.b32.xlu0 %v455, 32
      %v1434 = vpop.permute.xlu0 %1433
      %1435 = vrot.lane.b32.xlu0 %v456, 32
      %v1436 = vpop.permute.xlu0 %1435
      %1437 = vrot.lane.b32.xlu0 %v457, 32
      %v1438 = vpop.permute.xlu0 %1437
      %1439 = vrot.lane.b32.xlu0 %v458, 32
      %v1440 = vpop.permute.xlu0 %1439
      %1441 = vrot.lane.b32.xlu0 %v459, 32
      %v1442 = vpop.permute.xlu0 %1441
      %1443 = vrot.lane.b32.xlu0 %v460, 32
      %v1444 = vpop.permute.xlu0 %1443
      %1445 = vrot.lane.b32.xlu0 %v461, 32
      %v1446 = vpop.permute.xlu0 %1445
      %1447 = vrot.lane.b32.xlu0 %v462, 32
      %v1448 = vpop.permute.xlu0 %1447
      %1449 = vrot.lane.b32.xlu0 %v463, 32
      %v1450 = vpop.permute.xlu0 %1449
      %1451 = vrot.lane.b32.xlu0 %v464, 32
      %v1452 = vpop.permute.xlu0 %1451
      %1453 = vrot.lane.b32.xlu0 %v465, 32
      %v1454 = vpop.permute.xlu0 %1453
      %1455 = vrot.lane.b32.xlu0 %v466, 32
      %v1456 = vpop.permute.xlu0 %1455
      %vm1457 = vcmask 261120
      %v1458 = vsel %vm1457, %v1422, %v1424
      %v1459 = vsel %vm1457, %v1424, %v1426
      %v1460 = vsel %vm1457, %v1426, %v1428
      %v1461 = vsel %vm1457, %v1428, %v1430
      %v1462 = vsel %vm1457, %v1430, %v1432
      %v1463 = vsel %vm1457, %v1432, %v1434
      %v1464 = vsel %vm1457, %v1434, %v1436
      %v1465 = vsel %vm1457, %v1436, %v1438
      %v1466 = vsel %vm1457, %v1440, %v1442
      %v1467 = vsel %vm1457, %v1442, %v1444
      %v1468 = vsel %vm1457, %v1444, %v1446
      %v1469 = vsel %vm1457, %v1446, %v1448
      %v1470 = vsel %vm1457, %v1448, %v1450
      %v1471 = vsel %vm1457, %v1450, %v1452
      %v1472 = vsel %vm1457, %v1452, %v1454
      %v1473 = vsel %vm1457, %v1454, %v1456
      %v1491 = vsel %vm558, %v1420, 0
      %1493 = vmatprep.subr.bf16.mxu0 %v1459
      %1494 = vmatpush1.bf16.msra.mxu0 %v1458
      %1495 = vmatprep.subr.bf16.mxu0 %v1467
      %1496 = vmatpush1.bf16.msra.mxu0 %v1466
      %1497 = vmatprep.subr.bf16.mxu0 0
      %1498 = vmatpush1.bf16.msra.mxu0 0
      %1499 = vmatprep.subr.bf16.mxu0 0
      %1500 = vmatpush1.bf16.msra.mxu0 0
      %1501 = vmatprep.subr.bf16.mxu0 0
      %1502 = vmatpush1.bf16.msra.mxu0 0
      %1503 = vmatprep.subr.bf16.mxu0 0
      %1504 = vmatpush1.bf16.msra.mxu0 0
      %1505 = vmatprep.subr.bf16.mxu0 0
      %1506 = vmatpush1.bf16.msra.mxu0 0
      %1507 = vmatprep.subr.bf16.mxu0 0
      %1508 = vmatpush1.bf16.msra.mxu0 0
      %1509 = vmatprep.subr.bf16.mxu0 0
      %1510 = vmatpush1.bf16.msra.mxu0 0
      %1511 = vmatprep.subr.bf16.mxu0 0
      %1512 = vmatpush1.bf16.msra.mxu0 0
      %1513 = vmatprep.subr.bf16.mxu0 0
      %1514 = vmatpush1.bf16.msra.mxu0 0
      %1515 = vmatprep.subr.bf16.mxu0 0
      %1516 = vmatpush1.bf16.msra.mxu0 0
      %1517 = vmatprep.subr.bf16.mxu0 0
      %1518 = vmatpush1.bf16.msra.mxu0 0
      %1519 = vmatprep.subr.bf16.mxu0 0
      %1520 = vmatpush1.bf16.msra.mxu0 0
      %1521 = vmatprep.subr.bf16.mxu0 0
      %1522 = vmatpush1.bf16.msra.mxu0 0
      %1523 = vmatprep.subr.bf16.mxu0 0
      %1524 = vmatpush1.bf16.msra.mxu0 0
      %1525 = vmatprep.mubr.bf16.mxu0 0
      %1526 = vmatmul.mubr.bf16.gmra.mrb[0].mxu0 %v1491
      %v1527 = vpop.f32.mrb[0].mxu0
      %v1528 = vadd.f32 %v1288, %v1527
      %v1529 = vpop.f32.mrb[0].mxu0
      %v1530 = vadd.f32 %v1290, %v1529
      %v1531 = vpop.f32.mrb[0].mxu0
      %v1532 = vpop.f32.mrb[0].mxu0
      %1533 = vdwg.mxu0
      %1534 = vmatprep.subr.bf16.mxu0 %v1461
      %1535 = vmatpush1.bf16.msra.mxu0 %v1460
      %1536 = vmatprep.subr.bf16.mxu0 %v1469
      %1537 = vmatpush1.bf16.msra.mxu0 %v1468
      %1538 = vmatprep.subr.bf16.mxu0 0
      %1539 = vmatpush1.bf16.msra.mxu0 0
      %1540 = vmatprep.subr.bf16.mxu0 0
      %1541 = vmatpush1.bf16.msra.mxu0 0
      %1542 = vmatprep.subr.bf16.mxu0 0
      %1543 = vmatpush1.bf16.msra.mxu0 0
      %1544 = vmatprep.subr.bf16.mxu0 0
      %1545 = vmatpush1.bf16.msra.mxu0 0
      %1546 = vmatprep.subr.bf16.mxu0 0
      %1547 = vmatpush1.bf16.msra.mxu0 0
      %1548 = vmatprep.subr.bf16.mxu0 0
      %1549 = vmatpush1.bf16.msra.mxu0 0
      %1550 = vmatprep.subr.bf16.mxu0 0
      %1551 = vmatpush1.bf16.msra.mxu0 0
      %1552 = vmatprep.subr.bf16.mxu0 0
      %1553 = vmatpush1.bf16.msra.mxu0 0
      %1554 = vmatprep.subr.bf16.mxu0 0
      %1555 = vmatpush1.bf16.msra.mxu0 0
      %1556 = vmatprep.subr.bf16.mxu0 0
      %1557 = vmatpush1.bf16.msra.mxu0 0
      %1558 = vmatprep.subr.bf16.mxu0 0
      %1559 = vmatpush1.bf16.msra.mxu0 0
      %1560 = vmatprep.subr.bf16.mxu0 0
      %1561 = vmatpush1.bf16.msra.mxu0 0
      %1562 = vmatprep.subr.bf16.mxu0 0
      %1563 = vmatpush1.bf16.msra.mxu0 0
      %1564 = vmatprep.subr.bf16.mxu0 0
      %1565 = vmatpush1.bf16.msra.mxu0 0
      %1566 = vmatprep.mubr.bf16.mxu0 0
      %1567 = vmatmul.mubr.bf16.gmra.mrb[0].mxu0 %v1491
      %v1568 = vpop.f32.mrb[0].mxu0
      %v1569 = vadd.f32 %v1329, %v1568
      %v1570 = vpop.f32.mrb[0].mxu0
      %v1571 = vadd.f32 %v1331, %v1570
      %v1572 = vpop.f32.mrb[0].mxu0
      %v1573 = vpop.f32.mrb[0].mxu0
      %1574 = vdwg.mxu0
      %1575 = vmatprep.subr.bf16.mxu0 %v1463
      %1576 = vmatpush1.bf16.msra.mxu0 %v1462
      %1577 = vmatprep.subr.bf16.mxu0 %v1471
      %1578 = vmatpush1.bf16.msra.mxu0 %v1470
      %1579 = vmatprep.subr.bf16.mxu0 0
      %1580 = vmatpush1.bf16.msra.mxu0 0
      %1581 = vmatprep.subr.bf16.mxu0 0
      %1582 = vmatpush1.bf16.msra.mxu0 0
      %1583 = vmatprep.subr.bf16.mxu0 0
      %1584 = vmatpush1.bf16.msra.mxu0 0
      %1585 = vmatprep.subr.bf16.mxu0 0
      %1586 = vmatpush1.bf16.msra.mxu0 0
      %1587 = vmatprep.subr.bf16.mxu0 0
      %1588 = vmatpush1.bf16.msra.mxu0 0
      %1589 = vmatprep.subr.bf16.mxu0 0
      %1590 = vmatpush1.bf16.msra.mxu0 0
      %1591 = vmatprep.subr.bf16.mxu0 0
      %1592 = vmatpush1.bf16.msra.mxu0 0
      %1593 = vmatprep.subr.bf16.mxu0 0
      %1594 = vmatpush1.bf16.msra.mxu0 0
      %1595 = vmatprep.subr.bf16.mxu0 0
      %1596 = vmatpush1.bf16.msra.mxu0 0
      %1597 = vmatprep.subr.bf16.mxu0 0
      %1598 = vmatpush1.bf16.msra.mxu0 0
      %1599 = vmatprep.subr.bf16.mxu0 0
      %1600 = vmatpush1.bf16.msra.mxu0 0
      %1601 = vmatprep.subr.bf16.mxu0 0
      %1602 = vmatpush1.bf16.msra.mxu0 0
      %1603 = vmatprep.subr.bf16.mxu0 0
      %1604 = vmatpush1.bf16.msra.mxu0 0
      %1605 = vmatprep.subr.bf16.mxu0 0
      %1606 = vmatpush1.bf16.msra.mxu0 0
      %1607 = vmatprep.mubr.bf16.mxu0 0
      %1608 = vmatmul.mubr.bf16.gmra.mrb[0].mxu0 %v1491
      %v1609 = vpop.f32.mrb[0].mxu0
      %v1610 = vadd.f32 %v1370, %v1609
      %v1611 = vpop.f32.mrb[0].mxu0
      %v1612 = vadd.f32 %v1372, %v1611
      %v1613 = vpop.f32.mrb[0].mxu0
      %v1614 = vpop.f32.mrb[0].mxu0
      %1615 = vdwg.mxu0
      %1616 = vmatprep.subr.bf16.mxu0 %v1465
      %1617 = vmatpush1.bf16.msra.mxu0 %v1464
      %1618 = vmatprep.subr.bf16.mxu0 %v1473
      %1619 = vmatpush1.bf16.msra.mxu0 %v1472
      %1620 = vmatprep.subr.bf16.mxu0 0
      %1621 = vmatpush1.bf16.msra.mxu0 0
      %1622 = vmatprep.subr.bf16.mxu0 0
      %1623 = vmatpush1.bf16.msra.mxu0 0
      %1624 = vmatprep.subr.bf16.mxu0 0
      %1625 = vmatpush1.bf16.msra.mxu0 0
      %1626 = vmatprep.subr.bf16.mxu0 0
      %1627 = vmatpush1.bf16.msra.mxu0 0
      %1628 = vmatprep.subr.bf16.mxu0 0
      %1629 = vmatpush1.bf16.msra.mxu0 0
      %1630 = vmatprep.subr.bf16.mxu0 0
      %1631 = vmatpush1.bf16.msra.mxu0 0
      %1632 = vmatprep.subr.bf16.mxu0 0
      %1633 = vmatpush1.bf16.msra.mxu0 0
      %1634 = vmatprep.subr.bf16.mxu0 0
      %1635 = vmatpush1.bf16.msra.mxu0 0
      %1636 = vmatprep.subr.bf16.mxu0 0
      %1637 = vmatpush1.bf16.msra.mxu0 0
      %1638 = vmatprep.subr.bf16.mxu0 0
      %1639 = vmatpush1.bf16.msra.mxu0 0
      %1640 = vmatprep.subr.bf16.mxu0 0
      %1641 = vmatpush1.bf16.msra.mxu0 0
      %1642 = vmatprep.subr.bf16.mxu0 0
      %1643 = vmatpush1.bf16.msra.mxu0 0
      %1644 = vmatprep.subr.bf16.mxu0 0
      %1645 = vmatpush1.bf16.msra.mxu0 0
      %1646 = vmatprep.subr.bf16.mxu0 0
      %1647 = vmatpush1.bf16.msra.mxu0 0
      %1648 = vmatprep.mubr.bf16.mxu0 0
      %1649 = vmatmul.mubr.bf16.gmra.mrb[0].mxu0 %v1491
      %v1650 = vpop.f32.mrb[0].mxu0
      %v1651 = vadd.f32 %v1411, %v1650
      %v1652 = vpop.f32.mrb[0].mxu0
      %v1653 = vadd.f32 %v1413, %v1652
      %v1654 = vpop.f32.mrb[0].mxu0
      %v1655 = vpop.f32.mrb[0].mxu0
      %1656 = vdwg.mxu0
      %v1658 = vunpack.c.l.b16 %v350
      %v1659 = vpack.c.b16 %v1658, %v1658
      %v1660 = vrot.slane %v1659, 2
      %1661 = vrot.lane.b32.xlu0 %v962, 96
      %v1662 = vpop.permute.xlu0 %1661
      %1663 = vrot.lane.b32.xlu0 %v963, 96
      %v1664 = vpop.permute.xlu0 %1663
      %1665 = vrot.lane.b32.xlu0 %v964, 96
      %v1666 = vpop.permute.xlu0 %1665
      %1667 = vrot.lane.b32.xlu0 %v965, 96
      %v1668 = vpop.permute.xlu0 %1667
      %1669 = vrot.lane.b32.xlu0 %v966, 96
      %v1670 = vpop.permute.xlu0 %1669
      %1671 = vrot.lane.b32.xlu0 %v967, 96
      %v1672 = vpop.permute.xlu0 %1671
      %1673 = vrot.lane.b32.xlu0 %v968, 96
      %v1674 = vpop.permute.xlu0 %1673
      %1675 = vrot.lane.b32.xlu0 %v969, 96
      %v1676 = vpop.permute.xlu0 %1675
      %1677 = vrot.lane.b32.xlu0 %v970, 96
      %v1678 = vpop.permute.xlu0 %1677
      %1679 = vrot.lane.b32.xlu0 %v971, 96
      %v1680 = vpop.permute.xlu0 %1679
      %1681 = vrot.lane.b32.xlu0 %v972, 96
      %v1682 = vpop.permute.xlu0 %1681
      %1683 = vrot.lane.b32.xlu0 %v973, 96
      %v1684 = vpop.permute.xlu0 %1683
      %1685 = vrot.lane.b32.xlu0 %v974, 96
      %v1686 = vpop.permute.xlu0 %1685
      %1687 = vrot.lane.b32.xlu0 %v975, 96
      %v1688 = vpop.permute.xlu0 %1687
      %1689 = vrot.lane.b32.xlu0 %v976, 96
      %v1690 = vpop.permute.xlu0 %1689
      %1691 = vrot.lane.b32.xlu0 %v977, 96
      %v1692 = vpop.permute.xlu0 %1691
      %1693 = vrot.lane.b32.xlu0 %v978, 96
      %v1694 = vpop.permute.xlu0 %1693
      %1695 = vrot.lane.b32.xlu0 %v979, 96
      %v1696 = vpop.permute.xlu0 %1695
      %vm1697 = vcmask 785408
      %v1698 = vsel %vm1697, %v1662, %v1664
      %v1699 = vsel %vm1697, %v1664, %v1666
      %v1700 = vsel %vm1697, %v1666, %v1668
      %v1701 = vsel %vm1697, %v1668, %v1670
      %v1702 = vsel %vm1697, %v1670, %v1672
      %v1703 = vsel %vm1697, %v1672, %v1674
      %v1704 = vsel %vm1697, %v1674, %v1676
      %v1705 = vsel %vm1697, %v1676, %v1678
      %v1706 = vsel %vm1697, %v1680, %v1682
      %v1707 = vsel %vm1697, %v1682, %v1684
      %v1708 = vsel %vm1697, %v1684, %v1686
      %v1709 = vsel %vm1697, %v1686, %v1688
      %v1710 = vsel %vm1697, %v1688, %v1690
      %v1711 = vsel %vm1697, %v1690, %v1692
      %v1712 = vsel %vm1697, %v1692, %v1694
      %v1713 = vsel %vm1697, %v1694, %v1696
      %v1731 = vsel %vm558, %v1660, 0
      %1733 = vmatprep.subr.bf16.mxu0 %v1699
      %1734 = vmatpush1.bf16.msra.mxu0 %v1698
      %1735 = vmatprep.subr.bf16.mxu0 %v1707
      %1736 = vmatpush1.bf16.msra.mxu0 %v1706
      %1737 = vmatprep.subr.bf16.mxu0 0
      %1738 = vmatpush1.bf16.msra.mxu0 0
      %1739 = vmatprep.subr.bf16.mxu0 0
      %1740 = vmatpush1.bf16.msra.mxu0 0
      %1741 = vmatprep.subr.bf16.mxu0 0
      %1742 = vmatpush1.bf16.msra.mxu0 0
      %1743 = vmatprep.subr.bf16.mxu0 0
      %1744 = vmatpush1.bf16.msra.mxu0 0
      %1745 = vmatprep.subr.bf16.mxu0 0
      %1746 = vmatpush1.bf16.msra.mxu0 0
      %1747 = vmatprep.subr.bf16.mxu0 0
      %1748 = vmatpush1.bf16.msra.mxu0 0
      %1749 = vmatprep.subr.bf16.mxu0 0
      %1750 = vmatpush1.bf16.msra.mxu0 0
      %1751 = vmatprep.subr.bf16.mxu0 0
      %1752 = vmatpush1.bf16.msra.mxu0 0
      %1753 = vmatprep.subr.bf16.mxu0 0
      %1754 = vmatpush1.bf16.msra.mxu0 0
      %1755 = vmatprep.subr.bf16.mxu0 0
      %1756 = vmatpush1.bf16.msra.mxu0 0
      %1757 = vmatprep.subr.bf16.mxu0 0
      %1758 = vmatpush1.bf16.msra.mxu0 0
      %1759 = vmatprep.subr.bf16.mxu0 0
      %1760 = vmatpush1.bf16.msra.mxu0 0
      %1761 = vmatprep.subr.bf16.mxu0 0
      %1762 = vmatpush1.bf16.msra.mxu0 0
      %1763 = vmatprep.subr.bf16.mxu0 0
      %1764 = vmatpush1.bf16.msra.mxu0 0
      %1765 = vmatprep.mubr.bf16.mxu0 0
      %1766 = vmatmul.mubr.bf16.gmra.mrb[0].mxu0 %v1731
      %v1767 = vpop.f32.mrb[0].mxu0
      %v1768 = vadd.f32 0.0, %v1767
      %v1769 = vpop.f32.mrb[0].mxu0
      %v1770 = vadd.f32 0.0, %v1769
      %v1771 = vpop.f32.mrb[0].mxu0
      %v1772 = vpop.f32.mrb[0].mxu0
      %1773 = vdwg.mxu0
      %1774 = vmatprep.subr.bf16.mxu0 %v1701
      %1775 = vmatpush1.bf16.msra.mxu0 %v1700
      %1776 = vmatprep.subr.bf16.mxu0 %v1709
      %1777 = vmatpush1.bf16.msra.mxu0 %v1708
      %1778 = vmatprep.subr.bf16.mxu0 0
      %1779 = vmatpush1.bf16.msra.mxu0 0
      %1780 = vmatprep.subr.bf16.mxu0 0
      %1781 = vmatpush1.bf16.msra.mxu0 0
      %1782 = vmatprep.subr.bf16.mxu0 0
      %1783 = vmatpush1.bf16.msra.mxu0 0
      %1784 = vmatprep.subr.bf16.mxu0 0
      %1785 = vmatpush1.bf16.msra.mxu0 0
      %1786 = vmatprep.subr.bf16.mxu0 0
      %1787 = vmatpush1.bf16.msra.mxu0 0
      %1788 = vmatprep.subr.bf16.mxu0 0
      %1789 = vmatpush1.bf16.msra.mxu0 0
      %1790 = vmatprep.subr.bf16.mxu0 0
      %1791 = vmatpush1.bf16.msra.mxu0 0
      %1792 = vmatprep.subr.bf16.mxu0 0
      %1793 = vmatpush1.bf16.msra.mxu0 0
      %1794 = vmatprep.subr.bf16.mxu0 0
      %1795 = vmatpush1.bf16.msra.mxu0 0
      %1796 = vmatprep.subr.bf16.mxu0 0
      %1797 = vmatpush1.bf16.msra.mxu0 0
      %1798 = vmatprep.subr.bf16.mxu0 0
      %1799 = vmatpush1.bf16.msra.mxu0 0
      %1800 = vmatprep.subr.bf16.mxu0 0
      %1801 = vmatpush1.bf16.msra.mxu0 0
      %1802 = vmatprep.subr.bf16.mxu0 0
      %1803 = vmatpush1.bf16.msra.mxu0 0
      %1804 = vmatprep.subr.bf16.mxu0 0
      %1805 = vmatpush1.bf16.msra.mxu0 0
      %1806 = vmatprep.mubr.bf16.mxu0 0
      %1807 = vmatmul.mubr.bf16.gmra.mrb[0].mxu0 %v1731
      %v1808 = vpop.f32.mrb[0].mxu0
      %v1809 = vadd.f32 0.0, %v1808
      %v1810 = vpop.f32.mrb[0].mxu0
      %v1811 = vadd.f32 0.0, %v1810
      %v1812 = vpop.f32.mrb[0].mxu0
      %v1813 = vpop.f32.mrb[0].mxu0
      %1814 = vdwg.mxu0
      %1815 = vmatprep.subr.bf16.mxu0 %v1703
      %1816 = vmatpush1.bf16.msra.mxu0 %v1702
      %1817 = vmatprep.subr.bf16.mxu0 %v1711
      %1818 = vmatpush1.bf16.msra.mxu0 %v1710
      %1819 = vmatprep.subr.bf16.mxu0 0
      %1820 = vmatpush1.bf16.msra.mxu0 0
      %1821 = vmatprep.subr.bf16.mxu0 0
      %1822 = vmatpush1.bf16.msra.mxu0 0
      %1823 = vmatprep.subr.bf16.mxu0 0
      %1824 = vmatpush1.bf16.msra.mxu0 0
      %1825 = vmatprep.subr.bf16.mxu0 0
      %1826 = vmatpush1.bf16.msra.mxu0 0
      %1827 = vmatprep.subr.bf16.mxu0 0
      %1828 = vmatpush1.bf16.msra.mxu0 0
      %1829 = vmatprep.subr.bf16.mxu0 0
      %1830 = vmatpush1.bf16.msra.mxu0 0
      %1831 = vmatprep.subr.bf16.mxu0 0
      %1832 = vmatpush1.bf16.msra.mxu0 0
      %1833 = vmatprep.subr.bf16.mxu0 0
      %1834 = vmatpush1.bf16.msra.mxu0 0
      %1835 = vmatprep.subr.bf16.mxu0 0
      %1836 = vmatpush1.bf16.msra.mxu0 0
      %1837 = vmatprep.subr.bf16.mxu0 0
      %1838 = vmatpush1.bf16.msra.mxu0 0
      %1839 = vmatprep.subr.bf16.mxu0 0
      %1840 = vmatpush1.bf16.msra.mxu0 0
      %1841 = vmatprep.subr.bf16.mxu0 0
      %1842 = vmatpush1.bf16.msra.mxu0 0
      %1843 = vmatprep.subr.bf16.mxu0 0
      %1844 = vmatpush1.bf16.msra.mxu0 0
      %1845 = vmatprep.subr.bf16.mxu0 0
      %1846 = vmatpush1.bf16.msra.mxu0 0
      %1847 = vmatprep.mubr.bf16.mxu0 0
      %1848 = vmatmul.mubr.bf16.gmra.mrb[0].mxu0 %v1731
      %v1849 = vpop.f32.mrb[0].mxu0
      %v1850 = vadd.f32 0.0, %v1849
      %v1851 = vpop.f32.mrb[0].mxu0
      %v1852 = vadd.f32 0.0, %v1851
      %v1853 = vpop.f32.mrb[0].mxu0
      %v1854 = vpop.f32.mrb[0].mxu0
      %1855 = vdwg.mxu0
      %1856 = vmatprep.subr.bf16.mxu0 %v1705
      %1857 = vmatpush1.bf16.msra.mxu0 %v1704
      %1858 = vmatprep.subr.bf16.mxu0 %v1713
      %1859 = vmatpush1.bf16.msra.mxu0 %v1712
      %1860 = vmatprep.subr.bf16.mxu0 0
      %1861 = vmatpush1.bf16.msra.mxu0 0
      %1862 = vmatprep.subr.bf16.mxu0 0
      %1863 = vmatpush1.bf16.msra.mxu0 0
      %1864 = vmatprep.subr.bf16.mxu0 0
      %1865 = vmatpush1.bf16.msra.mxu0 0
      %1866 = vmatprep.subr.bf16.mxu0 0
      %1867 = vmatpush1.bf16.msra.mxu0 0
      %1868 = vmatprep.subr.bf16.mxu0 0
      %1869 = vmatpush1.bf16.msra.mxu0 0
      %1870 = vmatprep.subr.bf16.mxu0 0
      %1871 = vmatpush1.bf16.msra.mxu0 0
      %1872 = vmatprep.subr.bf16.mxu0 0
      %1873 = vmatpush1.bf16.msra.mxu0 0
      %1874 = vmatprep.subr.bf16.mxu0 0
      %1875 = vmatpush1.bf16.msra.mxu0 0
      %1876 = vmatprep.subr.bf16.mxu0 0
      %1877 = vmatpush1.bf16.msra.mxu0 0
      %1878 = vmatprep.subr.bf16.mxu0 0
      %1879 = vmatpush1.bf16.msra.mxu0 0
      %1880 = vmatprep.subr.bf16.mxu0 0
      %1881 = vmatpush1.bf16.msra.mxu0 0
      %1882 = vmatprep.subr.bf16.mxu0 0
      %1883 = vmatpush1.bf16.msra.mxu0 0
      %1884 = vmatprep.subr.bf16.mxu0 0
      %1885 = vmatpush1.bf16.msra.mxu0 0
      %1886 = vmatprep.subr.bf16.mxu0 0
      %1887 = vmatpush1.bf16.msra.mxu0 0
      %1888 = vmatprep.mubr.bf16.mxu0 0
      %1889 = vmatmul.mubr.bf16.gmra.mrb[0].mxu0 %v1731
      %v1890 = vpop.f32.mrb[0].mxu0
      %v1891 = vadd.f32 0.0, %v1890
      %v1892 = vpop.f32.mrb[0].mxu0
      %v1893 = vadd.f32 0.0, %v1892
      %v1894 = vpop.f32.mrb[0].mxu0
      %v1895 = vpop.f32.mrb[0].mxu0
      %1896 = vdwg.mxu0
      %v1897 = vadd.f32 %v1528, %v1768
      %v1898 = vadd.f32 %v1530, %v1770
      %v1899 = vadd.f32 %v1569, %v1809
      %v1900 = vadd.f32 %v1571, %v1811
      %v1901 = vadd.f32 %v1610, %v1850
      %v1902 = vadd.f32 %v1612, %v1852
      %v1903 = vadd.f32 %v1651, %v1891
      %v1904 = vadd.f32 %v1653, %v1893
      %v1905 = vadd.f32 %v1242, %v1897
      %v1906 = vadd.f32 %v1243, %v1898
      %v1907 = vadd.f32 %v1244, %v1899
      %v1908 = vadd.f32 %v1245, %v1900
      %v1909 = vadd.f32 %v1246, %v1901
      %v1910 = vadd.f32 %v1247, %v1902
      %v1911 = vadd.f32 %v1248, %v1903
      %v1912 = vadd.f32 %v1249, %v1904
      %v1914 = vunpack.c.l.b16 %v349
      %v1915 = vpack.c.b16 %v1914, %v1914
      %v1916 = vrot.slane %v1915, 2
      %1917 = vrot.lane.b32.xlu0 %v962, 127
      %v1918 = vpop.permute.xlu0 %1917
      %1919 = vrot.lane.b32.xlu0 %v963, 127
      %v1920 = vpop.permute.xlu0 %1919
      %1921 = vrot.lane.b32.xlu0 %v964, 127
      %v1922 = vpop.permute.xlu0 %1921
      %1923 = vrot.lane.b32.xlu0 %v965, 127
      %v1924 = vpop.permute.xlu0 %1923
      %1925 = vrot.lane.b32.xlu0 %v966, 127
      %v1926 = vpop.permute.xlu0 %1925
      %1927 = vrot.lane.b32.xlu0 %v967, 127
      %v1928 = vpop.permute.xlu0 %1927
      %1929 = vrot.lane.b32.xlu0 %v968, 127
      %v1930 = vpop.permute.xlu0 %1929
      %1931 = vrot.lane.b32.xlu0 %v969, 127
      %v1932 = vpop.permute.xlu0 %1931
      %1933 = vrot.lane.b32.xlu0 %v970, 127
      %v1934 = vpop.permute.xlu0 %1933
      %1935 = vrot.lane.b32.xlu0 %v971, 127
      %v1936 = vpop.permute.xlu0 %1935
      %1937 = vrot.lane.b32.xlu0 %v972, 127
      %v1938 = vpop.permute.xlu0 %1937
      %1939 = vrot.lane.b32.xlu0 %v973, 127
      %v1940 = vpop.permute.xlu0 %1939
      %1941 = vrot.lane.b32.xlu0 %v974, 127
      %v1942 = vpop.permute.xlu0 %1941
      %1943 = vrot.lane.b32.xlu0 %v975, 127
      %v1944 = vpop.permute.xlu0 %1943
      %1945 = vrot.lane.b32.xlu0 %v976, 127
      %v1946 = vpop.permute.xlu0 %1945
      %1947 = vrot.lane.b32.xlu0 %v977, 127
      %v1948 = vpop.permute.xlu0 %1947
      %1949 = vrot.lane.b32.xlu0 %v978, 127
      %v1950 = vpop.permute.xlu0 %1949
      %1951 = vrot.lane.b32.xlu0 %v979, 127
      %v1952 = vpop.permute.xlu0 %1951
      %vm1953 = vcmask 1039360
      %v1954 = vsel %vm1953, %v1918, %v1920
      %v1955 = vsel %vm1953, %v1920, %v1922
      %v1956 = vsel %vm1953, %v1922, %v1924
      %v1957 = vsel %vm1953, %v1924, %v1926
      %v1958 = vsel %vm1953, %v1926, %v1928
      %v1959 = vsel %vm1953, %v1928, %v1930
      %v1960 = vsel %vm1953, %v1930, %v1932
      %v1961 = vsel %vm1953, %v1932, %v1934
      %v1962 = vsel %vm1953, %v1936, %v1938
      %v1963 = vsel %vm1953, %v1938, %v1940
      %v1964 = vsel %vm1953, %v1940, %v1942
      %v1965 = vsel %vm1953, %v1942, %v1944
      %v1966 = vsel %vm1953, %v1944, %v1946
      %v1967 = vsel %vm1953, %v1946, %v1948
      %v1968 = vsel %vm1953, %v1948, %v1950
      %v1969 = vsel %vm1953, %v1950, %v1952
      %v1987 = vsel %vm558, %v1916, 0
      %1989 = vmatprep.subr.bf16.mxu0 %v1955
      %1990 = vmatpush1.bf16.msra.mxu0 %v1954
      %1991 = vmatprep.subr.bf16.mxu0 %v1963
      %1992 = vmatpush1.bf16.msra.mxu0 %v1962
      %1993 = vmatprep.subr.bf16.mxu0 0
      %1994 = vmatpush1.bf16.msra.mxu0 0
      %1995 = vmatprep.subr.bf16.mxu0 0
      %1996 = vmatpush1.bf16.msra.mxu0 0
      %1997 = vmatprep.subr.bf16.mxu0 0
      %1998 = vmatpush1.bf16.msra.mxu0 0
      %1999 = vmatprep.subr.bf16.mxu0 0
      %2000 = vmatpush1.bf16.msra.mxu0 0
      %2001 = vmatprep.subr.bf16.mxu0 0
      %2002 = vmatpush1.bf16.msra.mxu0 0
      %2003 = vmatprep.subr.bf16.mxu0 0
      %2004 = vmatpush1.bf16.msra.mxu0 0
      %2005 = vmatprep.subr.bf16.mxu0 0
      %2006 = vmatpush1.bf16.msra.mxu0 0
      %2007 = vmatprep.subr.bf16.mxu0 0
      %2008 = vmatpush1.bf16.msra.mxu0 0
      %2009 = vmatprep.subr.bf16.mxu0 0
      %2010 = vmatpush1.bf16.msra.mxu0 0
      %2011 = vmatprep.subr.bf16.mxu0 0
      %2012 = vmatpush1.bf16.msra.mxu0 0
      %2013 = vmatprep.subr.bf16.mxu0 0
      %2014 = vmatpush1.bf16.msra.mxu0 0
      %2015 = vmatprep.subr.bf16.mxu0 0
      %2016 = vmatpush1.bf16.msra.mxu0 0
      %2017 = vmatprep.subr.bf16.mxu0 0
      %2018 = vmatpush1.bf16.msra.mxu0 0
      %2019 = vmatprep.subr.bf16.mxu0 0
      %2020 = vmatpush1.bf16.msra.mxu0 0
      %2021 = vmatprep.mubr.bf16.mxu0 0
      %2022 = vmatmul.mubr.bf16.gmra.mrb[0].mxu0 %v1987
      %v2023 = vpop.f32.mrb[0].mxu0
      %v2024 = vadd.f32 0.0, %v2023
      %v2025 = vpop.f32.mrb[0].mxu0
      %v2026 = vadd.f32 0.0, %v2025
      %v2027 = vpop.f32.mrb[0].mxu0
      %v2028 = vpop.f32.mrb[0].mxu0
      %2029 = vdwg.mxu0
      %2030 = vmatprep.subr.bf16.mxu0 %v1957
      %2031 = vmatpush1.bf16.msra.mxu0 %v1956
      %2032 = vmatprep.subr.bf16.mxu0 %v1965
      %2033 = vmatpush1.bf16.msra.mxu0 %v1964
      %2034 = vmatprep.subr.bf16.mxu0 0
      %2035 = vmatpush1.bf16.msra.mxu0 0
      %2036 = vmatprep.subr.bf16.mxu0 0
      %2037 = vmatpush1.bf16.msra.mxu0 0
      %2038 = vmatprep.subr.bf16.mxu0 0
      %2039 = vmatpush1.bf16.msra.mxu0 0
      %2040 = vmatprep.subr.bf16.mxu0 0
      %2041 = vmatpush1.bf16.msra.mxu0 0
      %2042 = vmatprep.subr.bf16.mxu0 0
      %2043 = vmatpush1.bf16.msra.mxu0 0
      %2044 = vmatprep.subr.bf16.mxu0 0
      %2045 = vmatpush1.bf16.msra.mxu0 0
      %2046 = vmatprep.subr.bf16.mxu0 0
      %2047 = vmatpush1.bf16.msra.mxu0 0
      %2048 = vmatprep.subr.bf16.mxu0 0
      %2049 = vmatpush1.bf16.msra.mxu0 0
      %2050 = vmatprep.subr.bf16.mxu0 0
      %2051 = vmatpush1.bf16.msra.mxu0 0
      %2052 = vmatprep.subr.bf16.mxu0 0
      %2053 = vmatpush1.bf16.msra.mxu0 0
      %2054 = vmatprep.subr.bf16.mxu0 0
      %2055 = vmatpush1.bf16.msra.mxu0 0
      %2056 = vmatprep.subr.bf16.mxu0 0
      %2057 = vmatpush1.bf16.msra.mxu0 0
      %2058 = vmatprep.subr.bf16.mxu0 0
      %2059 = vmatpush1.bf16.msra.mxu0 0
      %2060 = vmatprep.subr.bf16.mxu0 0
      %2061 = vmatpush1.bf16.msra.mxu0 0
      %2062 = vmatprep.mubr.bf16.mxu0 0
      %2063 = vmatmul.mubr.bf16.gmra.mrb[0].mxu0 %v1987
      %v2064 = vpop.f32.mrb[0].mxu0
      %v2065 = vadd.f32 0.0, %v2064
      %v2066 = vpop.f32.mrb[0].mxu0
      %v2067 = vadd.f32 0.0, %v2066
      %v2068 = vpop.f32.mrb[0].mxu0
      %v2069 = vpop.f32.mrb[0].mxu0
      %2070 = vdwg.mxu0
      %2071 = vmatprep.subr.bf16.mxu0 %v1959
      %2072 = vmatpush1.bf16.msra.mxu0 %v1958
      %2073 = vmatprep.subr.bf16.mxu0 %v1967
      %2074 = vmatpush1.bf16.msra.mxu0 %v1966
      %2075 = vmatprep.subr.bf16.mxu0 0
      %2076 = vmatpush1.bf16.msra.mxu0 0
      %2077 = vmatprep.subr.bf16.mxu0 0
      %2078 = vmatpush1.bf16.msra.mxu0 0
      %2079 = vmatprep.subr.bf16.mxu0 0
      %2080 = vmatpush1.bf16.msra.mxu0 0
      %2081 = vmatprep.subr.bf16.mxu0 0
      %2082 = vmatpush1.bf16.msra.mxu0 0
      %2083 = vmatprep.subr.bf16.mxu0 0
      %2084 = vmatpush1.bf16.msra.mxu0 0
      %2085 = vmatprep.subr.bf16.mxu0 0
      %2086 = vmatpush1.bf16.msra.mxu0 0
      %2087 = vmatprep.subr.bf16.mxu0 0
      %2088 = vmatpush1.bf16.msra.mxu0 0
      %2089 = vmatprep.subr.bf16.mxu0 0
      %2090 = vmatpush1.bf16.msra.mxu0 0
      %2091 = vmatprep.subr.bf16.mxu0 0
      %2092 = vmatpush1.bf16.msra.mxu0 0
      %2093 = vmatprep.subr.bf16.mxu0 0
      %2094 = vmatpush1.bf16.msra.mxu0 0
      %2095 = vmatprep.subr.bf16.mxu0 0
      %2096 = vmatpush1.bf16.msra.mxu0 0
      %2097 = vmatprep.subr.bf16.mxu0 0
      %2098 = vmatpush1.bf16.msra.mxu0 0
      %2099 = vmatprep.subr.bf16.mxu0 0
      %2100 = vmatpush1.bf16.msra.mxu0 0
      %2101 = vmatprep.subr.bf16.mxu0 0
      %2102 = vmatpush1.bf16.msra.mxu0 0
      %2103 = vmatprep.mubr.bf16.mxu0 0
      %2104 = vmatmul.mubr.bf16.gmra.mrb[0].mxu0 %v1987
      %v2105 = vpop.f32.mrb[0].mxu0
      %v2106 = vadd.f32 0.0, %v2105
      %v2107 = vpop.f32.mrb[0].mxu0
      %v2108 = vadd.f32 0.0, %v2107
      %v2109 = vpop.f32.mrb[0].mxu0
      %v2110 = vpop.f32.mrb[0].mxu0
      %2111 = vdwg.mxu0
      %2112 = vmatprep.subr.bf16.mxu0 %v1961
      %2113 = vmatpush1.bf16.msra.mxu0 %v1960
      %2114 = vmatprep.subr.bf16.mxu0 %v1969
      %2115 = vmatpush1.bf16.msra.mxu0 %v1968
      %2116 = vmatprep.subr.bf16.mxu0 0
      %2117 = vmatpush1.bf16.msra.mxu0 0
      %2118 = vmatprep.subr.bf16.mxu0 0
      %2119 = vmatpush1.bf16.msra.mxu0 0
      %2120 = vmatprep.subr.bf16.mxu0 0
      %2121 = vmatpush1.bf16.msra.mxu0 0
      %2122 = vmatprep.subr.bf16.mxu0 0
      %2123 = vmatpush1.bf16.msra.mxu0 0
      %2124 = vmatprep.subr.bf16.mxu0 0
      %2125 = vmatpush1.bf16.msra.mxu0 0
      %2126 = vmatprep.subr.bf16.mxu0 0
      %2127 = vmatpush1.bf16.msra.mxu0 0
      %2128 = vmatprep.subr.bf16.mxu0 0
      %2129 = vmatpush1.bf16.msra.mxu0 0
      %2130 = vmatprep.subr.bf16.mxu0 0
      %2131 = vmatpush1.bf16.msra.mxu0 0
      %2132 = vmatprep.subr.bf16.mxu0 0
      %2133 = vmatpush1.bf16.msra.mxu0 0
      %2134 = vmatprep.subr.bf16.mxu0 0
      %2135 = vmatpush1.bf16.msra.mxu0 0
      %2136 = vmatprep.subr.bf16.mxu0 0
      %2137 = vmatpush1.bf16.msra.mxu0 0
      %2138 = vmatprep.subr.bf16.mxu0 0
      %2139 = vmatpush1.bf16.msra.mxu0 0
      %2140 = vmatprep.subr.bf16.mxu0 0
      %2141 = vmatpush1.bf16.msra.mxu0 0
      %2142 = vmatprep.subr.bf16.mxu0 0
      %2143 = vmatpush1.bf16.msra.mxu0 0
      %2144 = vmatprep.mubr.bf16.mxu0 0
      %2145 = vmatmul.mubr.bf16.gmra.mrb[0].mxu0 %v1987
      %v2146 = vpop.f32.mrb[0].mxu0
      %v2147 = vadd.f32 0.0, %v2146
      %v2148 = vpop.f32.mrb[0].mxu0
      %v2149 = vadd.f32 0.0, %v2148
      %v2150 = vpop.f32.mrb[0].mxu0
      %v2151 = vpop.f32.mrb[0].mxu0
      %2152 = vdwg.mxu0
      %2153 = vrot.lane.b32.xlu0 %v449, 31
      %v2154 = vpop.permute.xlu0 %2153
      %2155 = vrot.lane.b32.xlu0 %v450, 31
      %v2156 = vpop.permute.xlu0 %2155
      %2157 = vrot.lane.b32.xlu0 %v451, 31
      %v2158 = vpop.permute.xlu0 %2157
      %2159 = vrot.lane.b32.xlu0 %v452, 31
      %v2160 = vpop.permute.xlu0 %2159
      %2161 = vrot.lane.b32.xlu0 %v453, 31
      %v2162 = vpop.permute.xlu0 %2161
      %2163 = vrot.lane.b32.xlu0 %v454, 31
      %v2164 = vpop.permute.xlu0 %2163
      %2165 = vrot.lane.b32.xlu0 %v455, 31
      %v2166 = vpop.permute.xlu0 %2165
      %2167 = vrot.lane.b32.xlu0 %v456, 31
      %v2168 = vpop.permute.xlu0 %2167
      %2169 = vrot.lane.b32.xlu0 %v457, 31
      %v2170 = vpop.permute.xlu0 %2169
      %2171 = vrot.lane.b32.xlu0 %v458, 31
      %v2172 = vpop.permute.xlu0 %2171
      %2173 = vrot.lane.b32.xlu0 %v459, 31
      %v2174 = vpop.permute.xlu0 %2173
      %2175 = vrot.lane.b32.xlu0 %v460, 31
      %v2176 = vpop.permute.xlu0 %2175
      %2177 = vrot.lane.b32.xlu0 %v461, 31
      %v2178 = vpop.permute.xlu0 %2177
      %2179 = vrot.lane.b32.xlu0 %v462, 31
      %v2180 = vpop.permute.xlu0 %2179
      %2181 = vrot.lane.b32.xlu0 %v463, 31
      %v2182 = vpop.permute.xlu0 %2181
      %2183 = vrot.lane.b32.xlu0 %v464, 31
      %v2184 = vpop.permute.xlu0 %2183
      %2185 = vrot.lane.b32.xlu0 %v465, 31
      %v2186 = vpop.permute.xlu0 %2185
      %2187 = vrot.lane.b32.xlu0 %v466, 31
      %v2188 = vpop.permute.xlu0 %2187
      %vm2189 = vcmask 252928
      %v2190 = vsel %vm2189, %v2154, %v2156
      %v2191 = vsel %vm2189, %v2156, %v2158
      %v2192 = vsel %vm2189, %v2158, %v2160
      %v2193 = vsel %vm2189, %v2160, %v2162
      %v2194 = vsel %vm2189, %v2162, %v2164
      %v2195 = vsel %vm2189, %v2164, %v2166
      %v2196 = vsel %vm2189, %v2166, %v2168
      %v2197 = vsel %vm2189, %v2168, %v2170
      %v2198 = vsel %vm2189, %v2172, %v2174
      %v2199 = vsel %vm2189, %v2174, %v2176
      %v2200 = vsel %vm2189, %v2176, %v2178
      %v2201 = vsel %vm2189, %v2178, %v2180
      %v2202 = vsel %vm2189, %v2180, %v2182
      %v2203 = vsel %vm2189, %v2182, %v2184
      %v2204 = vsel %vm2189, %v2184, %v2186
      %v2205 = vsel %vm2189, %v2186, %v2188
      %v2223 = vsel %vm558, %v348, 0
      %2225 = vmatprep.subr.bf16.mxu0 %v2191
      %2226 = vmatpush1.bf16.msra.mxu0 %v2190
      %2227 = vmatprep.subr.bf16.mxu0 %v2199
      %2228 = vmatpush1.bf16.msra.mxu0 %v2198
      %2229 = vmatprep.subr.bf16.mxu0 0
      %2230 = vmatpush1.bf16.msra.mxu0 0
      %2231 = vmatprep.subr.bf16.mxu0 0
      %2232 = vmatpush1.bf16.msra.mxu0 0
      %2233 = vmatprep.subr.bf16.mxu0 0
      %2234 = vmatpush1.bf16.msra.mxu0 0
      %2235 = vmatprep.subr.bf16.mxu0 0
      %2236 = vmatpush1.bf16.msra.mxu0 0
      %2237 = vmatprep.subr.bf16.mxu0 0
      %2238 = vmatpush1.bf16.msra.mxu0 0
      %2239 = vmatprep.subr.bf16.mxu0 0
      %2240 = vmatpush1.bf16.msra.mxu0 0
      %2241 = vmatprep.subr.bf16.mxu0 0
      %2242 = vmatpush1.bf16.msra.mxu0 0
      %2243 = vmatprep.subr.bf16.mxu0 0
      %2244 = vmatpush1.bf16.msra.mxu0 0
      %2245 = vmatprep.subr.bf16.mxu0 0
      %2246 = vmatpush1.bf16.msra.mxu0 0
      %2247 = vmatprep.subr.bf16.mxu0 0
      %2248 = vmatpush1.bf16.msra.mxu0 0
      %2249 = vmatprep.subr.bf16.mxu0 0
      %2250 = vmatpush1.bf16.msra.mxu0 0
      %2251 = vmatprep.subr.bf16.mxu0 0
      %2252 = vmatpush1.bf16.msra.mxu0 0
      %2253 = vmatprep.subr.bf16.mxu0 0
      %2254 = vmatpush1.bf16.msra.mxu0 0
      %2255 = vmatprep.subr.bf16.mxu0 0
      %2256 = vmatpush1.bf16.msra.mxu0 0
      %2257 = vmatprep.mubr.bf16.mxu0 0
      %2258 = vmatmul.mubr.bf16.gmra.mrb[0].mxu0 %v2223
      %v2259 = vpop.f32.mrb[0].mxu0
      %v2260 = vadd.f32 %v2024, %v2259
      %v2261 = vpop.f32.mrb[0].mxu0
      %v2262 = vadd.f32 %v2026, %v2261
      %v2263 = vpop.f32.mrb[0].mxu0
      %v2264 = vpop.f32.mrb[0].mxu0
      %2265 = vdwg.mxu0
      %2266 = vmatprep.subr.bf16.mxu0 %v2193
      %2267 = vmatpush1.bf16.msra.mxu0 %v2192
      %2268 = vmatprep.subr.bf16.mxu0 %v2201
      %2269 = vmatpush1.bf16.msra.mxu0 %v2200
      %2270 = vmatprep.subr.bf16.mxu0 0
      %2271 = vmatpush1.bf16.msra.mxu0 0
      %2272 = vmatprep.subr.bf16.mxu0 0
      %2273 = vmatpush1.bf16.msra.mxu0 0
      %2274 = vmatprep.subr.bf16.mxu0 0
      %2275 = vmatpush1.bf16.msra.mxu0 0
      %2276 = vmatprep.subr.bf16.mxu0 0
      %2277 = vmatpush1.bf16.msra.mxu0 0
      %2278 = vmatprep.subr.bf16.mxu0 0
      %2279 = vmatpush1.bf16.msra.mxu0 0
      %2280 = vmatprep.subr.bf16.mxu0 0
      %2281 = vmatpush1.bf16.msra.mxu0 0
      %2282 = vmatprep.subr.bf16.mxu0 0
      %2283 = vmatpush1.bf16.msra.mxu0 0
      %2284 = vmatprep.subr.bf16.mxu0 0
      %2285 = vmatpush1.bf16.msra.mxu0 0
      %2286 = vmatprep.subr.bf16.mxu0 0
      %2287 = vmatpush1.bf16.msra.mxu0 0
      %2288 = vmatprep.subr.bf16.mxu0 0
      %2289 = vmatpush1.bf16.msra.mxu0 0
      %2290 = vmatprep.subr.bf16.mxu0 0
      %2291 = vmatpush1.bf16.msra.mxu0 0
      %2292 = vmatprep.subr.bf16.mxu0 0
      %2293 = vmatpush1.bf16.msra.mxu0 0
      %2294 = vmatprep.subr.bf16.mxu0 0
      %2295 = vmatpush1.bf16.msra.mxu0 0
      %2296 = vmatprep.subr.bf16.mxu0 0
      %2297 = vmatpush1.bf16.msra.mxu0 0
      %2298 = vmatprep.mubr.bf16.mxu0 0
      %2299 = vmatmul.mubr.bf16.gmra.mrb[0].mxu0 %v2223
      %v2300 = vpop.f32.mrb[0].mxu0
      %v2301 = vadd.f32 %v2065, %v2300
      %v2302 = vpop.f32.mrb[0].mxu0
      %v2303 = vadd.f32 %v2067, %v2302
      %v2304 = vpop.f32.mrb[0].mxu0
      %v2305 = vpop.f32.mrb[0].mxu0
      %2306 = vdwg.mxu0
      %2307 = vmatprep.subr.bf16.mxu0 %v2195
      %2308 = vmatpush1.bf16.msra.mxu0 %v2194
      %2309 = vmatprep.subr.bf16.mxu0 %v2203
      %2310 = vmatpush1.bf16.msra.mxu0 %v2202
      %2311 = vmatprep.subr.bf16.mxu0 0
      %2312 = vmatpush1.bf16.msra.mxu0 0
      %2313 = vmatprep.subr.bf16.mxu0 0
      %2314 = vmatpush1.bf16.msra.mxu0 0
      %2315 = vmatprep.subr.bf16.mxu0 0
      %2316 = vmatpush1.bf16.msra.mxu0 0
      %2317 = vmatprep.subr.bf16.mxu0 0
      %2318 = vmatpush1.bf16.msra.mxu0 0
      %2319 = vmatprep.subr.bf16.mxu0 0
      %2320 = vmatpush1.bf16.msra.mxu0 0
      %2321 = vmatprep.subr.bf16.mxu0 0
      %2322 = vmatpush1.bf16.msra.mxu0 0
      %2323 = vmatprep.subr.bf16.mxu0 0
      %2324 = vmatpush1.bf16.msra.mxu0 0
      %2325 = vmatprep.subr.bf16.mxu0 0
      %2326 = vmatpush1.bf16.msra.mxu0 0
      %2327 = vmatprep.subr.bf16.mxu0 0
      %2328 = vmatpush1.bf16.msra.mxu0 0
      %2329 = vmatprep.subr.bf16.mxu0 0
      %2330 = vmatpush1.bf16.msra.mxu0 0
      %2331 = vmatprep.subr.bf16.mxu0 0
      %2332 = vmatpush1.bf16.msra.mxu0 0
      %2333 = vmatprep.subr.bf16.mxu0 0
      %2334 = vmatpush1.bf16.msra.mxu0 0
      %2335 = vmatprep.subr.bf16.mxu0 0
      %2336 = vmatpush1.bf16.msra.mxu0 0
      %2337 = vmatprep.subr.bf16.mxu0 0
      %2338 = vmatpush1.bf16.msra.mxu0 0
      %2339 = vmatprep.mubr.bf16.mxu0 0
      %2340 = vmatmul.mubr.bf16.gmra.mrb[0].mxu0 %v2223
      %v2341 = vpop.f32.mrb[0].mxu0
      %v2342 = vadd.f32 %v2106, %v2341
      %v2343 = vpop.f32.mrb[0].mxu0
      %v2344 = vadd.f32 %v2108, %v2343
      %v2345 = vpop.f32.mrb[0].mxu0
      %v2346 = vpop.f32.mrb[0].mxu0
      %2347 = vdwg.mxu0
      %2348 = vmatprep.subr.bf16.mxu0 %v2197
      %2349 = vmatpush1.bf16.msra.mxu0 %v2196
      %2350 = vmatprep.subr.bf16.mxu0 %v2205
      %2351 = vmatpush1.bf16.msra.mxu0 %v2204
      %2352 = vmatprep.subr.bf16.mxu0 0
      %2353 = vmatpush1.bf16.msra.mxu0 0
      %2354 = vmatprep.subr.bf16.mxu0 0
      %2355 = vmatpush1.bf16.msra.mxu0 0
      %2356 = vmatprep.subr.bf16.mxu0 0
      %2357 = vmatpush1.bf16.msra.mxu0 0
      %2358 = vmatprep.subr.bf16.mxu0 0
      %2359 = vmatpush1.bf16.msra.mxu0 0
      %2360 = vmatprep.subr.bf16.mxu0 0
      %2361 = vmatpush1.bf16.msra.mxu0 0
      %2362 = vmatprep.subr.bf16.mxu0 0
      %2363 = vmatpush1.bf16.msra.mxu0 0
      %2364 = vmatprep.subr.bf16.mxu0 0
      %2365 = vmatpush1.bf16.msra.mxu0 0
      %2366 = vmatprep.subr.bf16.mxu0 0
      %2367 = vmatpush1.bf16.msra.mxu0 0
      %2368 = vmatprep.subr.bf16.mxu0 0
      %2369 = vmatpush1.bf16.msra.mxu0 0
      %2370 = vmatprep.subr.bf16.mxu0 0
      %2371 = vmatpush1.bf16.msra.mxu0 0
      %2372 = vmatprep.subr.bf16.mxu0 0
      %2373 = vmatpush1.bf16.msra.mxu0 0
      %2374 = vmatprep.subr.bf16.mxu0 0
      %2375 = vmatpush1.bf16.msra.mxu0 0
      %2376 = vmatprep.subr.bf16.mxu0 0
      %2377 = vmatpush1.bf16.msra.mxu0 0
      %2378 = vmatprep.subr.bf16.mxu0 0
      %2379 = vmatpush1.bf16.msra.mxu0 0
      %2380 = vmatprep.mubr.bf16.mxu0 0
      %2381 = vmatmul.mubr.bf16.gmra.mrb[0].mxu0 %v2223
      %v2382 = vpop.f32.mrb[0].mxu0
      %v2383 = vadd.f32 %v2147, %v2382
      %v2384 = vpop.f32.mrb[0].mxu0
      %v2385 = vadd.f32 %v2149, %v2384
      %v2386 = vpop.f32.mrb[0].mxu0
      %v2387 = vpop.f32.mrb[0].mxu0
      %2388 = vdwg.mxu0
      %2389 = vrot.lane.b32.xlu0 %v962, 95
      %v2390 = vpop.permute.xlu0 %2389
      %2391 = vrot.lane.b32.xlu0 %v963, 95
      %v2392 = vpop.permute.xlu0 %2391
      %2393 = vrot.lane.b32.xlu0 %v964, 95
      %v2394 = vpop.permute.xlu0 %2393
      %2395 = vrot.lane.b32.xlu0 %v965, 95
      %v2396 = vpop.permute.xlu0 %2395
      %2397 = vrot.lane.b32.xlu0 %v966, 95
      %v2398 = vpop.permute.xlu0 %2397
      %2399 = vrot.lane.b32.xlu0 %v967, 95
      %v2400 = vpop.permute.xlu0 %2399
      %2401 = vrot.lane.b32.xlu0 %v968, 95
      %v2402 = vpop.permute.xlu0 %2401
      %2403 = vrot.lane.b32.xlu0 %v969, 95
      %v2404 = vpop.permute.xlu0 %2403
      %2405 = vrot.lane.b32.xlu0 %v970, 95
      %v2406 = vpop.permute.xlu0 %2405
      %2407 = vrot.lane.b32.xlu0 %v971, 95
      %v2408 = vpop.permute.xlu0 %2407
      %2409 = vrot.lane.b32.xlu0 %v972, 95
      %v2410 = vpop.permute.xlu0 %2409
      %2411 = vrot.lane.b32.xlu0 %v973, 95
      %v2412 = vpop.permute.xlu0 %2411
      %2413 = vrot.lane.b32.xlu0 %v974, 95
      %v2414 = vpop.permute.xlu0 %2413
      %2415 = vrot.lane.b32.xlu0 %v975, 95
      %v2416 = vpop.permute.xlu0 %2415
      %2417 = vrot.lane.b32.xlu0 %v976, 95
      %v2418 = vpop.permute.xlu0 %2417
      %2419 = vrot.lane.b32.xlu0 %v977, 95
      %v2420 = vpop.permute.xlu0 %2419
      %2421 = vrot.lane.b32.xlu0 %v978, 95
      %v2422 = vpop.permute.xlu0 %2421
      %2423 = vrot.lane.b32.xlu0 %v979, 95
      %v2424 = vpop.permute.xlu0 %2423
      %vm2425 = vcmask 777216
      %v2426 = vsel %vm2425, %v2390, %v2392
      %v2427 = vsel %vm2425, %v2392, %v2394
      %v2428 = vsel %vm2425, %v2394, %v2396
      %v2429 = vsel %vm2425, %v2396, %v2398
      %v2430 = vsel %vm2425, %v2398, %v2400
      %v2431 = vsel %vm2425, %v2400, %v2402
      %v2432 = vsel %vm2425, %v2402, %v2404
      %v2433 = vsel %vm2425, %v2404, %v2406
      %v2434 = vsel %vm2425, %v2408, %v2410
      %v2435 = vsel %vm2425, %v2410, %v2412
      %v2436 = vsel %vm2425, %v2412, %v2414
      %v2437 = vsel %vm2425, %v2414, %v2416
      %v2438 = vsel %vm2425, %v2416, %v2418
      %v2439 = vsel %vm2425, %v2418, %v2420
      %v2440 = vsel %vm2425, %v2420, %v2422
      %v2441 = vsel %vm2425, %v2422, %v2424
      %v2459 = vsel %vm558, %v351, 0
      %2461 = vmatprep.subr.bf16.mxu0 %v2427
      %2462 = vmatpush1.bf16.msra.mxu0 %v2426
      %2463 = vmatprep.subr.bf16.mxu0 %v2435
      %2464 = vmatpush1.bf16.msra.mxu0 %v2434
      %2465 = vmatprep.subr.bf16.mxu0 0
      %2466 = vmatpush1.bf16.msra.mxu0 0
      %2467 = vmatprep.subr.bf16.mxu0 0
      %2468 = vmatpush1.bf16.msra.mxu0 0
      %2469 = vmatprep.subr.bf16.mxu0 0
      %2470 = vmatpush1.bf16.msra.mxu0 0
      %2471 = vmatprep.subr.bf16.mxu0 0
      %2472 = vmatpush1.bf16.msra.mxu0 0
      %2473 = vmatprep.subr.bf16.mxu0 0
      %2474 = vmatpush1.bf16.msra.mxu0 0
      %2475 = vmatprep.subr.bf16.mxu0 0
      %2476 = vmatpush1.bf16.msra.mxu0 0
      %2477 = vmatprep.subr.bf16.mxu0 0
      %2478 = vmatpush1.bf16.msra.mxu0 0
      %2479 = vmatprep.subr.bf16.mxu0 0
      %2480 = vmatpush1.bf16.msra.mxu0 0
      %2481 = vmatprep.subr.bf16.mxu0 0
      %2482 = vmatpush1.bf16.msra.mxu0 0
      %2483 = vmatprep.subr.bf16.mxu0 0
      %2484 = vmatpush1.bf16.msra.mxu0 0
      %2485 = vmatprep.subr.bf16.mxu0 0
      %2486 = vmatpush1.bf16.msra.mxu0 0
      %2487 = vmatprep.subr.bf16.mxu0 0
      %2488 = vmatpush1.bf16.msra.mxu0 0
      %2489 = vmatprep.subr.bf16.mxu0 0
      %2490 = vmatpush1.bf16.msra.mxu0 0
      %2491 = vmatprep.subr.bf16.mxu0 0
      %2492 = vmatpush1.bf16.msra.mxu0 0
      %2493 = vmatprep.mubr.bf16.mxu0 0
      %2494 = vmatmul.mubr.bf16.gmra.mrb[0].mxu0 %v2459
      %v2495 = vpop.f32.mrb[0].mxu0
      %v2496 = vadd.f32 0.0, %v2495
      %v2497 = vpop.f32.mrb[0].mxu0
      %v2498 = vadd.f32 0.0, %v2497
      %v2499 = vpop.f32.mrb[0].mxu0
      %v2500 = vpop.f32.mrb[0].mxu0
      %2501 = vdwg.mxu0
      %2502 = vmatprep.subr.bf16.mxu0 %v2429
      %2503 = vmatpush1.bf16.msra.mxu0 %v2428
      %2504 = vmatprep.subr.bf16.mxu0 %v2437
      %2505 = vmatpush1.bf16.msra.mxu0 %v2436
      %2506 = vmatprep.subr.bf16.mxu0 0
      %2507 = vmatpush1.bf16.msra.mxu0 0
      %2508 = vmatprep.subr.bf16.mxu0 0
      %2509 = vmatpush1.bf16.msra.mxu0 0
      %2510 = vmatprep.subr.bf16.mxu0 0
      %2511 = vmatpush1.bf16.msra.mxu0 0
      %2512 = vmatprep.subr.bf16.mxu0 0
      %2513 = vmatpush1.bf16.msra.mxu0 0
      %2514 = vmatprep.subr.bf16.mxu0 0
      %2515 = vmatpush1.bf16.msra.mxu0 0
      %2516 = vmatprep.subr.bf16.mxu0 0
      %2517 = vmatpush1.bf16.msra.mxu0 0
      %2518 = vmatprep.subr.bf16.mxu0 0
      %2519 = vmatpush1.bf16.msra.mxu0 0
      %2520 = vmatprep.subr.bf16.mxu0 0
      %2521 = vmatpush1.bf16.msra.mxu0 0
      %2522 = vmatprep.subr.bf16.mxu0 0
      %2523 = vmatpush1.bf16.msra.mxu0 0
      %2524 = vmatprep.subr.bf16.mxu0 0
      %2525 = vmatpush1.bf16.msra.mxu0 0
      %2526 = vmatprep.subr.bf16.mxu0 0
      %2527 = vmatpush1.bf16.msra.mxu0 0
      %2528 = vmatprep.subr.bf16.mxu0 0
      %2529 = vmatpush1.bf16.msra.mxu0 0
      %2530 = vmatprep.subr.bf16.mxu0 0
      %2531 = vmatpush1.bf16.msra.mxu0 0
      %2532 = vmatprep.subr.bf16.mxu0 0
      %2533 = vmatpush1.bf16.msra.mxu0 0
      %2534 = vmatprep.mubr.bf16.mxu0 0
      %2535 = vmatmul.mubr.bf16.gmra.mrb[0].mxu0 %v2459
      %v2536 = vpop.f32.mrb[0].mxu0
      %v2537 = vadd.f32 0.0, %v2536
      %v2538 = vpop.f32.mrb[0].mxu0
      %v2539 = vadd.f32 0.0, %v2538
      %v2540 = vpop.f32.mrb[0].mxu0
      %v2541 = vpop.f32.mrb[0].mxu0
      %2542 = vdwg.mxu0
      %2543 = vmatprep.subr.bf16.mxu0 %v2431
      %2544 = vmatpush1.bf16.msra.mxu0 %v2430
      %2545 = vmatprep.subr.bf16.mxu0 %v2439
      %2546 = vmatpush1.bf16.msra.mxu0 %v2438
      %2547 = vmatprep.subr.bf16.mxu0 0
      %2548 = vmatpush1.bf16.msra.mxu0 0
      %2549 = vmatprep.subr.bf16.mxu0 0
      %2550 = vmatpush1.bf16.msra.mxu0 0
      %2551 = vmatprep.subr.bf16.mxu0 0
      %2552 = vmatpush1.bf16.msra.mxu0 0
      %2553 = vmatprep.subr.bf16.mxu0 0
      %2554 = vmatpush1.bf16.msra.mxu0 0
      %2555 = vmatprep.subr.bf16.mxu0 0
      %2556 = vmatpush1.bf16.msra.mxu0 0
      %2557 = vmatprep.subr.bf16.mxu0 0
      %2558 = vmatpush1.bf16.msra.mxu0 0
      %2559 = vmatprep.subr.bf16.mxu0 0
      %2560 = vmatpush1.bf16.msra.mxu0 0
      %2561 = vmatprep.subr.bf16.mxu0 0
      %2562 = vmatpush1.bf16.msra.mxu0 0
      %2563 = vmatprep.subr.bf16.mxu0 0
      %2564 = vmatpush1.bf16.msra.mxu0 0
      %2565 = vmatprep.subr.bf16.mxu0 0
      %2566 = vmatpush1.bf16.msra.mxu0 0
      %2567 = vmatprep.subr.bf16.mxu0 0
      %2568 = vmatpush1.bf16.msra.mxu0 0
      %2569 = vmatprep.subr.bf16.mxu0 0
      %2570 = vmatpush1.bf16.msra.mxu0 0
      %2571 = vmatprep.subr.bf16.mxu0 0
      %2572 = vmatpush1.bf16.msra.mxu0 0
      %2573 = vmatprep.subr.bf16.mxu0 0
      %2574 = vmatpush1.bf16.msra.mxu0 0
      %2575 = vmatprep.mubr.bf16.mxu0 0
      %2576 = vmatmul.mubr.bf16.gmra.mrb[0].mxu0 %v2459
      %v2577 = vpop.f32.mrb[0].mxu0
      %v2578 = vadd.f32 0.0, %v2577
      %v2579 = vpop.f32.mrb[0].mxu0
      %v2580 = vadd.f32 0.0, %v2579
      %v2581 = vpop.f32.mrb[0].mxu0
      %v2582 = vpop.f32.mrb[0].mxu0
      %2583 = vdwg.mxu0
      %2584 = vmatprep.subr.bf16.mxu0 %v2433
      %2585 = vmatpush1.bf16.msra.mxu0 %v2432
      %2586 = vmatprep.subr.bf16.mxu0 %v2441
      %2587 = vmatpush1.bf16.msra.mxu0 %v2440
      %2588 = vmatprep.subr.bf16.mxu0 0
      %2589 = vmatpush1.bf16.msra.mxu0 0
      %2590 = vmatprep.subr.bf16.mxu0 0
      %2591 = vmatpush1.bf16.msra.mxu0 0
      %2592 = vmatprep.subr.bf16.mxu0 0
      %2593 = vmatpush1.bf16.msra.mxu0 0
      %2594 = vmatprep.subr.bf16.mxu0 0
      %2595 = vmatpush1.bf16.msra.mxu0 0
      %2596 = vmatprep.subr.bf16.mxu0 0
      %2597 = vmatpush1.bf16.msra.mxu0 0
      %2598 = vmatprep.subr.bf16.mxu0 0
      %2599 = vmatpush1.bf16.msra.mxu0 0
      %2600 = vmatprep.subr.bf16.mxu0 0
      %2601 = vmatpush1.bf16.msra.mxu0 0
      %2602 = vmatprep.subr.bf16.mxu0 0
      %2603 = vmatpush1.bf16.msra.mxu0 0
      %2604 = vmatprep.subr.bf16.mxu0 0
      %2605 = vmatpush1.bf16.msra.mxu0 0
      %2606 = vmatprep.subr.bf16.mxu0 0
      %2607 = vmatpush1.bf16.msra.mxu0 0
      %2608 = vmatprep.subr.bf16.mxu0 0
      %2609 = vmatpush1.bf16.msra.mxu0 0
      %2610 = vmatprep.subr.bf16.mxu0 0
      %2611 = vmatpush1.bf16.msra.mxu0 0
      %2612 = vmatprep.subr.bf16.mxu0 0
      %2613 = vmatpush1.bf16.msra.mxu0 0
      %2614 = vmatprep.subr.bf16.mxu0 0
      %2615 = vmatpush1.bf16.msra.mxu0 0
      %2616 = vmatprep.mubr.bf16.mxu0 0
      %2617 = vmatmul.mubr.bf16.gmra.mrb[0].mxu0 %v2459
      %v2618 = vpop.f32.mrb[0].mxu0
      %v2619 = vadd.f32 0.0, %v2618
      %v2620 = vpop.f32.mrb[0].mxu0
      %v2621 = vadd.f32 0.0, %v2620
      %v2622 = vpop.f32.mrb[0].mxu0
      %v2623 = vpop.f32.mrb[0].mxu0
      %2624 = vdwg.mxu0
      %v2625 = vadd.f32 %v2260, %v2496
      %v2626 = vadd.f32 %v2262, %v2498
      %v2627 = vadd.f32 %v2301, %v2537
      %v2628 = vadd.f32 %v2303, %v2539
      %v2629 = vadd.f32 %v2342, %v2578
      %v2630 = vadd.f32 %v2344, %v2580
      %v2631 = vadd.f32 %v2383, %v2619
      %v2632 = vadd.f32 %v2385, %v2621
      %v2633 = vmul.f32 %v2625, %v323
      %v2634 = vmul.f32 %v2626, %v324
      %v2635 = vmul.f32 %v2627, %v325
      %v2636 = vmul.f32 %v2628, %v326
      %v2637 = vmul.f32 %v2629, %v327
      %v2638 = vmul.f32 %v2630, %v328
      %v2639 = vmul.f32 %v2631, %v329
      %v2640 = vmul.f32 %v2632, %v330
      %v2641 = vadd.f32 %v1905, %v2633
      %v2642 = vadd.f32 %v1906, %v2634
      %v2643 = vadd.f32 %v1907, %v2635
      %v2644 = vadd.f32 %v1908, %v2636
      %v2645 = vadd.f32 %v1909, %v2637
      %v2646 = vadd.f32 %v1910, %v2638
      %v2647 = vadd.f32 %v1911, %v2639
      %v2648 = vadd.f32 %v1912, %v2640
      %2650 = vset.pattern.permute.xlu0 0
      %2651 = vperm.xlu0 %2650, %v352
      %v2652 = vpop.permute.xlu0 %2651
      %v2654 = vadd.f32 %v2641, %v2652
      %v2655 = vadd.f32 %v2642, %v2652
      %v2656 = vadd.f32 %v2643, %v2652
      %v2657 = vadd.f32 %v2644, %v2652
      %v2658 = vadd.f32 %v2645, %v2652
      %v2659 = vadd.f32 %v2646, %v2652
      %v2660 = vadd.f32 %v2647, %v2652
      %v2661 = vadd.f32 %v2648, %v2652
      %v2670 = vcombine.low %v2654, %v2655
      %v2671 = vcombine.low %v2656, %v2657
      %v2672 = vcombine.low %v2658, %v2659
      %v2673 = vcombine.low %v2660, %v2661
      %2678 = vst [vmem:[%s170] sm:$0xff] %v2670
      %2679 = vst [vmem:[%s170 + $0x8] sm:$0xff] %v2671
      %2680 = vst [vmem:[%s170 + $0x10] sm:$0xff] %v2672
      %2681 = vst [vmem:[%s170 + $0x18] sm:$0xff] %v2673
      %p2682 = scmp.lt.s32.totalorder %s14, 1
      %s2683 = scalar_select %p2682, %s14, 1
      %s2684 = smul.addr %s2683, 8
      %s2685 = smul.addr %s2684, 4
      %s2686 = scalar_lea.vmem %s3, %s2685
      // Predicated region
      $region33: #{edsr_forward.5} parent=31 // pred_check
        %p2687 = pneg %p100
      $region34: #{edsr_forward.5} parent=31 // pred_check_branch
        %2689 = sbr.rel (%p2687) target = $region36
      $region35: #{edsr_forward.5} parent=31 // pred_region
        _
      $region36: #{edsr_forward.5} parent=31 // pred_fallthru
        _
    $region32: #{edsr_forward.5} parent=5 // pred_fallthru
      _
    %p2690 = scmp.le.s32.totalorder 2, %s9
    // Predicated region
    $region37: #{edsr_forward.5} parent=5 // pred_check
      %p2691 = pneg %p2690
    $region38: #{edsr_forward.5} parent=5 // pred_check_branch
      %2693 = sbr.rel (%p2691) target = $region40
    $region39: #{edsr_forward.5} parent=5 // pred_region
      %s2694 = ssub.s32 %s9, 2
      // Predicated region
      $region41: #{edsr_forward.5} parent=39 // pred_check
        %p2695 = pneg %p106
      $region42: #{edsr_forward.5} parent=39 // pred_check_branch
        %2697 = sbr.rel (%p2695) target = $region44
      $region43: #{edsr_forward.5} parent=39 // pred_region
        %p2698 = scmp.lt.s32.totalorder %s15, 1
        %s2699 = scalar_select %p2698, %s15, 1
        %s2700 = smul.addr %s2699, 8
        %s2701 = smul.addr %s2700, 4
        %s2702 = scalar_lea.vmem %s3, %s2701
      $region44: #{edsr_forward.5} parent=39 // pred_fallthru
        _
    $region40: #{edsr_forward.5} parent=5 // pred_fallthru
      _
  $region6: #{edsr_forward.5} parent=0 // loop_footer
    %s13 = sadd.s32 1, %s9
  $region7: #{edsr_forward.5} parent=0 // loop_footer_branch
    %8 = sbr.rel target = $region3
  $region8: #{edsr_forward.5} parent=0 // loop_exit
    _

</llo_original>
